<compile_context>
chip_gen: v6e
topology: v6e:2x2x1
jax: 0.10.0
libtpu: 0.0.40
codegen_flags: <defaults>
</compile_context>

<pallas_src>
import jax
import jax.numpy as jnp
from jax.experimental import pallas as pl
from jax.experimental.pallas import tpu as pltpu

EPS = 1e-5  # PyTorch BatchNorm2d default eps


# ----------------------------- Pallas kernels ------------------------------

def _bn_relu_kernel(p_ref, w_ref, gb_ref, o_ref):
    """Batched matmul (one matmul per phase / kernel tap) + train-mode
    BatchNorm folded into one FMA + ReLU.

    p_ref : (P, M, K)  bf16 patches
    w_ref : (P, K, C)  bf16 weights (C padded to a multiple of 128)
    gb_ref: (2, C)     f32  [gamma; beta]
    o_ref : (P, M, C)  f32
    """
    y = jnp.einsum("pmk,pkc->pmc", p_ref[...], w_ref[...],
                   preferred_element_type=jnp.float32)
    cnt = y.shape[0] * y.shape[1]
    inv = 1.0 / cnt
    # One-pass stats: sum and sum-of-squares (mean/var per output channel).
    s = jnp.sum(jnp.sum(y, axis=1, keepdims=True), axis=0, keepdims=True)
    ss = jnp.sum(jnp.sum(y * y, axis=1, keepdims=True), axis=0, keepdims=True)
    mean = s * inv
    var = jnp.maximum(ss * inv - mean * mean, 0.0)
    gb = gb_ref[...]
    gamma = gb[0][None, None, :]
    beta = gb[1][None, None, :]
    scale = gamma * jax.lax.rsqrt(var + EPS)
    shift = beta - scale * mean
    o_ref[...] = jnp.maximum(y * scale + shift, 0.0)


def _tanh_kernel(p_ref, w_ref, b_ref, o_ref):
    """Per-phase matmul + bias + tanh (no BN, phases independent)."""
    y = jnp.dot(p_ref[0], w_ref[0], preferred_element_type=jnp.float32)
    o_ref[0] = jnp.tanh(y + b_ref[...])


def _fused_bn_relu(patches, weights, gb):
    P, M, K = patches.shape
    C = weights.shape[2]
    return pl.pallas_call(
        _bn_relu_kernel,
        out_shape=jax.ShapeDtypeStruct((P, M, C), jnp.float32),
        grid=(1,),
        in_specs=[
            pl.BlockSpec((P, M, K), lambda i: (0, 0, 0)),
            pl.BlockSpec((P, K, C), lambda i: (0, 0, 0)),
            pl.BlockSpec((2, C), lambda i: (0, 0)),
        ],
        out_specs=pl.BlockSpec((P, M, C), lambda i: (0, 0, 0)),
        compiler_params=pltpu.CompilerParams(
            dimension_semantics=("arbitrary",)),
    )(patches, weights, gb)
    # TODO(synk): at PyTorch-default d=128 / larger batch, add M-tiling with a
    # two-pass BN (accumulate sum/sumsq, then normalize) instead of the
    # whole-layer single block.


def _fused_tanh(patches, weights, bias):
    P, M, K = patches.shape
    C = weights.shape[2]
    return pl.pallas_call(
        _tanh_kernel,
        out_shape=jax.ShapeDtypeStruct((P, M, C), jnp.float32),
        grid=(P,),
        in_specs=[
            pl.BlockSpec((1, M, K), lambda p: (p, 0, 0)),
            pl.BlockSpec((1, K, C), lambda p: (p, 0, 0)),
            pl.BlockSpec((1, C), lambda p: (0, 0)),
        ],
        out_specs=pl.BlockSpec((1, M, C), lambda p: (p, 0, 0)),
        compiler_params=pltpu.CompilerParams(
            dimension_semantics=("parallel",)),
    )(patches, weights, bias)


# ------------------------------- glue (JAX) --------------------------------

def _round_up(n, m):
    return ((n + m - 1) // m) * m


def _pad_last(a, target):
    pad = target - a.shape[-1]
    if pad == 0:
        return a
    return jnp.pad(a, [(0, 0)] * (a.ndim - 1) + [(0, pad)])


# For ConvTranspose2d(k=4, stride=2, pad=1): output (2i+ph, 2j+pw) depends
# only on 2x2 kernel taps per phase.  (kh, padded_row_start) per row-phase:
_ROW_TAPS = {0: [(1, 1), (3, 0)], 1: [(0, 2), (2, 1)]}


def _phase_patches(x, w):
    """Sub-pixel decomposition of ConvTranspose2d(k=4, s=2, p=1).

    x: (N, H, W, Cin) NHWC activation; w: (Cin, Cout, 4, 4) PyTorch weight.
    Returns patches (4, N*H*W, 4*Cin) and weights (4, 4*Cin, Cout); phase
    p = ph*2 + pw writes output pixels (2i+ph, 2j+pw).
    """
    N, H, W, Cin = x.shape
    Cout = w.shape[1]
    xp = jnp.pad(x, ((0, 0), (1, 1), (1, 1), (0, 0)))
    patches, weights = [], []
    for ph in range(2):
        for pw in range(2):
            slabs, wslabs = [], []
            for kh, oh in _ROW_TAPS[ph]:
                for kw, ow in _ROW_TAPS[pw]:
                    slabs.append(xp[:, oh:oh + H, ow:ow + W, :])
                    wslabs.append(w[:, :, kh, kw])
            pat = jnp.stack(slabs, axis=3)            # (N, H, W, 4, Cin)
            patches.append(pat.reshape(N * H * W, 4 * Cin))
            weights.append(jnp.stack(wslabs, axis=0).reshape(4 * Cin, Cout))
    return jnp.stack(patches), jnp.stack(weights)


def _assemble_phases(y, N, H, W, cout):
    """(4, N*H*W, Cpad) phase outputs -> (N, 2H, 2W, cout) NHWC."""
    y = y[..., :cout].reshape(2, 2, N, H, W, cout)
    return jnp.transpose(y, (2, 3, 0, 4, 1, 5)).reshape(N, 2 * H, 2 * W, cout)


def dc_generator_forward(x_nchw, params):
    N = x_nchw.shape[0]
    z = x_nchw.reshape(N, -1).astype(jnp.float32)          # (N, 100)

    # ---- deconv1 (k=4, s=1, p=0 on 1x1 input) + BN + ReLU --------------
    # Pure matmul per kernel tap: y[kh,kw] = z @ W[:, :, kh, kw].
    w, _b, g, be = params["deconv1"]
    cin, cout = w.shape[0], w.shape[1]
    cpad = _round_up(cout, 128)
    wt = jnp.transpose(w, (2, 3, 0, 1)).reshape(16, cin, cout)
    wt = _pad_last(wt, cpad).astype(jnp.bfloat16)
    pats = jnp.broadcast_to(z[None], (16, N, cin)).astype(jnp.bfloat16)
    gb = jnp.stack([_pad_last(g, cpad), _pad_last(be, cpad)])
    y = _fused_bn_relu(pats, wt, gb)                        # (16, N, cpad)
    x = jnp.transpose(y[..., :cout].reshape(4, 4, N, cout), (2, 0, 1, 3))

    # ---- deconv2..4 (k=4, s=2, p=1) + BN + ReLU (phase decomposition) --
    for i in range(2, 5):
        w, _b, g, be = params[f"deconv{i}"]
        cout = w.shape[1]
        cpad = _round_up(cout, 128)
        Nn, H, W = x.shape[0], x.shape[1], x.shape[2]
        pats, wts = _phase_patches(x, w)
        pats = pats.astype(jnp.bfloat16)
        wts = _pad_last(wts, cpad).astype(jnp.bfloat16)
        gb = jnp.stack([_pad_last(g, cpad), _pad_last(be, cpad)])
        y = _fused_bn_relu(pats, wts, gb)                   # (4, N*H*W, cpad)
        x = _assemble_phases(y, Nn, H, W, cout)

    # ---- deconv5 (k=4, s=2, p=1) + tanh (no BN) ------------------------
    w, b = params["deconv5"]
    cout = w.shape[1]
    cpad = _round_up(cout, 128)
    Nn, H, W = x.shape[0], x.shape[1], x.shape[2]
    pats, wts = _phase_patches(x, w)
    pats = pats.astype(jnp.bfloat16)
    wts = _pad_last(wts, cpad).astype(jnp.bfloat16)
    bp = _pad_last(b.reshape(1, -1), cpad)
    y = _fused_tanh(pats, wts, bp)                          # (4, N*H*W, cpad)
    x = _assemble_phases(y, Nn, H, W, cout)
    return jnp.transpose(x, (0, 3, 1, 2))                   # -> NCHW
    # TODO(synk): fuse all 5 layers into one pallas_call (activations resident
    # in VMEM scratch) to remove per-layer launch/HBM round-trips at toy sizes.


# ------------------------- pure-JAX reference (f32) ------------------------

def _ref_deconv(x, w, b, stride, pad):
    k = w.shape[2]
    w_hwio = jnp.transpose(jnp.flip(w, axis=(2, 3)), (2, 3, 0, 1))
    y = jax.lax.conv_general_dilated(
        x, w_hwio, window_strides=(1, 1),
        padding=[(k - 1 - pad, k - 1 - pad)] * 2,
        lhs_dilation=(stride, stride),
        dimension_numbers=("NHWC", "HWIO", "NHWC"))
    return y + b.reshape(1, 1, 1, -1)


def _reference_forward(x_nchw, params):
    x = jnp.transpose(x_nchw, (0, 2, 3, 1)).astype(jnp.float32)
    for i in range(1, 5):
        w, b, g, be = params[f"deconv{i}"]
        stride, pad = (1, 0) if i == 1 else (2, 1)
        y = _ref_deconv(x, w, b, stride, pad)
        mean = jnp.mean(y, axis=(0, 1, 2), keepdims=True)
        var = jnp.mean((y - mean) ** 2, axis=(0, 1, 2), keepdims=True)
        x = jnp.maximum(g * (y - mean) * jax.lax.rsqrt(var + EPS) + be, 0.0)
    w, b = params["deconv5"]
    y = _ref_deconv(x, w, b, 2, 1)
    return jnp.transpose(jnp.tanh(y), (0, 3, 1, 2))


# --------------------------------- params ----------------------------------

def init_params(key, d=16):
    """Deterministic init matching normal_init(mean=0, std=0.02):
    conv weights ~ N(0, 0.02), biases zero; BN gamma=1, beta=0."""
    chans = [(100, d * 8), (d * 8, d * 4), (d * 4, d * 2), (d * 2, d), (d, 1)]
    keys = jax.random.split(key, len(chans))
    params = {}
    for i, ((cin, cout), k) in enumerate(zip(chans, keys), start=1):
        w = 0.02 * jax.random.normal(k, (cin, cout, 4, 4), jnp.float32)
        b = jnp.zeros((cout,), jnp.float32)
        if i < 5:
            params[f"deconv{i}"] = (
                w, b, jnp.ones((cout,), jnp.float32),
                jnp.zeros((cout,), jnp.float32))
        else:
            params[f"deconv{i}"] = (w, b)
    return params
    # TODO(synk): BatchNorm running-mean/var buffer updates (training-time
    # side effect) are not materialized; forward output does not depend on them.


if __name__ == "__main__":
    root = jax.random.PRNGKey(0)
    k_params, k_input = jax.random.split(root)
    d = 16                                   # small d (PyTorch default is 128)
    params = init_params(k_params, d=d)
    z = jax.random.normal(k_input, (2, 100, 1, 1), jnp.float32)  # NCHW latent

    out = jax.block_until_ready(jax.jit(dc_generator_forward)(z, params))
    assert out.shape == (2, 1, 64, 64), out.shape
    assert bool(jnp.all(jnp.isfinite(out)))

    ref = jax.block_until_ready(jax.jit(_reference_forward)(z, params))
    err = float(jnp.max(jnp.abs(out - ref)))
    assert err < 0.1, f"max |kernel - reference| = {err}"
    print("KERNEL_OK")
</pallas_src>

<mosaic_0001>
module attributes {stable_mosaic.version = 11 : i64} {
  func.func @_bn_relu_kernel(%arg0: i32, %arg1: memref<16x2x100xbf16, #tpu.memory_space<vmem>>, %arg2: memref<16x100x128xbf16, #tpu.memory_space<vmem>>, %arg3: memref<2x128xf32, #tpu.memory_space<vmem>>, %arg4: memref<16x2x128xf32, #tpu.memory_space<vmem>>) attributes {dimension_semantics = [#tpu.dimension_semantics<arbitrary>], iteration_bounds = array<i64: 1>, scalar_prefetch = 0 : i64, scratch_operands = 0 : i64, tpu.core_type = #tpu.core_type<tc>, window_params = [{pipeline_mode = #tpu.pipeline_mode<synchronous>, transform_indices = @transform_0, window_bounds = array<i64: 16, 2, 100>}, {pipeline_mode = #tpu.pipeline_mode<synchronous>, transform_indices = @transform_1, window_bounds = array<i64: 16, 100, 128>}, {pipeline_mode = #tpu.pipeline_mode<synchronous>, transform_indices = @transform_2, window_bounds = array<i64: 2, 128>}, {pipeline_mode = #tpu.pipeline_mode<synchronous>, transform_indices = @transform_3, window_bounds = array<i64: 16, 2, 128>}]} {
    %c0 = arith.constant 0 : index
    %c0_0 = arith.constant 0 : index
    %c0_1 = arith.constant 0 : index
    %0 = vector.load %arg1[%c0, %c0_0, %c0_1] : memref<16x2x100xbf16, #tpu.memory_space<vmem>>, vector<16x2x100xbf16>
    %c0_2 = arith.constant 0 : index
    %c0_3 = arith.constant 0 : index
    %c0_4 = arith.constant 0 : index
    %1 = vector.load %arg2[%c0_2, %c0_3, %c0_4] : memref<16x100x128xbf16, #tpu.memory_space<vmem>>, vector<16x100x128xbf16>
    "tpu.trace_start"() <{level = 10 : i32, message = "pmk,pkc->pmc"}> : () -> ()
    %cst = arith.constant dense<0.000000e+00> : vector<16x2x128xf32>
    %2 = tpu.matmul %0, %1, %cst {dimension_numbers = #tpu.dot_dimension_numbers<[2], [1], [1], [2], [0, 0, 0, 1, 1, 2], [0], [0]>} : vector<16x2x100xbf16>, vector<16x100x128xbf16>, vector<16x2x128xf32> -> vector<16x2x128xf32>
    "tpu.trace_stop"() : () -> ()
    %cst_5 = arith.constant dense<0.000000e+00> : vector<16x128xf32>
    %3 = vector.multi_reduction <add>, %2, %cst_5 [1] : vector<16x2x128xf32> to vector<16x128xf32>
    %4 = vector.shape_cast %3 : vector<16x128xf32> to vector<16x1x128xf32>
    %cst_6 = arith.constant dense<0.000000e+00> : vector<1x128xf32>
    %5 = vector.multi_reduction <add>, %4, %cst_6 [0] : vector<16x1x128xf32> to vector<1x128xf32>
    %6 = vector.shape_cast %5 : vector<1x128xf32> to vector<1x1x128xf32>
    %7 = arith.mulf %2, %2 : vector<16x2x128xf32>
    %cst_7 = arith.constant dense<0.000000e+00> : vector<16x128xf32>
    %8 = vector.multi_reduction <add>, %7, %cst_7 [1] : vector<16x2x128xf32> to vector<16x128xf32>
    %9 = vector.shape_cast %8 : vector<16x128xf32> to vector<16x1x128xf32>
    %cst_8 = arith.constant dense<0.000000e+00> : vector<1x128xf32>
    %10 = vector.multi_reduction <add>, %9, %cst_8 [0] : vector<16x1x128xf32> to vector<1x128xf32>
    %11 = vector.shape_cast %10 : vector<1x128xf32> to vector<1x1x128xf32>
    %cst_9 = arith.constant 3.125000e-02 : f32
    %12 = vector.broadcast %cst_9 : f32 to vector<1x1x128xf32>
    %13 = arith.mulf %6, %12 : vector<1x1x128xf32>
    %cst_10 = arith.constant 3.125000e-02 : f32
    %14 = vector.broadcast %cst_10 : f32 to vector<1x1x128xf32>
    %15 = arith.mulf %11, %14 : vector<1x1x128xf32>
    %16 = arith.mulf %13, %13 : vector<1x1x128xf32>
    %17 = arith.subf %15, %16 : vector<1x1x128xf32>
    %cst_11 = arith.constant 0.000000e+00 : f32
    %18 = vector.broadcast %cst_11 : f32 to vector<1x1x128xf32>
    %19 = arith.maximumf %17, %18 : vector<1x1x128xf32>
    %c0_12 = arith.constant 0 : index
    %c0_13 = arith.constant 0 : index
    %20 = vector.load %arg3[%c0_12, %c0_13] : memref<2x128xf32, #tpu.memory_space<vmem>>, vector<2x128xf32>
    %21 = vector.extract_strided_slice %20 {offsets = [0, 0], sizes = [1, 128], strides = [1, 1]} : vector<2x128xf32> to vector<1x128xf32>
    %22 = vector.shape_cast %21 : vector<1x128xf32> to vector<128xf32>
    %23 = vector.shape_cast %22 : vector<128xf32> to vector<1x1x128xf32>
    %24 = vector.extract_strided_slice %20 {offsets = [1, 0], sizes = [1, 128], strides = [1, 1]} : vector<2x128xf32> to vector<1x128xf32>
    %25 = vector.shape_cast %24 : vector<1x128xf32> to vector<128xf32>
    %26 = vector.shape_cast %25 : vector<128xf32> to vector<1x1x128xf32>
    %cst_14 = arith.constant 9.99999974E-6 : f32
    %27 = vector.broadcast %cst_14 : f32 to vector<1x1x128xf32>
    %28 = arith.addf %19, %27 : vector<1x1x128xf32>
    %29 = math.rsqrt %28 : vector<1x1x128xf32>
    %30 = arith.mulf %23, %29 : vector<1x1x128xf32>
    %31 = arith.mulf %30, %13 : vector<1x1x128xf32>
    %32 = arith.subf %26, %31 : vector<1x1x128xf32>
    %33 = vector.broadcast %30 : vector<1x1x128xf32> to vector<16x2x128xf32>
    %34 = arith.mulf %2, %33 : vector<16x2x128xf32>
    %35 = vector.broadcast %32 : vector<1x1x128xf32> to vector<16x2x128xf32>
    %36 = arith.addf %34, %35 : vector<16x2x128xf32>
    %cst_15 = arith.constant 0.000000e+00 : f32
    %37 = vector.broadcast %cst_15 : f32 to vector<16x2x128xf32>
    %38 = arith.maximumf %36, %37 : vector<16x2x128xf32>
    %c0_16 = arith.constant 0 : index
    %c0_17 = arith.constant 0 : index
    %c0_18 = arith.constant 0 : index
    %39 = vector.load %arg4[%c0_16, %c0_17, %c0_18] : memref<16x2x128xf32, #tpu.memory_space<vmem>>, vector<16x2x128xf32>
    tpu.vector_store %arg4[%c0_16, %c0_17, %c0_18], %38 {strides = array<i32>} : memref<16x2x128xf32, #tpu.memory_space<vmem>>, vector<16x2x128xf32>,
    return
  }
  func.func @transform_0(%arg0: i32) -> (i32, i32, i32) {
    %c0_i32 = arith.constant 0 : i32
    %c0_i32_0 = arith.constant 0 : i32
    %c0_i32_1 = arith.constant 0 : i32
    %c0_i32_2 = arith.constant 0 : i32
    return %c0_i32, %c0_i32_0, %c0_i32_1 : i32, i32, i32
  }
  func.func @transform_1(%arg0: i32) -> (i32, i32, i32) {
    %c0_i32 = arith.constant 0 : i32
    %c0_i32_0 = arith.constant 0 : i32
    %c0_i32_1 = arith.constant 0 : i32
    %c0_i32_2 = arith.constant 0 : i32
    return %c0_i32, %c0_i32_0, %c0_i32_1 : i32, i32, i32
  }
  func.func @transform_2(%arg0: i32) -> (i32, i32) {
    %c0_i32 = arith.constant 0 : i32
    %c0_i32_0 = arith.constant 0 : i32
    %c0_i32_1 = arith.constant 0 : i32
    return %c0_i32, %c0_i32_0 : i32, i32
  }
  func.func @transform_3(%arg0: i32) -> (i32, i32, i32) {
    %c0_i32 = arith.constant 0 : i32
    %c0_i32_0 = arith.constant 0 : i32
    %c0_i32_1 = arith.constant 0 : i32
    %c0_i32_2 = arith.constant 0 : i32
    return %c0_i32, %c0_i32_0, %c0_i32_1 : i32, i32, i32
  }
}

module attributes {stable_mosaic.version = 11 : i64} {
  func.func @_bn_relu_kernel(%arg0: i32, %arg1: memref<4x32x512xbf16, #tpu.memory_space<vmem>>, %arg2: memref<4x512x128xbf16, #tpu.memory_space<vmem>>, %arg3: memref<2x128xf32, #tpu.memory_space<vmem>>, %arg4: memref<4x32x128xf32, #tpu.memory_space<vmem>>) attributes {dimension_semantics = [#tpu.dimension_semantics<arbitrary>], iteration_bounds = array<i64: 1>, scalar_prefetch = 0 : i64, scratch_operands = 0 : i64, tpu.core_type = #tpu.core_type<tc>, window_params = [{pipeline_mode = #tpu.pipeline_mode<synchronous>, transform_indices = @transform_0, window_bounds = array<i64: 4, 32, 512>}, {pipeline_mode = #tpu.pipeline_mode<synchronous>, transform_indices = @transform_1, window_bounds = array<i64: 4, 512, 128>}, {pipeline_mode = #tpu.pipeline_mode<synchronous>, transform_indices = @transform_2, window_bounds = array<i64: 2, 128>}, {pipeline_mode = #tpu.pipeline_mode<synchronous>, transform_indices = @transform_3, window_bounds = array<i64: 4, 32, 128>}]} {
    %c0 = arith.constant 0 : index
    %c0_0 = arith.constant 0 : index
    %c0_1 = arith.constant 0 : index
    %0 = vector.load %arg1[%c0, %c0_0, %c0_1] : memref<4x32x512xbf16, #tpu.memory_space<vmem>>, vector<4x32x512xbf16>
    %c0_2 = arith.constant 0 : index
    %c0_3 = arith.constant 0 : index
    %c0_4 = arith.constant 0 : index
    %1 = vector.load %arg2[%c0_2, %c0_3, %c0_4] : memref<4x512x128xbf16, #tpu.memory_space<vmem>>, vector<4x512x128xbf16>
    "tpu.trace_start"() <{level = 10 : i32, message = "pmk,pkc->pmc"}> : () -> ()
    %cst = arith.constant dense<0.000000e+00> : vector<4x32x128xf32>
    %2 = tpu.matmul %0, %1, %cst {dimension_numbers = #tpu.dot_dimension_numbers<[2], [1], [1], [2], [0, 0, 0, 1, 1, 2], [0], [0]>} : vector<4x32x512xbf16>, vector<4x512x128xbf16>, vector<4x32x128xf32> -> vector<4x32x128xf32>
    "tpu.trace_stop"() : () -> ()
    %cst_5 = arith.constant dense<0.000000e+00> : vector<4x128xf32>
    %3 = vector.multi_reduction <add>, %2, %cst_5 [1] : vector<4x32x128xf32> to vector<4x128xf32>
    %4 = vector.shape_cast %3 : vector<4x128xf32> to vector<4x1x128xf32>
    %cst_6 = arith.constant dense<0.000000e+00> : vector<1x128xf32>
    %5 = vector.multi_reduction <add>, %4, %cst_6 [0] : vector<4x1x128xf32> to vector<1x128xf32>
    %6 = vector.shape_cast %5 : vector<1x128xf32> to vector<1x1x128xf32>
    %7 = arith.mulf %2, %2 : vector<4x32x128xf32>
    %cst_7 = arith.constant dense<0.000000e+00> : vector<4x128xf32>
    %8 = vector.multi_reduction <add>, %7, %cst_7 [1] : vector<4x32x128xf32> to vector<4x128xf32>
    %9 = vector.shape_cast %8 : vector<4x128xf32> to vector<4x1x128xf32>
    %cst_8 = arith.constant dense<0.000000e+00> : vector<1x128xf32>
    %10 = vector.multi_reduction <add>, %9, %cst_8 [0] : vector<4x1x128xf32> to vector<1x128xf32>
    %11 = vector.shape_cast %10 : vector<1x128xf32> to vector<1x1x128xf32>
    %cst_9 = arith.constant 7.812500e-03 : f32
    %12 = vector.broadcast %cst_9 : f32 to vector<1x1x128xf32>
    %13 = arith.mulf %6, %12 : vector<1x1x128xf32>
    %cst_10 = arith.constant 7.812500e-03 : f32
    %14 = vector.broadcast %cst_10 : f32 to vector<1x1x128xf32>
    %15 = arith.mulf %11, %14 : vector<1x1x128xf32>
    %16 = arith.mulf %13, %13 : vector<1x1x128xf32>
    %17 = arith.subf %15, %16 : vector<1x1x128xf32>
    %cst_11 = arith.constant 0.000000e+00 : f32
    %18 = vector.broadcast %cst_11 : f32 to vector<1x1x128xf32>
    %19 = arith.maximumf %17, %18 : vector<1x1x128xf32>
    %c0_12 = arith.constant 0 : index
    %c0_13 = arith.constant 0 : index
    %20 = vector.load %arg3[%c0_12, %c0_13] : memref<2x128xf32, #tpu.memory_space<vmem>>, vector<2x128xf32>
    %21 = vector.extract_strided_slice %20 {offsets = [0, 0], sizes = [1, 128], strides = [1, 1]} : vector<2x128xf32> to vector<1x128xf32>
    %22 = vector.shape_cast %21 : vector<1x128xf32> to vector<128xf32>
    %23 = vector.shape_cast %22 : vector<128xf32> to vector<1x1x128xf32>
    %24 = vector.extract_strided_slice %20 {offsets = [1, 0], sizes = [1, 128], strides = [1, 1]} : vector<2x128xf32> to vector<1x128xf32>
    %25 = vector.shape_cast %24 : vector<1x128xf32> to vector<128xf32>
    %26 = vector.shape_cast %25 : vector<128xf32> to vector<1x1x128xf32>
    %cst_14 = arith.constant 9.99999974E-6 : f32
    %27 = vector.broadcast %cst_14 : f32 to vector<1x1x128xf32>
    %28 = arith.addf %19, %27 : vector<1x1x128xf32>
    %29 = math.rsqrt %28 : vector<1x1x128xf32>
    %30 = arith.mulf %23, %29 : vector<1x1x128xf32>
    %31 = arith.mulf %30, %13 : vector<1x1x128xf32>
    %32 = arith.subf %26, %31 : vector<1x1x128xf32>
    %33 = vector.broadcast %30 : vector<1x1x128xf32> to vector<4x32x128xf32>
    %34 = arith.mulf %2, %33 : vector<4x32x128xf32>
    %35 = vector.broadcast %32 : vector<1x1x128xf32> to vector<4x32x128xf32>
    %36 = arith.addf %34, %35 : vector<4x32x128xf32>
    %cst_15 = arith.constant 0.000000e+00 : f32
    %37 = vector.broadcast %cst_15 : f32 to vector<4x32x128xf32>
    %38 = arith.maximumf %36, %37 : vector<4x32x128xf32>
    %c0_16 = arith.constant 0 : index
    %c0_17 = arith.constant 0 : index
    %c0_18 = arith.constant 0 : index
    %39 = vector.load %arg4[%c0_16, %c0_17, %c0_18] : memref<4x32x128xf32, #tpu.memory_space<vmem>>, vector<4x32x128xf32>
    tpu.vector_store %arg4[%c0_16, %c0_17, %c0_18], %38 {strides = array<i32>} : memref<4x32x128xf32, #tpu.memory_space<vmem>>, vector<4x32x128xf32>,
    return
  }
  func.func @transform_0(%arg0: i32) -> (i32, i32, i32) {
    %c0_i32 = arith.constant 0 : i32
    %c0_i32_0 = arith.constant 0 : i32
    %c0_i32_1 = arith.constant 0 : i32
    %c0_i32_2 = arith.constant 0 : i32
    return %c0_i32, %c0_i32_0, %c0_i32_1 : i32, i32, i32
  }
  func.func @transform_1(%arg0: i32) -> (i32, i32, i32) {
    %c0_i32 = arith.constant 0 : i32
    %c0_i32_0 = arith.constant 0 : i32
    %c0_i32_1 = arith.constant 0 : i32
    %c0_i32_2 = arith.constant 0 : i32
    return %c0_i32, %c0_i32_0, %c0_i32_1 : i32, i32, i32
  }
  func.func @transform_2(%arg0: i32) -> (i32, i32) {
    %c0_i32 = arith.constant 0 : i32
    %c0_i32_0 = arith.constant 0 : i32
    %c0_i32_1 = arith.constant 0 : i32
    return %c0_i32, %c0_i32_0 : i32, i32
  }
  func.func @transform_3(%arg0: i32) -> (i32, i32, i32) {
    %c0_i32 = arith.constant 0 : i32
    %c0_i32_0 = arith.constant 0 : i32
    %c0_i32_1 = arith.constant 0 : i32
    %c0_i32_2 = arith.constant 0 : i32
    return %c0_i32, %c0_i32_0, %c0_i32_1 : i32, i32, i32
  }
}

module attributes {stable_mosaic.version = 11 : i64} {
  func.func @_bn_relu_kernel(%arg0: i32, %arg1: memref<4x128x256xbf16, #tpu.memory_space<vmem>>, %arg2: memref<4x256x128xbf16, #tpu.memory_space<vmem>>, %arg3: memref<2x128xf32, #tpu.memory_space<vmem>>, %arg4: memref<4x128x128xf32, #tpu.memory_space<vmem>>) attributes {dimension_semantics = [#tpu.dimension_semantics<arbitrary>], iteration_bounds = array<i64: 1>, scalar_prefetch = 0 : i64, scratch_operands = 0 : i64, tpu.core_type = #tpu.core_type<tc>, window_params = [{pipeline_mode = #tpu.pipeline_mode<synchronous>, transform_indices = @transform_0, window_bounds = array<i64: 4, 128, 256>}, {pipeline_mode = #tpu.pipeline_mode<synchronous>, transform_indices = @transform_1, window_bounds = array<i64: 4, 256, 128>}, {pipeline_mode = #tpu.pipeline_mode<synchronous>, transform_indices = @transform_2, window_bounds = array<i64: 2, 128>}, {pipeline_mode = #tpu.pipeline_mode<synchronous>, transform_indices = @transform_3, window_bounds = array<i64: 4, 128, 128>}]} {
    %c0 = arith.constant 0 : index
    %c0_0 = arith.constant 0 : index
    %c0_1 = arith.constant 0 : index
    %0 = vector.load %arg1[%c0, %c0_0, %c0_1] : memref<4x128x256xbf16, #tpu.memory_space<vmem>>, vector<4x128x256xbf16>
    %c0_2 = arith.constant 0 : index
    %c0_3 = arith.constant 0 : index
    %c0_4 = arith.constant 0 : index
    %1 = vector.load %arg2[%c0_2, %c0_3, %c0_4] : memref<4x256x128xbf16, #tpu.memory_space<vmem>>, vector<4x256x128xbf16>
    "tpu.trace_start"() <{level = 10 : i32, message = "pmk,pkc->pmc"}> : () -> ()
    %cst = arith.constant dense<0.000000e+00> : vector<4x128x128xf32>
    %2 = tpu.matmul %0, %1, %cst {dimension_numbers = #tpu.dot_dimension_numbers<[2], [1], [1], [2], [0, 0, 0, 1, 1, 2], [0], [0]>} : vector<4x128x256xbf16>, vector<4x256x128xbf16>, vector<4x128x128xf32> -> vector<4x128x128xf32>
    "tpu.trace_stop"() : () -> ()
    %cst_5 = arith.constant dense<0.000000e+00> : vector<4x128xf32>
    %3 = vector.multi_reduction <add>, %2, %cst_5 [1] : vector<4x128x128xf32> to vector<4x128xf32>
    %4 = vector.shape_cast %3 : vector<4x128xf32> to vector<4x1x128xf32>
    %cst_6 = arith.constant dense<0.000000e+00> : vector<1x128xf32>
    %5 = vector.multi_reduction <add>, %4, %cst_6 [0] : vector<4x1x128xf32> to vector<1x128xf32>
    %6 = vector.shape_cast %5 : vector<1x128xf32> to vector<1x1x128xf32>
    %7 = arith.mulf %2, %2 : vector<4x128x128xf32>
    %cst_7 = arith.constant dense<0.000000e+00> : vector<4x128xf32>
    %8 = vector.multi_reduction <add>, %7, %cst_7 [1] : vector<4x128x128xf32> to vector<4x128xf32>
    %9 = vector.shape_cast %8 : vector<4x128xf32> to vector<4x1x128xf32>
    %cst_8 = arith.constant dense<0.000000e+00> : vector<1x128xf32>
    %10 = vector.multi_reduction <add>, %9, %cst_8 [0] : vector<4x1x128xf32> to vector<1x128xf32>
    %11 = vector.shape_cast %10 : vector<1x128xf32> to vector<1x1x128xf32>
    %cst_9 = arith.constant 0.001953125 : f32
    %12 = vector.broadcast %cst_9 : f32 to vector<1x1x128xf32>
    %13 = arith.mulf %6, %12 : vector<1x1x128xf32>
    %cst_10 = arith.constant 0.001953125 : f32
    %14 = vector.broadcast %cst_10 : f32 to vector<1x1x128xf32>
    %15 = arith.mulf %11, %14 : vector<1x1x128xf32>
    %16 = arith.mulf %13, %13 : vector<1x1x128xf32>
    %17 = arith.subf %15, %16 : vector<1x1x128xf32>
    %cst_11 = arith.constant 0.000000e+00 : f32
    %18 = vector.broadcast %cst_11 : f32 to vector<1x1x128xf32>
    %19 = arith.maximumf %17, %18 : vector<1x1x128xf32>
    %c0_12 = arith.constant 0 : index
    %c0_13 = arith.constant 0 : index
    %20 = vector.load %arg3[%c0_12, %c0_13] : memref<2x128xf32, #tpu.memory_space<vmem>>, vector<2x128xf32>
    %21 = vector.extract_strided_slice %20 {offsets = [0, 0], sizes = [1, 128], strides = [1, 1]} : vector<2x128xf32> to vector<1x128xf32>
    %22 = vector.shape_cast %21 : vector<1x128xf32> to vector<128xf32>
    %23 = vector.shape_cast %22 : vector<128xf32> to vector<1x1x128xf32>
    %24 = vector.extract_strided_slice %20 {offsets = [1, 0], sizes = [1, 128], strides = [1, 1]} : vector<2x128xf32> to vector<1x128xf32>
    %25 = vector.shape_cast %24 : vector<1x128xf32> to vector<128xf32>
    %26 = vector.shape_cast %25 : vector<128xf32> to vector<1x1x128xf32>
    %cst_14 = arith.constant 9.99999974E-6 : f32
    %27 = vector.broadcast %cst_14 : f32 to vector<1x1x128xf32>
    %28 = arith.addf %19, %27 : vector<1x1x128xf32>
    %29 = math.rsqrt %28 : vector<1x1x128xf32>
    %30 = arith.mulf %23, %29 : vector<1x1x128xf32>
    %31 = arith.mulf %30, %13 : vector<1x1x128xf32>
    %32 = arith.subf %26, %31 : vector<1x1x128xf32>
    %33 = vector.broadcast %30 : vector<1x1x128xf32> to vector<4x128x128xf32>
    %34 = arith.mulf %2, %33 : vector<4x128x128xf32>
    %35 = vector.broadcast %32 : vector<1x1x128xf32> to vector<4x128x128xf32>
    %36 = arith.addf %34, %35 : vector<4x128x128xf32>
    %cst_15 = arith.constant 0.000000e+00 : f32
    %37 = vector.broadcast %cst_15 : f32 to vector<4x128x128xf32>
    %38 = arith.maximumf %36, %37 : vector<4x128x128xf32>
    %c0_16 = arith.constant 0 : index
    %c0_17 = arith.constant 0 : index
    %c0_18 = arith.constant 0 : index
    %39 = vector.load %arg4[%c0_16, %c0_17, %c0_18] : memref<4x128x128xf32, #tpu.memory_space<vmem>>, vector<4x128x128xf32>
    tpu.vector_store %arg4[%c0_16, %c0_17, %c0_18], %38 {strides = array<i32>} : memref<4x128x128xf32, #tpu.memory_space<vmem>>, vector<4x128x128xf32>,
    return
  }
  func.func @transform_0(%arg0: i32) -> (i32, i32, i32) {
    %c0_i32 = arith.constant 0 : i32
    %c0_i32_0 = arith.constant 0 : i32
    %c0_i32_1 = arith.constant 0 : i32
    %c0_i32_2 = arith.constant 0 : i32
    return %c0_i32, %c0_i32_0, %c0_i32_1 : i32, i32, i32
  }
  func.func @transform_1(%arg0: i32) -> (i32, i32, i32) {
    %c0_i32 = arith.constant 0 : i32
    %c0_i32_0 = arith.constant 0 : i32
    %c0_i32_1 = arith.constant 0 : i32
    %c0_i32_2 = arith.constant 0 : i32
    return %c0_i32, %c0_i32_0, %c0_i32_1 : i32, i32, i32
  }
  func.func @transform_2(%arg0: i32) -> (i32, i32) {
    %c0_i32 = arith.constant 0 : i32
    %c0_i32_0 = arith.constant 0 : i32
    %c0_i32_1 = arith.constant 0 : i32
    return %c0_i32, %c0_i32_0 : i32, i32
  }
  func.func @transform_3(%arg0: i32) -> (i32, i32, i32) {
    %c0_i32 = arith.constant 0 : i32
    %c0_i32_0 = arith.constant 0 : i32
    %c0_i32_1 = arith.constant 0 : i32
    %c0_i32_2 = arith.constant 0 : i32
    return %c0_i32, %c0_i32_0, %c0_i32_1 : i32, i32, i32
  }
}

module attributes {stable_mosaic.version = 11 : i64} {
  func.func @_bn_relu_kernel(%arg0: i32, %arg1: memref<4x512x128xbf16, #tpu.memory_space<vmem>>, %arg2: memref<4x128x128xbf16, #tpu.memory_space<vmem>>, %arg3: memref<2x128xf32, #tpu.memory_space<vmem>>, %arg4: memref<4x512x128xf32, #tpu.memory_space<vmem>>) attributes {dimension_semantics = [#tpu.dimension_semantics<arbitrary>], iteration_bounds = array<i64: 1>, scalar_prefetch = 0 : i64, scratch_operands = 0 : i64, tpu.core_type = #tpu.core_type<tc>, window_params = [{pipeline_mode = #tpu.pipeline_mode<synchronous>, transform_indices = @transform_0, window_bounds = array<i64: 4, 512, 128>}, {pipeline_mode = #tpu.pipeline_mode<synchronous>, transform_indices = @transform_1, window_bounds = array<i64: 4, 128, 128>}, {pipeline_mode = #tpu.pipeline_mode<synchronous>, transform_indices = @transform_2, window_bounds = array<i64: 2, 128>}, {pipeline_mode = #tpu.pipeline_mode<synchronous>, transform_indices = @transform_3, window_bounds = array<i64: 4, 512, 128>}]} {
    %c0 = arith.constant 0 : index
    %c0_0 = arith.constant 0 : index
    %c0_1 = arith.constant 0 : index
    %0 = vector.load %arg1[%c0, %c0_0, %c0_1] : memref<4x512x128xbf16, #tpu.memory_space<vmem>>, vector<4x512x128xbf16>
    %c0_2 = arith.constant 0 : index
    %c0_3 = arith.constant 0 : index
    %c0_4 = arith.constant 0 : index
    %1 = vector.load %arg2[%c0_2, %c0_3, %c0_4] : memref<4x128x128xbf16, #tpu.memory_space<vmem>>, vector<4x128x128xbf16>
    "tpu.trace_start"() <{level = 10 : i32, message = "pmk,pkc->pmc"}> : () -> ()
    %cst = arith.constant dense<0.000000e+00> : vector<4x512x128xf32>
    %2 = tpu.matmul %0, %1, %cst {dimension_numbers = #tpu.dot_dimension_numbers<[2], [1], [1], [2], [0, 0, 0, 1, 1, 2], [0], [0]>} : vector<4x512x128xbf16>, vector<4x128x128xbf16>, vector<4x512x128xf32> -> vector<4x512x128xf32>
    "tpu.trace_stop"() : () -> ()
    %cst_5 = arith.constant dense<0.000000e+00> : vector<4x128xf32>
    %3 = vector.multi_reduction <add>, %2, %cst_5 [1] : vector<4x512x128xf32> to vector<4x128xf32>
    %4 = vector.shape_cast %3 : vector<4x128xf32> to vector<4x1x128xf32>
    %cst_6 = arith.constant dense<0.000000e+00> : vector<1x128xf32>
    %5 = vector.multi_reduction <add>, %4, %cst_6 [0] : vector<4x1x128xf32> to vector<1x128xf32>
    %6 = vector.shape_cast %5 : vector<1x128xf32> to vector<1x1x128xf32>
    %7 = arith.mulf %2, %2 : vector<4x512x128xf32>
    %cst_7 = arith.constant dense<0.000000e+00> : vector<4x128xf32>
    %8 = vector.multi_reduction <add>, %7, %cst_7 [1] : vector<4x512x128xf32> to vector<4x128xf32>
    %9 = vector.shape_cast %8 : vector<4x128xf32> to vector<4x1x128xf32>
    %cst_8 = arith.constant dense<0.000000e+00> : vector<1x128xf32>
    %10 = vector.multi_reduction <add>, %9, %cst_8 [0] : vector<4x1x128xf32> to vector<1x128xf32>
    %11 = vector.shape_cast %10 : vector<1x128xf32> to vector<1x1x128xf32>
    %cst_9 = arith.constant 4.8828125E-4 : f32
    %12 = vector.broadcast %cst_9 : f32 to vector<1x1x128xf32>
    %13 = arith.mulf %6, %12 : vector<1x1x128xf32>
    %cst_10 = arith.constant 4.8828125E-4 : f32
    %14 = vector.broadcast %cst_10 : f32 to vector<1x1x128xf32>
    %15 = arith.mulf %11, %14 : vector<1x1x128xf32>
    %16 = arith.mulf %13, %13 : vector<1x1x128xf32>
    %17 = arith.subf %15, %16 : vector<1x1x128xf32>
    %cst_11 = arith.constant 0.000000e+00 : f32
    %18 = vector.broadcast %cst_11 : f32 to vector<1x1x128xf32>
    %19 = arith.maximumf %17, %18 : vector<1x1x128xf32>
    %c0_12 = arith.constant 0 : index
    %c0_13 = arith.constant 0 : index
    %20 = vector.load %arg3[%c0_12, %c0_13] : memref<2x128xf32, #tpu.memory_space<vmem>>, vector<2x128xf32>
    %21 = vector.extract_strided_slice %20 {offsets = [0, 0], sizes = [1, 128], strides = [1, 1]} : vector<2x128xf32> to vector<1x128xf32>
    %22 = vector.shape_cast %21 : vector<1x128xf32> to vector<128xf32>
    %23 = vector.shape_cast %22 : vector<128xf32> to vector<1x1x128xf32>
    %24 = vector.extract_strided_slice %20 {offsets = [1, 0], sizes = [1, 128], strides = [1, 1]} : vector<2x128xf32> to vector<1x128xf32>
    %25 = vector.shape_cast %24 : vector<1x128xf32> to vector<128xf32>
    %26 = vector.shape_cast %25 : vector<128xf32> to vector<1x1x128xf32>
    %cst_14 = arith.constant 9.99999974E-6 : f32
    %27 = vector.broadcast %cst_14 : f32 to vector<1x1x128xf32>
    %28 = arith.addf %19, %27 : vector<1x1x128xf32>
    %29 = math.rsqrt %28 : vector<1x1x128xf32>
    %30 = arith.mulf %23, %29 : vector<1x1x128xf32>
    %31 = arith.mulf %30, %13 : vector<1x1x128xf32>
    %32 = arith.subf %26, %31 : vector<1x1x128xf32>
    %33 = vector.broadcast %30 : vector<1x1x128xf32> to vector<4x512x128xf32>
    %34 = arith.mulf %2, %33 : vector<4x512x128xf32>
    %35 = vector.broadcast %32 : vector<1x1x128xf32> to vector<4x512x128xf32>
    %36 = arith.addf %34, %35 : vector<4x512x128xf32>
    %cst_15 = arith.constant 0.000000e+00 : f32
    %37 = vector.broadcast %cst_15 : f32 to vector<4x512x128xf32>
    %38 = arith.maximumf %36, %37 : vector<4x512x128xf32>
    %c0_16 = arith.constant 0 : index
    %c0_17 = arith.constant 0 : index
    %c0_18 = arith.constant 0 : index
    %39 = vector.load %arg4[%c0_16, %c0_17, %c0_18] : memref<4x512x128xf32, #tpu.memory_space<vmem>>, vector<4x512x128xf32>
    tpu.vector_store %arg4[%c0_16, %c0_17, %c0_18], %38 {strides = array<i32>} : memref<4x512x128xf32, #tpu.memory_space<vmem>>, vector<4x512x128xf32>,
    return
  }
  func.func @transform_0(%arg0: i32) -> (i32, i32, i32) {
    %c0_i32 = arith.constant 0 : i32
    %c0_i32_0 = arith.constant 0 : i32
    %c0_i32_1 = arith.constant 0 : i32
    %c0_i32_2 = arith.constant 0 : i32
    return %c0_i32, %c0_i32_0, %c0_i32_1 : i32, i32, i32
  }
  func.func @transform_1(%arg0: i32) -> (i32, i32, i32) {
    %c0_i32 = arith.constant 0 : i32
    %c0_i32_0 = arith.constant 0 : i32
    %c0_i32_1 = arith.constant 0 : i32
    %c0_i32_2 = arith.constant 0 : i32
    return %c0_i32, %c0_i32_0, %c0_i32_1 : i32, i32, i32
  }
  func.func @transform_2(%arg0: i32) -> (i32, i32) {
    %c0_i32 = arith.constant 0 : i32
    %c0_i32_0 = arith.constant 0 : i32
    %c0_i32_1 = arith.constant 0 : i32
    return %c0_i32, %c0_i32_0 : i32, i32
  }
  func.func @transform_3(%arg0: i32) -> (i32, i32, i32) {
    %c0_i32 = arith.constant 0 : i32
    %c0_i32_0 = arith.constant 0 : i32
    %c0_i32_1 = arith.constant 0 : i32
    %c0_i32_2 = arith.constant 0 : i32
    return %c0_i32, %c0_i32_0, %c0_i32_1 : i32, i32, i32
  }
}

module attributes {stable_mosaic.version = 11 : i64} {
  func.func @_tanh_kernel(%arg0: i32, %arg1: memref<1x2048x64xbf16, #tpu.memory_space<vmem>>, %arg2: memref<1x64x128xbf16, #tpu.memory_space<vmem>>, %arg3: memref<1x128xf32, #tpu.memory_space<vmem>>, %arg4: memref<1x2048x128xf32, #tpu.memory_space<vmem>>) attributes {dimension_semantics = [#tpu.dimension_semantics<parallel>], iteration_bounds = array<i64: 4>, scalar_prefetch = 0 : i64, scratch_operands = 0 : i64, tpu.core_type = #tpu.core_type<tc>, window_params = [{transform_indices = @transform_0, window_bounds = array<i64: 1, 2048, 64>}, {transform_indices = @transform_1, window_bounds = array<i64: 1, 64, 128>}, {pipeline_mode = #tpu.pipeline_mode<synchronous>, transform_indices = @transform_2, window_bounds = array<i64: 1, 128>}, {transform_indices = @transform_3, window_bounds = array<i64: 1, 2048, 128>}]} {
    %c0 = arith.constant 0 : index
    %c0_0 = arith.constant 0 : index
    %c0_1 = arith.constant 0 : index
    %0 = vector.load %arg1[%c0, %c0_0, %c0_1] : memref<1x2048x64xbf16, #tpu.memory_space<vmem>>, vector<1x2048x64xbf16>
    %1 = vector.shape_cast %0 : vector<1x2048x64xbf16> to vector<2048x64xbf16>
    %c0_2 = arith.constant 0 : index
    %c0_3 = arith.constant 0 : index
    %c0_4 = arith.constant 0 : index
    %2 = vector.load %arg2[%c0_2, %c0_3, %c0_4] : memref<1x64x128xbf16, #tpu.memory_space<vmem>>, vector<1x64x128xbf16>
    %3 = vector.shape_cast %2 : vector<1x64x128xbf16> to vector<64x128xbf16>
    %cst = arith.constant dense<0.000000e+00> : vector<2048x128xf32>
    %4 = tpu.matmul %1, %3, %cst {dimension_numbers = #tpu.dot_dimension_numbers<[1], [0], [0], [1], [0, 0, 1, 1], [], []>} : vector<2048x64xbf16>, vector<64x128xbf16>, vector<2048x128xf32> -> vector<2048x128xf32>
    %c0_5 = arith.constant 0 : index
    %c0_6 = arith.constant 0 : index
    %5 = vector.load %arg3[%c0_5, %c0_6] : memref<1x128xf32, #tpu.memory_space<vmem>>, vector<1x128xf32>
    %6 = vector.broadcast %5 : vector<1x128xf32> to vector<2048x128xf32>
    %7 = arith.addf %4, %6 : vector<2048x128xf32>
    %8 = math.tanh %7 : vector<2048x128xf32>
    %c0_7 = arith.constant 0 : index
    %c0_8 = arith.constant 0 : index
    %c0_9 = arith.constant 0 : index
    %9 = vector.load %arg4[%c0_7, %c0_8, %c0_9] : memref<1x2048x128xf32, #tpu.memory_space<vmem>>, vector<1x2048x128xf32>
    %10 = vector.shape_cast %9 : vector<1x2048x128xf32> to vector<2048x128xf32>
    %11 = vector.shape_cast %8 : vector<2048x128xf32> to vector<1x2048x128xf32>
    tpu.vector_store %arg4[%c0_7, %c0_8, %c0_9], %11 {strides = array<i32>} : memref<1x2048x128xf32, #tpu.memory_space<vmem>>, vector<1x2048x128xf32>,
    return
  }
  func.func @transform_0(%arg0: i32) -> (i32, i32, i32) {
    %c0_i32 = arith.constant 0 : i32
    %c0_i32_0 = arith.constant 0 : i32
    %c0_i32_1 = arith.constant 0 : i32
    return %arg0, %c0_i32, %c0_i32_0 : i32, i32, i32
  }
  func.func @transform_1(%arg0: i32) -> (i32, i32, i32) {
    %c0_i32 = arith.constant 0 : i32
    %c0_i32_0 = arith.constant 0 : i32
    %c0_i32_1 = arith.constant 0 : i32
    return %arg0, %c0_i32, %c0_i32_0 : i32, i32, i32
  }
  func.func @transform_2(%arg0: i32) -> (i32, i32) {
    %c0_i32 = arith.constant 0 : i32
    %c0_i32_0 = arith.constant 0 : i32
    %c0_i32_1 = arith.constant 0 : i32
    return %c0_i32, %c0_i32_0 : i32, i32
  }
  func.func @transform_3(%arg0: i32) -> (i32, i32, i32) {
    %c0_i32 = arith.constant 0 : i32
    %c0_i32_0 = arith.constant 0 : i32
    %c0_i32_1 = arith.constant 0 : i32
    return %arg0, %c0_i32, %c0_i32_0 : i32, i32, i32
  }
}

</mosaic_0001>

<llo_original>
// kernel: dc_generator_forward.5
$region0: #{dc_generator_forward.5}
  #allocation0 [shape = 'u32[]', space=smem, size = 0x4, offset = 0x4, fixed_abs, tag = 'smem constant byte address 0x4 - core index']
  #allocation1 [shape = 'u32[144,128]{1,0:T(1,128)}', space=vmem, size = 0x12000, scoped, tag = 'internal scratch']
  %s0 = inlined_call_operand.vmem [shape: bf16[16,2,100], index: 0, kind: input, shape index: {}]
  %s1 = inlined_call_operand.vmem [shape: bf16[16,100,128], index: 1, kind: input, shape index: {}]
  %s2 = inlined_call_operand.vmem [shape: f32[2,128], index: 2, kind: input, shape index: {}]
  %s3 = inlined_call_operand.vmem [shape: f32[16,2,128], index: 3, kind: output, shape index: {}]
  %s4 = sld [smem:[#allocation0]]
  $region22: #{dc_generator_forward.5} parent=0
    _
  %s6 = ssub.s32 1, %s4
  %s7 = scalar_select 0, %s6, %s4
  // Predicated region
  $region2: #{dc_generator_forward.5} parent=0 // pred_check
    _
  $region3: #{dc_generator_forward.5} parent=0 // pred_check_branch
    %9 = sbr.rel (0) target = $region5
  $region4: #{dc_generator_forward.5} parent=0 // pred_region
    _
  $region5: #{dc_generator_forward.5} parent=0 // pred_fallthru
    _
  // Predicated region
  $region6: #{dc_generator_forward.5} parent=0 // pred_check
    _
  $region7: #{dc_generator_forward.5} parent=0 // pred_check_branch
    %11 = sbr.rel (0) target = $region9
  $region8: #{dc_generator_forward.5} parent=0 // pred_region
    _
  $region9: #{dc_generator_forward.5} parent=0 // pred_fallthru
    _
  // Predicated region
  $region10: #{dc_generator_forward.5} parent=0 // pred_check
    _
  $region11: #{dc_generator_forward.5} parent=0 // pred_check_branch
    %13 = sbr.rel (0) target = $region13
  $region12: #{dc_generator_forward.5} parent=0 // pred_region
    _
  $region13: #{dc_generator_forward.5} parent=0 // pred_fallthru
    _
  %v15 = vld [vmem:[%s0] sm:$0x1]
  %v16 = vld [vmem:[%s0 + $0x1] sm:$0x1]
  %v17 = vld [vmem:[%s0 + $0x2] sm:$0x1]
  %v18 = vld [vmem:[%s0 + $0x3] sm:$0x1]
  %v19 = vld [vmem:[%s0 + $0x4] sm:$0x1]
  %v20 = vld [vmem:[%s0 + $0x5] sm:$0x1]
  %v21 = vld [vmem:[%s0 + $0x6] sm:$0x1]
  %v22 = vld [vmem:[%s0 + $0x7] sm:$0x1]
  %v23 = vld [vmem:[%s0 + $0x8] sm:$0x1]
  %v24 = vld [vmem:[%s0 + $0x9] sm:$0x1]
  %v25 = vld [vmem:[%s0 + $0xa] sm:$0x1]
  %v26 = vld [vmem:[%s0 + $0xb] sm:$0x1]
  %v27 = vld [vmem:[%s0 + $0xc] sm:$0x1]
  %v28 = vld [vmem:[%s0 + $0xd] sm:$0x1]
  %v29 = vld [vmem:[%s0 + $0xe] sm:$0x1]
  %v30 = vld [vmem:[%s0 + $0xf] sm:$0x1]
  %v31 = vld [vmem:[%s1] sm:$0xf]
  %v32 = vld [vmem:[%s1 + $0x4] sm:$0xf]
  %v33 = vld [vmem:[%s1 + $0x8] sm:$0xf]
  %v34 = vld [vmem:[%s1 + $0xc] sm:$0xf]
  %v35 = vld [vmem:[%s1 + $0x10] sm:$0xf]
  %v36 = vld [vmem:[%s1 + $0x14] sm:$0xf]
  %v37 = vld [vmem:[%s1 + $0x18] sm:$0xf]
  %v38 = vld [vmem:[%s1 + $0x1c] sm:$0xf]
  %v39 = vld [vmem:[%s1 + $0x20] sm:$0xf]
  %v40 = vld [vmem:[%s1 + $0x24] sm:$0xf]
  %v41 = vld [vmem:[%s1 + $0x28] sm:$0xf]
  %v42 = vld [vmem:[%s1 + $0x2c] sm:$0xf]
  %v43 = vld [vmem:[%s1 + $0x30] sm:$0x3]
  %v44 = vld [vmem:[%s1 + $0x34] sm:$0xf]
  %v45 = vld [vmem:[%s1 + $0x38] sm:$0xf]
  %v46 = vld [vmem:[%s1 + $0x3c] sm:$0xf]
  %v47 = vld [vmem:[%s1 + $0x40] sm:$0xf]
  %v48 = vld [vmem:[%s1 + $0x44] sm:$0xf]
  %v49 = vld [vmem:[%s1 + $0x48] sm:$0xf]
  %v50 = vld [vmem:[%s1 + $0x4c] sm:$0xf]
  %v51 = vld [vmem:[%s1 + $0x50] sm:$0xf]
  %v52 = vld [vmem:[%s1 + $0x54] sm:$0xf]
  %v53 = vld [vmem:[%s1 + $0x58] sm:$0xf]
  %v54 = vld [vmem:[%s1 + $0x5c] sm:$0xf]
  %v55 = vld [vmem:[%s1 + $0x60] sm:$0xf]
  %v56 = vld [vmem:[%s1 + $0x64] sm:$0x3]
  %v57 = vld [vmem:[%s1 + $0x68] sm:$0xf]
  %v58 = vld [vmem:[%s1 + $0x6c] sm:$0xf]
  %v59 = vld [vmem:[%s1 + $0x70] sm:$0xf]
  %v60 = vld [vmem:[%s1 + $0x74] sm:$0xf]
  %v61 = vld [vmem:[%s1 + $0x78] sm:$0xf]
  %v62 = vld [vmem:[%s1 + $0x7c] sm:$0xf]
  %v63 = vld [vmem:[%s1 + $0x80] sm:$0xf]
  %v64 = vld [vmem:[%s1 + $0x84] sm:$0xf]
  %v65 = vld [vmem:[%s1 + $0x88] sm:$0xf]
  %v66 = vld [vmem:[%s1 + $0x8c] sm:$0xf]
  %v67 = vld [vmem:[%s1 + $0x90] sm:$0xf]
  %v68 = vld [vmem:[%s1 + $0x94] sm:$0xf]
  %v69 = vld [vmem:[%s1 + $0x98] sm:$0x3]
  %v70 = vld [vmem:[%s1 + $0x9c] sm:$0xf]
  %v71 = vld [vmem:[%s1 + $0xa0] sm:$0xf]
  %v72 = vld [vmem:[%s1 + $0xa4] sm:$0xf]
  %v73 = vld [vmem:[%s1 + $0xa8] sm:$0xf]
  %v74 = vld [vmem:[%s1 + $0xac] sm:$0xf]
  %v75 = vld [vmem:[%s1 + $0xb0] sm:$0xf]
  %v76 = vld [vmem:[%s1 + $0xb4] sm:$0xf]
  %v77 = vld [vmem:[%s1 + $0xb8] sm:$0xf]
  %v78 = vld [vmem:[%s1 + $0xbc] sm:$0xf]
  %v79 = vld [vmem:[%s1 + $0xc0] sm:$0xf]
  %v80 = vld [vmem:[%s1 + $0xc4] sm:$0xf]
  %v81 = vld [vmem:[%s1 + $0xc8] sm:$0xf]
  %v82 = vld [vmem:[%s1 + $0xcc] sm:$0x3]
  %v83 = vld [vmem:[%s1 + $0xd0] sm:$0xf]
  %v84 = vld [vmem:[%s1 + $0xd4] sm:$0xf]
  %v85 = vld [vmem:[%s1 + $0xd8] sm:$0xf]
  %v86 = vld [vmem:[%s1 + $0xdc] sm:$0xf]
  %v87 = vld [vmem:[%s1 + $0xe0] sm:$0xf]
  %v88 = vld [vmem:[%s1 + $0xe4] sm:$0xf]
  %v89 = vld [vmem:[%s1 + $0xe8] sm:$0xf]
  %v90 = vld [vmem:[%s1 + $0xec] sm:$0xf]
  %v91 = vld [vmem:[%s1 + $0xf0] sm:$0xf]
  %v92 = vld [vmem:[%s1 + $0xf4] sm:$0xf]
  %v93 = vld [vmem:[%s1 + $0xf8] sm:$0xf]
  %v94 = vld [vmem:[%s1 + $0xfc] sm:$0xf]
  %v95 = vld [vmem:[%s1 + $0x100] sm:$0x3]
  %v96 = vld [vmem:[%s1 + $0x104] sm:$0xf]
  %v97 = vld [vmem:[%s1 + $0x108] sm:$0xf]
  %v98 = vld [vmem:[%s1 + $0x10c] sm:$0xf]
  %v99 = vld [vmem:[%s1 + $0x110] sm:$0xf]
  %v100 = vld [vmem:[%s1 + $0x114] sm:$0xf]
  %v101 = vld [vmem:[%s1 + $0x118] sm:$0xf]
  %v102 = vld [vmem:[%s1 + $0x11c] sm:$0xf]
  %v103 = vld [vmem:[%s1 + $0x120] sm:$0xf]
  %v104 = vld [vmem:[%s1 + $0x124] sm:$0xf]
  %v105 = vld [vmem:[%s1 + $0x128] sm:$0xf]
  %v106 = vld [vmem:[%s1 + $0x12c] sm:$0xf]
  %v107 = vld [vmem:[%s1 + $0x130] sm:$0xf]
  %v108 = vld [vmem:[%s1 + $0x134] sm:$0x3]
  %v109 = vld [vmem:[%s1 + $0x138] sm:$0xf]
  %v110 = vld [vmem:[%s1 + $0x13c] sm:$0xf]
  %v111 = vld [vmem:[%s1 + $0x140] sm:$0xf]
  %v112 = vld [vmem:[%s1 + $0x144] sm:$0xf]
  %v113 = vld [vmem:[%s1 + $0x148] sm:$0xf]
  %v114 = vld [vmem:[%s1 + $0x14c] sm:$0xf]
  %v115 = vld [vmem:[%s1 + $0x150] sm:$0xf]
  %v116 = vld [vmem:[%s1 + $0x154] sm:$0xf]
  %v117 = vld [vmem:[%s1 + $0x158] sm:$0xf]
  %v118 = vld [vmem:[%s1 + $0x15c] sm:$0xf]
  %v119 = vld [vmem:[%s1 + $0x160] sm:$0xf]
  %v120 = vld [vmem:[%s1 + $0x164] sm:$0xf]
  %v121 = vld [vmem:[%s1 + $0x168] sm:$0x3]
  %v122 = vld [vmem:[%s1 + $0x16c] sm:$0xf]
  %v123 = vld [vmem:[%s1 + $0x170] sm:$0xf]
  %v124 = vld [vmem:[%s1 + $0x174] sm:$0xf]
  %v125 = vld [vmem:[%s1 + $0x178] sm:$0xf]
  %v126 = vld [vmem:[%s1 + $0x17c] sm:$0xf]
  %v127 = vld [vmem:[%s1 + $0x180] sm:$0xf]
  %v128 = vld [vmem:[%s1 + $0x184] sm:$0xf]
  %v129 = vld [vmem:[%s1 + $0x188] sm:$0xf]
  %v130 = vld [vmem:[%s1 + $0x18c] sm:$0xf]
  %v131 = vld [vmem:[%s1 + $0x190] sm:$0xf]
  %v132 = vld [vmem:[%s1 + $0x194] sm:$0xf]
  %v133 = vld [vmem:[%s1 + $0x198] sm:$0xf]
  %v134 = vld [vmem:[%s1 + $0x19c] sm:$0x3]
  %v135 = vld [vmem:[%s1 + $0x1a0] sm:$0xf]
  %v136 = vld [vmem:[%s1 + $0x1a4] sm:$0xf]
  %v137 = vld [vmem:[%s1 + $0x1a8] sm:$0xf]
  %v138 = vld [vmem:[%s1 + $0x1ac] sm:$0xf]
  %v139 = vld [vmem:[%s1 + $0x1b0] sm:$0xf]
  %v140 = vld [vmem:[%s1 + $0x1b4] sm:$0xf]
  %v141 = vld [vmem:[%s1 + $0x1b8] sm:$0xf]
  %v142 = vld [vmem:[%s1 + $0x1bc] sm:$0xf]
  %v143 = vld [vmem:[%s1 + $0x1c0] sm:$0xf]
  %v144 = vld [vmem:[%s1 + $0x1c4] sm:$0xf]
  %v145 = vld [vmem:[%s1 + $0x1c8] sm:$0xf]
  %v146 = vld [vmem:[%s1 + $0x1cc] sm:$0xf]
  %v147 = vld [vmem:[%s1 + $0x1d0] sm:$0x3]
  %v148 = vld [vmem:[%s1 + $0x1d4] sm:$0xf]
  %v149 = vld [vmem:[%s1 + $0x1d8] sm:$0xf]
  %v150 = vld [vmem:[%s1 + $0x1dc] sm:$0xf]
  %v151 = vld [vmem:[%s1 + $0x1e0] sm:$0xf]
  %v152 = vld [vmem:[%s1 + $0x1e4] sm:$0xf]
  %v153 = vld [vmem:[%s1 + $0x1e8] sm:$0xf]
  %v154 = vld [vmem:[%s1 + $0x1ec] sm:$0xf]
  %v155 = vld [vmem:[%s1 + $0x1f0] sm:$0xf]
  %v156 = vld [vmem:[%s1 + $0x1f4] sm:$0xf]
  %v157 = vld [vmem:[%s1 + $0x1f8] sm:$0xf]
  %v158 = vld [vmem:[%s1 + $0x1fc] sm:$0xf]
  %v159 = vld [vmem:[%s1 + $0x200] sm:$0xf]
  %v160 = vld [vmem:[%s1 + $0x204] sm:$0x3]
  %v161 = vld [vmem:[%s1 + $0x208] sm:$0xf]
  %v162 = vld [vmem:[%s1 + $0x20c] sm:$0xf]
  %v163 = vld [vmem:[%s1 + $0x210] sm:$0xf]
  %v164 = vld [vmem:[%s1 + $0x214] sm:$0xf]
  %v165 = vld [vmem:[%s1 + $0x218] sm:$0xf]
  %v166 = vld [vmem:[%s1 + $0x21c] sm:$0xf]
  %v167 = vld [vmem:[%s1 + $0x220] sm:$0xf]
  %v168 = vld [vmem:[%s1 + $0x224] sm:$0xf]
  %v169 = vld [vmem:[%s1 + $0x228] sm:$0xf]
  %v170 = vld [vmem:[%s1 + $0x22c] sm:$0xf]
  %v171 = vld [vmem:[%s1 + $0x230] sm:$0xf]
  %v172 = vld [vmem:[%s1 + $0x234] sm:$0xf]
  %v173 = vld [vmem:[%s1 + $0x238] sm:$0x3]
  %v174 = vld [vmem:[%s1 + $0x23c] sm:$0xf]
  %v175 = vld [vmem:[%s1 + $0x240] sm:$0xf]
  %v176 = vld [vmem:[%s1 + $0x244] sm:$0xf]
  %v177 = vld [vmem:[%s1 + $0x248] sm:$0xf]
  %v178 = vld [vmem:[%s1 + $0x24c] sm:$0xf]
  %v179 = vld [vmem:[%s1 + $0x250] sm:$0xf]
  %v180 = vld [vmem:[%s1 + $0x254] sm:$0xf]
  %v181 = vld [vmem:[%s1 + $0x258] sm:$0xf]
  %v182 = vld [vmem:[%s1 + $0x25c] sm:$0xf]
  %v183 = vld [vmem:[%s1 + $0x260] sm:$0xf]
  %v184 = vld [vmem:[%s1 + $0x264] sm:$0xf]
  %v185 = vld [vmem:[%s1 + $0x268] sm:$0xf]
  %v186 = vld [vmem:[%s1 + $0x26c] sm:$0x3]
  %v187 = vld [vmem:[%s1 + $0x270] sm:$0xf]
  %v188 = vld [vmem:[%s1 + $0x274] sm:$0xf]
  %v189 = vld [vmem:[%s1 + $0x278] sm:$0xf]
  %v190 = vld [vmem:[%s1 + $0x27c] sm:$0xf]
  %v191 = vld [vmem:[%s1 + $0x280] sm:$0xf]
  %v192 = vld [vmem:[%s1 + $0x284] sm:$0xf]
  %v193 = vld [vmem:[%s1 + $0x288] sm:$0xf]
  %v194 = vld [vmem:[%s1 + $0x28c] sm:$0xf]
  %v195 = vld [vmem:[%s1 + $0x290] sm:$0xf]
  %v196 = vld [vmem:[%s1 + $0x294] sm:$0xf]
  %v197 = vld [vmem:[%s1 + $0x298] sm:$0xf]
  %v198 = vld [vmem:[%s1 + $0x29c] sm:$0xf]
  %v199 = vld [vmem:[%s1 + $0x2a0] sm:$0x3]
  %v200 = vld [vmem:[%s1 + $0x2a4] sm:$0xf]
  %v201 = vld [vmem:[%s1 + $0x2a8] sm:$0xf]
  %v202 = vld [vmem:[%s1 + $0x2ac] sm:$0xf]
  %v203 = vld [vmem:[%s1 + $0x2b0] sm:$0xf]
  %v204 = vld [vmem:[%s1 + $0x2b4] sm:$0xf]
  %v205 = vld [vmem:[%s1 + $0x2b8] sm:$0xf]
  %v206 = vld [vmem:[%s1 + $0x2bc] sm:$0xf]
  %v207 = vld [vmem:[%s1 + $0x2c0] sm:$0xf]
  %v208 = vld [vmem:[%s1 + $0x2c4] sm:$0xf]
  %v209 = vld [vmem:[%s1 + $0x2c8] sm:$0xf]
  %v210 = vld [vmem:[%s1 + $0x2cc] sm:$0xf]
  %v211 = vld [vmem:[%s1 + $0x2d0] sm:$0xf]
  %v212 = vld [vmem:[%s1 + $0x2d4] sm:$0x3]
  %v213 = vld [vmem:[%s1 + $0x2d8] sm:$0xf]
  %v214 = vld [vmem:[%s1 + $0x2dc] sm:$0xf]
  %v215 = vld [vmem:[%s1 + $0x2e0] sm:$0xf]
  %v216 = vld [vmem:[%s1 + $0x2e4] sm:$0xf]
  %v217 = vld [vmem:[%s1 + $0x2e8] sm:$0xf]
  %v218 = vld [vmem:[%s1 + $0x2ec] sm:$0xf]
  %v219 = vld [vmem:[%s1 + $0x2f0] sm:$0xf]
  %v220 = vld [vmem:[%s1 + $0x2f4] sm:$0xf]
  %v221 = vld [vmem:[%s1 + $0x2f8] sm:$0xf]
  %v222 = vld [vmem:[%s1 + $0x2fc] sm:$0xf]
  %v223 = vld [vmem:[%s1 + $0x300] sm:$0xf]
  %v224 = vld [vmem:[%s1 + $0x304] sm:$0xf]
  %v225 = vld [vmem:[%s1 + $0x308] sm:$0x3]
  %v226 = vld [vmem:[%s1 + $0x30c] sm:$0xf]
  %v227 = vld [vmem:[%s1 + $0x310] sm:$0xf]
  %v228 = vld [vmem:[%s1 + $0x314] sm:$0xf]
  %v229 = vld [vmem:[%s1 + $0x318] sm:$0xf]
  %v230 = vld [vmem:[%s1 + $0x31c] sm:$0xf]
  %v231 = vld [vmem:[%s1 + $0x320] sm:$0xf]
  %v232 = vld [vmem:[%s1 + $0x324] sm:$0xf]
  %v233 = vld [vmem:[%s1 + $0x328] sm:$0xf]
  %v234 = vld [vmem:[%s1 + $0x32c] sm:$0xf]
  %v235 = vld [vmem:[%s1 + $0x330] sm:$0xf]
  %v236 = vld [vmem:[%s1 + $0x334] sm:$0xf]
  %v237 = vld [vmem:[%s1 + $0x338] sm:$0xf]
  %v238 = vld [vmem:[%s1 + $0x33c] sm:$0x3]
  %v252 = vunpack.c.l.b16 %v31
  %v253 = vunpack.c.l.b16 %v32
  %v254 = vunpack.c.l.b16 %v33
  %v255 = vunpack.c.l.b16 %v34
  %v256 = vunpack.c.l.b16 %v35
  %v257 = vunpack.c.l.b16 %v36
  %v258 = vunpack.c.l.b16 %v37
  %v259 = vunpack.c.l.b16 %v38
  %v260 = vunpack.c.l.b16 %v39
  %v261 = vunpack.c.l.b16 %v40
  %v262 = vunpack.c.l.b16 %v41
  %v263 = vunpack.c.l.b16 %v42
  %v264 = vunpack.c.l.b16 %v43
  %v265 = vpack.c.b16 %v253, %v252
  %v266 = vpack.c.b16 %v255, %v254
  %v267 = vpack.c.b16 %v257, %v256
  %v268 = vpack.c.b16 %v259, %v258
  %v269 = vpack.c.b16 %v261, %v260
  %v270 = vpack.c.b16 %v263, %v262
  %v271 = vpack.c.b16 %v264, %v264
  %vm278 = vcmask 818176
  %v280 = vsel %vm278, %v15, 0
  %vm282 = vcmask 1041408
  %v284 = vsel %vm282, %v271, 0
  %286 = vmatprep.subr.bf16.mxu0 0
  %287 = vmatpush1.bf16.msra.mxu0 0
  %288 = vmatprep.subr.bf16.mxu0 0
  %289 = vmatpush1.bf16.msra.mxu0 %v284
  %290 = vmatprep.subr.bf16.mxu0 0
  %291 = vmatpush1.bf16.msra.mxu0 %v270
  %292 = vmatprep.subr.bf16.mxu0 0
  %293 = vmatpush1.bf16.msra.mxu0 %v269
  %294 = vmatprep.subr.bf16.mxu0 0
  %295 = vmatpush1.bf16.msra.mxu0 %v268
  %296 = vmatprep.subr.bf16.mxu0 0
  %297 = vmatpush1.bf16.msra.mxu0 %v267
  %298 = vmatprep.subr.bf16.mxu0 0
  %299 = vmatpush1.bf16.msra.mxu0 %v266
  %300 = vmatprep.subr.bf16.mxu0 0
  %301 = vmatpush1.bf16.msra.mxu0 %v265
  %302 = vmatprep.subr.bf16.mxu0 0
  %303 = vmatpush2.bf16.msra.mxu0 0
  %304 = vmatprep.subr.bf16.mxu0 0
  %305 = vmatpush2.bf16.msra.mxu0 0
  %306 = vmatprep.subr.bf16.mxu0 0
  %307 = vmatpush2.bf16.msra.mxu0 0
  %308 = vmatprep.subr.bf16.mxu0 0
  %309 = vmatpush2.bf16.msra.mxu0 0
  %310 = vmatprep.subr.bf16.mxu0 0
  %311 = vmatpush2.bf16.msra.mxu0 0
  %312 = vmatprep.subr.bf16.mxu0 0
  %313 = vmatpush2.bf16.msra.mxu0 0
  %314 = vmatprep.subr.bf16.mxu0 0
  %315 = vmatpush2.bf16.msra.mxu0 0
  %316 = vmatprep.subr.bf16.mxu0 0
  %317 = vmatpush2.bf16.msra.mxu0 0
  %318 = vmatprep.mubr.bf16.mxu0 0
  %319 = vmatmul.mubr.bf16.gmra.mxu0 %v280
  %v320 = vpop.f32.mrf.mxu0
  %v321 = vadd.f32 0.0, %v320
  %v322 = vpop.f32.mrf.mxu0
  %v323 = vpop.f32.mrf.mxu0
  %v324 = vpop.f32.mrf.mxu0
  %325 = vdwg.mxu0
  %v339 = vunpack.c.l.b16 %v44
  %v340 = vunpack.c.l.b16 %v45
  %v341 = vunpack.c.l.b16 %v46
  %v342 = vunpack.c.l.b16 %v47
  %v343 = vunpack.c.l.b16 %v48
  %v344 = vunpack.c.l.b16 %v49
  %v345 = vunpack.c.l.b16 %v50
  %v346 = vunpack.c.l.b16 %v51
  %v347 = vunpack.c.l.b16 %v52
  %v348 = vunpack.c.l.b16 %v53
  %v349 = vunpack.c.l.b16 %v54
  %v350 = vunpack.c.l.b16 %v55
  %v351 = vunpack.c.l.b16 %v56
  %v352 = vpack.c.b16 %v340, %v339
  %v353 = vpack.c.b16 %v342, %v341
  %v354 = vpack.c.b16 %v344, %v343
  %v355 = vpack.c.b16 %v346, %v345
  %v356 = vpack.c.b16 %v348, %v347
  %v357 = vpack.c.b16 %v350, %v349
  %v358 = vpack.c.b16 %v351, %v351
  %v366 = vsel %vm278, %v16, 0
  %v369 = vsel %vm282, %v358, 0
  %371 = vmatprep.subr.bf16.mxu0 0
  %372 = vmatpush1.bf16.msra.mxu0 0
  %373 = vmatprep.subr.bf16.mxu0 0
  %374 = vmatpush1.bf16.msra.mxu0 %v369
  %375 = vmatprep.subr.bf16.mxu0 0
  %376 = vmatpush1.bf16.msra.mxu0 %v357
  %377 = vmatprep.subr.bf16.mxu0 0
  %378 = vmatpush1.bf16.msra.mxu0 %v356
  %379 = vmatprep.subr.bf16.mxu0 0
  %380 = vmatpush1.bf16.msra.mxu0 %v355
  %381 = vmatprep.subr.bf16.mxu0 0
  %382 = vmatpush1.bf16.msra.mxu0 %v354
  %383 = vmatprep.subr.bf16.mxu0 0
  %384 = vmatpush1.bf16.msra.mxu0 %v353
  %385 = vmatprep.subr.bf16.mxu0 0
  %386 = vmatpush1.bf16.msra.mxu0 %v352
  %387 = vmatprep.subr.bf16.mxu0 0
  %388 = vmatpush2.bf16.msra.mxu0 0
  %389 = vmatprep.subr.bf16.mxu0 0
  %390 = vmatpush2.bf16.msra.mxu0 0
  %391 = vmatprep.subr.bf16.mxu0 0
  %392 = vmatpush2.bf16.msra.mxu0 0
  %393 = vmatprep.subr.bf16.mxu0 0
  %394 = vmatpush2.bf16.msra.mxu0 0
  %395 = vmatprep.subr.bf16.mxu0 0
  %396 = vmatpush2.bf16.msra.mxu0 0
  %397 = vmatprep.subr.bf16.mxu0 0
  %398 = vmatpush2.bf16.msra.mxu0 0
  %399 = vmatprep.subr.bf16.mxu0 0
  %400 = vmatpush2.bf16.msra.mxu0 0
  %401 = vmatprep.subr.bf16.mxu0 0
  %402 = vmatpush2.bf16.msra.mxu0 0
  %403 = vmatprep.mubr.bf16.mxu0 0
  %404 = vmatmul.mubr.bf16.gmra.mxu0 %v366
  %v405 = vpop.f32.mrf.mxu0
  %v406 = vadd.f32 0.0, %v405
  %v407 = vpop.f32.mrf.mxu0
  %v408 = vpop.f32.mrf.mxu0
  %v409 = vpop.f32.mrf.mxu0
  %410 = vdwg.mxu0
  %v424 = vunpack.c.l.b16 %v57
  %v425 = vunpack.c.l.b16 %v58
  %v426 = vunpack.c.l.b16 %v59
  %v427 = vunpack.c.l.b16 %v60
  %v428 = vunpack.c.l.b16 %v61
  %v429 = vunpack.c.l.b16 %v62
  %v430 = vunpack.c.l.b16 %v63
  %v431 = vunpack.c.l.b16 %v64
  %v432 = vunpack.c.l.b16 %v65
  %v433 = vunpack.c.l.b16 %v66
  %v434 = vunpack.c.l.b16 %v67
  %v435 = vunpack.c.l.b16 %v68
  %v436 = vunpack.c.l.b16 %v69
  %v437 = vpack.c.b16 %v425, %v424
  %v438 = vpack.c.b16 %v427, %v426
  %v439 = vpack.c.b16 %v429, %v428
  %v440 = vpack.c.b16 %v431, %v430
  %v441 = vpack.c.b16 %v433, %v432
  %v442 = vpack.c.b16 %v435, %v434
  %v443 = vpack.c.b16 %v436, %v436
  %v451 = vsel %vm278, %v17, 0
  %v454 = vsel %vm282, %v443, 0
  %456 = vmatprep.subr.bf16.mxu0 0
  %457 = vmatpush1.bf16.msra.mxu0 0
  %458 = vmatprep.subr.bf16.mxu0 0
  %459 = vmatpush1.bf16.msra.mxu0 %v454
  %460 = vmatprep.subr.bf16.mxu0 0
  %461 = vmatpush1.bf16.msra.mxu0 %v442
  %462 = vmatprep.subr.bf16.mxu0 0
  %463 = vmatpush1.bf16.msra.mxu0 %v441
  %464 = vmatprep.subr.bf16.mxu0 0
  %465 = vmatpush1.bf16.msra.mxu0 %v440
  %466 = vmatprep.subr.bf16.mxu0 0
  %467 = vmatpush1.bf16.msra.mxu0 %v439
  %468 = vmatprep.subr.bf16.mxu0 0
  %469 = vmatpush1.bf16.msra.mxu0 %v438
  %470 = vmatprep.subr.bf16.mxu0 0
  %471 = vmatpush1.bf16.msra.mxu0 %v437
  %472 = vmatprep.subr.bf16.mxu0 0
  %473 = vmatpush2.bf16.msra.mxu0 0
  %474 = vmatprep.subr.bf16.mxu0 0
  %475 = vmatpush2.bf16.msra.mxu0 0
  %476 = vmatprep.subr.bf16.mxu0 0
  %477 = vmatpush2.bf16.msra.mxu0 0
  %478 = vmatprep.subr.bf16.mxu0 0
  %479 = vmatpush2.bf16.msra.mxu0 0
  %480 = vmatprep.subr.bf16.mxu0 0
  %481 = vmatpush2.bf16.msra.mxu0 0
  %482 = vmatprep.subr.bf16.mxu0 0
  %483 = vmatpush2.bf16.msra.mxu0 0
  %484 = vmatprep.subr.bf16.mxu0 0
  %485 = vmatpush2.bf16.msra.mxu0 0
  %486 = vmatprep.subr.bf16.mxu0 0
  %487 = vmatpush2.bf16.msra.mxu0 0
  %488 = vmatprep.mubr.bf16.mxu0 0
  %489 = vmatmul.mubr.bf16.gmra.mxu0 %v451
  %v490 = vpop.f32.mrf.mxu0
  %v491 = vadd.f32 0.0, %v490
  %v492 = vpop.f32.mrf.mxu0
  %v493 = vpop.f32.mrf.mxu0
  %v494 = vpop.f32.mrf.mxu0
  %495 = vdwg.mxu0
  %v509 = vunpack.c.l.b16 %v70
  %v510 = vunpack.c.l.b16 %v71
  %v511 = vunpack.c.l.b16 %v72
  %v512 = vunpack.c.l.b16 %v73
  %v513 = vunpack.c.l.b16 %v74
  %v514 = vunpack.c.l.b16 %v75
  %v515 = vunpack.c.l.b16 %v76
  %v516 = vunpack.c.l.b16 %v77
  %v517 = vunpack.c.l.b16 %v78
  %v518 = vunpack.c.l.b16 %v79
  %v519 = vunpack.c.l.b16 %v80
  %v520 = vunpack.c.l.b16 %v81
  %v521 = vunpack.c.l.b16 %v82
  %v522 = vpack.c.b16 %v510, %v509
  %v523 = vpack.c.b16 %v512, %v511
  %v524 = vpack.c.b16 %v514, %v513
  %v525 = vpack.c.b16 %v516, %v515
  %v526 = vpack.c.b16 %v518, %v517
  %v527 = vpack.c.b16 %v520, %v519
  %v528 = vpack.c.b16 %v521, %v521
  %v536 = vsel %vm278, %v18, 0
  %v539 = vsel %vm282, %v528, 0
  %541 = vmatprep.subr.bf16.mxu0 0
  %542 = vmatpush1.bf16.msra.mxu0 0
  %543 = vmatprep.subr.bf16.mxu0 0
  %544 = vmatpush1.bf16.msra.mxu0 %v539
  %545 = vmatprep.subr.bf16.mxu0 0
  %546 = vmatpush1.bf16.msra.mxu0 %v527
  %547 = vmatprep.subr.bf16.mxu0 0
  %548 = vmatpush1.bf16.msra.mxu0 %v526
  %549 = vmatprep.subr.bf16.mxu0 0
  %550 = vmatpush1.bf16.msra.mxu0 %v525
  %551 = vmatprep.subr.bf16.mxu0 0
  %552 = vmatpush1.bf16.msra.mxu0 %v524
  %553 = vmatprep.subr.bf16.mxu0 0
  %554 = vmatpush1.bf16.msra.mxu0 %v523
  %555 = vmatprep.subr.bf16.mxu0 0
  %556 = vmatpush1.bf16.msra.mxu0 %v522
  %557 = vmatprep.subr.bf16.mxu0 0
  %558 = vmatpush2.bf16.msra.mxu0 0
  %559 = vmatprep.subr.bf16.mxu0 0
  %560 = vmatpush2.bf16.msra.mxu0 0
  %561 = vmatprep.subr.bf16.mxu0 0
  %562 = vmatpush2.bf16.msra.mxu0 0
  %563 = vmatprep.subr.bf16.mxu0 0
  %564 = vmatpush2.bf16.msra.mxu0 0
  %565 = vmatprep.subr.bf16.mxu0 0
  %566 = vmatpush2.bf16.msra.mxu0 0
  %567 = vmatprep.subr.bf16.mxu0 0
  %568 = vmatpush2.bf16.msra.mxu0 0
  %569 = vmatprep.subr.bf16.mxu0 0
  %570 = vmatpush2.bf16.msra.mxu0 0
  %571 = vmatprep.subr.bf16.mxu0 0
  %572 = vmatpush2.bf16.msra.mxu0 0
  %573 = vmatprep.mubr.bf16.mxu0 0
  %574 = vmatmul.mubr.bf16.gmra.mxu0 %v536
  %v575 = vpop.f32.mrf.mxu0
  %v576 = vadd.f32 0.0, %v575
  %v577 = vpop.f32.mrf.mxu0
  %v578 = vpop.f32.mrf.mxu0
  %v579 = vpop.f32.mrf.mxu0
  %580 = vdwg.mxu0
  %v594 = vunpack.c.l.b16 %v83
  %v595 = vunpack.c.l.b16 %v84
  %v596 = vunpack.c.l.b16 %v85
  %v597 = vunpack.c.l.b16 %v86
  %v598 = vunpack.c.l.b16 %v87
  %v599 = vunpack.c.l.b16 %v88
  %v600 = vunpack.c.l.b16 %v89
  %v601 = vunpack.c.l.b16 %v90
  %v602 = vunpack.c.l.b16 %v91
  %v603 = vunpack.c.l.b16 %v92
  %v604 = vunpack.c.l.b16 %v93
  %v605 = vunpack.c.l.b16 %v94
  %v606 = vunpack.c.l.b16 %v95
  %v607 = vpack.c.b16 %v595, %v594
  %v608 = vpack.c.b16 %v597, %v596
  %v609 = vpack.c.b16 %v599, %v598
  %v610 = vpack.c.b16 %v601, %v600
  %v611 = vpack.c.b16 %v603, %v602
  %v612 = vpack.c.b16 %v605, %v604
  %v613 = vpack.c.b16 %v606, %v606
  %v621 = vsel %vm278, %v19, 0
  %v624 = vsel %vm282, %v613, 0
  %626 = vmatprep.subr.bf16.mxu0 0
  %627 = vmatpush1.bf16.msra.mxu0 0
  %628 = vmatprep.subr.bf16.mxu0 0
  %629 = vmatpush1.bf16.msra.mxu0 %v624
  %630 = vmatprep.subr.bf16.mxu0 0
  %631 = vmatpush1.bf16.msra.mxu0 %v612
  %632 = vmatprep.subr.bf16.mxu0 0
  %633 = vmatpush1.bf16.msra.mxu0 %v611
  %634 = vmatprep.subr.bf16.mxu0 0
  %635 = vmatpush1.bf16.msra.mxu0 %v610
  %636 = vmatprep.subr.bf16.mxu0 0
  %637 = vmatpush1.bf16.msra.mxu0 %v609
  %638 = vmatprep.subr.bf16.mxu0 0
  %639 = vmatpush1.bf16.msra.mxu0 %v608
  %640 = vmatprep.subr.bf16.mxu0 0
  %641 = vmatpush1.bf16.msra.mxu0 %v607
  %642 = vmatprep.subr.bf16.mxu0 0
  %643 = vmatpush2.bf16.msra.mxu0 0
  %644 = vmatprep.subr.bf16.mxu0 0
  %645 = vmatpush2.bf16.msra.mxu0 0
  %646 = vmatprep.subr.bf16.mxu0 0
  %647 = vmatpush2.bf16.msra.mxu0 0
  %648 = vmatprep.subr.bf16.mxu0 0
  %649 = vmatpush2.bf16.msra.mxu0 0
  %650 = vmatprep.subr.bf16.mxu0 0
  %651 = vmatpush2.bf16.msra.mxu0 0
  %652 = vmatprep.subr.bf16.mxu0 0
  %653 = vmatpush2.bf16.msra.mxu0 0
  %654 = vmatprep.subr.bf16.mxu0 0
  %655 = vmatpush2.bf16.msra.mxu0 0
  %656 = vmatprep.subr.bf16.mxu0 0
  %657 = vmatpush2.bf16.msra.mxu0 0
  %658 = vmatprep.mubr.bf16.mxu0 0
  %659 = vmatmul.mubr.bf16.gmra.mxu0 %v621
  %v660 = vpop.f32.mrf.mxu0
  %v661 = vadd.f32 0.0, %v660
  %v662 = vpop.f32.mrf.mxu0
  %v663 = vpop.f32.mrf.mxu0
  %v664 = vpop.f32.mrf.mxu0
  %665 = vdwg.mxu0
  %v679 = vunpack.c.l.b16 %v96
  %v680 = vunpack.c.l.b16 %v97
  %v681 = vunpack.c.l.b16 %v98
  %v682 = vunpack.c.l.b16 %v99
  %v683 = vunpack.c.l.b16 %v100
  %v684 = vunpack.c.l.b16 %v101
  %v685 = vunpack.c.l.b16 %v102
  %v686 = vunpack.c.l.b16 %v103
  %v687 = vunpack.c.l.b16 %v104
  %v688 = vunpack.c.l.b16 %v105
  %v689 = vunpack.c.l.b16 %v106
  %v690 = vunpack.c.l.b16 %v107
  %v691 = vunpack.c.l.b16 %v108
  %v692 = vpack.c.b16 %v680, %v679
  %v693 = vpack.c.b16 %v682, %v681
  %v694 = vpack.c.b16 %v684, %v683
  %v695 = vpack.c.b16 %v686, %v685
  %v696 = vpack.c.b16 %v688, %v687
  %v697 = vpack.c.b16 %v690, %v689
  %v698 = vpack.c.b16 %v691, %v691
  %v706 = vsel %vm278, %v20, 0
  %v709 = vsel %vm282, %v698, 0
  %711 = vmatprep.subr.bf16.mxu0 0
  %712 = vmatpush1.bf16.msra.mxu0 0
  %713 = vmatprep.subr.bf16.mxu0 0
  %714 = vmatpush1.bf16.msra.mxu0 %v709
  %715 = vmatprep.subr.bf16.mxu0 0
  %716 = vmatpush1.bf16.msra.mxu0 %v697
  %717 = vmatprep.subr.bf16.mxu0 0
  %718 = vmatpush1.bf16.msra.mxu0 %v696
  %719 = vmatprep.subr.bf16.mxu0 0
  %720 = vmatpush1.bf16.msra.mxu0 %v695
  %721 = vmatprep.subr.bf16.mxu0 0
  %722 = vmatpush1.bf16.msra.mxu0 %v694
  %723 = vmatprep.subr.bf16.mxu0 0
  %724 = vmatpush1.bf16.msra.mxu0 %v693
  %725 = vmatprep.subr.bf16.mxu0 0
  %726 = vmatpush1.bf16.msra.mxu0 %v692
  %727 = vmatprep.subr.bf16.mxu0 0
  %728 = vmatpush2.bf16.msra.mxu0 0
  %729 = vmatprep.subr.bf16.mxu0 0
  %730 = vmatpush2.bf16.msra.mxu0 0
  %731 = vmatprep.subr.bf16.mxu0 0
  %732 = vmatpush2.bf16.msra.mxu0 0
  %733 = vmatprep.subr.bf16.mxu0 0
  %734 = vmatpush2.bf16.msra.mxu0 0
  %735 = vmatprep.subr.bf16.mxu0 0
  %736 = vmatpush2.bf16.msra.mxu0 0
  %737 = vmatprep.subr.bf16.mxu0 0
  %738 = vmatpush2.bf16.msra.mxu0 0
  %739 = vmatprep.subr.bf16.mxu0 0
  %740 = vmatpush2.bf16.msra.mxu0 0
  %741 = vmatprep.subr.bf16.mxu0 0
  %742 = vmatpush2.bf16.msra.mxu0 0
  %743 = vmatprep.mubr.bf16.mxu0 0
  %744 = vmatmul.mubr.bf16.gmra.mxu0 %v706
  %v745 = vpop.f32.mrf.mxu0
  %v746 = vadd.f32 0.0, %v745
  %v747 = vpop.f32.mrf.mxu0
  %v748 = vpop.f32.mrf.mxu0
  %v749 = vpop.f32.mrf.mxu0
  %750 = vdwg.mxu0
  %v764 = vunpack.c.l.b16 %v109
  %v765 = vunpack.c.l.b16 %v110
  %v766 = vunpack.c.l.b16 %v111
  %v767 = vunpack.c.l.b16 %v112
  %v768 = vunpack.c.l.b16 %v113
  %v769 = vunpack.c.l.b16 %v114
  %v770 = vunpack.c.l.b16 %v115
  %v771 = vunpack.c.l.b16 %v116
  %v772 = vunpack.c.l.b16 %v117
  %v773 = vunpack.c.l.b16 %v118
  %v774 = vunpack.c.l.b16 %v119
  %v775 = vunpack.c.l.b16 %v120
  %v776 = vunpack.c.l.b16 %v121
  %v777 = vpack.c.b16 %v765, %v764
  %v778 = vpack.c.b16 %v767, %v766
  %v779 = vpack.c.b16 %v769, %v768
  %v780 = vpack.c.b16 %v771, %v770
  %v781 = vpack.c.b16 %v773, %v772
  %v782 = vpack.c.b16 %v775, %v774
  %v783 = vpack.c.b16 %v776, %v776
  %v791 = vsel %vm278, %v21, 0
  %v794 = vsel %vm282, %v783, 0
  %796 = vmatprep.subr.bf16.mxu0 0
  %797 = vmatpush1.bf16.msra.mxu0 0
  %798 = vmatprep.subr.bf16.mxu0 0
  %799 = vmatpush1.bf16.msra.mxu0 %v794
  %800 = vmatprep.subr.bf16.mxu0 0
  %801 = vmatpush1.bf16.msra.mxu0 %v782
  %802 = vmatprep.subr.bf16.mxu0 0
  %803 = vmatpush1.bf16.msra.mxu0 %v781
  %804 = vmatprep.subr.bf16.mxu0 0
  %805 = vmatpush1.bf16.msra.mxu0 %v780
  %806 = vmatprep.subr.bf16.mxu0 0
  %807 = vmatpush1.bf16.msra.mxu0 %v779
  %808 = vmatprep.subr.bf16.mxu0 0
  %809 = vmatpush1.bf16.msra.mxu0 %v778
  %810 = vmatprep.subr.bf16.mxu0 0
  %811 = vmatpush1.bf16.msra.mxu0 %v777
  %812 = vmatprep.subr.bf16.mxu0 0
  %813 = vmatpush2.bf16.msra.mxu0 0
  %814 = vmatprep.subr.bf16.mxu0 0
  %815 = vmatpush2.bf16.msra.mxu0 0
  %816 = vmatprep.subr.bf16.mxu0 0
  %817 = vmatpush2.bf16.msra.mxu0 0
  %818 = vmatprep.subr.bf16.mxu0 0
  %819 = vmatpush2.bf16.msra.mxu0 0
  %820 = vmatprep.subr.bf16.mxu0 0
  %821 = vmatpush2.bf16.msra.mxu0 0
  %822 = vmatprep.subr.bf16.mxu0 0
  %823 = vmatpush2.bf16.msra.mxu0 0
  %824 = vmatprep.subr.bf16.mxu0 0
  %825 = vmatpush2.bf16.msra.mxu0 0
  %826 = vmatprep.subr.bf16.mxu0 0
  %827 = vmatpush2.bf16.msra.mxu0 0
  %828 = vmatprep.mubr.bf16.mxu0 0
  %829 = vmatmul.mubr.bf16.gmra.mxu0 %v791
  %v830 = vpop.f32.mrf.mxu0
  %v831 = vadd.f32 0.0, %v830
  %v832 = vpop.f32.mrf.mxu0
  %v833 = vpop.f32.mrf.mxu0
  %v834 = vpop.f32.mrf.mxu0
  %835 = vdwg.mxu0
  %v849 = vunpack.c.l.b16 %v122
  %v850 = vunpack.c.l.b16 %v123
  %v851 = vunpack.c.l.b16 %v124
  %v852 = vunpack.c.l.b16 %v125
  %v853 = vunpack.c.l.b16 %v126
  %v854 = vunpack.c.l.b16 %v127
  %v855 = vunpack.c.l.b16 %v128
  %v856 = vunpack.c.l.b16 %v129
  %v857 = vunpack.c.l.b16 %v130
  %v858 = vunpack.c.l.b16 %v131
  %v859 = vunpack.c.l.b16 %v132
  %v860 = vunpack.c.l.b16 %v133
  %v861 = vunpack.c.l.b16 %v134
  %v862 = vpack.c.b16 %v850, %v849
  %v863 = vpack.c.b16 %v852, %v851
  %v864 = vpack.c.b16 %v854, %v853
  %v865 = vpack.c.b16 %v856, %v855
  %v866 = vpack.c.b16 %v858, %v857
  %v867 = vpack.c.b16 %v860, %v859
  %v868 = vpack.c.b16 %v861, %v861
  %v876 = vsel %vm278, %v22, 0
  %v879 = vsel %vm282, %v868, 0
  %881 = vmatprep.subr.bf16.mxu0 0
  %882 = vmatpush1.bf16.msra.mxu0 0
  %883 = vmatprep.subr.bf16.mxu0 0
  %884 = vmatpush1.bf16.msra.mxu0 %v879
  %885 = vmatprep.subr.bf16.mxu0 0
  %886 = vmatpush1.bf16.msra.mxu0 %v867
  %887 = vmatprep.subr.bf16.mxu0 0
  %888 = vmatpush1.bf16.msra.mxu0 %v866
  %889 = vmatprep.subr.bf16.mxu0 0
  %890 = vmatpush1.bf16.msra.mxu0 %v865
  %891 = vmatprep.subr.bf16.mxu0 0
  %892 = vmatpush1.bf16.msra.mxu0 %v864
  %893 = vmatprep.subr.bf16.mxu0 0
  %894 = vmatpush1.bf16.msra.mxu0 %v863
  %895 = vmatprep.subr.bf16.mxu0 0
  %896 = vmatpush1.bf16.msra.mxu0 %v862
  %897 = vmatprep.subr.bf16.mxu0 0
  %898 = vmatpush2.bf16.msra.mxu0 0
  %899 = vmatprep.subr.bf16.mxu0 0
  %900 = vmatpush2.bf16.msra.mxu0 0
  %901 = vmatprep.subr.bf16.mxu0 0
  %902 = vmatpush2.bf16.msra.mxu0 0
  %903 = vmatprep.subr.bf16.mxu0 0
  %904 = vmatpush2.bf16.msra.mxu0 0
  %905 = vmatprep.subr.bf16.mxu0 0
  %906 = vmatpush2.bf16.msra.mxu0 0
  %907 = vmatprep.subr.bf16.mxu0 0
  %908 = vmatpush2.bf16.msra.mxu0 0
  %909 = vmatprep.subr.bf16.mxu0 0
  %910 = vmatpush2.bf16.msra.mxu0 0
  %911 = vmatprep.subr.bf16.mxu0 0
  %912 = vmatpush2.bf16.msra.mxu0 0
  %913 = vmatprep.mubr.bf16.mxu0 0
  %914 = vmatmul.mubr.bf16.gmra.mxu0 %v876
  %v915 = vpop.f32.mrf.mxu0
  %v916 = vadd.f32 0.0, %v915
  %v917 = vpop.f32.mrf.mxu0
  %v918 = vpop.f32.mrf.mxu0
  %v919 = vpop.f32.mrf.mxu0
  %920 = vdwg.mxu0
  %v934 = vunpack.c.l.b16 %v135
  %v935 = vunpack.c.l.b16 %v136
  %v936 = vunpack.c.l.b16 %v137
  %v937 = vunpack.c.l.b16 %v138
  %v938 = vunpack.c.l.b16 %v139
  %v939 = vunpack.c.l.b16 %v140
  %v940 = vunpack.c.l.b16 %v141
  %v941 = vunpack.c.l.b16 %v142
  %v942 = vunpack.c.l.b16 %v143
  %v943 = vunpack.c.l.b16 %v144
  %v944 = vunpack.c.l.b16 %v145
  %v945 = vunpack.c.l.b16 %v146
  %v946 = vunpack.c.l.b16 %v147
  %v947 = vpack.c.b16 %v935, %v934
  %v948 = vpack.c.b16 %v937, %v936
  %v949 = vpack.c.b16 %v939, %v938
  %v950 = vpack.c.b16 %v941, %v940
  %v951 = vpack.c.b16 %v943, %v942
  %v952 = vpack.c.b16 %v945, %v944
  %v953 = vpack.c.b16 %v946, %v946
  %v961 = vsel %vm278, %v23, 0
  %v964 = vsel %vm282, %v953, 0
  %966 = vmatprep.subr.bf16.mxu0 0
  %967 = vmatpush1.bf16.msra.mxu0 0
  %968 = vmatprep.subr.bf16.mxu0 0
  %969 = vmatpush1.bf16.msra.mxu0 %v964
  %970 = vmatprep.subr.bf16.mxu0 0
  %971 = vmatpush1.bf16.msra.mxu0 %v952
  %972 = vmatprep.subr.bf16.mxu0 0
  %973 = vmatpush1.bf16.msra.mxu0 %v951
  %974 = vmatprep.subr.bf16.mxu0 0
  %975 = vmatpush1.bf16.msra.mxu0 %v950
  %976 = vmatprep.subr.bf16.mxu0 0
  %977 = vmatpush1.bf16.msra.mxu0 %v949
  %978 = vmatprep.subr.bf16.mxu0 0
  %979 = vmatpush1.bf16.msra.mxu0 %v948
  %980 = vmatprep.subr.bf16.mxu0 0
  %981 = vmatpush1.bf16.msra.mxu0 %v947
  %982 = vmatprep.subr.bf16.mxu0 0
  %983 = vmatpush2.bf16.msra.mxu0 0
  %984 = vmatprep.subr.bf16.mxu0 0
  %985 = vmatpush2.bf16.msra.mxu0 0
  %986 = vmatprep.subr.bf16.mxu0 0
  %987 = vmatpush2.bf16.msra.mxu0 0
  %988 = vmatprep.subr.bf16.mxu0 0
  %989 = vmatpush2.bf16.msra.mxu0 0
  %990 = vmatprep.subr.bf16.mxu0 0
  %991 = vmatpush2.bf16.msra.mxu0 0
  %992 = vmatprep.subr.bf16.mxu0 0
  %993 = vmatpush2.bf16.msra.mxu0 0
  %994 = vmatprep.subr.bf16.mxu0 0
  %995 = vmatpush2.bf16.msra.mxu0 0
  %996 = vmatprep.subr.bf16.mxu0 0
  %997 = vmatpush2.bf16.msra.mxu0 0
  %998 = vmatprep.mubr.bf16.mxu0 0
  %999 = vmatmul.mubr.bf16.gmra.mxu0 %v961
  %v1000 = vpop.f32.mrf.mxu0
  %v1001 = vadd.f32 0.0, %v1000
  %v1002 = vpop.f32.mrf.mxu0
  %v1003 = vpop.f32.mrf.mxu0
  %v1004 = vpop.f32.mrf.mxu0
  %1005 = vdwg.mxu0
  %v1019 = vunpack.c.l.b16 %v148
  %v1020 = vunpack.c.l.b16 %v149
  %v1021 = vunpack.c.l.b16 %v150
  %v1022 = vunpack.c.l.b16 %v151
  %v1023 = vunpack.c.l.b16 %v152
  %v1024 = vunpack.c.l.b16 %v153
  %v1025 = vunpack.c.l.b16 %v154
  %v1026 = vunpack.c.l.b16 %v155
  %v1027 = vunpack.c.l.b16 %v156
  %v1028 = vunpack.c.l.b16 %v157
  %v1029 = vunpack.c.l.b16 %v158
  %v1030 = vunpack.c.l.b16 %v159
  %v1031 = vunpack.c.l.b16 %v160
  %v1032 = vpack.c.b16 %v1020, %v1019
  %v1033 = vpack.c.b16 %v1022, %v1021
  %v1034 = vpack.c.b16 %v1024, %v1023
  %v1035 = vpack.c.b16 %v1026, %v1025
  %v1036 = vpack.c.b16 %v1028, %v1027
  %v1037 = vpack.c.b16 %v1030, %v1029
  %v1038 = vpack.c.b16 %v1031, %v1031
  %v1046 = vsel %vm278, %v24, 0
  %v1049 = vsel %vm282, %v1038, 0
  %1051 = vmatprep.subr.bf16.mxu0 0
  %1052 = vmatpush1.bf16.msra.mxu0 0
  %1053 = vmatprep.subr.bf16.mxu0 0
  %1054 = vmatpush1.bf16.msra.mxu0 %v1049
  %1055 = vmatprep.subr.bf16.mxu0 0
  %1056 = vmatpush1.bf16.msra.mxu0 %v1037
  %1057 = vmatprep.subr.bf16.mxu0 0
  %1058 = vmatpush1.bf16.msra.mxu0 %v1036
  %1059 = vmatprep.subr.bf16.mxu0 0
  %1060 = vmatpush1.bf16.msra.mxu0 %v1035
  %1061 = vmatprep.subr.bf16.mxu0 0
  %1062 = vmatpush1.bf16.msra.mxu0 %v1034
  %1063 = vmatprep.subr.bf16.mxu0 0
  %1064 = vmatpush1.bf16.msra.mxu0 %v1033
  %1065 = vmatprep.subr.bf16.mxu0 0
  %1066 = vmatpush1.bf16.msra.mxu0 %v1032
  %1067 = vmatprep.subr.bf16.mxu0 0
  %1068 = vmatpush2.bf16.msra.mxu0 0
  %1069 = vmatprep.subr.bf16.mxu0 0
  %1070 = vmatpush2.bf16.msra.mxu0 0
  %1071 = vmatprep.subr.bf16.mxu0 0
  %1072 = vmatpush2.bf16.msra.mxu0 0
  %1073 = vmatprep.subr.bf16.mxu0 0
  %1074 = vmatpush2.bf16.msra.mxu0 0
  %1075 = vmatprep.subr.bf16.mxu0 0
  %1076 = vmatpush2.bf16.msra.mxu0 0
  %1077 = vmatprep.subr.bf16.mxu0 0
  %1078 = vmatpush2.bf16.msra.mxu0 0
  %1079 = vmatprep.subr.bf16.mxu0 0
  %1080 = vmatpush2.bf16.msra.mxu0 0
  %1081 = vmatprep.subr.bf16.mxu0 0
  %1082 = vmatpush2.bf16.msra.mxu0 0
  %1083 = vmatprep.mubr.bf16.mxu0 0
  %1084 = vmatmul.mubr.bf16.gmra.mxu0 %v1046
  %v1085 = vpop.f32.mrf.mxu0
  %v1086 = vadd.f32 0.0, %v1085
  %v1087 = vpop.f32.mrf.mxu0
  %v1088 = vpop.f32.mrf.mxu0
  %v1089 = vpop.f32.mrf.mxu0
  %1090 = vdwg.mxu0
  %v1104 = vunpack.c.l.b16 %v161
  %v1105 = vunpack.c.l.b16 %v162
  %v1106 = vunpack.c.l.b16 %v163
  %v1107 = vunpack.c.l.b16 %v164
  %v1108 = vunpack.c.l.b16 %v165
  %v1109 = vunpack.c.l.b16 %v166
  %v1110 = vunpack.c.l.b16 %v167
  %v1111 = vunpack.c.l.b16 %v168
  %v1112 = vunpack.c.l.b16 %v169
  %v1113 = vunpack.c.l.b16 %v170
  %v1114 = vunpack.c.l.b16 %v171
  %v1115 = vunpack.c.l.b16 %v172
  %v1116 = vunpack.c.l.b16 %v173
  %v1117 = vpack.c.b16 %v1105, %v1104
  %v1118 = vpack.c.b16 %v1107, %v1106
  %v1119 = vpack.c.b16 %v1109, %v1108
  %v1120 = vpack.c.b16 %v1111, %v1110
  %v1121 = vpack.c.b16 %v1113, %v1112
  %v1122 = vpack.c.b16 %v1115, %v1114
  %v1123 = vpack.c.b16 %v1116, %v1116
  %v1131 = vsel %vm278, %v25, 0
  %v1134 = vsel %vm282, %v1123, 0
  %1136 = vmatprep.subr.bf16.mxu0 0
  %1137 = vmatpush1.bf16.msra.mxu0 0
  %1138 = vmatprep.subr.bf16.mxu0 0
  %1139 = vmatpush1.bf16.msra.mxu0 %v1134
  %1140 = vmatprep.subr.bf16.mxu0 0
  %1141 = vmatpush1.bf16.msra.mxu0 %v1122
  %1142 = vmatprep.subr.bf16.mxu0 0
  %1143 = vmatpush1.bf16.msra.mxu0 %v1121
  %1144 = vmatprep.subr.bf16.mxu0 0
  %1145 = vmatpush1.bf16.msra.mxu0 %v1120
  %1146 = vmatprep.subr.bf16.mxu0 0
  %1147 = vmatpush1.bf16.msra.mxu0 %v1119
  %1148 = vmatprep.subr.bf16.mxu0 0
  %1149 = vmatpush1.bf16.msra.mxu0 %v1118
  %1150 = vmatprep.subr.bf16.mxu0 0
  %1151 = vmatpush1.bf16.msra.mxu0 %v1117
  %1152 = vmatprep.subr.bf16.mxu0 0
  %1153 = vmatpush2.bf16.msra.mxu0 0
  %1154 = vmatprep.subr.bf16.mxu0 0
  %1155 = vmatpush2.bf16.msra.mxu0 0
  %1156 = vmatprep.subr.bf16.mxu0 0
  %1157 = vmatpush2.bf16.msra.mxu0 0
  %1158 = vmatprep.subr.bf16.mxu0 0
  %1159 = vmatpush2.bf16.msra.mxu0 0
  %1160 = vmatprep.subr.bf16.mxu0 0
  %1161 = vmatpush2.bf16.msra.mxu0 0
  %1162 = vmatprep.subr.bf16.mxu0 0
  %1163 = vmatpush2.bf16.msra.mxu0 0
  %1164 = vmatprep.subr.bf16.mxu0 0
  %1165 = vmatpush2.bf16.msra.mxu0 0
  %1166 = vmatprep.subr.bf16.mxu0 0
  %1167 = vmatpush2.bf16.msra.mxu0 0
  %1168 = vmatprep.mubr.bf16.mxu0 0
  %1169 = vmatmul.mubr.bf16.gmra.mxu0 %v1131
  %v1170 = vpop.f32.mrf.mxu0
  %v1171 = vadd.f32 0.0, %v1170
  %v1172 = vpop.f32.mrf.mxu0
  %v1173 = vpop.f32.mrf.mxu0
  %v1174 = vpop.f32.mrf.mxu0
  %1175 = vdwg.mxu0
  %v1189 = vunpack.c.l.b16 %v174
  %v1190 = vunpack.c.l.b16 %v175
  %v1191 = vunpack.c.l.b16 %v176
  %v1192 = vunpack.c.l.b16 %v177
  %v1193 = vunpack.c.l.b16 %v178
  %v1194 = vunpack.c.l.b16 %v179
  %v1195 = vunpack.c.l.b16 %v180
  %v1196 = vunpack.c.l.b16 %v181
  %v1197 = vunpack.c.l.b16 %v182
  %v1198 = vunpack.c.l.b16 %v183
  %v1199 = vunpack.c.l.b16 %v184
  %v1200 = vunpack.c.l.b16 %v185
  %v1201 = vunpack.c.l.b16 %v186
  %v1202 = vpack.c.b16 %v1190, %v1189
  %v1203 = vpack.c.b16 %v1192, %v1191
  %v1204 = vpack.c.b16 %v1194, %v1193
  %v1205 = vpack.c.b16 %v1196, %v1195
  %v1206 = vpack.c.b16 %v1198, %v1197
  %v1207 = vpack.c.b16 %v1200, %v1199
  %v1208 = vpack.c.b16 %v1201, %v1201
  %v1216 = vsel %vm278, %v26, 0
  %v1219 = vsel %vm282, %v1208, 0
  %1221 = vmatprep.subr.bf16.mxu0 0
  %1222 = vmatpush1.bf16.msra.mxu0 0
  %1223 = vmatprep.subr.bf16.mxu0 0
  %1224 = vmatpush1.bf16.msra.mxu0 %v1219
  %1225 = vmatprep.subr.bf16.mxu0 0
  %1226 = vmatpush1.bf16.msra.mxu0 %v1207
  %1227 = vmatprep.subr.bf16.mxu0 0
  %1228 = vmatpush1.bf16.msra.mxu0 %v1206
  %1229 = vmatprep.subr.bf16.mxu0 0
  %1230 = vmatpush1.bf16.msra.mxu0 %v1205
  %1231 = vmatprep.subr.bf16.mxu0 0
  %1232 = vmatpush1.bf16.msra.mxu0 %v1204
  %1233 = vmatprep.subr.bf16.mxu0 0
  %1234 = vmatpush1.bf16.msra.mxu0 %v1203
  %1235 = vmatprep.subr.bf16.mxu0 0
  %1236 = vmatpush1.bf16.msra.mxu0 %v1202
  %1237 = vmatprep.subr.bf16.mxu0 0
  %1238 = vmatpush2.bf16.msra.mxu0 0
  %1239 = vmatprep.subr.bf16.mxu0 0
  %1240 = vmatpush2.bf16.msra.mxu0 0
  %1241 = vmatprep.subr.bf16.mxu0 0
  %1242 = vmatpush2.bf16.msra.mxu0 0
  %1243 = vmatprep.subr.bf16.mxu0 0
  %1244 = vmatpush2.bf16.msra.mxu0 0
  %1245 = vmatprep.subr.bf16.mxu0 0
  %1246 = vmatpush2.bf16.msra.mxu0 0
  %1247 = vmatprep.subr.bf16.mxu0 0
  %1248 = vmatpush2.bf16.msra.mxu0 0
  %1249 = vmatprep.subr.bf16.mxu0 0
  %1250 = vmatpush2.bf16.msra.mxu0 0
  %1251 = vmatprep.subr.bf16.mxu0 0
  %1252 = vmatpush2.bf16.msra.mxu0 0
  %1253 = vmatprep.mubr.bf16.mxu0 0
  %1254 = vmatmul.mubr.bf16.gmra.mxu0 %v1216
  %v1255 = vpop.f32.mrf.mxu0
  %v1256 = vadd.f32 0.0, %v1255
  %v1257 = vpop.f32.mrf.mxu0
  %v1258 = vpop.f32.mrf.mxu0
  %v1259 = vpop.f32.mrf.mxu0
  %1260 = vdwg.mxu0
  %v1274 = vunpack.c.l.b16 %v187
  %v1275 = vunpack.c.l.b16 %v188
  %v1276 = vunpack.c.l.b16 %v189
  %v1277 = vunpack.c.l.b16 %v190
  %v1278 = vunpack.c.l.b16 %v191
  %v1279 = vunpack.c.l.b16 %v192
  %v1280 = vunpack.c.l.b16 %v193
  %v1281 = vunpack.c.l.b16 %v194
  %v1282 = vunpack.c.l.b16 %v195
  %v1283 = vunpack.c.l.b16 %v196
  %v1284 = vunpack.c.l.b16 %v197
  %v1285 = vunpack.c.l.b16 %v198
  %v1286 = vunpack.c.l.b16 %v199
  %v1287 = vpack.c.b16 %v1275, %v1274
  %v1288 = vpack.c.b16 %v1277, %v1276
  %v1289 = vpack.c.b16 %v1279, %v1278
  %v1290 = vpack.c.b16 %v1281, %v1280
  %v1291 = vpack.c.b16 %v1283, %v1282
  %v1292 = vpack.c.b16 %v1285, %v1284
  %v1293 = vpack.c.b16 %v1286, %v1286
  %v1301 = vsel %vm278, %v27, 0
  %v1304 = vsel %vm282, %v1293, 0
  %1306 = vmatprep.subr.bf16.mxu0 0
  %1307 = vmatpush1.bf16.msra.mxu0 0
  %1308 = vmatprep.subr.bf16.mxu0 0
  %1309 = vmatpush1.bf16.msra.mxu0 %v1304
  %1310 = vmatprep.subr.bf16.mxu0 0
  %1311 = vmatpush1.bf16.msra.mxu0 %v1292
  %1312 = vmatprep.subr.bf16.mxu0 0
  %1313 = vmatpush1.bf16.msra.mxu0 %v1291
  %1314 = vmatprep.subr.bf16.mxu0 0
  %1315 = vmatpush1.bf16.msra.mxu0 %v1290
  %1316 = vmatprep.subr.bf16.mxu0 0
  %1317 = vmatpush1.bf16.msra.mxu0 %v1289
  %1318 = vmatprep.subr.bf16.mxu0 0
  %1319 = vmatpush1.bf16.msra.mxu0 %v1288
  %1320 = vmatprep.subr.bf16.mxu0 0
  %1321 = vmatpush1.bf16.msra.mxu0 %v1287
  %1322 = vmatprep.subr.bf16.mxu0 0
  %1323 = vmatpush2.bf16.msra.mxu0 0
  %1324 = vmatprep.subr.bf16.mxu0 0
  %1325 = vmatpush2.bf16.msra.mxu0 0
  %1326 = vmatprep.subr.bf16.mxu0 0
  %1327 = vmatpush2.bf16.msra.mxu0 0
  %1328 = vmatprep.subr.bf16.mxu0 0
  %1329 = vmatpush2.bf16.msra.mxu0 0
  %1330 = vmatprep.subr.bf16.mxu0 0
  %1331 = vmatpush2.bf16.msra.mxu0 0
  %1332 = vmatprep.subr.bf16.mxu0 0
  %1333 = vmatpush2.bf16.msra.mxu0 0
  %1334 = vmatprep.subr.bf16.mxu0 0
  %1335 = vmatpush2.bf16.msra.mxu0 0
  %1336 = vmatprep.subr.bf16.mxu0 0
  %1337 = vmatpush2.bf16.msra.mxu0 0
  %1338 = vmatprep.mubr.bf16.mxu0 0
  %1339 = vmatmul.mubr.bf16.gmra.mxu0 %v1301
  %v1340 = vpop.f32.mrf.mxu0
  %v1341 = vadd.f32 0.0, %v1340
  %v1342 = vpop.f32.mrf.mxu0
  %v1343 = vpop.f32.mrf.mxu0
  %v1344 = vpop.f32.mrf.mxu0
  %1345 = vdwg.mxu0
  %v1359 = vunpack.c.l.b16 %v200
  %v1360 = vunpack.c.l.b16 %v201
  %v1361 = vunpack.c.l.b16 %v202
  %v1362 = vunpack.c.l.b16 %v203
  %v1363 = vunpack.c.l.b16 %v204
  %v1364 = vunpack.c.l.b16 %v205
  %v1365 = vunpack.c.l.b16 %v206
  %v1366 = vunpack.c.l.b16 %v207
  %v1367 = vunpack.c.l.b16 %v208
  %v1368 = vunpack.c.l.b16 %v209
  %v1369 = vunpack.c.l.b16 %v210
  %v1370 = vunpack.c.l.b16 %v211
  %v1371 = vunpack.c.l.b16 %v212
  %v1372 = vpack.c.b16 %v1360, %v1359
  %v1373 = vpack.c.b16 %v1362, %v1361
  %v1374 = vpack.c.b16 %v1364, %v1363
  %v1375 = vpack.c.b16 %v1366, %v1365
  %v1376 = vpack.c.b16 %v1368, %v1367
  %v1377 = vpack.c.b16 %v1370, %v1369
  %v1378 = vpack.c.b16 %v1371, %v1371
  %v1386 = vsel %vm278, %v28, 0
  %v1389 = vsel %vm282, %v1378, 0
  %1391 = vmatprep.subr.bf16.mxu0 0
  %1392 = vmatpush1.bf16.msra.mxu0 0
  %1393 = vmatprep.subr.bf16.mxu0 0
  %1394 = vmatpush1.bf16.msra.mxu0 %v1389
  %1395 = vmatprep.subr.bf16.mxu0 0
  %1396 = vmatpush1.bf16.msra.mxu0 %v1377
  %1397 = vmatprep.subr.bf16.mxu0 0
  %1398 = vmatpush1.bf16.msra.mxu0 %v1376
  %1399 = vmatprep.subr.bf16.mxu0 0
  %1400 = vmatpush1.bf16.msra.mxu0 %v1375
  %1401 = vmatprep.subr.bf16.mxu0 0
  %1402 = vmatpush1.bf16.msra.mxu0 %v1374
  %1403 = vmatprep.subr.bf16.mxu0 0
  %1404 = vmatpush1.bf16.msra.mxu0 %v1373
  %1405 = vmatprep.subr.bf16.mxu0 0
  %1406 = vmatpush1.bf16.msra.mxu0 %v1372
  %1407 = vmatprep.subr.bf16.mxu0 0
  %1408 = vmatpush2.bf16.msra.mxu0 0
  %1409 = vmatprep.subr.bf16.mxu0 0
  %1410 = vmatpush2.bf16.msra.mxu0 0
  %1411 = vmatprep.subr.bf16.mxu0 0
  %1412 = vmatpush2.bf16.msra.mxu0 0
  %1413 = vmatprep.subr.bf16.mxu0 0
  %1414 = vmatpush2.bf16.msra.mxu0 0
  %1415 = vmatprep.subr.bf16.mxu0 0
  %1416 = vmatpush2.bf16.msra.mxu0 0
  %1417 = vmatprep.subr.bf16.mxu0 0
  %1418 = vmatpush2.bf16.msra.mxu0 0
  %1419 = vmatprep.subr.bf16.mxu0 0
  %1420 = vmatpush2.bf16.msra.mxu0 0
  %1421 = vmatprep.subr.bf16.mxu0 0
  %1422 = vmatpush2.bf16.msra.mxu0 0
  %1423 = vmatprep.mubr.bf16.mxu0 0
  %1424 = vmatmul.mubr.bf16.gmra.mxu0 %v1386
  %v1425 = vpop.f32.mrf.mxu0
  %v1426 = vadd.f32 0.0, %v1425
  %v1427 = vpop.f32.mrf.mxu0
  %v1428 = vpop.f32.mrf.mxu0
  %v1429 = vpop.f32.mrf.mxu0
  %1430 = vdwg.mxu0
  %v1444 = vunpack.c.l.b16 %v213
  %v1445 = vunpack.c.l.b16 %v214
  %v1446 = vunpack.c.l.b16 %v215
  %v1447 = vunpack.c.l.b16 %v216
  %v1448 = vunpack.c.l.b16 %v217
  %v1449 = vunpack.c.l.b16 %v218
  %v1450 = vunpack.c.l.b16 %v219
  %v1451 = vunpack.c.l.b16 %v220
  %v1452 = vunpack.c.l.b16 %v221
  %v1453 = vunpack.c.l.b16 %v222
  %v1454 = vunpack.c.l.b16 %v223
  %v1455 = vunpack.c.l.b16 %v224
  %v1456 = vunpack.c.l.b16 %v225
  %v1457 = vpack.c.b16 %v1445, %v1444
  %v1458 = vpack.c.b16 %v1447, %v1446
  %v1459 = vpack.c.b16 %v1449, %v1448
  %v1460 = vpack.c.b16 %v1451, %v1450
  %v1461 = vpack.c.b16 %v1453, %v1452
  %v1462 = vpack.c.b16 %v1455, %v1454
  %v1463 = vpack.c.b16 %v1456, %v1456
  %v1471 = vsel %vm278, %v29, 0
  %v1474 = vsel %vm282, %v1463, 0
  %1476 = vmatprep.subr.bf16.mxu0 0
  %1477 = vmatpush1.bf16.msra.mxu0 0
  %1478 = vmatprep.subr.bf16.mxu0 0
  %1479 = vmatpush1.bf16.msra.mxu0 %v1474
  %1480 = vmatprep.subr.bf16.mxu0 0
  %1481 = vmatpush1.bf16.msra.mxu0 %v1462
  %1482 = vmatprep.subr.bf16.mxu0 0
  %1483 = vmatpush1.bf16.msra.mxu0 %v1461
  %1484 = vmatprep.subr.bf16.mxu0 0
  %1485 = vmatpush1.bf16.msra.mxu0 %v1460
  %1486 = vmatprep.subr.bf16.mxu0 0
  %1487 = vmatpush1.bf16.msra.mxu0 %v1459
  %1488 = vmatprep.subr.bf16.mxu0 0
  %1489 = vmatpush1.bf16.msra.mxu0 %v1458
  %1490 = vmatprep.subr.bf16.mxu0 0
  %1491 = vmatpush1.bf16.msra.mxu0 %v1457
  %1492 = vmatprep.subr.bf16.mxu0 0
  %1493 = vmatpush2.bf16.msra.mxu0 0
  %1494 = vmatprep.subr.bf16.mxu0 0
  %1495 = vmatpush2.bf16.msra.mxu0 0
  %1496 = vmatprep.subr.bf16.mxu0 0
  %1497 = vmatpush2.bf16.msra.mxu0 0
  %1498 = vmatprep.subr.bf16.mxu0 0
  %1499 = vmatpush2.bf16.msra.mxu0 0
  %1500 = vmatprep.subr.bf16.mxu0 0
  %1501 = vmatpush2.bf16.msra.mxu0 0
  %1502 = vmatprep.subr.bf16.mxu0 0
  %1503 = vmatpush2.bf16.msra.mxu0 0
  %1504 = vmatprep.subr.bf16.mxu0 0
  %1505 = vmatpush2.bf16.msra.mxu0 0
  %1506 = vmatprep.subr.bf16.mxu0 0
  %1507 = vmatpush2.bf16.msra.mxu0 0
  %1508 = vmatprep.mubr.bf16.mxu0 0
  %1509 = vmatmul.mubr.bf16.gmra.mxu0 %v1471
  %v1510 = vpop.f32.mrf.mxu0
  %v1511 = vadd.f32 0.0, %v1510
  %v1512 = vpop.f32.mrf.mxu0
  %v1513 = vpop.f32.mrf.mxu0
  %v1514 = vpop.f32.mrf.mxu0
  %1515 = vdwg.mxu0
  %v1529 = vunpack.c.l.b16 %v226
  %v1530 = vunpack.c.l.b16 %v227
  %v1531 = vunpack.c.l.b16 %v228
  %v1532 = vunpack.c.l.b16 %v229
  %v1533 = vunpack.c.l.b16 %v230
  %v1534 = vunpack.c.l.b16 %v231
  %v1535 = vunpack.c.l.b16 %v232
  %v1536 = vunpack.c.l.b16 %v233
  %v1537 = vunpack.c.l.b16 %v234
  %v1538 = vunpack.c.l.b16 %v235
  %v1539 = vunpack.c.l.b16 %v236
  %v1540 = vunpack.c.l.b16 %v237
  %v1541 = vunpack.c.l.b16 %v238
  %v1542 = vpack.c.b16 %v1530, %v1529
  %v1543 = vpack.c.b16 %v1532, %v1531
  %v1544 = vpack.c.b16 %v1534, %v1533
  %v1545 = vpack.c.b16 %v1536, %v1535
  %v1546 = vpack.c.b16 %v1538, %v1537
  %v1547 = vpack.c.b16 %v1540, %v1539
  %v1548 = vpack.c.b16 %v1541, %v1541
  %v1556 = vsel %vm278, %v30, 0
  %v1559 = vsel %vm282, %v1548, 0
  %1561 = vmatprep.subr.bf16.mxu0 0
  %1562 = vmatpush1.bf16.msra.mxu0 0
  %1563 = vmatprep.subr.bf16.mxu0 0
  %1564 = vmatpush1.bf16.msra.mxu0 %v1559
  %1565 = vmatprep.subr.bf16.mxu0 0
  %1566 = vmatpush1.bf16.msra.mxu0 %v1547
  %1567 = vmatprep.subr.bf16.mxu0 0
  %1568 = vmatpush1.bf16.msra.mxu0 %v1546
  %1569 = vmatprep.subr.bf16.mxu0 0
  %1570 = vmatpush1.bf16.msra.mxu0 %v1545
  %1571 = vmatprep.subr.bf16.mxu0 0
  %1572 = vmatpush1.bf16.msra.mxu0 %v1544
  %1573 = vmatprep.subr.bf16.mxu0 0
  %1574 = vmatpush1.bf16.msra.mxu0 %v1543
  %1575 = vmatprep.subr.bf16.mxu0 0
  %1576 = vmatpush1.bf16.msra.mxu0 %v1542
  %1577 = vmatprep.subr.bf16.mxu0 0
  %1578 = vmatpush2.bf16.msra.mxu0 0
  %1579 = vmatprep.subr.bf16.mxu0 0
  %1580 = vmatpush2.bf16.msra.mxu0 0
  %1581 = vmatprep.subr.bf16.mxu0 0
  %1582 = vmatpush2.bf16.msra.mxu0 0
  %1583 = vmatprep.subr.bf16.mxu0 0
  %1584 = vmatpush2.bf16.msra.mxu0 0
  %1585 = vmatprep.subr.bf16.mxu0 0
  %1586 = vmatpush2.bf16.msra.mxu0 0
  %1587 = vmatprep.subr.bf16.mxu0 0
  %1588 = vmatpush2.bf16.msra.mxu0 0
  %1589 = vmatprep.subr.bf16.mxu0 0
  %1590 = vmatpush2.bf16.msra.mxu0 0
  %1591 = vmatprep.subr.bf16.mxu0 0
  %1592 = vmatpush2.bf16.msra.mxu0 0
  %1593 = vmatprep.mubr.bf16.mxu0 0
  %1594 = vmatmul.mubr.bf16.gmra.mxu0 %v1556
  %v1595 = vpop.f32.mrf.mxu0
  %v1596 = vadd.f32 0.0, %v1595
  %v1597 = vpop.f32.mrf.mxu0
  %v1598 = vpop.f32.mrf.mxu0
  %v1599 = vpop.f32.mrf.mxu0
  %1600 = vdwg.mxu0
  %v1601 = vsel %vm282, %v321, 0.0
  %v1602 = vrot.slane %v1601, 4
  %v1603 = vadd.f32 %v1601, %v1602
  %v1604 = vrot.slane %v1603, 2
  %v1605 = vadd.f32 %v1603, %v1604
  %v1606 = vrot.slane %v1605, 1
  %v1607 = vadd.f32 %v1605, %v1606
  %v1608 = vsel %vm282, %v406, 0.0
  %v1609 = vrot.slane %v1608, 4
  %v1610 = vadd.f32 %v1608, %v1609
  %v1611 = vrot.slane %v1610, 2
  %v1612 = vadd.f32 %v1610, %v1611
  %v1613 = vrot.slane %v1612, 1
  %v1614 = vadd.f32 %v1612, %v1613
  %v1615 = vsel %vm282, %v491, 0.0
  %v1616 = vrot.slane %v1615, 4
  %v1617 = vadd.f32 %v1615, %v1616
  %v1618 = vrot.slane %v1617, 2
  %v1619 = vadd.f32 %v1617, %v1618
  %v1620 = vrot.slane %v1619, 1
  %v1621 = vadd.f32 %v1619, %v1620
  %v1622 = vsel %vm282, %v576, 0.0
  %v1623 = vrot.slane %v1622, 4
  %v1624 = vadd.f32 %v1622, %v1623
  %v1625 = vrot.slane %v1624, 2
  %v1626 = vadd.f32 %v1624, %v1625
  %v1627 = vrot.slane %v1626, 1
  %v1628 = vadd.f32 %v1626, %v1627
  %v1629 = vsel %vm282, %v661, 0.0
  %v1630 = vrot.slane %v1629, 4
  %v1631 = vadd.f32 %v1629, %v1630
  %v1632 = vrot.slane %v1631, 2
  %v1633 = vadd.f32 %v1631, %v1632
  %v1634 = vrot.slane %v1633, 1
  %v1635 = vadd.f32 %v1633, %v1634
  %v1636 = vsel %vm282, %v746, 0.0
  %v1637 = vrot.slane %v1636, 4
  %v1638 = vadd.f32 %v1636, %v1637
  %v1639 = vrot.slane %v1638, 2
  %v1640 = vadd.f32 %v1638, %v1639
  %v1641 = vrot.slane %v1640, 1
  %v1642 = vadd.f32 %v1640, %v1641
  %v1643 = vsel %vm282, %v831, 0.0
  %v1644 = vrot.slane %v1643, 4
  %v1645 = vadd.f32 %v1643, %v1644
  %v1646 = vrot.slane %v1645, 2
  %v1647 = vadd.f32 %v1645, %v1646
  %v1648 = vrot.slane %v1647, 1
  %v1649 = vadd.f32 %v1647, %v1648
  %v1650 = vsel %vm282, %v916, 0.0
  %v1651 = vrot.slane %v1650, 4
  %v1652 = vadd.f32 %v1650, %v1651
  %v1653 = vrot.slane %v1652, 2
  %v1654 = vadd.f32 %v1652, %v1653
  %v1655 = vrot.slane %v1654, 1
  %v1656 = vadd.f32 %v1654, %v1655
  %v1657 = vsel %vm282, %v1001, 0.0
  %v1658 = vrot.slane %v1657, 4
  %v1659 = vadd.f32 %v1657, %v1658
  %v1660 = vrot.slane %v1659, 2
  %v1661 = vadd.f32 %v1659, %v1660
  %v1662 = vrot.slane %v1661, 1
  %v1663 = vadd.f32 %v1661, %v1662
  %v1664 = vsel %vm282, %v1086, 0.0
  %v1665 = vrot.slane %v1664, 4
  %v1666 = vadd.f32 %v1664, %v1665
  %v1667 = vrot.slane %v1666, 2
  %v1668 = vadd.f32 %v1666, %v1667
  %v1669 = vrot.slane %v1668, 1
  %v1670 = vadd.f32 %v1668, %v1669
  %v1671 = vsel %vm282, %v1171, 0.0
  %v1672 = vrot.slane %v1671, 4
  %v1673 = vadd.f32 %v1671, %v1672
  %v1674 = vrot.slane %v1673, 2
  %v1675 = vadd.f32 %v1673, %v1674
  %v1676 = vrot.slane %v1675, 1
  %v1677 = vadd.f32 %v1675, %v1676
  %v1678 = vsel %vm282, %v1256, 0.0
  %v1679 = vrot.slane %v1678, 4
  %v1680 = vadd.f32 %v1678, %v1679
  %v1681 = vrot.slane %v1680, 2
  %v1682 = vadd.f32 %v1680, %v1681
  %v1683 = vrot.slane %v1682, 1
  %v1684 = vadd.f32 %v1682, %v1683
  %v1685 = vsel %vm282, %v1341, 0.0
  %v1686 = vrot.slane %v1685, 4
  %v1687 = vadd.f32 %v1685, %v1686
  %v1688 = vrot.slane %v1687, 2
  %v1689 = vadd.f32 %v1687, %v1688
  %v1690 = vrot.slane %v1689, 1
  %v1691 = vadd.f32 %v1689, %v1690
  %v1692 = vsel %vm282, %v1426, 0.0
  %v1693 = vrot.slane %v1692, 4
  %v1694 = vadd.f32 %v1692, %v1693
  %v1695 = vrot.slane %v1694, 2
  %v1696 = vadd.f32 %v1694, %v1695
  %v1697 = vrot.slane %v1696, 1
  %v1698 = vadd.f32 %v1696, %v1697
  %v1699 = vsel %vm282, %v1511, 0.0
  %v1700 = vrot.slane %v1699, 4
  %v1701 = vadd.f32 %v1699, %v1700
  %v1702 = vrot.slane %v1701, 2
  %v1703 = vadd.f32 %v1701, %v1702
  %v1704 = vrot.slane %v1703, 1
  %v1705 = vadd.f32 %v1703, %v1704
  %v1706 = vsel %vm282, %v1596, 0.0
  %v1707 = vrot.slane %v1706, 4
  %v1708 = vadd.f32 %v1706, %v1707
  %v1709 = vrot.slane %v1708, 2
  %v1710 = vadd.f32 %v1708, %v1709
  %v1711 = vrot.slane %v1710, 1
  %v1712 = vadd.f32 %v1710, %v1711
  %v1713 = vadd.f32 %v1607, %v1614
  %v1714 = vadd.f32 %v1713, %v1621
  %v1715 = vadd.f32 %v1714, %v1628
  %v1716 = vadd.f32 %v1715, %v1635
  %v1717 = vadd.f32 %v1716, %v1642
  %v1718 = vadd.f32 %v1717, %v1649
  %v1719 = vadd.f32 %v1718, %v1656
  %v1720 = vadd.f32 %v1719, %v1663
  %v1721 = vadd.f32 %v1720, %v1670
  %v1722 = vadd.f32 %v1721, %v1677
  %v1723 = vadd.f32 %v1722, %v1684
  %v1724 = vadd.f32 %v1723, %v1691
  %v1725 = vadd.f32 %v1724, %v1698
  %v1726 = vadd.f32 %v1725, %v1705
  %v1727 = vadd.f32 %v1726, %v1712
  %v1728 = vmul.f32 %v321, %v321
  %v1729 = vmul.f32 %v406, %v406
  %v1730 = vmul.f32 %v491, %v491
  %v1731 = vmul.f32 %v576, %v576
  %v1732 = vmul.f32 %v661, %v661
  %v1733 = vmul.f32 %v746, %v746
  %v1734 = vmul.f32 %v831, %v831
  %v1735 = vmul.f32 %v916, %v916
  %v1736 = vmul.f32 %v1001, %v1001
  %v1737 = vmul.f32 %v1086, %v1086
  %v1738 = vmul.f32 %v1171, %v1171
  %v1739 = vmul.f32 %v1256, %v1256
  %v1740 = vmul.f32 %v1341, %v1341
  %v1741 = vmul.f32 %v1426, %v1426
  %v1742 = vmul.f32 %v1511, %v1511
  %v1743 = vmul.f32 %v1596, %v1596
  %v1744 = vsel %vm282, %v1728, 0.0
  %v1745 = vrot.slane %v1744, 4
  %v1746 = vadd.f32 %v1744, %v1745
  %v1747 = vrot.slane %v1746, 2
  %v1748 = vadd.f32 %v1746, %v1747
  %v1749 = vrot.slane %v1748, 1
  %v1750 = vadd.f32 %v1748, %v1749
  %v1751 = vsel %vm282, %v1729, 0.0
  %v1752 = vrot.slane %v1751, 4
  %v1753 = vadd.f32 %v1751, %v1752
  %v1754 = vrot.slane %v1753, 2
  %v1755 = vadd.f32 %v1753, %v1754
  %v1756 = vrot.slane %v1755, 1
  %v1757 = vadd.f32 %v1755, %v1756
  %v1758 = vsel %vm282, %v1730, 0.0
  %v1759 = vrot.slane %v1758, 4
  %v1760 = vadd.f32 %v1758, %v1759
  %v1761 = vrot.slane %v1760, 2
  %v1762 = vadd.f32 %v1760, %v1761
  %v1763 = vrot.slane %v1762, 1
  %v1764 = vadd.f32 %v1762, %v1763
  %v1765 = vsel %vm282, %v1731, 0.0
  %v1766 = vrot.slane %v1765, 4
  %v1767 = vadd.f32 %v1765, %v1766
  %v1768 = vrot.slane %v1767, 2
  %v1769 = vadd.f32 %v1767, %v1768
  %v1770 = vrot.slane %v1769, 1
  %v1771 = vadd.f32 %v1769, %v1770
  %v1772 = vsel %vm282, %v1732, 0.0
  %v1773 = vrot.slane %v1772, 4
  %v1774 = vadd.f32 %v1772, %v1773
  %v1775 = vrot.slane %v1774, 2
  %v1776 = vadd.f32 %v1774, %v1775
  %v1777 = vrot.slane %v1776, 1
  %v1778 = vadd.f32 %v1776, %v1777
  %v1779 = vsel %vm282, %v1733, 0.0
  %v1780 = vrot.slane %v1779, 4
  %v1781 = vadd.f32 %v1779, %v1780
  %v1782 = vrot.slane %v1781, 2
  %v1783 = vadd.f32 %v1781, %v1782
  %v1784 = vrot.slane %v1783, 1
  %v1785 = vadd.f32 %v1783, %v1784
  %v1786 = vsel %vm282, %v1734, 0.0
  %v1787 = vrot.slane %v1786, 4
  %v1788 = vadd.f32 %v1786, %v1787
  %v1789 = vrot.slane %v1788, 2
  %v1790 = vadd.f32 %v1788, %v1789
  %v1791 = vrot.slane %v1790, 1
  %v1792 = vadd.f32 %v1790, %v1791
  %v1793 = vsel %vm282, %v1735, 0.0
  %v1794 = vrot.slane %v1793, 4
  %v1795 = vadd.f32 %v1793, %v1794
  %v1796 = vrot.slane %v1795, 2
  %v1797 = vadd.f32 %v1795, %v1796
  %v1798 = vrot.slane %v1797, 1
  %v1799 = vadd.f32 %v1797, %v1798
  %v1800 = vsel %vm282, %v1736, 0.0
  %v1801 = vrot.slane %v1800, 4
  %v1802 = vadd.f32 %v1800, %v1801
  %v1803 = vrot.slane %v1802, 2
  %v1804 = vadd.f32 %v1802, %v1803
  %v1805 = vrot.slane %v1804, 1
  %v1806 = vadd.f32 %v1804, %v1805
  %v1807 = vsel %vm282, %v1737, 0.0
  %v1808 = vrot.slane %v1807, 4
  %v1809 = vadd.f32 %v1807, %v1808
  %v1810 = vrot.slane %v1809, 2
  %v1811 = vadd.f32 %v1809, %v1810
  %v1812 = vrot.slane %v1811, 1
  %v1813 = vadd.f32 %v1811, %v1812
  %v1814 = vsel %vm282, %v1738, 0.0
  %v1815 = vrot.slane %v1814, 4
  %v1816 = vadd.f32 %v1814, %v1815
  %v1817 = vrot.slane %v1816, 2
  %v1818 = vadd.f32 %v1816, %v1817
  %v1819 = vrot.slane %v1818, 1
  %v1820 = vadd.f32 %v1818, %v1819
  %v1821 = vsel %vm282, %v1739, 0.0
  %v1822 = vrot.slane %v1821, 4
  %v1823 = vadd.f32 %v1821, %v1822
  %v1824 = vrot.slane %v1823, 2
  %v1825 = vadd.f32 %v1823, %v1824
  %v1826 = vrot.slane %v1825, 1
  %v1827 = vadd.f32 %v1825, %v1826
  %v1828 = vsel %vm282, %v1740, 0.0
  %v1829 = vrot.slane %v1828, 4
  %v1830 = vadd.f32 %v1828, %v1829
  %v1831 = vrot.slane %v1830, 2
  %v1832 = vadd.f32 %v1830, %v1831
  %v1833 = vrot.slane %v1832, 1
  %v1834 = vadd.f32 %v1832, %v1833
  %v1835 = vsel %vm282, %v1741, 0.0
  %v1836 = vrot.slane %v1835, 4
  %v1837 = vadd.f32 %v1835, %v1836
  %v1838 = vrot.slane %v1837, 2
  %v1839 = vadd.f32 %v1837, %v1838
  %v1840 = vrot.slane %v1839, 1
  %v1841 = vadd.f32 %v1839, %v1840
  %v1842 = vsel %vm282, %v1742, 0.0
  %v1843 = vrot.slane %v1842, 4
  %v1844 = vadd.f32 %v1842, %v1843
  %v1845 = vrot.slane %v1844, 2
  %v1846 = vadd.f32 %v1844, %v1845
  %v1847 = vrot.slane %v1846, 1
  %v1848 = vadd.f32 %v1846, %v1847
  %v1849 = vsel %vm282, %v1743, 0.0
  %v1850 = vrot.slane %v1849, 4
  %v1851 = vadd.f32 %v1849, %v1850
  %v1852 = vrot.slane %v1851, 2
  %v1853 = vadd.f32 %v1851, %v1852
  %v1854 = vrot.slane %v1853, 1
  %v1855 = vadd.f32 %v1853, %v1854
  %v1856 = vadd.f32 %v1750, %v1757
  %v1857 = vadd.f32 %v1856, %v1764
  %v1858 = vadd.f32 %v1857, %v1771
  %v1859 = vadd.f32 %v1858, %v1778
  %v1860 = vadd.f32 %v1859, %v1785
  %v1861 = vadd.f32 %v1860, %v1792
  %v1862 = vadd.f32 %v1861, %v1799
  %v1863 = vadd.f32 %v1862, %v1806
  %v1864 = vadd.f32 %v1863, %v1813
  %v1865 = vadd.f32 %v1864, %v1820
  %v1866 = vadd.f32 %v1865, %v1827
  %v1867 = vadd.f32 %v1866, %v1834
  %v1868 = vadd.f32 %v1867, %v1841
  %v1869 = vadd.f32 %v1868, %v1848
  %v1870 = vadd.f32 %v1869, %v1855
  %v1871 = vmul.f32 %v1727, 0.03125
  %v1872 = vmul.f32 %v1870, 0.03125
  %v1873 = vmul.f32 %v1871, %v1871
  %v1874 = vsub.f32 %v1872, %v1873
  %v1875 = vmax.f32 %v1874, 0.0
  %v1876 = vld [vmem:[%s2] sm:$0x3]
  %v1877 = vadd.f32 %v1875, 1e-05
  %v1878 = vrsqrt.pop %v1877
  %v1879 = vmul.f32 %v1876, %v1878
  %v1880 = vmul.f32 %v1879, %v1871
  %v1882 = vrot.slane %v1880, 7
  %v1884 = vsub.f32 %v1876, %v1882
  %v1885 = vlaneseq
  %v1886 = vshrl.u32 %v1885, 7
  %v1887 = vsub.s32 0, %v1886
  %v1888 = vrot.slane %v1879, %v1887
  %v1889 = vmul.f32 %v321, %v1888
  %v1890 = vmul.f32 %v406, %v1888
  %v1891 = vmul.f32 %v491, %v1888
  %v1892 = vmul.f32 %v576, %v1888
  %v1893 = vmul.f32 %v661, %v1888
  %v1894 = vmul.f32 %v746, %v1888
  %v1895 = vmul.f32 %v831, %v1888
  %v1896 = vmul.f32 %v916, %v1888
  %v1897 = vmul.f32 %v1001, %v1888
  %v1898 = vmul.f32 %v1086, %v1888
  %v1899 = vmul.f32 %v1171, %v1888
  %v1900 = vmul.f32 %v1256, %v1888
  %v1901 = vmul.f32 %v1341, %v1888
  %v1902 = vmul.f32 %v1426, %v1888
  %v1903 = vmul.f32 %v1511, %v1888
  %v1904 = vmul.f32 %v1596, %v1888
  %v1905 = vlaneseq
  %v1906 = vshrl.u32 %v1905, 7
  %v1907 = vsub.s32 1, %v1906
  %v1908 = vrot.slane %v1884, %v1907
  %v1909 = vadd.f32 %v1889, %v1908
  %v1910 = vadd.f32 %v1890, %v1908
  %v1911 = vadd.f32 %v1891, %v1908
  %v1912 = vadd.f32 %v1892, %v1908
  %v1913 = vadd.f32 %v1893, %v1908
  %v1914 = vadd.f32 %v1894, %v1908
  %v1915 = vadd.f32 %v1895, %v1908
  %v1916 = vadd.f32 %v1896, %v1908
  %v1917 = vadd.f32 %v1897, %v1908
  %v1918 = vadd.f32 %v1898, %v1908
  %v1919 = vadd.f32 %v1899, %v1908
  %v1920 = vadd.f32 %v1900, %v1908
  %v1921 = vadd.f32 %v1901, %v1908
  %v1922 = vadd.f32 %v1902, %v1908
  %v1923 = vadd.f32 %v1903, %v1908
  %v1924 = vadd.f32 %v1904, %v1908
  %v1925 = vmax.f32 %v1909, 0.0
  %v1926 = vmax.f32 %v1910, 0.0
  %v1927 = vmax.f32 %v1911, 0.0
  %v1928 = vmax.f32 %v1912, 0.0
  %v1929 = vmax.f32 %v1913, 0.0
  %v1930 = vmax.f32 %v1914, 0.0
  %v1931 = vmax.f32 %v1915, 0.0
  %v1932 = vmax.f32 %v1916, 0.0
  %v1933 = vmax.f32 %v1917, 0.0
  %v1934 = vmax.f32 %v1918, 0.0
  %v1935 = vmax.f32 %v1919, 0.0
  %v1936 = vmax.f32 %v1920, 0.0
  %v1937 = vmax.f32 %v1921, 0.0
  %v1938 = vmax.f32 %v1922, 0.0
  %v1939 = vmax.f32 %v1923, 0.0
  %v1940 = vmax.f32 %v1924, 0.0
  %1941 = vst [vmem:[%s3] sm:$0x3] %v1925
  %1942 = vst [vmem:[%s3 + $0x2] sm:$0x3] %v1926
  %1943 = vst [vmem:[%s3 + $0x4] sm:$0x3] %v1927
  %1944 = vst [vmem:[%s3 + $0x6] sm:$0x3] %v1928
  %1945 = vst [vmem:[%s3 + $0x8] sm:$0x3] %v1929
  %1946 = vst [vmem:[%s3 + $0xa] sm:$0x3] %v1930
  %1947 = vst [vmem:[%s3 + $0xc] sm:$0x3] %v1931
  %1948 = vst [vmem:[%s3 + $0xe] sm:$0x3] %v1932
  %1949 = vst [vmem:[%s3 + $0x10] sm:$0x3] %v1933
  %1950 = vst [vmem:[%s3 + $0x12] sm:$0x3] %v1934
  %1951 = vst [vmem:[%s3 + $0x14] sm:$0x3] %v1935
  %1952 = vst [vmem:[%s3 + $0x16] sm:$0x3] %v1936
  %1953 = vst [vmem:[%s3 + $0x18] sm:$0x3] %v1937
  %1954 = vst [vmem:[%s3 + $0x1a] sm:$0x3] %v1938
  %1955 = vst [vmem:[%s3 + $0x1c] sm:$0x3] %v1939
  %1956 = vst [vmem:[%s3 + $0x1e] sm:$0x3] %v1940
  // Predicated region
  $region14: #{dc_generator_forward.5} parent=0 // pred_check
    _
  $region15: #{dc_generator_forward.5} parent=0 // pred_check_branch
    %1958 = sbr.rel (0) target = $region17
  $region16: #{dc_generator_forward.5} parent=0 // pred_region
    _
  $region17: #{dc_generator_forward.5} parent=0 // pred_fallthru
    _
  // Predicated region
  $region18: #{dc_generator_forward.5} parent=0 // pred_check
    _
  $region19: #{dc_generator_forward.5} parent=0 // pred_check_branch
    %1960 = sbr.rel (0) target = $region21
  $region20: #{dc_generator_forward.5} parent=0 // pred_region
    _
  $region21: #{dc_generator_forward.5} parent=0 // pred_fallthru
    _

// kernel: dc_generator_forward.6
$region0: #{dc_generator_forward.6}
  #allocation0 [shape = 'u32[]', space=smem, size = 0x4, offset = 0x4, fixed_abs, tag = 'smem constant byte address 0x4 - core index']
  #allocation1 [shape = 'u32[144,128]{1,0:T(1,128)}', space=vmem, size = 0x12000, scoped, tag = 'internal scratch']
  %s0 = inlined_call_operand.vmem [shape: bf16[4,32,512], index: 0, kind: input, shape index: {}]
  %s1 = inlined_call_operand.vmem [shape: bf16[4,512,128], index: 1, kind: input, shape index: {}]
  %s2 = inlined_call_operand.vmem [shape: f32[2,128], index: 2, kind: input, shape index: {}]
  %s3 = inlined_call_operand.vmem [shape: f32[4,32,128], index: 3, kind: output, shape index: {}]
  %s4 = sld [smem:[#allocation0]]
  $region22: #{dc_generator_forward.6} parent=0
    _
  %s6 = ssub.s32 1, %s4
  %s7 = scalar_select 0, %s6, %s4
  // Predicated region
  $region2: #{dc_generator_forward.6} parent=0 // pred_check
    _
  $region3: #{dc_generator_forward.6} parent=0 // pred_check_branch
    %9 = sbr.rel (0) target = $region5
  $region4: #{dc_generator_forward.6} parent=0 // pred_region
    _
  $region5: #{dc_generator_forward.6} parent=0 // pred_fallthru
    _
  // Predicated region
  $region6: #{dc_generator_forward.6} parent=0 // pred_check
    _
  $region7: #{dc_generator_forward.6} parent=0 // pred_check_branch
    %11 = sbr.rel (0) target = $region9
  $region8: #{dc_generator_forward.6} parent=0 // pred_region
    _
  $region9: #{dc_generator_forward.6} parent=0 // pred_fallthru
    _
  // Predicated region
  $region10: #{dc_generator_forward.6} parent=0 // pred_check
    _
  $region11: #{dc_generator_forward.6} parent=0 // pred_check_branch
    %13 = sbr.rel (0) target = $region13
  $region12: #{dc_generator_forward.6} parent=0 // pred_region
    _
  $region13: #{dc_generator_forward.6} parent=0 // pred_fallthru
    _
  %v15 = vld [vmem:[%s0] sm:$0xff]
  %v16 = vld [vmem:[%s0 + $0x8] sm:$0xff]
  %v17 = vld [vmem:[%s0 + $0x10] sm:$0xff]
  %v18 = vld [vmem:[%s0 + $0x18] sm:$0xff]
  %v19 = vld [vmem:[%s0 + $0x20] sm:$0xff]
  %v20 = vld [vmem:[%s0 + $0x28] sm:$0xff]
  %v21 = vld [vmem:[%s0 + $0x30] sm:$0xff]
  %v22 = vld [vmem:[%s0 + $0x38] sm:$0xff]
  %v23 = vld [vmem:[%s0 + $0x40] sm:$0xff]
  %v24 = vld [vmem:[%s0 + $0x48] sm:$0xff]
  %v25 = vld [vmem:[%s0 + $0x50] sm:$0xff]
  %v26 = vld [vmem:[%s0 + $0x58] sm:$0xff]
  %v27 = vld [vmem:[%s0 + $0x60] sm:$0xff]
  %v28 = vld [vmem:[%s0 + $0x68] sm:$0xff]
  %v29 = vld [vmem:[%s0 + $0x70] sm:$0xff]
  %v30 = vld [vmem:[%s0 + $0x78] sm:$0xff]
  %v31 = vld [vmem:[%s0 + $0x80] sm:$0xff]
  %v32 = vld [vmem:[%s0 + $0x88] sm:$0xff]
  %v33 = vld [vmem:[%s0 + $0x90] sm:$0xff]
  %v34 = vld [vmem:[%s0 + $0x98] sm:$0xff]
  %v35 = vld [vmem:[%s0 + $0xa0] sm:$0xff]
  %v36 = vld [vmem:[%s0 + $0xa8] sm:$0xff]
  %v37 = vld [vmem:[%s0 + $0xb0] sm:$0xff]
  %v38 = vld [vmem:[%s0 + $0xb8] sm:$0xff]
  %v39 = vld [vmem:[%s0 + $0xc0] sm:$0xff]
  %v40 = vld [vmem:[%s0 + $0xc8] sm:$0xff]
  %v41 = vld [vmem:[%s0 + $0xd0] sm:$0xff]
  %v42 = vld [vmem:[%s0 + $0xd8] sm:$0xff]
  %v43 = vld [vmem:[%s0 + $0xe0] sm:$0xff]
  %v44 = vld [vmem:[%s0 + $0xe8] sm:$0xff]
  %v45 = vld [vmem:[%s0 + $0xf0] sm:$0xff]
  %v46 = vld [vmem:[%s0 + $0xf8] sm:$0xff]
  %v47 = vld [vmem:[%s1] sm:$0xf]
  %v48 = vld [vmem:[%s1 + $0x4] sm:$0xf]
  %v49 = vld [vmem:[%s1 + $0x8] sm:$0xf]
  %v50 = vld [vmem:[%s1 + $0xc] sm:$0xf]
  %v51 = vld [vmem:[%s1 + $0x10] sm:$0xf]
  %v52 = vld [vmem:[%s1 + $0x14] sm:$0xf]
  %v53 = vld [vmem:[%s1 + $0x18] sm:$0xf]
  %v54 = vld [vmem:[%s1 + $0x1c] sm:$0xf]
  %v55 = vld [vmem:[%s1 + $0x20] sm:$0xf]
  %v56 = vld [vmem:[%s1 + $0x24] sm:$0xf]
  %v57 = vld [vmem:[%s1 + $0x28] sm:$0xf]
  %v58 = vld [vmem:[%s1 + $0x2c] sm:$0xf]
  %v59 = vld [vmem:[%s1 + $0x30] sm:$0xf]
  %v60 = vld [vmem:[%s1 + $0x34] sm:$0xf]
  %v61 = vld [vmem:[%s1 + $0x38] sm:$0xf]
  %v62 = vld [vmem:[%s1 + $0x3c] sm:$0xf]
  %v63 = vld [vmem:[%s1 + $0x40] sm:$0xf]
  %v64 = vld [vmem:[%s1 + $0x44] sm:$0xf]
  %v65 = vld [vmem:[%s1 + $0x48] sm:$0xf]
  %v66 = vld [vmem:[%s1 + $0x4c] sm:$0xf]
  %v67 = vld [vmem:[%s1 + $0x50] sm:$0xf]
  %v68 = vld [vmem:[%s1 + $0x54] sm:$0xf]
  %v69 = vld [vmem:[%s1 + $0x58] sm:$0xf]
  %v70 = vld [vmem:[%s1 + $0x5c] sm:$0xf]
  %v71 = vld [vmem:[%s1 + $0x60] sm:$0xf]
  %v72 = vld [vmem:[%s1 + $0x64] sm:$0xf]
  %v73 = vld [vmem:[%s1 + $0x68] sm:$0xf]
  %v74 = vld [vmem:[%s1 + $0x6c] sm:$0xf]
  %v75 = vld [vmem:[%s1 + $0x70] sm:$0xf]
  %v76 = vld [vmem:[%s1 + $0x74] sm:$0xf]
  %v77 = vld [vmem:[%s1 + $0x78] sm:$0xf]
  %v78 = vld [vmem:[%s1 + $0x7c] sm:$0xf]
  %v79 = vld [vmem:[%s1 + $0x80] sm:$0xf]
  %v80 = vld [vmem:[%s1 + $0x84] sm:$0xf]
  %v81 = vld [vmem:[%s1 + $0x88] sm:$0xf]
  %v82 = vld [vmem:[%s1 + $0x8c] sm:$0xf]
  %v83 = vld [vmem:[%s1 + $0x90] sm:$0xf]
  %v84 = vld [vmem:[%s1 + $0x94] sm:$0xf]
  %v85 = vld [vmem:[%s1 + $0x98] sm:$0xf]
  %v86 = vld [vmem:[%s1 + $0x9c] sm:$0xf]
  %v87 = vld [vmem:[%s1 + $0xa0] sm:$0xf]
  %v88 = vld [vmem:[%s1 + $0xa4] sm:$0xf]
  %v89 = vld [vmem:[%s1 + $0xa8] sm:$0xf]
  %v90 = vld [vmem:[%s1 + $0xac] sm:$0xf]
  %v91 = vld [vmem:[%s1 + $0xb0] sm:$0xf]
  %v92 = vld [vmem:[%s1 + $0xb4] sm:$0xf]
  %v93 = vld [vmem:[%s1 + $0xb8] sm:$0xf]
  %v94 = vld [vmem:[%s1 + $0xbc] sm:$0xf]
  %v95 = vld [vmem:[%s1 + $0xc0] sm:$0xf]
  %v96 = vld [vmem:[%s1 + $0xc4] sm:$0xf]
  %v97 = vld [vmem:[%s1 + $0xc8] sm:$0xf]
  %v98 = vld [vmem:[%s1 + $0xcc] sm:$0xf]
  %v99 = vld [vmem:[%s1 + $0xd0] sm:$0xf]
  %v100 = vld [vmem:[%s1 + $0xd4] sm:$0xf]
  %v101 = vld [vmem:[%s1 + $0xd8] sm:$0xf]
  %v102 = vld [vmem:[%s1 + $0xdc] sm:$0xf]
  %v103 = vld [vmem:[%s1 + $0xe0] sm:$0xf]
  %v104 = vld [vmem:[%s1 + $0xe4] sm:$0xf]
  %v105 = vld [vmem:[%s1 + $0xe8] sm:$0xf]
  %v106 = vld [vmem:[%s1 + $0xec] sm:$0xf]
  %v107 = vld [vmem:[%s1 + $0xf0] sm:$0xf]
  %v108 = vld [vmem:[%s1 + $0xf4] sm:$0xf]
  %v109 = vld [vmem:[%s1 + $0xf8] sm:$0xf]
  %v110 = vld [vmem:[%s1 + $0xfc] sm:$0xf]
  %v111 = vld [vmem:[%s1 + $0x100] sm:$0xf]
  %v112 = vld [vmem:[%s1 + $0x104] sm:$0xf]
  %v113 = vld [vmem:[%s1 + $0x108] sm:$0xf]
  %v114 = vld [vmem:[%s1 + $0x10c] sm:$0xf]
  %v115 = vld [vmem:[%s1 + $0x110] sm:$0xf]
  %v116 = vld [vmem:[%s1 + $0x114] sm:$0xf]
  %v117 = vld [vmem:[%s1 + $0x118] sm:$0xf]
  %v118 = vld [vmem:[%s1 + $0x11c] sm:$0xf]
  %v119 = vld [vmem:[%s1 + $0x120] sm:$0xf]
  %v120 = vld [vmem:[%s1 + $0x124] sm:$0xf]
  %v121 = vld [vmem:[%s1 + $0x128] sm:$0xf]
  %v122 = vld [vmem:[%s1 + $0x12c] sm:$0xf]
  %v123 = vld [vmem:[%s1 + $0x130] sm:$0xf]
  %v124 = vld [vmem:[%s1 + $0x134] sm:$0xf]
  %v125 = vld [vmem:[%s1 + $0x138] sm:$0xf]
  %v126 = vld [vmem:[%s1 + $0x13c] sm:$0xf]
  %v127 = vld [vmem:[%s1 + $0x140] sm:$0xf]
  %v128 = vld [vmem:[%s1 + $0x144] sm:$0xf]
  %v129 = vld [vmem:[%s1 + $0x148] sm:$0xf]
  %v130 = vld [vmem:[%s1 + $0x14c] sm:$0xf]
  %v131 = vld [vmem:[%s1 + $0x150] sm:$0xf]
  %v132 = vld [vmem:[%s1 + $0x154] sm:$0xf]
  %v133 = vld [vmem:[%s1 + $0x158] sm:$0xf]
  %v134 = vld [vmem:[%s1 + $0x15c] sm:$0xf]
  %v135 = vld [vmem:[%s1 + $0x160] sm:$0xf]
  %v136 = vld [vmem:[%s1 + $0x164] sm:$0xf]
  %v137 = vld [vmem:[%s1 + $0x168] sm:$0xf]
  %v138 = vld [vmem:[%s1 + $0x16c] sm:$0xf]
  %v139 = vld [vmem:[%s1 + $0x170] sm:$0xf]
  %v140 = vld [vmem:[%s1 + $0x174] sm:$0xf]
  %v141 = vld [vmem:[%s1 + $0x178] sm:$0xf]
  %v142 = vld [vmem:[%s1 + $0x17c] sm:$0xf]
  %v143 = vld [vmem:[%s1 + $0x180] sm:$0xf]
  %v144 = vld [vmem:[%s1 + $0x184] sm:$0xf]
  %v145 = vld [vmem:[%s1 + $0x188] sm:$0xf]
  %v146 = vld [vmem:[%s1 + $0x18c] sm:$0xf]
  %v147 = vld [vmem:[%s1 + $0x190] sm:$0xf]
  %v148 = vld [vmem:[%s1 + $0x194] sm:$0xf]
  %v149 = vld [vmem:[%s1 + $0x198] sm:$0xf]
  %v150 = vld [vmem:[%s1 + $0x19c] sm:$0xf]
  %v151 = vld [vmem:[%s1 + $0x1a0] sm:$0xf]
  %v152 = vld [vmem:[%s1 + $0x1a4] sm:$0xf]
  %v153 = vld [vmem:[%s1 + $0x1a8] sm:$0xf]
  %v154 = vld [vmem:[%s1 + $0x1ac] sm:$0xf]
  %v155 = vld [vmem:[%s1 + $0x1b0] sm:$0xf]
  %v156 = vld [vmem:[%s1 + $0x1b4] sm:$0xf]
  %v157 = vld [vmem:[%s1 + $0x1b8] sm:$0xf]
  %v158 = vld [vmem:[%s1 + $0x1bc] sm:$0xf]
  %v159 = vld [vmem:[%s1 + $0x1c0] sm:$0xf]
  %v160 = vld [vmem:[%s1 + $0x1c4] sm:$0xf]
  %v161 = vld [vmem:[%s1 + $0x1c8] sm:$0xf]
  %v162 = vld [vmem:[%s1 + $0x1cc] sm:$0xf]
  %v163 = vld [vmem:[%s1 + $0x1d0] sm:$0xf]
  %v164 = vld [vmem:[%s1 + $0x1d4] sm:$0xf]
  %v165 = vld [vmem:[%s1 + $0x1d8] sm:$0xf]
  %v166 = vld [vmem:[%s1 + $0x1dc] sm:$0xf]
  %v167 = vld [vmem:[%s1 + $0x1e0] sm:$0xf]
  %v168 = vld [vmem:[%s1 + $0x1e4] sm:$0xf]
  %v169 = vld [vmem:[%s1 + $0x1e8] sm:$0xf]
  %v170 = vld [vmem:[%s1 + $0x1ec] sm:$0xf]
  %v171 = vld [vmem:[%s1 + $0x1f0] sm:$0xf]
  %v172 = vld [vmem:[%s1 + $0x1f4] sm:$0xf]
  %v173 = vld [vmem:[%s1 + $0x1f8] sm:$0xf]
  %v174 = vld [vmem:[%s1 + $0x1fc] sm:$0xf]
  %v175 = vld [vmem:[%s1 + $0x200] sm:$0xf]
  %v176 = vld [vmem:[%s1 + $0x204] sm:$0xf]
  %v177 = vld [vmem:[%s1 + $0x208] sm:$0xf]
  %v178 = vld [vmem:[%s1 + $0x20c] sm:$0xf]
  %v179 = vld [vmem:[%s1 + $0x210] sm:$0xf]
  %v180 = vld [vmem:[%s1 + $0x214] sm:$0xf]
  %v181 = vld [vmem:[%s1 + $0x218] sm:$0xf]
  %v182 = vld [vmem:[%s1 + $0x21c] sm:$0xf]
  %v183 = vld [vmem:[%s1 + $0x220] sm:$0xf]
  %v184 = vld [vmem:[%s1 + $0x224] sm:$0xf]
  %v185 = vld [vmem:[%s1 + $0x228] sm:$0xf]
  %v186 = vld [vmem:[%s1 + $0x22c] sm:$0xf]
  %v187 = vld [vmem:[%s1 + $0x230] sm:$0xf]
  %v188 = vld [vmem:[%s1 + $0x234] sm:$0xf]
  %v189 = vld [vmem:[%s1 + $0x238] sm:$0xf]
  %v190 = vld [vmem:[%s1 + $0x23c] sm:$0xf]
  %v191 = vld [vmem:[%s1 + $0x240] sm:$0xf]
  %v192 = vld [vmem:[%s1 + $0x244] sm:$0xf]
  %v193 = vld [vmem:[%s1 + $0x248] sm:$0xf]
  %v194 = vld [vmem:[%s1 + $0x24c] sm:$0xf]
  %v195 = vld [vmem:[%s1 + $0x250] sm:$0xf]
  %v196 = vld [vmem:[%s1 + $0x254] sm:$0xf]
  %v197 = vld [vmem:[%s1 + $0x258] sm:$0xf]
  %v198 = vld [vmem:[%s1 + $0x25c] sm:$0xf]
  %v199 = vld [vmem:[%s1 + $0x260] sm:$0xf]
  %v200 = vld [vmem:[%s1 + $0x264] sm:$0xf]
  %v201 = vld [vmem:[%s1 + $0x268] sm:$0xf]
  %v202 = vld [vmem:[%s1 + $0x26c] sm:$0xf]
  %v203 = vld [vmem:[%s1 + $0x270] sm:$0xf]
  %v204 = vld [vmem:[%s1 + $0x274] sm:$0xf]
  %v205 = vld [vmem:[%s1 + $0x278] sm:$0xf]
  %v206 = vld [vmem:[%s1 + $0x27c] sm:$0xf]
  %v207 = vld [vmem:[%s1 + $0x280] sm:$0xf]
  %v208 = vld [vmem:[%s1 + $0x284] sm:$0xf]
  %v209 = vld [vmem:[%s1 + $0x288] sm:$0xf]
  %v210 = vld [vmem:[%s1 + $0x28c] sm:$0xf]
  %v211 = vld [vmem:[%s1 + $0x290] sm:$0xf]
  %v212 = vld [vmem:[%s1 + $0x294] sm:$0xf]
  %v213 = vld [vmem:[%s1 + $0x298] sm:$0xf]
  %v214 = vld [vmem:[%s1 + $0x29c] sm:$0xf]
  %v215 = vld [vmem:[%s1 + $0x2a0] sm:$0xf]
  %v216 = vld [vmem:[%s1 + $0x2a4] sm:$0xf]
  %v217 = vld [vmem:[%s1 + $0x2a8] sm:$0xf]
  %v218 = vld [vmem:[%s1 + $0x2ac] sm:$0xf]
  %v219 = vld [vmem:[%s1 + $0x2b0] sm:$0xf]
  %v220 = vld [vmem:[%s1 + $0x2b4] sm:$0xf]
  %v221 = vld [vmem:[%s1 + $0x2b8] sm:$0xf]
  %v222 = vld [vmem:[%s1 + $0x2bc] sm:$0xf]
  %v223 = vld [vmem:[%s1 + $0x2c0] sm:$0xf]
  %v224 = vld [vmem:[%s1 + $0x2c4] sm:$0xf]
  %v225 = vld [vmem:[%s1 + $0x2c8] sm:$0xf]
  %v226 = vld [vmem:[%s1 + $0x2cc] sm:$0xf]
  %v227 = vld [vmem:[%s1 + $0x2d0] sm:$0xf]
  %v228 = vld [vmem:[%s1 + $0x2d4] sm:$0xf]
  %v229 = vld [vmem:[%s1 + $0x2d8] sm:$0xf]
  %v230 = vld [vmem:[%s1 + $0x2dc] sm:$0xf]
  %v231 = vld [vmem:[%s1 + $0x2e0] sm:$0xf]
  %v232 = vld [vmem:[%s1 + $0x2e4] sm:$0xf]
  %v233 = vld [vmem:[%s1 + $0x2e8] sm:$0xf]
  %v234 = vld [vmem:[%s1 + $0x2ec] sm:$0xf]
  %v235 = vld [vmem:[%s1 + $0x2f0] sm:$0xf]
  %v236 = vld [vmem:[%s1 + $0x2f4] sm:$0xf]
  %v237 = vld [vmem:[%s1 + $0x2f8] sm:$0xf]
  %v238 = vld [vmem:[%s1 + $0x2fc] sm:$0xf]
  %v239 = vld [vmem:[%s1 + $0x300] sm:$0xf]
  %v240 = vld [vmem:[%s1 + $0x304] sm:$0xf]
  %v241 = vld [vmem:[%s1 + $0x308] sm:$0xf]
  %v242 = vld [vmem:[%s1 + $0x30c] sm:$0xf]
  %v243 = vld [vmem:[%s1 + $0x310] sm:$0xf]
  %v244 = vld [vmem:[%s1 + $0x314] sm:$0xf]
  %v245 = vld [vmem:[%s1 + $0x318] sm:$0xf]
  %v246 = vld [vmem:[%s1 + $0x31c] sm:$0xf]
  %v247 = vld [vmem:[%s1 + $0x320] sm:$0xf]
  %v248 = vld [vmem:[%s1 + $0x324] sm:$0xf]
  %v249 = vld [vmem:[%s1 + $0x328] sm:$0xf]
  %v250 = vld [vmem:[%s1 + $0x32c] sm:$0xf]
  %v251 = vld [vmem:[%s1 + $0x330] sm:$0xf]
  %v252 = vld [vmem:[%s1 + $0x334] sm:$0xf]
  %v253 = vld [vmem:[%s1 + $0x338] sm:$0xf]
  %v254 = vld [vmem:[%s1 + $0x33c] sm:$0xf]
  %v255 = vld [vmem:[%s1 + $0x340] sm:$0xf]
  %v256 = vld [vmem:[%s1 + $0x344] sm:$0xf]
  %v257 = vld [vmem:[%s1 + $0x348] sm:$0xf]
  %v258 = vld [vmem:[%s1 + $0x34c] sm:$0xf]
  %v259 = vld [vmem:[%s1 + $0x350] sm:$0xf]
  %v260 = vld [vmem:[%s1 + $0x354] sm:$0xf]
  %v261 = vld [vmem:[%s1 + $0x358] sm:$0xf]
  %v262 = vld [vmem:[%s1 + $0x35c] sm:$0xf]
  %v263 = vld [vmem:[%s1 + $0x360] sm:$0xf]
  %v264 = vld [vmem:[%s1 + $0x364] sm:$0xf]
  %v265 = vld [vmem:[%s1 + $0x368] sm:$0xf]
  %v266 = vld [vmem:[%s1 + $0x36c] sm:$0xf]
  %v267 = vld [vmem:[%s1 + $0x370] sm:$0xf]
  %v268 = vld [vmem:[%s1 + $0x374] sm:$0xf]
  %v269 = vld [vmem:[%s1 + $0x378] sm:$0xf]
  %v270 = vld [vmem:[%s1 + $0x37c] sm:$0xf]
  %v271 = vld [vmem:[%s1 + $0x380] sm:$0xf]
  %v272 = vld [vmem:[%s1 + $0x384] sm:$0xf]
  %v273 = vld [vmem:[%s1 + $0x388] sm:$0xf]
  %v274 = vld [vmem:[%s1 + $0x38c] sm:$0xf]
  %v275 = vld [vmem:[%s1 + $0x390] sm:$0xf]
  %v276 = vld [vmem:[%s1 + $0x394] sm:$0xf]
  %v277 = vld [vmem:[%s1 + $0x398] sm:$0xf]
  %v278 = vld [vmem:[%s1 + $0x39c] sm:$0xf]
  %v279 = vld [vmem:[%s1 + $0x3a0] sm:$0xf]
  %v280 = vld [vmem:[%s1 + $0x3a4] sm:$0xf]
  %v281 = vld [vmem:[%s1 + $0x3a8] sm:$0xf]
  %v282 = vld [vmem:[%s1 + $0x3ac] sm:$0xf]
  %v283 = vld [vmem:[%s1 + $0x3b0] sm:$0xf]
  %v284 = vld [vmem:[%s1 + $0x3b4] sm:$0xf]
  %v285 = vld [vmem:[%s1 + $0x3b8] sm:$0xf]
  %v286 = vld [vmem:[%s1 + $0x3bc] sm:$0xf]
  %v287 = vld [vmem:[%s1 + $0x3c0] sm:$0xf]
  %v288 = vld [vmem:[%s1 + $0x3c4] sm:$0xf]
  %v289 = vld [vmem:[%s1 + $0x3c8] sm:$0xf]
  %v290 = vld [vmem:[%s1 + $0x3cc] sm:$0xf]
  %v291 = vld [vmem:[%s1 + $0x3d0] sm:$0xf]
  %v292 = vld [vmem:[%s1 + $0x3d4] sm:$0xf]
  %v293 = vld [vmem:[%s1 + $0x3d8] sm:$0xf]
  %v294 = vld [vmem:[%s1 + $0x3dc] sm:$0xf]
  %v295 = vld [vmem:[%s1 + $0x3e0] sm:$0xf]
  %v296 = vld [vmem:[%s1 + $0x3e4] sm:$0xf]
  %v297 = vld [vmem:[%s1 + $0x3e8] sm:$0xf]
  %v298 = vld [vmem:[%s1 + $0x3ec] sm:$0xf]
  %v299 = vld [vmem:[%s1 + $0x3f0] sm:$0xf]
  %v300 = vld [vmem:[%s1 + $0x3f4] sm:$0xf]
  %v301 = vld [vmem:[%s1 + $0x3f8] sm:$0xf]
  %v302 = vld [vmem:[%s1 + $0x3fc] sm:$0xf]
  %v311 = vunpack.c.l.b16 %v15
  %v312 = vunpack.c.h.b16 %v15
  %v313 = vunpack.c.l.b16 %v16
  %v314 = vunpack.c.h.b16 %v16
  %v315 = vunpack.c.l.b16 %v17
  %v316 = vunpack.c.h.b16 %v17
  %v317 = vunpack.c.l.b16 %v18
  %v318 = vunpack.c.h.b16 %v18
  %v319 = vunpack.c.l.b16 %v19
  %v320 = vunpack.c.h.b16 %v19
  %v321 = vunpack.c.l.b16 %v20
  %v322 = vunpack.c.h.b16 %v20
  %v323 = vunpack.c.l.b16 %v21
  %v324 = vunpack.c.h.b16 %v21
  %v325 = vunpack.c.l.b16 %v22
  %v326 = vunpack.c.h.b16 %v22
  %v327 = vpack.c.b16 %v315, %v311
  %v328 = vpack.c.b16 %v316, %v312
  %v329 = vpack.c.b16 %v317, %v313
  %v330 = vpack.c.b16 %v318, %v314
  %v331 = vpack.c.b16 %v323, %v319
  %v332 = vpack.c.b16 %v324, %v320
  %v333 = vpack.c.b16 %v325, %v321
  %v334 = vpack.c.b16 %v326, %v322
  %v407 = vunpack.c.l.b16 %v47
  %v408 = vunpack.c.l.b16 %v48
  %v409 = vunpack.c.l.b16 %v49
  %v410 = vunpack.c.l.b16 %v50
  %v411 = vunpack.c.l.b16 %v51
  %v412 = vunpack.c.l.b16 %v52
  %v413 = vunpack.c.l.b16 %v53
  %v414 = vunpack.c.l.b16 %v54
  %v415 = vunpack.c.l.b16 %v55
  %v416 = vunpack.c.l.b16 %v56
  %v417 = vunpack.c.l.b16 %v57
  %v418 = vunpack.c.l.b16 %v58
  %v419 = vunpack.c.l.b16 %v59
  %v420 = vunpack.c.l.b16 %v60
  %v421 = vunpack.c.l.b16 %v61
  %v422 = vunpack.c.l.b16 %v62
  %v423 = vunpack.c.l.b16 %v63
  %v424 = vunpack.c.l.b16 %v64
  %v425 = vunpack.c.l.b16 %v65
  %v426 = vunpack.c.l.b16 %v66
  %v427 = vunpack.c.l.b16 %v67
  %v428 = vunpack.c.l.b16 %v68
  %v429 = vunpack.c.l.b16 %v69
  %v430 = vunpack.c.l.b16 %v70
  %v431 = vunpack.c.l.b16 %v71
  %v432 = vunpack.c.l.b16 %v72
  %v433 = vunpack.c.l.b16 %v73
  %v434 = vunpack.c.l.b16 %v74
  %v435 = vunpack.c.l.b16 %v75
  %v436 = vunpack.c.l.b16 %v76
  %v437 = vunpack.c.l.b16 %v77
  %v438 = vunpack.c.l.b16 %v78
  %v439 = vunpack.c.l.b16 %v79
  %v440 = vunpack.c.l.b16 %v80
  %v441 = vunpack.c.l.b16 %v81
  %v442 = vunpack.c.l.b16 %v82
  %v443 = vunpack.c.l.b16 %v83
  %v444 = vunpack.c.l.b16 %v84
  %v445 = vunpack.c.l.b16 %v85
  %v446 = vunpack.c.l.b16 %v86
  %v447 = vunpack.c.l.b16 %v87
  %v448 = vunpack.c.l.b16 %v88
  %v449 = vunpack.c.l.b16 %v89
  %v450 = vunpack.c.l.b16 %v90
  %v451 = vunpack.c.l.b16 %v91
  %v452 = vunpack.c.l.b16 %v92
  %v453 = vunpack.c.l.b16 %v93
  %v454 = vunpack.c.l.b16 %v94
  %v455 = vunpack.c.l.b16 %v95
  %v456 = vunpack.c.l.b16 %v96
  %v457 = vunpack.c.l.b16 %v97
  %v458 = vunpack.c.l.b16 %v98
  %v459 = vunpack.c.l.b16 %v99
  %v460 = vunpack.c.l.b16 %v100
  %v461 = vunpack.c.l.b16 %v101
  %v462 = vunpack.c.l.b16 %v102
  %v463 = vunpack.c.l.b16 %v103
  %v464 = vunpack.c.l.b16 %v104
  %v465 = vunpack.c.l.b16 %v105
  %v466 = vunpack.c.l.b16 %v106
  %v467 = vunpack.c.l.b16 %v107
  %v468 = vunpack.c.l.b16 %v108
  %v469 = vunpack.c.l.b16 %v109
  %v470 = vunpack.c.l.b16 %v110
  %v471 = vpack.c.b16 %v408, %v407
  %v472 = vpack.c.b16 %v410, %v409
  %v473 = vpack.c.b16 %v412, %v411
  %v474 = vpack.c.b16 %v414, %v413
  %v475 = vpack.c.b16 %v416, %v415
  %v476 = vpack.c.b16 %v418, %v417
  %v477 = vpack.c.b16 %v420, %v419
  %v478 = vpack.c.b16 %v422, %v421
  %v479 = vpack.c.b16 %v424, %v423
  %v480 = vpack.c.b16 %v426, %v425
  %v481 = vpack.c.b16 %v428, %v427
  %v482 = vpack.c.b16 %v430, %v429
  %v483 = vpack.c.b16 %v432, %v431
  %v484 = vpack.c.b16 %v434, %v433
  %v485 = vpack.c.b16 %v436, %v435
  %v486 = vpack.c.b16 %v438, %v437
  %v487 = vpack.c.b16 %v440, %v439
  %v488 = vpack.c.b16 %v442, %v441
  %v489 = vpack.c.b16 %v444, %v443
  %v490 = vpack.c.b16 %v446, %v445
  %v491 = vpack.c.b16 %v448, %v447
  %v492 = vpack.c.b16 %v450, %v449
  %v493 = vpack.c.b16 %v452, %v451
  %v494 = vpack.c.b16 %v454, %v453
  %v495 = vpack.c.b16 %v456, %v455
  %v496 = vpack.c.b16 %v458, %v457
  %v497 = vpack.c.b16 %v460, %v459
  %v498 = vpack.c.b16 %v462, %v461
  %v499 = vpack.c.b16 %v464, %v463
  %v500 = vpack.c.b16 %v466, %v465
  %v501 = vpack.c.b16 %v468, %v467
  %v502 = vpack.c.b16 %v470, %v469
  %535 = vmatprep.subr.bf16.mxu0 0
  %536 = vmatpush1.bf16.msra.mxu0 %v478
  %537 = vmatprep.subr.bf16.mxu0 0
  %538 = vmatpush1.bf16.msra.mxu0 %v477
  %539 = vmatprep.subr.bf16.mxu0 0
  %540 = vmatpush1.bf16.msra.mxu0 %v476
  %541 = vmatprep.subr.bf16.mxu0 0
  %542 = vmatpush1.bf16.msra.mxu0 %v475
  %543 = vmatprep.subr.bf16.mxu0 0
  %544 = vmatpush1.bf16.msra.mxu0 %v474
  %545 = vmatprep.subr.bf16.mxu0 0
  %546 = vmatpush1.bf16.msra.mxu0 %v473
  %547 = vmatprep.subr.bf16.mxu0 0
  %548 = vmatpush1.bf16.msra.mxu0 %v472
  %549 = vmatprep.subr.bf16.mxu0 0
  %550 = vmatpush1.bf16.msra.mxu0 %v471
  %551 = vmatprep.subr.bf16.mxu0 0
  %552 = vmatpush2.bf16.msra.mxu0 %v486
  %553 = vmatprep.subr.bf16.mxu0 0
  %554 = vmatpush2.bf16.msra.mxu0 %v485
  %555 = vmatprep.subr.bf16.mxu0 0
  %556 = vmatpush2.bf16.msra.mxu0 %v484
  %557 = vmatprep.subr.bf16.mxu0 0
  %558 = vmatpush2.bf16.msra.mxu0 %v483
  %559 = vmatprep.subr.bf16.mxu0 0
  %560 = vmatpush2.bf16.msra.mxu0 %v482
  %561 = vmatprep.subr.bf16.mxu0 0
  %562 = vmatpush2.bf16.msra.mxu0 %v481
  %563 = vmatprep.subr.bf16.mxu0 0
  %564 = vmatpush2.bf16.msra.mxu0 %v480
  %565 = vmatprep.subr.bf16.mxu0 0
  %566 = vmatpush2.bf16.msra.mxu0 %v479
  %567 = vmatprep.mubr.bf16.mxu0 %v328
  %568 = vmatmul.mubr.bf16.gmra.mxu0 %v327
  %v569 = vpop.f32.mrf.mxu0
  %v570 = vadd.f32 0.0, %v569
  %v571 = vpop.f32.mrf.mxu0
  %v572 = vpop.f32.mrf.mxu0
  %v573 = vadd.f32 0.0, %v572
  %v574 = vpop.f32.mrf.mxu0
  %575 = vmatprep.mubr.bf16.mxu0 %v332
  %576 = vmatmul.mubr.bf16.gmra.mxu0 %v331
  %v577 = vpop.f32.mrf.mxu0
  %v578 = vadd.f32 0.0, %v577
  %v579 = vpop.f32.mrf.mxu0
  %v580 = vpop.f32.mrf.mxu0
  %v581 = vadd.f32 0.0, %v580
  %v582 = vpop.f32.mrf.mxu0
  %583 = vdwg.mxu0
  %584 = vmatprep.subr.bf16.mxu0 0
  %585 = vmatpush1.bf16.msra.mxu0 %v494
  %586 = vmatprep.subr.bf16.mxu0 0
  %587 = vmatpush1.bf16.msra.mxu0 %v493
  %588 = vmatprep.subr.bf16.mxu0 0
  %589 = vmatpush1.bf16.msra.mxu0 %v492
  %590 = vmatprep.subr.bf16.mxu0 0
  %591 = vmatpush1.bf16.msra.mxu0 %v491
  %592 = vmatprep.subr.bf16.mxu0 0
  %593 = vmatpush1.bf16.msra.mxu0 %v490
  %594 = vmatprep.subr.bf16.mxu0 0
  %595 = vmatpush1.bf16.msra.mxu0 %v489
  %596 = vmatprep.subr.bf16.mxu0 0
  %597 = vmatpush1.bf16.msra.mxu0 %v488
  %598 = vmatprep.subr.bf16.mxu0 0
  %599 = vmatpush1.bf16.msra.mxu0 %v487
  %600 = vmatprep.subr.bf16.mxu0 0
  %601 = vmatpush2.bf16.msra.mxu0 %v502
  %602 = vmatprep.subr.bf16.mxu0 0
  %603 = vmatpush2.bf16.msra.mxu0 %v501
  %604 = vmatprep.subr.bf16.mxu0 0
  %605 = vmatpush2.bf16.msra.mxu0 %v500
  %606 = vmatprep.subr.bf16.mxu0 0
  %607 = vmatpush2.bf16.msra.mxu0 %v499
  %608 = vmatprep.subr.bf16.mxu0 0
  %609 = vmatpush2.bf16.msra.mxu0 %v498
  %610 = vmatprep.subr.bf16.mxu0 0
  %611 = vmatpush2.bf16.msra.mxu0 %v497
  %612 = vmatprep.subr.bf16.mxu0 0
  %613 = vmatpush2.bf16.msra.mxu0 %v496
  %614 = vmatprep.subr.bf16.mxu0 0
  %615 = vmatpush2.bf16.msra.mxu0 %v495
  %616 = vmatprep.mubr.bf16.mxu0 %v330
  %617 = vmatmul.mubr.bf16.gmra.mxu0 %v329
  %v618 = vpop.f32.mrf.mxu0
  %v619 = vadd.f32 %v570, %v618
  %v620 = vpop.f32.mrf.mxu0
  %v621 = vpop.f32.mrf.mxu0
  %v622 = vadd.f32 %v573, %v621
  %v623 = vpop.f32.mrf.mxu0
  %624 = vmatprep.mubr.bf16.mxu0 %v334
  %625 = vmatmul.mubr.bf16.gmra.mxu0 %v333
  %v626 = vpop.f32.mrf.mxu0
  %v627 = vadd.f32 %v578, %v626
  %v628 = vpop.f32.mrf.mxu0
  %v629 = vpop.f32.mrf.mxu0
  %v630 = vadd.f32 %v581, %v629
  %v631 = vpop.f32.mrf.mxu0
  %632 = vdwg.mxu0
  %v641 = vunpack.c.l.b16 %v23
  %v642 = vunpack.c.h.b16 %v23
  %v643 = vunpack.c.l.b16 %v24
  %v644 = vunpack.c.h.b16 %v24
  %v645 = vunpack.c.l.b16 %v25
  %v646 = vunpack.c.h.b16 %v25
  %v647 = vunpack.c.l.b16 %v26
  %v648 = vunpack.c.h.b16 %v26
  %v649 = vunpack.c.l.b16 %v27
  %v650 = vunpack.c.h.b16 %v27
  %v651 = vunpack.c.l.b16 %v28
  %v652 = vunpack.c.h.b16 %v28
  %v653 = vunpack.c.l.b16 %v29
  %v654 = vunpack.c.h.b16 %v29
  %v655 = vunpack.c.l.b16 %v30
  %v656 = vunpack.c.h.b16 %v30
  %v657 = vpack.c.b16 %v645, %v641
  %v658 = vpack.c.b16 %v646, %v642
  %v659 = vpack.c.b16 %v647, %v643
  %v660 = vpack.c.b16 %v648, %v644
  %v661 = vpack.c.b16 %v653, %v649
  %v662 = vpack.c.b16 %v654, %v650
  %v663 = vpack.c.b16 %v655, %v651
  %v664 = vpack.c.b16 %v656, %v652
  %v737 = vunpack.c.l.b16 %v111
  %v738 = vunpack.c.l.b16 %v112
  %v739 = vunpack.c.l.b16 %v113
  %v740 = vunpack.c.l.b16 %v114
  %v741 = vunpack.c.l.b16 %v115
  %v742 = vunpack.c.l.b16 %v116
  %v743 = vunpack.c.l.b16 %v117
  %v744 = vunpack.c.l.b16 %v118
  %v745 = vunpack.c.l.b16 %v119
  %v746 = vunpack.c.l.b16 %v120
  %v747 = vunpack.c.l.b16 %v121
  %v748 = vunpack.c.l.b16 %v122
  %v749 = vunpack.c.l.b16 %v123
  %v750 = vunpack.c.l.b16 %v124
  %v751 = vunpack.c.l.b16 %v125
  %v752 = vunpack.c.l.b16 %v126
  %v753 = vunpack.c.l.b16 %v127
  %v754 = vunpack.c.l.b16 %v128
  %v755 = vunpack.c.l.b16 %v129
  %v756 = vunpack.c.l.b16 %v130
  %v757 = vunpack.c.l.b16 %v131
  %v758 = vunpack.c.l.b16 %v132
  %v759 = vunpack.c.l.b16 %v133
  %v760 = vunpack.c.l.b16 %v134
  %v761 = vunpack.c.l.b16 %v135
  %v762 = vunpack.c.l.b16 %v136
  %v763 = vunpack.c.l.b16 %v137
  %v764 = vunpack.c.l.b16 %v138
  %v765 = vunpack.c.l.b16 %v139
  %v766 = vunpack.c.l.b16 %v140
  %v767 = vunpack.c.l.b16 %v141
  %v768 = vunpack.c.l.b16 %v142
  %v769 = vunpack.c.l.b16 %v143
  %v770 = vunpack.c.l.b16 %v144
  %v771 = vunpack.c.l.b16 %v145
  %v772 = vunpack.c.l.b16 %v146
  %v773 = vunpack.c.l.b16 %v147
  %v774 = vunpack.c.l.b16 %v148
  %v775 = vunpack.c.l.b16 %v149
  %v776 = vunpack.c.l.b16 %v150
  %v777 = vunpack.c.l.b16 %v151
  %v778 = vunpack.c.l.b16 %v152
  %v779 = vunpack.c.l.b16 %v153
  %v780 = vunpack.c.l.b16 %v154
  %v781 = vunpack.c.l.b16 %v155
  %v782 = vunpack.c.l.b16 %v156
  %v783 = vunpack.c.l.b16 %v157
  %v784 = vunpack.c.l.b16 %v158
  %v785 = vunpack.c.l.b16 %v159
  %v786 = vunpack.c.l.b16 %v160
  %v787 = vunpack.c.l.b16 %v161
  %v788 = vunpack.c.l.b16 %v162
  %v789 = vunpack.c.l.b16 %v163
  %v790 = vunpack.c.l.b16 %v164
  %v791 = vunpack.c.l.b16 %v165
  %v792 = vunpack.c.l.b16 %v166
  %v793 = vunpack.c.l.b16 %v167
  %v794 = vunpack.c.l.b16 %v168
  %v795 = vunpack.c.l.b16 %v169
  %v796 = vunpack.c.l.b16 %v170
  %v797 = vunpack.c.l.b16 %v171
  %v798 = vunpack.c.l.b16 %v172
  %v799 = vunpack.c.l.b16 %v173
  %v800 = vunpack.c.l.b16 %v174
  %v801 = vpack.c.b16 %v738, %v737
  %v802 = vpack.c.b16 %v740, %v739
  %v803 = vpack.c.b16 %v742, %v741
  %v804 = vpack.c.b16 %v744, %v743
  %v805 = vpack.c.b16 %v746, %v745
  %v806 = vpack.c.b16 %v748, %v747
  %v807 = vpack.c.b16 %v750, %v749
  %v808 = vpack.c.b16 %v752, %v751
  %v809 = vpack.c.b16 %v754, %v753
  %v810 = vpack.c.b16 %v756, %v755
  %v811 = vpack.c.b16 %v758, %v757
  %v812 = vpack.c.b16 %v760, %v759
  %v813 = vpack.c.b16 %v762, %v761
  %v814 = vpack.c.b16 %v764, %v763
  %v815 = vpack.c.b16 %v766, %v765
  %v816 = vpack.c.b16 %v768, %v767
  %v817 = vpack.c.b16 %v770, %v769
  %v818 = vpack.c.b16 %v772, %v771
  %v819 = vpack.c.b16 %v774, %v773
  %v820 = vpack.c.b16 %v776, %v775
  %v821 = vpack.c.b16 %v778, %v777
  %v822 = vpack.c.b16 %v780, %v779
  %v823 = vpack.c.b16 %v782, %v781
  %v824 = vpack.c.b16 %v784, %v783
  %v825 = vpack.c.b16 %v786, %v785
  %v826 = vpack.c.b16 %v788, %v787
  %v827 = vpack.c.b16 %v790, %v789
  %v828 = vpack.c.b16 %v792, %v791
  %v829 = vpack.c.b16 %v794, %v793
  %v830 = vpack.c.b16 %v796, %v795
  %v831 = vpack.c.b16 %v798, %v797
  %v832 = vpack.c.b16 %v800, %v799
  %865 = vmatprep.subr.bf16.mxu0 0
  %866 = vmatpush1.bf16.msra.mxu0 %v808
  %867 = vmatprep.subr.bf16.mxu0 0
  %868 = vmatpush1.bf16.msra.mxu0 %v807
  %869 = vmatprep.subr.bf16.mxu0 0
  %870 = vmatpush1.bf16.msra.mxu0 %v806
  %871 = vmatprep.subr.bf16.mxu0 0
  %872 = vmatpush1.bf16.msra.mxu0 %v805
  %873 = vmatprep.subr.bf16.mxu0 0
  %874 = vmatpush1.bf16.msra.mxu0 %v804
  %875 = vmatprep.subr.bf16.mxu0 0
  %876 = vmatpush1.bf16.msra.mxu0 %v803
  %877 = vmatprep.subr.bf16.mxu0 0
  %878 = vmatpush1.bf16.msra.mxu0 %v802
  %879 = vmatprep.subr.bf16.mxu0 0
  %880 = vmatpush1.bf16.msra.mxu0 %v801
  %881 = vmatprep.subr.bf16.mxu0 0
  %882 = vmatpush2.bf16.msra.mxu0 %v816
  %883 = vmatprep.subr.bf16.mxu0 0
  %884 = vmatpush2.bf16.msra.mxu0 %v815
  %885 = vmatprep.subr.bf16.mxu0 0
  %886 = vmatpush2.bf16.msra.mxu0 %v814
  %887 = vmatprep.subr.bf16.mxu0 0
  %888 = vmatpush2.bf16.msra.mxu0 %v813
  %889 = vmatprep.subr.bf16.mxu0 0
  %890 = vmatpush2.bf16.msra.mxu0 %v812
  %891 = vmatprep.subr.bf16.mxu0 0
  %892 = vmatpush2.bf16.msra.mxu0 %v811
  %893 = vmatprep.subr.bf16.mxu0 0
  %894 = vmatpush2.bf16.msra.mxu0 %v810
  %895 = vmatprep.subr.bf16.mxu0 0
  %896 = vmatpush2.bf16.msra.mxu0 %v809
  %897 = vmatprep.mubr.bf16.mxu0 %v658
  %898 = vmatmul.mubr.bf16.gmra.mxu0 %v657
  %v899 = vpop.f32.mrf.mxu0
  %v900 = vadd.f32 0.0, %v899
  %v901 = vpop.f32.mrf.mxu0
  %v902 = vpop.f32.mrf.mxu0
  %v903 = vadd.f32 0.0, %v902
  %v904 = vpop.f32.mrf.mxu0
  %905 = vmatprep.mubr.bf16.mxu0 %v662
  %906 = vmatmul.mubr.bf16.gmra.mxu0 %v661
  %v907 = vpop.f32.mrf.mxu0
  %v908 = vadd.f32 0.0, %v907
  %v909 = vpop.f32.mrf.mxu0
  %v910 = vpop.f32.mrf.mxu0
  %v911 = vadd.f32 0.0, %v910
  %v912 = vpop.f32.mrf.mxu0
  %913 = vdwg.mxu0
  %914 = vmatprep.subr.bf16.mxu0 0
  %915 = vmatpush1.bf16.msra.mxu0 %v824
  %916 = vmatprep.subr.bf16.mxu0 0
  %917 = vmatpush1.bf16.msra.mxu0 %v823
  %918 = vmatprep.subr.bf16.mxu0 0
  %919 = vmatpush1.bf16.msra.mxu0 %v822
  %920 = vmatprep.subr.bf16.mxu0 0
  %921 = vmatpush1.bf16.msra.mxu0 %v821
  %922 = vmatprep.subr.bf16.mxu0 0
  %923 = vmatpush1.bf16.msra.mxu0 %v820
  %924 = vmatprep.subr.bf16.mxu0 0
  %925 = vmatpush1.bf16.msra.mxu0 %v819
  %926 = vmatprep.subr.bf16.mxu0 0
  %927 = vmatpush1.bf16.msra.mxu0 %v818
  %928 = vmatprep.subr.bf16.mxu0 0
  %929 = vmatpush1.bf16.msra.mxu0 %v817
  %930 = vmatprep.subr.bf16.mxu0 0
  %931 = vmatpush2.bf16.msra.mxu0 %v832
  %932 = vmatprep.subr.bf16.mxu0 0
  %933 = vmatpush2.bf16.msra.mxu0 %v831
  %934 = vmatprep.subr.bf16.mxu0 0
  %935 = vmatpush2.bf16.msra.mxu0 %v830
  %936 = vmatprep.subr.bf16.mxu0 0
  %937 = vmatpush2.bf16.msra.mxu0 %v829
  %938 = vmatprep.subr.bf16.mxu0 0
  %939 = vmatpush2.bf16.msra.mxu0 %v828
  %940 = vmatprep.subr.bf16.mxu0 0
  %941 = vmatpush2.bf16.msra.mxu0 %v827
  %942 = vmatprep.subr.bf16.mxu0 0
  %943 = vmatpush2.bf16.msra.mxu0 %v826
  %944 = vmatprep.subr.bf16.mxu0 0
  %945 = vmatpush2.bf16.msra.mxu0 %v825
  %946 = vmatprep.mubr.bf16.mxu0 %v660
  %947 = vmatmul.mubr.bf16.gmra.mxu0 %v659
  %v948 = vpop.f32.mrf.mxu0
  %v949 = vadd.f32 %v900, %v948
  %v950 = vpop.f32.mrf.mxu0
  %v951 = vpop.f32.mrf.mxu0
  %v952 = vadd.f32 %v903, %v951
  %v953 = vpop.f32.mrf.mxu0
  %954 = vmatprep.mubr.bf16.mxu0 %v664
  %955 = vmatmul.mubr.bf16.gmra.mxu0 %v663
  %v956 = vpop.f32.mrf.mxu0
  %v957 = vadd.f32 %v908, %v956
  %v958 = vpop.f32.mrf.mxu0
  %v959 = vpop.f32.mrf.mxu0
  %v960 = vadd.f32 %v911, %v959
  %v961 = vpop.f32.mrf.mxu0
  %962 = vdwg.mxu0
  %v971 = vunpack.c.l.b16 %v31
  %v972 = vunpack.c.h.b16 %v31
  %v973 = vunpack.c.l.b16 %v32
  %v974 = vunpack.c.h.b16 %v32
  %v975 = vunpack.c.l.b16 %v33
  %v976 = vunpack.c.h.b16 %v33
  %v977 = vunpack.c.l.b16 %v34
  %v978 = vunpack.c.h.b16 %v34
  %v979 = vunpack.c.l.b16 %v35
  %v980 = vunpack.c.h.b16 %v35
  %v981 = vunpack.c.l.b16 %v36
  %v982 = vunpack.c.h.b16 %v36
  %v983 = vunpack.c.l.b16 %v37
  %v984 = vunpack.c.h.b16 %v37
  %v985 = vunpack.c.l.b16 %v38
  %v986 = vunpack.c.h.b16 %v38
  %v987 = vpack.c.b16 %v975, %v971
  %v988 = vpack.c.b16 %v976, %v972
  %v989 = vpack.c.b16 %v977, %v973
  %v990 = vpack.c.b16 %v978, %v974
  %v991 = vpack.c.b16 %v983, %v979
  %v992 = vpack.c.b16 %v984, %v980
  %v993 = vpack.c.b16 %v985, %v981
  %v994 = vpack.c.b16 %v986, %v982
  %v1067 = vunpack.c.l.b16 %v175
  %v1068 = vunpack.c.l.b16 %v176
  %v1069 = vunpack.c.l.b16 %v177
  %v1070 = vunpack.c.l.b16 %v178
  %v1071 = vunpack.c.l.b16 %v179
  %v1072 = vunpack.c.l.b16 %v180
  %v1073 = vunpack.c.l.b16 %v181
  %v1074 = vunpack.c.l.b16 %v182
  %v1075 = vunpack.c.l.b16 %v183
  %v1076 = vunpack.c.l.b16 %v184
  %v1077 = vunpack.c.l.b16 %v185
  %v1078 = vunpack.c.l.b16 %v186
  %v1079 = vunpack.c.l.b16 %v187
  %v1080 = vunpack.c.l.b16 %v188
  %v1081 = vunpack.c.l.b16 %v189
  %v1082 = vunpack.c.l.b16 %v190
  %v1083 = vunpack.c.l.b16 %v191
  %v1084 = vunpack.c.l.b16 %v192
  %v1085 = vunpack.c.l.b16 %v193
  %v1086 = vunpack.c.l.b16 %v194
  %v1087 = vunpack.c.l.b16 %v195
  %v1088 = vunpack.c.l.b16 %v196
  %v1089 = vunpack.c.l.b16 %v197
  %v1090 = vunpack.c.l.b16 %v198
  %v1091 = vunpack.c.l.b16 %v199
  %v1092 = vunpack.c.l.b16 %v200
  %v1093 = vunpack.c.l.b16 %v201
  %v1094 = vunpack.c.l.b16 %v202
  %v1095 = vunpack.c.l.b16 %v203
  %v1096 = vunpack.c.l.b16 %v204
  %v1097 = vunpack.c.l.b16 %v205
  %v1098 = vunpack.c.l.b16 %v206
  %v1099 = vunpack.c.l.b16 %v207
  %v1100 = vunpack.c.l.b16 %v208
  %v1101 = vunpack.c.l.b16 %v209
  %v1102 = vunpack.c.l.b16 %v210
  %v1103 = vunpack.c.l.b16 %v211
  %v1104 = vunpack.c.l.b16 %v212
  %v1105 = vunpack.c.l.b16 %v213
  %v1106 = vunpack.c.l.b16 %v214
  %v1107 = vunpack.c.l.b16 %v215
  %v1108 = vunpack.c.l.b16 %v216
  %v1109 = vunpack.c.l.b16 %v217
  %v1110 = vunpack.c.l.b16 %v218
  %v1111 = vunpack.c.l.b16 %v219
  %v1112 = vunpack.c.l.b16 %v220
  %v1113 = vunpack.c.l.b16 %v221
  %v1114 = vunpack.c.l.b16 %v222
  %v1115 = vunpack.c.l.b16 %v223
  %v1116 = vunpack.c.l.b16 %v224
  %v1117 = vunpack.c.l.b16 %v225
  %v1118 = vunpack.c.l.b16 %v226
  %v1119 = vunpack.c.l.b16 %v227
  %v1120 = vunpack.c.l.b16 %v228
  %v1121 = vunpack.c.l.b16 %v229
  %v1122 = vunpack.c.l.b16 %v230
  %v1123 = vunpack.c.l.b16 %v231
  %v1124 = vunpack.c.l.b16 %v232
  %v1125 = vunpack.c.l.b16 %v233
  %v1126 = vunpack.c.l.b16 %v234
  %v1127 = vunpack.c.l.b16 %v235
  %v1128 = vunpack.c.l.b16 %v236
  %v1129 = vunpack.c.l.b16 %v237
  %v1130 = vunpack.c.l.b16 %v238
  %v1131 = vpack.c.b16 %v1068, %v1067
  %v1132 = vpack.c.b16 %v1070, %v1069
  %v1133 = vpack.c.b16 %v1072, %v1071
  %v1134 = vpack.c.b16 %v1074, %v1073
  %v1135 = vpack.c.b16 %v1076, %v1075
  %v1136 = vpack.c.b16 %v1078, %v1077
  %v1137 = vpack.c.b16 %v1080, %v1079
  %v1138 = vpack.c.b16 %v1082, %v1081
  %v1139 = vpack.c.b16 %v1084, %v1083
  %v1140 = vpack.c.b16 %v1086, %v1085
  %v1141 = vpack.c.b16 %v1088, %v1087
  %v1142 = vpack.c.b16 %v1090, %v1089
  %v1143 = vpack.c.b16 %v1092, %v1091
  %v1144 = vpack.c.b16 %v1094, %v1093
  %v1145 = vpack.c.b16 %v1096, %v1095
  %v1146 = vpack.c.b16 %v1098, %v1097
  %v1147 = vpack.c.b16 %v1100, %v1099
  %v1148 = vpack.c.b16 %v1102, %v1101
  %v1149 = vpack.c.b16 %v1104, %v1103
  %v1150 = vpack.c.b16 %v1106, %v1105
  %v1151 = vpack.c.b16 %v1108, %v1107
  %v1152 = vpack.c.b16 %v1110, %v1109
  %v1153 = vpack.c.b16 %v1112, %v1111
  %v1154 = vpack.c.b16 %v1114, %v1113
  %v1155 = vpack.c.b16 %v1116, %v1115
  %v1156 = vpack.c.b16 %v1118, %v1117
  %v1157 = vpack.c.b16 %v1120, %v1119
  %v1158 = vpack.c.b16 %v1122, %v1121
  %v1159 = vpack.c.b16 %v1124, %v1123
  %v1160 = vpack.c.b16 %v1126, %v1125
  %v1161 = vpack.c.b16 %v1128, %v1127
  %v1162 = vpack.c.b16 %v1130, %v1129
  %1195 = vmatprep.subr.bf16.mxu0 0
  %1196 = vmatpush1.bf16.msra.mxu0 %v1138
  %1197 = vmatprep.subr.bf16.mxu0 0
  %1198 = vmatpush1.bf16.msra.mxu0 %v1137
  %1199 = vmatprep.subr.bf16.mxu0 0
  %1200 = vmatpush1.bf16.msra.mxu0 %v1136
  %1201 = vmatprep.subr.bf16.mxu0 0
  %1202 = vmatpush1.bf16.msra.mxu0 %v1135
  %1203 = vmatprep.subr.bf16.mxu0 0
  %1204 = vmatpush1.bf16.msra.mxu0 %v1134
  %1205 = vmatprep.subr.bf16.mxu0 0
  %1206 = vmatpush1.bf16.msra.mxu0 %v1133
  %1207 = vmatprep.subr.bf16.mxu0 0
  %1208 = vmatpush1.bf16.msra.mxu0 %v1132
  %1209 = vmatprep.subr.bf16.mxu0 0
  %1210 = vmatpush1.bf16.msra.mxu0 %v1131
  %1211 = vmatprep.subr.bf16.mxu0 0
  %1212 = vmatpush2.bf16.msra.mxu0 %v1146
  %1213 = vmatprep.subr.bf16.mxu0 0
  %1214 = vmatpush2.bf16.msra.mxu0 %v1145
  %1215 = vmatprep.subr.bf16.mxu0 0
  %1216 = vmatpush2.bf16.msra.mxu0 %v1144
  %1217 = vmatprep.subr.bf16.mxu0 0
  %1218 = vmatpush2.bf16.msra.mxu0 %v1143
  %1219 = vmatprep.subr.bf16.mxu0 0
  %1220 = vmatpush2.bf16.msra.mxu0 %v1142
  %1221 = vmatprep.subr.bf16.mxu0 0
  %1222 = vmatpush2.bf16.msra.mxu0 %v1141
  %1223 = vmatprep.subr.bf16.mxu0 0
  %1224 = vmatpush2.bf16.msra.mxu0 %v1140
  %1225 = vmatprep.subr.bf16.mxu0 0
  %1226 = vmatpush2.bf16.msra.mxu0 %v1139
  %1227 = vmatprep.mubr.bf16.mxu0 %v988
  %1228 = vmatmul.mubr.bf16.gmra.mxu0 %v987
  %v1229 = vpop.f32.mrf.mxu0
  %v1230 = vadd.f32 0.0, %v1229
  %v1231 = vpop.f32.mrf.mxu0
  %v1232 = vpop.f32.mrf.mxu0
  %v1233 = vadd.f32 0.0, %v1232
  %v1234 = vpop.f32.mrf.mxu0
  %1235 = vmatprep.mubr.bf16.mxu0 %v992
  %1236 = vmatmul.mubr.bf16.gmra.mxu0 %v991
  %v1237 = vpop.f32.mrf.mxu0
  %v1238 = vadd.f32 0.0, %v1237
  %v1239 = vpop.f32.mrf.mxu0
  %v1240 = vpop.f32.mrf.mxu0
  %v1241 = vadd.f32 0.0, %v1240
  %v1242 = vpop.f32.mrf.mxu0
  %1243 = vdwg.mxu0
  %1244 = vmatprep.subr.bf16.mxu0 0
  %1245 = vmatpush1.bf16.msra.mxu0 %v1154
  %1246 = vmatprep.subr.bf16.mxu0 0
  %1247 = vmatpush1.bf16.msra.mxu0 %v1153
  %1248 = vmatprep.subr.bf16.mxu0 0
  %1249 = vmatpush1.bf16.msra.mxu0 %v1152
  %1250 = vmatprep.subr.bf16.mxu0 0
  %1251 = vmatpush1.bf16.msra.mxu0 %v1151
  %1252 = vmatprep.subr.bf16.mxu0 0
  %1253 = vmatpush1.bf16.msra.mxu0 %v1150
  %1254 = vmatprep.subr.bf16.mxu0 0
  %1255 = vmatpush1.bf16.msra.mxu0 %v1149
  %1256 = vmatprep.subr.bf16.mxu0 0
  %1257 = vmatpush1.bf16.msra.mxu0 %v1148
  %1258 = vmatprep.subr.bf16.mxu0 0
  %1259 = vmatpush1.bf16.msra.mxu0 %v1147
  %1260 = vmatprep.subr.bf16.mxu0 0
  %1261 = vmatpush2.bf16.msra.mxu0 %v1162
  %1262 = vmatprep.subr.bf16.mxu0 0
  %1263 = vmatpush2.bf16.msra.mxu0 %v1161
  %1264 = vmatprep.subr.bf16.mxu0 0
  %1265 = vmatpush2.bf16.msra.mxu0 %v1160
  %1266 = vmatprep.subr.bf16.mxu0 0
  %1267 = vmatpush2.bf16.msra.mxu0 %v1159
  %1268 = vmatprep.subr.bf16.mxu0 0
  %1269 = vmatpush2.bf16.msra.mxu0 %v1158
  %1270 = vmatprep.subr.bf16.mxu0 0
  %1271 = vmatpush2.bf16.msra.mxu0 %v1157
  %1272 = vmatprep.subr.bf16.mxu0 0
  %1273 = vmatpush2.bf16.msra.mxu0 %v1156
  %1274 = vmatprep.subr.bf16.mxu0 0
  %1275 = vmatpush2.bf16.msra.mxu0 %v1155
  %1276 = vmatprep.mubr.bf16.mxu0 %v990
  %1277 = vmatmul.mubr.bf16.gmra.mxu0 %v989
  %v1278 = vpop.f32.mrf.mxu0
  %v1279 = vadd.f32 %v1230, %v1278
  %v1280 = vpop.f32.mrf.mxu0
  %v1281 = vpop.f32.mrf.mxu0
  %v1282 = vadd.f32 %v1233, %v1281
  %v1283 = vpop.f32.mrf.mxu0
  %1284 = vmatprep.mubr.bf16.mxu0 %v994
  %1285 = vmatmul.mubr.bf16.gmra.mxu0 %v993
  %v1286 = vpop.f32.mrf.mxu0
  %v1287 = vadd.f32 %v1238, %v1286
  %v1288 = vpop.f32.mrf.mxu0
  %v1289 = vpop.f32.mrf.mxu0
  %v1290 = vadd.f32 %v1241, %v1289
  %v1291 = vpop.f32.mrf.mxu0
  %1292 = vdwg.mxu0
  %v1301 = vunpack.c.l.b16 %v39
  %v1302 = vunpack.c.h.b16 %v39
  %v1303 = vunpack.c.l.b16 %v40
  %v1304 = vunpack.c.h.b16 %v40
  %v1305 = vunpack.c.l.b16 %v41
  %v1306 = vunpack.c.h.b16 %v41
  %v1307 = vunpack.c.l.b16 %v42
  %v1308 = vunpack.c.h.b16 %v42
  %v1309 = vunpack.c.l.b16 %v43
  %v1310 = vunpack.c.h.b16 %v43
  %v1311 = vunpack.c.l.b16 %v44
  %v1312 = vunpack.c.h.b16 %v44
  %v1313 = vunpack.c.l.b16 %v45
  %v1314 = vunpack.c.h.b16 %v45
  %v1315 = vunpack.c.l.b16 %v46
  %v1316 = vunpack.c.h.b16 %v46
  %v1317 = vpack.c.b16 %v1305, %v1301
  %v1318 = vpack.c.b16 %v1306, %v1302
  %v1319 = vpack.c.b16 %v1307, %v1303
  %v1320 = vpack.c.b16 %v1308, %v1304
  %v1321 = vpack.c.b16 %v1313, %v1309
  %v1322 = vpack.c.b16 %v1314, %v1310
  %v1323 = vpack.c.b16 %v1315, %v1311
  %v1324 = vpack.c.b16 %v1316, %v1312
  %v1397 = vunpack.c.l.b16 %v239
  %v1398 = vunpack.c.l.b16 %v240
  %v1399 = vunpack.c.l.b16 %v241
  %v1400 = vunpack.c.l.b16 %v242
  %v1401 = vunpack.c.l.b16 %v243
  %v1402 = vunpack.c.l.b16 %v244
  %v1403 = vunpack.c.l.b16 %v245
  %v1404 = vunpack.c.l.b16 %v246
  %v1405 = vunpack.c.l.b16 %v247
  %v1406 = vunpack.c.l.b16 %v248
  %v1407 = vunpack.c.l.b16 %v249
  %v1408 = vunpack.c.l.b16 %v250
  %v1409 = vunpack.c.l.b16 %v251
  %v1410 = vunpack.c.l.b16 %v252
  %v1411 = vunpack.c.l.b16 %v253
  %v1412 = vunpack.c.l.b16 %v254
  %v1413 = vunpack.c.l.b16 %v255
  %v1414 = vunpack.c.l.b16 %v256
  %v1415 = vunpack.c.l.b16 %v257
  %v1416 = vunpack.c.l.b16 %v258
  %v1417 = vunpack.c.l.b16 %v259
  %v1418 = vunpack.c.l.b16 %v260
  %v1419 = vunpack.c.l.b16 %v261
  %v1420 = vunpack.c.l.b16 %v262
  %v1421 = vunpack.c.l.b16 %v263
  %v1422 = vunpack.c.l.b16 %v264
  %v1423 = vunpack.c.l.b16 %v265
  %v1424 = vunpack.c.l.b16 %v266
  %v1425 = vunpack.c.l.b16 %v267
  %v1426 = vunpack.c.l.b16 %v268
  %v1427 = vunpack.c.l.b16 %v269
  %v1428 = vunpack.c.l.b16 %v270
  %v1429 = vunpack.c.l.b16 %v271
  %v1430 = vunpack.c.l.b16 %v272
  %v1431 = vunpack.c.l.b16 %v273
  %v1432 = vunpack.c.l.b16 %v274
  %v1433 = vunpack.c.l.b16 %v275
  %v1434 = vunpack.c.l.b16 %v276
  %v1435 = vunpack.c.l.b16 %v277
  %v1436 = vunpack.c.l.b16 %v278
  %v1437 = vunpack.c.l.b16 %v279
  %v1438 = vunpack.c.l.b16 %v280
  %v1439 = vunpack.c.l.b16 %v281
  %v1440 = vunpack.c.l.b16 %v282
  %v1441 = vunpack.c.l.b16 %v283
  %v1442 = vunpack.c.l.b16 %v284
  %v1443 = vunpack.c.l.b16 %v285
  %v1444 = vunpack.c.l.b16 %v286
  %v1445 = vunpack.c.l.b16 %v287
  %v1446 = vunpack.c.l.b16 %v288
  %v1447 = vunpack.c.l.b16 %v289
  %v1448 = vunpack.c.l.b16 %v290
  %v1449 = vunpack.c.l.b16 %v291
  %v1450 = vunpack.c.l.b16 %v292
  %v1451 = vunpack.c.l.b16 %v293
  %v1452 = vunpack.c.l.b16 %v294
  %v1453 = vunpack.c.l.b16 %v295
  %v1454 = vunpack.c.l.b16 %v296
  %v1455 = vunpack.c.l.b16 %v297
  %v1456 = vunpack.c.l.b16 %v298
  %v1457 = vunpack.c.l.b16 %v299
  %v1458 = vunpack.c.l.b16 %v300
  %v1459 = vunpack.c.l.b16 %v301
  %v1460 = vunpack.c.l.b16 %v302
  %v1461 = vpack.c.b16 %v1398, %v1397
  %v1462 = vpack.c.b16 %v1400, %v1399
  %v1463 = vpack.c.b16 %v1402, %v1401
  %v1464 = vpack.c.b16 %v1404, %v1403
  %v1465 = vpack.c.b16 %v1406, %v1405
  %v1466 = vpack.c.b16 %v1408, %v1407
  %v1467 = vpack.c.b16 %v1410, %v1409
  %v1468 = vpack.c.b16 %v1412, %v1411
  %v1469 = vpack.c.b16 %v1414, %v1413
  %v1470 = vpack.c.b16 %v1416, %v1415
  %v1471 = vpack.c.b16 %v1418, %v1417
  %v1472 = vpack.c.b16 %v1420, %v1419
  %v1473 = vpack.c.b16 %v1422, %v1421
  %v1474 = vpack.c.b16 %v1424, %v1423
  %v1475 = vpack.c.b16 %v1426, %v1425
  %v1476 = vpack.c.b16 %v1428, %v1427
  %v1477 = vpack.c.b16 %v1430, %v1429
  %v1478 = vpack.c.b16 %v1432, %v1431
  %v1479 = vpack.c.b16 %v1434, %v1433
  %v1480 = vpack.c.b16 %v1436, %v1435
  %v1481 = vpack.c.b16 %v1438, %v1437
  %v1482 = vpack.c.b16 %v1440, %v1439
  %v1483 = vpack.c.b16 %v1442, %v1441
  %v1484 = vpack.c.b16 %v1444, %v1443
  %v1485 = vpack.c.b16 %v1446, %v1445
  %v1486 = vpack.c.b16 %v1448, %v1447
  %v1487 = vpack.c.b16 %v1450, %v1449
  %v1488 = vpack.c.b16 %v1452, %v1451
  %v1489 = vpack.c.b16 %v1454, %v1453
  %v1490 = vpack.c.b16 %v1456, %v1455
  %v1491 = vpack.c.b16 %v1458, %v1457
  %v1492 = vpack.c.b16 %v1460, %v1459
  %1525 = vmatprep.subr.bf16.mxu0 0
  %1526 = vmatpush1.bf16.msra.mxu0 %v1468
  %1527 = vmatprep.subr.bf16.mxu0 0
  %1528 = vmatpush1.bf16.msra.mxu0 %v1467
  %1529 = vmatprep.subr.bf16.mxu0 0
  %1530 = vmatpush1.bf16.msra.mxu0 %v1466
  %1531 = vmatprep.subr.bf16.mxu0 0
  %1532 = vmatpush1.bf16.msra.mxu0 %v1465
  %1533 = vmatprep.subr.bf16.mxu0 0
  %1534 = vmatpush1.bf16.msra.mxu0 %v1464
  %1535 = vmatprep.subr.bf16.mxu0 0
  %1536 = vmatpush1.bf16.msra.mxu0 %v1463
  %1537 = vmatprep.subr.bf16.mxu0 0
  %1538 = vmatpush1.bf16.msra.mxu0 %v1462
  %1539 = vmatprep.subr.bf16.mxu0 0
  %1540 = vmatpush1.bf16.msra.mxu0 %v1461
  %1541 = vmatprep.subr.bf16.mxu0 0
  %1542 = vmatpush2.bf16.msra.mxu0 %v1476
  %1543 = vmatprep.subr.bf16.mxu0 0
  %1544 = vmatpush2.bf16.msra.mxu0 %v1475
  %1545 = vmatprep.subr.bf16.mxu0 0
  %1546 = vmatpush2.bf16.msra.mxu0 %v1474
  %1547 = vmatprep.subr.bf16.mxu0 0
  %1548 = vmatpush2.bf16.msra.mxu0 %v1473
  %1549 = vmatprep.subr.bf16.mxu0 0
  %1550 = vmatpush2.bf16.msra.mxu0 %v1472
  %1551 = vmatprep.subr.bf16.mxu0 0
  %1552 = vmatpush2.bf16.msra.mxu0 %v1471
  %1553 = vmatprep.subr.bf16.mxu0 0
  %1554 = vmatpush2.bf16.msra.mxu0 %v1470
  %1555 = vmatprep.subr.bf16.mxu0 0
  %1556 = vmatpush2.bf16.msra.mxu0 %v1469
  %1557 = vmatprep.mubr.bf16.mxu0 %v1318
  %1558 = vmatmul.mubr.bf16.gmra.mxu0 %v1317
  %v1559 = vpop.f32.mrf.mxu0
  %v1560 = vadd.f32 0.0, %v1559
  %v1561 = vpop.f32.mrf.mxu0
  %v1562 = vpop.f32.mrf.mxu0
  %v1563 = vadd.f32 0.0, %v1562
  %v1564 = vpop.f32.mrf.mxu0
  %1565 = vmatprep.mubr.bf16.mxu0 %v1322
  %1566 = vmatmul.mubr.bf16.gmra.mxu0 %v1321
  %v1567 = vpop.f32.mrf.mxu0
  %v1568 = vadd.f32 0.0, %v1567
  %v1569 = vpop.f32.mrf.mxu0
  %v1570 = vpop.f32.mrf.mxu0
  %v1571 = vadd.f32 0.0, %v1570
  %v1572 = vpop.f32.mrf.mxu0
  %1573 = vdwg.mxu0
  %1574 = vmatprep.subr.bf16.mxu0 0
  %1575 = vmatpush1.bf16.msra.mxu0 %v1484
  %1576 = vmatprep.subr.bf16.mxu0 0
  %1577 = vmatpush1.bf16.msra.mxu0 %v1483
  %1578 = vmatprep.subr.bf16.mxu0 0
  %1579 = vmatpush1.bf16.msra.mxu0 %v1482
  %1580 = vmatprep.subr.bf16.mxu0 0
  %1581 = vmatpush1.bf16.msra.mxu0 %v1481
  %1582 = vmatprep.subr.bf16.mxu0 0
  %1583 = vmatpush1.bf16.msra.mxu0 %v1480
  %1584 = vmatprep.subr.bf16.mxu0 0
  %1585 = vmatpush1.bf16.msra.mxu0 %v1479
  %1586 = vmatprep.subr.bf16.mxu0 0
  %1587 = vmatpush1.bf16.msra.mxu0 %v1478
  %1588 = vmatprep.subr.bf16.mxu0 0
  %1589 = vmatpush1.bf16.msra.mxu0 %v1477
  %1590 = vmatprep.subr.bf16.mxu0 0
  %1591 = vmatpush2.bf16.msra.mxu0 %v1492
  %1592 = vmatprep.subr.bf16.mxu0 0
  %1593 = vmatpush2.bf16.msra.mxu0 %v1491
  %1594 = vmatprep.subr.bf16.mxu0 0
  %1595 = vmatpush2.bf16.msra.mxu0 %v1490
  %1596 = vmatprep.subr.bf16.mxu0 0
  %1597 = vmatpush2.bf16.msra.mxu0 %v1489
  %1598 = vmatprep.subr.bf16.mxu0 0
  %1599 = vmatpush2.bf16.msra.mxu0 %v1488
  %1600 = vmatprep.subr.bf16.mxu0 0
  %1601 = vmatpush2.bf16.msra.mxu0 %v1487
  %1602 = vmatprep.subr.bf16.mxu0 0
  %1603 = vmatpush2.bf16.msra.mxu0 %v1486
  %1604 = vmatprep.subr.bf16.mxu0 0
  %1605 = vmatpush2.bf16.msra.mxu0 %v1485
  %1606 = vmatprep.mubr.bf16.mxu0 %v1320
  %1607 = vmatmul.mubr.bf16.gmra.mxu0 %v1319
  %v1608 = vpop.f32.mrf.mxu0
  %v1609 = vadd.f32 %v1560, %v1608
  %v1610 = vpop.f32.mrf.mxu0
  %v1611 = vpop.f32.mrf.mxu0
  %v1612 = vadd.f32 %v1563, %v1611
  %v1613 = vpop.f32.mrf.mxu0
  %1614 = vmatprep.mubr.bf16.mxu0 %v1324
  %1615 = vmatmul.mubr.bf16.gmra.mxu0 %v1323
  %v1616 = vpop.f32.mrf.mxu0
  %v1617 = vadd.f32 %v1568, %v1616
  %v1618 = vpop.f32.mrf.mxu0
  %v1619 = vpop.f32.mrf.mxu0
  %v1620 = vadd.f32 %v1571, %v1619
  %v1621 = vpop.f32.mrf.mxu0
  %1622 = vdwg.mxu0
  %v1623 = vadd.f32 %v619, %v622
  %v1624 = vadd.f32 %v1623, %v627
  %v1625 = vadd.f32 %v1624, %v630
  %v1626 = vrot.slane %v1625, 4
  %v1627 = vadd.f32 %v1625, %v1626
  %v1628 = vrot.slane %v1627, 2
  %v1629 = vadd.f32 %v1627, %v1628
  %v1630 = vrot.slane %v1629, 1
  %v1631 = vadd.f32 %v1629, %v1630
  %v1632 = vadd.f32 %v949, %v952
  %v1633 = vadd.f32 %v1632, %v957
  %v1634 = vadd.f32 %v1633, %v960
  %v1635 = vrot.slane %v1634, 4
  %v1636 = vadd.f32 %v1634, %v1635
  %v1637 = vrot.slane %v1636, 2
  %v1638 = vadd.f32 %v1636, %v1637
  %v1639 = vrot.slane %v1638, 1
  %v1640 = vadd.f32 %v1638, %v1639
  %v1641 = vadd.f32 %v1279, %v1282
  %v1642 = vadd.f32 %v1641, %v1287
  %v1643 = vadd.f32 %v1642, %v1290
  %v1644 = vrot.slane %v1643, 4
  %v1645 = vadd.f32 %v1643, %v1644
  %v1646 = vrot.slane %v1645, 2
  %v1647 = vadd.f32 %v1645, %v1646
  %v1648 = vrot.slane %v1647, 1
  %v1649 = vadd.f32 %v1647, %v1648
  %v1650 = vadd.f32 %v1609, %v1612
  %v1651 = vadd.f32 %v1650, %v1617
  %v1652 = vadd.f32 %v1651, %v1620
  %v1653 = vrot.slane %v1652, 4
  %v1654 = vadd.f32 %v1652, %v1653
  %v1655 = vrot.slane %v1654, 2
  %v1656 = vadd.f32 %v1654, %v1655
  %v1657 = vrot.slane %v1656, 1
  %v1658 = vadd.f32 %v1656, %v1657
  %v1659 = vadd.f32 %v1631, %v1640
  %v1660 = vadd.f32 %v1659, %v1649
  %v1661 = vadd.f32 %v1660, %v1658
  %v1662 = vmul.f32 %v619, %v619
  %v1663 = vmul.f32 %v622, %v622
  %v1664 = vmul.f32 %v627, %v627
  %v1665 = vmul.f32 %v630, %v630
  %v1666 = vmul.f32 %v949, %v949
  %v1667 = vmul.f32 %v952, %v952
  %v1668 = vmul.f32 %v957, %v957
  %v1669 = vmul.f32 %v960, %v960
  %v1670 = vmul.f32 %v1279, %v1279
  %v1671 = vmul.f32 %v1282, %v1282
  %v1672 = vmul.f32 %v1287, %v1287
  %v1673 = vmul.f32 %v1290, %v1290
  %v1674 = vmul.f32 %v1609, %v1609
  %v1675 = vmul.f32 %v1612, %v1612
  %v1676 = vmul.f32 %v1617, %v1617
  %v1677 = vmul.f32 %v1620, %v1620
  %v1678 = vadd.f32 %v1662, %v1663
  %v1679 = vadd.f32 %v1678, %v1664
  %v1680 = vadd.f32 %v1679, %v1665
  %v1681 = vrot.slane %v1680, 4
  %v1682 = vadd.f32 %v1680, %v1681
  %v1683 = vrot.slane %v1682, 2
  %v1684 = vadd.f32 %v1682, %v1683
  %v1685 = vrot.slane %v1684, 1
  %v1686 = vadd.f32 %v1684, %v1685
  %v1687 = vadd.f32 %v1666, %v1667
  %v1688 = vadd.f32 %v1687, %v1668
  %v1689 = vadd.f32 %v1688, %v1669
  %v1690 = vrot.slane %v1689, 4
  %v1691 = vadd.f32 %v1689, %v1690
  %v1692 = vrot.slane %v1691, 2
  %v1693 = vadd.f32 %v1691, %v1692
  %v1694 = vrot.slane %v1693, 1
  %v1695 = vadd.f32 %v1693, %v1694
  %v1696 = vadd.f32 %v1670, %v1671
  %v1697 = vadd.f32 %v1696, %v1672
  %v1698 = vadd.f32 %v1697, %v1673
  %v1699 = vrot.slane %v1698, 4
  %v1700 = vadd.f32 %v1698, %v1699
  %v1701 = vrot.slane %v1700, 2
  %v1702 = vadd.f32 %v1700, %v1701
  %v1703 = vrot.slane %v1702, 1
  %v1704 = vadd.f32 %v1702, %v1703
  %v1705 = vadd.f32 %v1674, %v1675
  %v1706 = vadd.f32 %v1705, %v1676
  %v1707 = vadd.f32 %v1706, %v1677
  %v1708 = vrot.slane %v1707, 4
  %v1709 = vadd.f32 %v1707, %v1708
  %v1710 = vrot.slane %v1709, 2
  %v1711 = vadd.f32 %v1709, %v1710
  %v1712 = vrot.slane %v1711, 1
  %v1713 = vadd.f32 %v1711, %v1712
  %v1714 = vadd.f32 %v1686, %v1695
  %v1715 = vadd.f32 %v1714, %v1704
  %v1716 = vadd.f32 %v1715, %v1713
  %v1717 = vmul.f32 %v1661, 0.0078125
  %v1718 = vmul.f32 %v1716, 0.0078125
  %v1719 = vmul.f32 %v1717, %v1717
  %v1720 = vsub.f32 %v1718, %v1719
  %v1721 = vmax.f32 %v1720, 0.0
  %v1722 = vld [vmem:[%s2] sm:$0x3]
  %v1723 = vadd.f32 %v1721, 1e-05
  %v1724 = vrsqrt.pop %v1723
  %v1725 = vmul.f32 %v1722, %v1724
  %v1726 = vmul.f32 %v1725, %v1717
  %v1728 = vrot.slane %v1726, 7
  %v1730 = vsub.f32 %v1722, %v1728
  %v1731 = vlaneseq
  %v1732 = vshrl.u32 %v1731, 7
  %v1733 = vsub.s32 0, %v1732
  %v1734 = vrot.slane %v1725, %v1733
  %v1735 = vmul.f32 %v619, %v1734
  %v1736 = vmul.f32 %v622, %v1734
  %v1737 = vmul.f32 %v627, %v1734
  %v1738 = vmul.f32 %v630, %v1734
  %v1739 = vmul.f32 %v949, %v1734
  %v1740 = vmul.f32 %v952, %v1734
  %v1741 = vmul.f32 %v957, %v1734
  %v1742 = vmul.f32 %v960, %v1734
  %v1743 = vmul.f32 %v1279, %v1734
  %v1744 = vmul.f32 %v1282, %v1734
  %v1745 = vmul.f32 %v1287, %v1734
  %v1746 = vmul.f32 %v1290, %v1734
  %v1747 = vmul.f32 %v1609, %v1734
  %v1748 = vmul.f32 %v1612, %v1734
  %v1749 = vmul.f32 %v1617, %v1734
  %v1750 = vmul.f32 %v1620, %v1734
  %v1751 = vlaneseq
  %v1752 = vshrl.u32 %v1751, 7
  %v1753 = vsub.s32 1, %v1752
  %v1754 = vrot.slane %v1730, %v1753
  %v1755 = vadd.f32 %v1735, %v1754
  %v1756 = vadd.f32 %v1736, %v1754
  %v1757 = vadd.f32 %v1737, %v1754
  %v1758 = vadd.f32 %v1738, %v1754
  %v1759 = vadd.f32 %v1739, %v1754
  %v1760 = vadd.f32 %v1740, %v1754
  %v1761 = vadd.f32 %v1741, %v1754
  %v1762 = vadd.f32 %v1742, %v1754
  %v1763 = vadd.f32 %v1743, %v1754
  %v1764 = vadd.f32 %v1744, %v1754
  %v1765 = vadd.f32 %v1745, %v1754
  %v1766 = vadd.f32 %v1746, %v1754
  %v1767 = vadd.f32 %v1747, %v1754
  %v1768 = vadd.f32 %v1748, %v1754
  %v1769 = vadd.f32 %v1749, %v1754
  %v1770 = vadd.f32 %v1750, %v1754
  %v1771 = vmax.f32 %v1755, 0.0
  %v1772 = vmax.f32 %v1756, 0.0
  %v1773 = vmax.f32 %v1757, 0.0
  %v1774 = vmax.f32 %v1758, 0.0
  %v1775 = vmax.f32 %v1759, 0.0
  %v1776 = vmax.f32 %v1760, 0.0
  %v1777 = vmax.f32 %v1761, 0.0
  %v1778 = vmax.f32 %v1762, 0.0
  %v1779 = vmax.f32 %v1763, 0.0
  %v1780 = vmax.f32 %v1764, 0.0
  %v1781 = vmax.f32 %v1765, 0.0
  %v1782 = vmax.f32 %v1766, 0.0
  %v1783 = vmax.f32 %v1767, 0.0
  %v1784 = vmax.f32 %v1768, 0.0
  %v1785 = vmax.f32 %v1769, 0.0
  %v1786 = vmax.f32 %v1770, 0.0
  %1787 = vst [vmem:[%s3] sm:$0xff] %v1771
  %1788 = vst [vmem:[%s3 + $0x8] sm:$0xff] %v1772
  %1789 = vst [vmem:[%s3 + $0x10] sm:$0xff] %v1773
  %1790 = vst [vmem:[%s3 + $0x18] sm:$0xff] %v1774
  %1791 = vst [vmem:[%s3 + $0x20] sm:$0xff] %v1775
  %1792 = vst [vmem:[%s3 + $0x28] sm:$0xff] %v1776
  %1793 = vst [vmem:[%s3 + $0x30] sm:$0xff] %v1777
  %1794 = vst [vmem:[%s3 + $0x38] sm:$0xff] %v1778
  %1795 = vst [vmem:[%s3 + $0x40] sm:$0xff] %v1779
  %1796 = vst [vmem:[%s3 + $0x48] sm:$0xff] %v1780
  %1797 = vst [vmem:[%s3 + $0x50] sm:$0xff] %v1781
  %1798 = vst [vmem:[%s3 + $0x58] sm:$0xff] %v1782
  %1799 = vst [vmem:[%s3 + $0x60] sm:$0xff] %v1783
  %1800 = vst [vmem:[%s3 + $0x68] sm:$0xff] %v1784
  %1801 = vst [vmem:[%s3 + $0x70] sm:$0xff] %v1785
  %1802 = vst [vmem:[%s3 + $0x78] sm:$0xff] %v1786
  // Predicated region
  $region14: #{dc_generator_forward.6} parent=0 // pred_check
    _
  $region15: #{dc_generator_forward.6} parent=0 // pred_check_branch
    %1804 = sbr.rel (0) target = $region17
  $region16: #{dc_generator_forward.6} parent=0 // pred_region
    _
  $region17: #{dc_generator_forward.6} parent=0 // pred_fallthru
    _
  // Predicated region
  $region18: #{dc_generator_forward.6} parent=0 // pred_check
    _
  $region19: #{dc_generator_forward.6} parent=0 // pred_check_branch
    %1806 = sbr.rel (0) target = $region21
  $region20: #{dc_generator_forward.6} parent=0 // pred_region
    _
  $region21: #{dc_generator_forward.6} parent=0 // pred_fallthru
    _

// kernel: dc_generator_forward.7
$region0: #{dc_generator_forward.7}
  #allocation0 [shape = 'u32[]', space=smem, size = 0x4, offset = 0x4, fixed_abs, tag = 'smem constant byte address 0x4 - core index']
  #allocation1 [shape = 'u32[144,128]{1,0:T(1,128)}', space=vmem, size = 0x12000, scoped, tag = 'internal scratch']
  %s0 = inlined_call_operand.vmem [shape: bf16[4,128,256], index: 0, kind: input, shape index: {}]
  %s1 = inlined_call_operand.vmem [shape: bf16[4,256,128], index: 1, kind: input, shape index: {}]
  %s2 = inlined_call_operand.vmem [shape: f32[2,128], index: 2, kind: input, shape index: {}]
  %s3 = inlined_call_operand.vmem [shape: f32[4,128,128], index: 3, kind: output, shape index: {}]
  %s4 = sld [smem:[#allocation0]]
  $region22: #{dc_generator_forward.7} parent=0
    _
  %s6 = ssub.s32 1, %s4
  %s7 = scalar_select 0, %s6, %s4
  // Predicated region
  $region2: #{dc_generator_forward.7} parent=0 // pred_check
    _
  $region3: #{dc_generator_forward.7} parent=0 // pred_check_branch
    %9 = sbr.rel (0) target = $region5
  $region4: #{dc_generator_forward.7} parent=0 // pred_region
    _
  $region5: #{dc_generator_forward.7} parent=0 // pred_fallthru
    _
  // Predicated region
  $region6: #{dc_generator_forward.7} parent=0 // pred_check
    _
  $region7: #{dc_generator_forward.7} parent=0 // pred_check_branch
    %11 = sbr.rel (0) target = $region9
  $region8: #{dc_generator_forward.7} parent=0 // pred_region
    _
  $region9: #{dc_generator_forward.7} parent=0 // pred_fallthru
    _
  // Predicated region
  $region10: #{dc_generator_forward.7} parent=0 // pred_check
    _
  $region11: #{dc_generator_forward.7} parent=0 // pred_check_branch
    %13 = sbr.rel (0) target = $region13
  $region12: #{dc_generator_forward.7} parent=0 // pred_region
    _
  $region13: #{dc_generator_forward.7} parent=0 // pred_fallthru
    _
  %v15 = vld [vmem:[%s0] sm:$0xff]
  %v16 = vld [vmem:[%s0 + $0x8] sm:$0xff]
  %v17 = vld [vmem:[%s0 + $0x10] sm:$0xff]
  %v18 = vld [vmem:[%s0 + $0x18] sm:$0xff]
  %v19 = vld [vmem:[%s0 + $0x20] sm:$0xff]
  %v20 = vld [vmem:[%s0 + $0x28] sm:$0xff]
  %v21 = vld [vmem:[%s0 + $0x30] sm:$0xff]
  %v22 = vld [vmem:[%s0 + $0x38] sm:$0xff]
  %v23 = vld [vmem:[%s0 + $0x40] sm:$0xff]
  %v24 = vld [vmem:[%s0 + $0x48] sm:$0xff]
  %v25 = vld [vmem:[%s0 + $0x50] sm:$0xff]
  %v26 = vld [vmem:[%s0 + $0x58] sm:$0xff]
  %v27 = vld [vmem:[%s0 + $0x60] sm:$0xff]
  %v28 = vld [vmem:[%s0 + $0x68] sm:$0xff]
  %v29 = vld [vmem:[%s0 + $0x70] sm:$0xff]
  %v30 = vld [vmem:[%s0 + $0x78] sm:$0xff]
  %v31 = vld [vmem:[%s0 + $0x80] sm:$0xff]
  %v32 = vld [vmem:[%s0 + $0x88] sm:$0xff]
  %v33 = vld [vmem:[%s0 + $0x90] sm:$0xff]
  %v34 = vld [vmem:[%s0 + $0x98] sm:$0xff]
  %v35 = vld [vmem:[%s0 + $0xa0] sm:$0xff]
  %v36 = vld [vmem:[%s0 + $0xa8] sm:$0xff]
  %v37 = vld [vmem:[%s0 + $0xb0] sm:$0xff]
  %v38 = vld [vmem:[%s0 + $0xb8] sm:$0xff]
  %v39 = vld [vmem:[%s0 + $0xc0] sm:$0xff]
  %v40 = vld [vmem:[%s0 + $0xc8] sm:$0xff]
  %v41 = vld [vmem:[%s0 + $0xd0] sm:$0xff]
  %v42 = vld [vmem:[%s0 + $0xd8] sm:$0xff]
  %v43 = vld [vmem:[%s0 + $0xe0] sm:$0xff]
  %v44 = vld [vmem:[%s0 + $0xe8] sm:$0xff]
  %v45 = vld [vmem:[%s0 + $0xf0] sm:$0xff]
  %v46 = vld [vmem:[%s0 + $0xf8] sm:$0xff]
  %v47 = vld [vmem:[%s0 + $0x100] sm:$0xff]
  %v48 = vld [vmem:[%s0 + $0x108] sm:$0xff]
  %v49 = vld [vmem:[%s0 + $0x110] sm:$0xff]
  %v50 = vld [vmem:[%s0 + $0x118] sm:$0xff]
  %v51 = vld [vmem:[%s0 + $0x120] sm:$0xff]
  %v52 = vld [vmem:[%s0 + $0x128] sm:$0xff]
  %v53 = vld [vmem:[%s0 + $0x130] sm:$0xff]
  %v54 = vld [vmem:[%s0 + $0x138] sm:$0xff]
  %v55 = vld [vmem:[%s0 + $0x140] sm:$0xff]
  %v56 = vld [vmem:[%s0 + $0x148] sm:$0xff]
  %v57 = vld [vmem:[%s0 + $0x150] sm:$0xff]
  %v58 = vld [vmem:[%s0 + $0x158] sm:$0xff]
  %v59 = vld [vmem:[%s0 + $0x160] sm:$0xff]
  %v60 = vld [vmem:[%s0 + $0x168] sm:$0xff]
  %v61 = vld [vmem:[%s0 + $0x170] sm:$0xff]
  %v62 = vld [vmem:[%s0 + $0x178] sm:$0xff]
  %v63 = vld [vmem:[%s0 + $0x180] sm:$0xff]
  %v64 = vld [vmem:[%s0 + $0x188] sm:$0xff]
  %v65 = vld [vmem:[%s0 + $0x190] sm:$0xff]
  %v66 = vld [vmem:[%s0 + $0x198] sm:$0xff]
  %v67 = vld [vmem:[%s0 + $0x1a0] sm:$0xff]
  %v68 = vld [vmem:[%s0 + $0x1a8] sm:$0xff]
  %v69 = vld [vmem:[%s0 + $0x1b0] sm:$0xff]
  %v70 = vld [vmem:[%s0 + $0x1b8] sm:$0xff]
  %v71 = vld [vmem:[%s0 + $0x1c0] sm:$0xff]
  %v72 = vld [vmem:[%s0 + $0x1c8] sm:$0xff]
  %v73 = vld [vmem:[%s0 + $0x1d0] sm:$0xff]
  %v74 = vld [vmem:[%s0 + $0x1d8] sm:$0xff]
  %v75 = vld [vmem:[%s0 + $0x1e0] sm:$0xff]
  %v76 = vld [vmem:[%s0 + $0x1e8] sm:$0xff]
  %v77 = vld [vmem:[%s0 + $0x1f0] sm:$0xff]
  %v78 = vld [vmem:[%s0 + $0x1f8] sm:$0xff]
  %v79 = vld [vmem:[%s1] sm:$0xf]
  %v80 = vld [vmem:[%s1 + $0x4] sm:$0xf]
  %v81 = vld [vmem:[%s1 + $0x8] sm:$0xf]
  %v82 = vld [vmem:[%s1 + $0xc] sm:$0xf]
  %v83 = vld [vmem:[%s1 + $0x10] sm:$0xf]
  %v84 = vld [vmem:[%s1 + $0x14] sm:$0xf]
  %v85 = vld [vmem:[%s1 + $0x18] sm:$0xf]
  %v86 = vld [vmem:[%s1 + $0x1c] sm:$0xf]
  %v87 = vld [vmem:[%s1 + $0x20] sm:$0xf]
  %v88 = vld [vmem:[%s1 + $0x24] sm:$0xf]
  %v89 = vld [vmem:[%s1 + $0x28] sm:$0xf]
  %v90 = vld [vmem:[%s1 + $0x2c] sm:$0xf]
  %v91 = vld [vmem:[%s1 + $0x30] sm:$0xf]
  %v92 = vld [vmem:[%s1 + $0x34] sm:$0xf]
  %v93 = vld [vmem:[%s1 + $0x38] sm:$0xf]
  %v94 = vld [vmem:[%s1 + $0x3c] sm:$0xf]
  %v95 = vld [vmem:[%s1 + $0x40] sm:$0xf]
  %v96 = vld [vmem:[%s1 + $0x44] sm:$0xf]
  %v97 = vld [vmem:[%s1 + $0x48] sm:$0xf]
  %v98 = vld [vmem:[%s1 + $0x4c] sm:$0xf]
  %v99 = vld [vmem:[%s1 + $0x50] sm:$0xf]
  %v100 = vld [vmem:[%s1 + $0x54] sm:$0xf]
  %v101 = vld [vmem:[%s1 + $0x58] sm:$0xf]
  %v102 = vld [vmem:[%s1 + $0x5c] sm:$0xf]
  %v103 = vld [vmem:[%s1 + $0x60] sm:$0xf]
  %v104 = vld [vmem:[%s1 + $0x64] sm:$0xf]
  %v105 = vld [vmem:[%s1 + $0x68] sm:$0xf]
  %v106 = vld [vmem:[%s1 + $0x6c] sm:$0xf]
  %v107 = vld [vmem:[%s1 + $0x70] sm:$0xf]
  %v108 = vld [vmem:[%s1 + $0x74] sm:$0xf]
  %v109 = vld [vmem:[%s1 + $0x78] sm:$0xf]
  %v110 = vld [vmem:[%s1 + $0x7c] sm:$0xf]
  %v111 = vld [vmem:[%s1 + $0x80] sm:$0xf]
  %v112 = vld [vmem:[%s1 + $0x84] sm:$0xf]
  %v113 = vld [vmem:[%s1 + $0x88] sm:$0xf]
  %v114 = vld [vmem:[%s1 + $0x8c] sm:$0xf]
  %v115 = vld [vmem:[%s1 + $0x90] sm:$0xf]
  %v116 = vld [vmem:[%s1 + $0x94] sm:$0xf]
  %v117 = vld [vmem:[%s1 + $0x98] sm:$0xf]
  %v118 = vld [vmem:[%s1 + $0x9c] sm:$0xf]
  %v119 = vld [vmem:[%s1 + $0xa0] sm:$0xf]
  %v120 = vld [vmem:[%s1 + $0xa4] sm:$0xf]
  %v121 = vld [vmem:[%s1 + $0xa8] sm:$0xf]
  %v122 = vld [vmem:[%s1 + $0xac] sm:$0xf]
  %v123 = vld [vmem:[%s1 + $0xb0] sm:$0xf]
  %v124 = vld [vmem:[%s1 + $0xb4] sm:$0xf]
  %v125 = vld [vmem:[%s1 + $0xb8] sm:$0xf]
  %v126 = vld [vmem:[%s1 + $0xbc] sm:$0xf]
  %v127 = vld [vmem:[%s1 + $0xc0] sm:$0xf]
  %v128 = vld [vmem:[%s1 + $0xc4] sm:$0xf]
  %v129 = vld [vmem:[%s1 + $0xc8] sm:$0xf]
  %v130 = vld [vmem:[%s1 + $0xcc] sm:$0xf]
  %v131 = vld [vmem:[%s1 + $0xd0] sm:$0xf]
  %v132 = vld [vmem:[%s1 + $0xd4] sm:$0xf]
  %v133 = vld [vmem:[%s1 + $0xd8] sm:$0xf]
  %v134 = vld [vmem:[%s1 + $0xdc] sm:$0xf]
  %v135 = vld [vmem:[%s1 + $0xe0] sm:$0xf]
  %v136 = vld [vmem:[%s1 + $0xe4] sm:$0xf]
  %v137 = vld [vmem:[%s1 + $0xe8] sm:$0xf]
  %v138 = vld [vmem:[%s1 + $0xec] sm:$0xf]
  %v139 = vld [vmem:[%s1 + $0xf0] sm:$0xf]
  %v140 = vld [vmem:[%s1 + $0xf4] sm:$0xf]
  %v141 = vld [vmem:[%s1 + $0xf8] sm:$0xf]
  %v142 = vld [vmem:[%s1 + $0xfc] sm:$0xf]
  %v143 = vld [vmem:[%s1 + $0x100] sm:$0xf]
  %v144 = vld [vmem:[%s1 + $0x104] sm:$0xf]
  %v145 = vld [vmem:[%s1 + $0x108] sm:$0xf]
  %v146 = vld [vmem:[%s1 + $0x10c] sm:$0xf]
  %v147 = vld [vmem:[%s1 + $0x110] sm:$0xf]
  %v148 = vld [vmem:[%s1 + $0x114] sm:$0xf]
  %v149 = vld [vmem:[%s1 + $0x118] sm:$0xf]
  %v150 = vld [vmem:[%s1 + $0x11c] sm:$0xf]
  %v151 = vld [vmem:[%s1 + $0x120] sm:$0xf]
  %v152 = vld [vmem:[%s1 + $0x124] sm:$0xf]
  %v153 = vld [vmem:[%s1 + $0x128] sm:$0xf]
  %v154 = vld [vmem:[%s1 + $0x12c] sm:$0xf]
  %v155 = vld [vmem:[%s1 + $0x130] sm:$0xf]
  %v156 = vld [vmem:[%s1 + $0x134] sm:$0xf]
  %v157 = vld [vmem:[%s1 + $0x138] sm:$0xf]
  %v158 = vld [vmem:[%s1 + $0x13c] sm:$0xf]
  %v159 = vld [vmem:[%s1 + $0x140] sm:$0xf]
  %v160 = vld [vmem:[%s1 + $0x144] sm:$0xf]
  %v161 = vld [vmem:[%s1 + $0x148] sm:$0xf]
  %v162 = vld [vmem:[%s1 + $0x14c] sm:$0xf]
  %v163 = vld [vmem:[%s1 + $0x150] sm:$0xf]
  %v164 = vld [vmem:[%s1 + $0x154] sm:$0xf]
  %v165 = vld [vmem:[%s1 + $0x158] sm:$0xf]
  %v166 = vld [vmem:[%s1 + $0x15c] sm:$0xf]
  %v167 = vld [vmem:[%s1 + $0x160] sm:$0xf]
  %v168 = vld [vmem:[%s1 + $0x164] sm:$0xf]
  %v169 = vld [vmem:[%s1 + $0x168] sm:$0xf]
  %v170 = vld [vmem:[%s1 + $0x16c] sm:$0xf]
  %v171 = vld [vmem:[%s1 + $0x170] sm:$0xf]
  %v172 = vld [vmem:[%s1 + $0x174] sm:$0xf]
  %v173 = vld [vmem:[%s1 + $0x178] sm:$0xf]
  %v174 = vld [vmem:[%s1 + $0x17c] sm:$0xf]
  %v175 = vld [vmem:[%s1 + $0x180] sm:$0xf]
  %v176 = vld [vmem:[%s1 + $0x184] sm:$0xf]
  %v177 = vld [vmem:[%s1 + $0x188] sm:$0xf]
  %v178 = vld [vmem:[%s1 + $0x18c] sm:$0xf]
  %v179 = vld [vmem:[%s1 + $0x190] sm:$0xf]
  %v180 = vld [vmem:[%s1 + $0x194] sm:$0xf]
  %v181 = vld [vmem:[%s1 + $0x198] sm:$0xf]
  %v182 = vld [vmem:[%s1 + $0x19c] sm:$0xf]
  %v183 = vld [vmem:[%s1 + $0x1a0] sm:$0xf]
  %v184 = vld [vmem:[%s1 + $0x1a4] sm:$0xf]
  %v185 = vld [vmem:[%s1 + $0x1a8] sm:$0xf]
  %v186 = vld [vmem:[%s1 + $0x1ac] sm:$0xf]
  %v187 = vld [vmem:[%s1 + $0x1b0] sm:$0xf]
  %v188 = vld [vmem:[%s1 + $0x1b4] sm:$0xf]
  %v189 = vld [vmem:[%s1 + $0x1b8] sm:$0xf]
  %v190 = vld [vmem:[%s1 + $0x1bc] sm:$0xf]
  %v191 = vld [vmem:[%s1 + $0x1c0] sm:$0xf]
  %v192 = vld [vmem:[%s1 + $0x1c4] sm:$0xf]
  %v193 = vld [vmem:[%s1 + $0x1c8] sm:$0xf]
  %v194 = vld [vmem:[%s1 + $0x1cc] sm:$0xf]
  %v195 = vld [vmem:[%s1 + $0x1d0] sm:$0xf]
  %v196 = vld [vmem:[%s1 + $0x1d4] sm:$0xf]
  %v197 = vld [vmem:[%s1 + $0x1d8] sm:$0xf]
  %v198 = vld [vmem:[%s1 + $0x1dc] sm:$0xf]
  %v199 = vld [vmem:[%s1 + $0x1e0] sm:$0xf]
  %v200 = vld [vmem:[%s1 + $0x1e4] sm:$0xf]
  %v201 = vld [vmem:[%s1 + $0x1e8] sm:$0xf]
  %v202 = vld [vmem:[%s1 + $0x1ec] sm:$0xf]
  %v203 = vld [vmem:[%s1 + $0x1f0] sm:$0xf]
  %v204 = vld [vmem:[%s1 + $0x1f4] sm:$0xf]
  %v205 = vld [vmem:[%s1 + $0x1f8] sm:$0xf]
  %v206 = vld [vmem:[%s1 + $0x1fc] sm:$0xf]
  %v223 = vunpack.c.l.b16 %v15
  %v224 = vunpack.c.h.b16 %v15
  %v225 = vunpack.c.l.b16 %v16
  %v226 = vunpack.c.h.b16 %v16
  %v227 = vunpack.c.l.b16 %v17
  %v228 = vunpack.c.h.b16 %v17
  %v229 = vunpack.c.l.b16 %v18
  %v230 = vunpack.c.h.b16 %v18
  %v231 = vunpack.c.l.b16 %v19
  %v232 = vunpack.c.h.b16 %v19
  %v233 = vunpack.c.l.b16 %v20
  %v234 = vunpack.c.h.b16 %v20
  %v235 = vunpack.c.l.b16 %v21
  %v236 = vunpack.c.h.b16 %v21
  %v237 = vunpack.c.l.b16 %v22
  %v238 = vunpack.c.h.b16 %v22
  %v239 = vunpack.c.l.b16 %v23
  %v240 = vunpack.c.h.b16 %v23
  %v241 = vunpack.c.l.b16 %v24
  %v242 = vunpack.c.h.b16 %v24
  %v243 = vunpack.c.l.b16 %v25
  %v244 = vunpack.c.h.b16 %v25
  %v245 = vunpack.c.l.b16 %v26
  %v246 = vunpack.c.h.b16 %v26
  %v247 = vunpack.c.l.b16 %v27
  %v248 = vunpack.c.h.b16 %v27
  %v249 = vunpack.c.l.b16 %v28
  %v250 = vunpack.c.h.b16 %v28
  %v251 = vunpack.c.l.b16 %v29
  %v252 = vunpack.c.h.b16 %v29
  %v253 = vunpack.c.l.b16 %v30
  %v254 = vunpack.c.h.b16 %v30
  %v255 = vpack.c.b16 %v225, %v223
  %v256 = vpack.c.b16 %v226, %v224
  %v257 = vpack.c.b16 %v229, %v227
  %v258 = vpack.c.b16 %v230, %v228
  %v259 = vpack.c.b16 %v233, %v231
  %v260 = vpack.c.b16 %v234, %v232
  %v261 = vpack.c.b16 %v237, %v235
  %v262 = vpack.c.b16 %v238, %v236
  %v263 = vpack.c.b16 %v241, %v239
  %v264 = vpack.c.b16 %v242, %v240
  %v265 = vpack.c.b16 %v245, %v243
  %v266 = vpack.c.b16 %v246, %v244
  %v267 = vpack.c.b16 %v249, %v247
  %v268 = vpack.c.b16 %v250, %v248
  %v269 = vpack.c.b16 %v253, %v251
  %v270 = vpack.c.b16 %v254, %v252
  %v319 = vunpack.c.l.b16 %v79
  %v320 = vunpack.c.l.b16 %v80
  %v321 = vunpack.c.l.b16 %v81
  %v322 = vunpack.c.l.b16 %v82
  %v323 = vunpack.c.l.b16 %v83
  %v324 = vunpack.c.l.b16 %v84
  %v325 = vunpack.c.l.b16 %v85
  %v326 = vunpack.c.l.b16 %v86
  %v327 = vunpack.c.l.b16 %v87
  %v328 = vunpack.c.l.b16 %v88
  %v329 = vunpack.c.l.b16 %v89
  %v330 = vunpack.c.l.b16 %v90
  %v331 = vunpack.c.l.b16 %v91
  %v332 = vunpack.c.l.b16 %v92
  %v333 = vunpack.c.l.b16 %v93
  %v334 = vunpack.c.l.b16 %v94
  %v335 = vunpack.c.l.b16 %v95
  %v336 = vunpack.c.l.b16 %v96
  %v337 = vunpack.c.l.b16 %v97
  %v338 = vunpack.c.l.b16 %v98
  %v339 = vunpack.c.l.b16 %v99
  %v340 = vunpack.c.l.b16 %v100
  %v341 = vunpack.c.l.b16 %v101
  %v342 = vunpack.c.l.b16 %v102
  %v343 = vunpack.c.l.b16 %v103
  %v344 = vunpack.c.l.b16 %v104
  %v345 = vunpack.c.l.b16 %v105
  %v346 = vunpack.c.l.b16 %v106
  %v347 = vunpack.c.l.b16 %v107
  %v348 = vunpack.c.l.b16 %v108
  %v349 = vunpack.c.l.b16 %v109
  %v350 = vunpack.c.l.b16 %v110
  %v351 = vpack.c.b16 %v320, %v319
  %v352 = vpack.c.b16 %v322, %v321
  %v353 = vpack.c.b16 %v324, %v323
  %v354 = vpack.c.b16 %v326, %v325
  %v355 = vpack.c.b16 %v328, %v327
  %v356 = vpack.c.b16 %v330, %v329
  %v357 = vpack.c.b16 %v332, %v331
  %v358 = vpack.c.b16 %v334, %v333
  %v359 = vpack.c.b16 %v336, %v335
  %v360 = vpack.c.b16 %v338, %v337
  %v361 = vpack.c.b16 %v340, %v339
  %v362 = vpack.c.b16 %v342, %v341
  %v363 = vpack.c.b16 %v344, %v343
  %v364 = vpack.c.b16 %v346, %v345
  %v365 = vpack.c.b16 %v348, %v347
  %v366 = vpack.c.b16 %v350, %v349
  %383 = vmatprep.subr.bf16.mxu0 0
  %384 = vmatpush1.bf16.msra.mxu0 %v358
  %385 = vmatprep.subr.bf16.mxu0 0
  %386 = vmatpush1.bf16.msra.mxu0 %v357
  %387 = vmatprep.subr.bf16.mxu0 0
  %388 = vmatpush1.bf16.msra.mxu0 %v356
  %389 = vmatprep.subr.bf16.mxu0 0
  %390 = vmatpush1.bf16.msra.mxu0 %v355
  %391 = vmatprep.subr.bf16.mxu0 0
  %392 = vmatpush1.bf16.msra.mxu0 %v354
  %393 = vmatprep.subr.bf16.mxu0 0
  %394 = vmatpush1.bf16.msra.mxu0 %v353
  %395 = vmatprep.subr.bf16.mxu0 0
  %396 = vmatpush1.bf16.msra.mxu0 %v352
  %397 = vmatprep.subr.bf16.mxu0 0
  %398 = vmatpush1.bf16.msra.mxu0 %v351
  %399 = vmatprep.subr.bf16.mxu0 0
  %400 = vmatpush2.bf16.msra.mxu0 %v366
  %401 = vmatprep.subr.bf16.mxu0 0
  %402 = vmatpush2.bf16.msra.mxu0 %v365
  %403 = vmatprep.subr.bf16.mxu0 0
  %404 = vmatpush2.bf16.msra.mxu0 %v364
  %405 = vmatprep.subr.bf16.mxu0 0
  %406 = vmatpush2.bf16.msra.mxu0 %v363
  %407 = vmatprep.subr.bf16.mxu0 0
  %408 = vmatpush2.bf16.msra.mxu0 %v362
  %409 = vmatprep.subr.bf16.mxu0 0
  %410 = vmatpush2.bf16.msra.mxu0 %v361
  %411 = vmatprep.subr.bf16.mxu0 0
  %412 = vmatpush2.bf16.msra.mxu0 %v360
  %413 = vmatprep.subr.bf16.mxu0 0
  %414 = vmatpush2.bf16.msra.mxu0 %v359
  %415 = vmatprep.mubr.bf16.mxu0 %v256
  %416 = vmatmul.mubr.bf16.gmra.mxu0 %v255
  %v417 = vpop.f32.mrf.mxu0
  %v418 = vadd.f32 0.0, %v417
  %v419 = vpop.f32.mrf.mxu0
  %v420 = vpop.f32.mrf.mxu0
  %v421 = vadd.f32 0.0, %v420
  %v422 = vpop.f32.mrf.mxu0
  %423 = vmatprep.mubr.bf16.mxu0 %v258
  %424 = vmatmul.mubr.bf16.gmra.mxu0 %v257
  %v425 = vpop.f32.mrf.mxu0
  %v426 = vadd.f32 0.0, %v425
  %v427 = vpop.f32.mrf.mxu0
  %v428 = vpop.f32.mrf.mxu0
  %v429 = vadd.f32 0.0, %v428
  %v430 = vpop.f32.mrf.mxu0
  %431 = vmatprep.mubr.bf16.mxu0 %v260
  %432 = vmatmul.mubr.bf16.gmra.mxu0 %v259
  %v433 = vpop.f32.mrf.mxu0
  %v434 = vadd.f32 0.0, %v433
  %v435 = vpop.f32.mrf.mxu0
  %v436 = vpop.f32.mrf.mxu0
  %v437 = vadd.f32 0.0, %v436
  %v438 = vpop.f32.mrf.mxu0
  %439 = vmatprep.mubr.bf16.mxu0 %v262
  %440 = vmatmul.mubr.bf16.gmra.mxu0 %v261
  %v441 = vpop.f32.mrf.mxu0
  %v442 = vadd.f32 0.0, %v441
  %v443 = vpop.f32.mrf.mxu0
  %v444 = vpop.f32.mrf.mxu0
  %v445 = vadd.f32 0.0, %v444
  %v446 = vpop.f32.mrf.mxu0
  %447 = vmatprep.mubr.bf16.mxu0 %v264
  %448 = vmatmul.mubr.bf16.gmra.mxu0 %v263
  %v449 = vpop.f32.mrf.mxu0
  %v450 = vadd.f32 0.0, %v449
  %v451 = vpop.f32.mrf.mxu0
  %v452 = vpop.f32.mrf.mxu0
  %v453 = vadd.f32 0.0, %v452
  %v454 = vpop.f32.mrf.mxu0
  %455 = vmatprep.mubr.bf16.mxu0 %v266
  %456 = vmatmul.mubr.bf16.gmra.mxu0 %v265
  %v457 = vpop.f32.mrf.mxu0
  %v458 = vadd.f32 0.0, %v457
  %v459 = vpop.f32.mrf.mxu0
  %v460 = vpop.f32.mrf.mxu0
  %v461 = vadd.f32 0.0, %v460
  %v462 = vpop.f32.mrf.mxu0
  %463 = vmatprep.mubr.bf16.mxu0 %v268
  %464 = vmatmul.mubr.bf16.gmra.mxu0 %v267
  %v465 = vpop.f32.mrf.mxu0
  %v466 = vadd.f32 0.0, %v465
  %v467 = vpop.f32.mrf.mxu0
  %v468 = vpop.f32.mrf.mxu0
  %v469 = vadd.f32 0.0, %v468
  %v470 = vpop.f32.mrf.mxu0
  %471 = vmatprep.mubr.bf16.mxu0 %v270
  %472 = vmatmul.mubr.bf16.gmra.mxu0 %v269
  %v473 = vpop.f32.mrf.mxu0
  %v474 = vadd.f32 0.0, %v473
  %v475 = vpop.f32.mrf.mxu0
  %v476 = vpop.f32.mrf.mxu0
  %v477 = vadd.f32 0.0, %v476
  %v478 = vpop.f32.mrf.mxu0
  %479 = vdwg.mxu0
  %v496 = vunpack.c.l.b16 %v31
  %v497 = vunpack.c.h.b16 %v31
  %v498 = vunpack.c.l.b16 %v32
  %v499 = vunpack.c.h.b16 %v32
  %v500 = vunpack.c.l.b16 %v33
  %v501 = vunpack.c.h.b16 %v33
  %v502 = vunpack.c.l.b16 %v34
  %v503 = vunpack.c.h.b16 %v34
  %v504 = vunpack.c.l.b16 %v35
  %v505 = vunpack.c.h.b16 %v35
  %v506 = vunpack.c.l.b16 %v36
  %v507 = vunpack.c.h.b16 %v36
  %v508 = vunpack.c.l.b16 %v37
  %v509 = vunpack.c.h.b16 %v37
  %v510 = vunpack.c.l.b16 %v38
  %v511 = vunpack.c.h.b16 %v38
  %v512 = vunpack.c.l.b16 %v39
  %v513 = vunpack.c.h.b16 %v39
  %v514 = vunpack.c.l.b16 %v40
  %v515 = vunpack.c.h.b16 %v40
  %v516 = vunpack.c.l.b16 %v41
  %v517 = vunpack.c.h.b16 %v41
  %v518 = vunpack.c.l.b16 %v42
  %v519 = vunpack.c.h.b16 %v42
  %v520 = vunpack.c.l.b16 %v43
  %v521 = vunpack.c.h.b16 %v43
  %v522 = vunpack.c.l.b16 %v44
  %v523 = vunpack.c.h.b16 %v44
  %v524 = vunpack.c.l.b16 %v45
  %v525 = vunpack.c.h.b16 %v45
  %v526 = vunpack.c.l.b16 %v46
  %v527 = vunpack.c.h.b16 %v46
  %v528 = vpack.c.b16 %v498, %v496
  %v529 = vpack.c.b16 %v499, %v497
  %v530 = vpack.c.b16 %v502, %v500
  %v531 = vpack.c.b16 %v503, %v501
  %v532 = vpack.c.b16 %v506, %v504
  %v533 = vpack.c.b16 %v507, %v505
  %v534 = vpack.c.b16 %v510, %v508
  %v535 = vpack.c.b16 %v511, %v509
  %v536 = vpack.c.b16 %v514, %v512
  %v537 = vpack.c.b16 %v515, %v513
  %v538 = vpack.c.b16 %v518, %v516
  %v539 = vpack.c.b16 %v519, %v517
  %v540 = vpack.c.b16 %v522, %v520
  %v541 = vpack.c.b16 %v523, %v521
  %v542 = vpack.c.b16 %v526, %v524
  %v543 = vpack.c.b16 %v527, %v525
  %v592 = vunpack.c.l.b16 %v111
  %v593 = vunpack.c.l.b16 %v112
  %v594 = vunpack.c.l.b16 %v113
  %v595 = vunpack.c.l.b16 %v114
  %v596 = vunpack.c.l.b16 %v115
  %v597 = vunpack.c.l.b16 %v116
  %v598 = vunpack.c.l.b16 %v117
  %v599 = vunpack.c.l.b16 %v118
  %v600 = vunpack.c.l.b16 %v119
  %v601 = vunpack.c.l.b16 %v120
  %v602 = vunpack.c.l.b16 %v121
  %v603 = vunpack.c.l.b16 %v122
  %v604 = vunpack.c.l.b16 %v123
  %v605 = vunpack.c.l.b16 %v124
  %v606 = vunpack.c.l.b16 %v125
  %v607 = vunpack.c.l.b16 %v126
  %v608 = vunpack.c.l.b16 %v127
  %v609 = vunpack.c.l.b16 %v128
  %v610 = vunpack.c.l.b16 %v129
  %v611 = vunpack.c.l.b16 %v130
  %v612 = vunpack.c.l.b16 %v131
  %v613 = vunpack.c.l.b16 %v132
  %v614 = vunpack.c.l.b16 %v133
  %v615 = vunpack.c.l.b16 %v134
  %v616 = vunpack.c.l.b16 %v135
  %v617 = vunpack.c.l.b16 %v136
  %v618 = vunpack.c.l.b16 %v137
  %v619 = vunpack.c.l.b16 %v138
  %v620 = vunpack.c.l.b16 %v139
  %v621 = vunpack.c.l.b16 %v140
  %v622 = vunpack.c.l.b16 %v141
  %v623 = vunpack.c.l.b16 %v142
  %v624 = vpack.c.b16 %v593, %v592
  %v625 = vpack.c.b16 %v595, %v594
  %v626 = vpack.c.b16 %v597, %v596
  %v627 = vpack.c.b16 %v599, %v598
  %v628 = vpack.c.b16 %v601, %v600
  %v629 = vpack.c.b16 %v603, %v602
  %v630 = vpack.c.b16 %v605, %v604
  %v631 = vpack.c.b16 %v607, %v606
  %v632 = vpack.c.b16 %v609, %v608
  %v633 = vpack.c.b16 %v611, %v610
  %v634 = vpack.c.b16 %v613, %v612
  %v635 = vpack.c.b16 %v615, %v614
  %v636 = vpack.c.b16 %v617, %v616
  %v637 = vpack.c.b16 %v619, %v618
  %v638 = vpack.c.b16 %v621, %v620
  %v639 = vpack.c.b16 %v623, %v622
  %656 = vmatprep.subr.bf16.mxu0 0
  %657 = vmatpush1.bf16.msra.mxu0 %v631
  %658 = vmatprep.subr.bf16.mxu0 0
  %659 = vmatpush1.bf16.msra.mxu0 %v630
  %660 = vmatprep.subr.bf16.mxu0 0
  %661 = vmatpush1.bf16.msra.mxu0 %v629
  %662 = vmatprep.subr.bf16.mxu0 0
  %663 = vmatpush1.bf16.msra.mxu0 %v628
  %664 = vmatprep.subr.bf16.mxu0 0
  %665 = vmatpush1.bf16.msra.mxu0 %v627
  %666 = vmatprep.subr.bf16.mxu0 0
  %667 = vmatpush1.bf16.msra.mxu0 %v626
  %668 = vmatprep.subr.bf16.mxu0 0
  %669 = vmatpush1.bf16.msra.mxu0 %v625
  %670 = vmatprep.subr.bf16.mxu0 0
  %671 = vmatpush1.bf16.msra.mxu0 %v624
  %672 = vmatprep.subr.bf16.mxu0 0
  %673 = vmatpush2.bf16.msra.mxu0 %v639
  %674 = vmatprep.subr.bf16.mxu0 0
  %675 = vmatpush2.bf16.msra.mxu0 %v638
  %676 = vmatprep.subr.bf16.mxu0 0
  %677 = vmatpush2.bf16.msra.mxu0 %v637
  %678 = vmatprep.subr.bf16.mxu0 0
  %679 = vmatpush2.bf16.msra.mxu0 %v636
  %680 = vmatprep.subr.bf16.mxu0 0
  %681 = vmatpush2.bf16.msra.mxu0 %v635
  %682 = vmatprep.subr.bf16.mxu0 0
  %683 = vmatpush2.bf16.msra.mxu0 %v634
  %684 = vmatprep.subr.bf16.mxu0 0
  %685 = vmatpush2.bf16.msra.mxu0 %v633
  %686 = vmatprep.subr.bf16.mxu0 0
  %687 = vmatpush2.bf16.msra.mxu0 %v632
  %688 = vmatprep.mubr.bf16.mxu0 %v529
  %689 = vmatmul.mubr.bf16.gmra.mxu0 %v528
  %v690 = vpop.f32.mrf.mxu0
  %v691 = vadd.f32 0.0, %v690
  %v692 = vpop.f32.mrf.mxu0
  %v693 = vpop.f32.mrf.mxu0
  %v694 = vadd.f32 0.0, %v693
  %v695 = vpop.f32.mrf.mxu0
  %696 = vmatprep.mubr.bf16.mxu0 %v531
  %697 = vmatmul.mubr.bf16.gmra.mxu0 %v530
  %v698 = vpop.f32.mrf.mxu0
  %v699 = vadd.f32 0.0, %v698
  %v700 = vpop.f32.mrf.mxu0
  %v701 = vpop.f32.mrf.mxu0
  %v702 = vadd.f32 0.0, %v701
  %v703 = vpop.f32.mrf.mxu0
  %704 = vmatprep.mubr.bf16.mxu0 %v533
  %705 = vmatmul.mubr.bf16.gmra.mxu0 %v532
  %v706 = vpop.f32.mrf.mxu0
  %v707 = vadd.f32 0.0, %v706
  %v708 = vpop.f32.mrf.mxu0
  %v709 = vpop.f32.mrf.mxu0
  %v710 = vadd.f32 0.0, %v709
  %v711 = vpop.f32.mrf.mxu0
  %712 = vmatprep.mubr.bf16.mxu0 %v535
  %713 = vmatmul.mubr.bf16.gmra.mxu0 %v534
  %v714 = vpop.f32.mrf.mxu0
  %v715 = vadd.f32 0.0, %v714
  %v716 = vpop.f32.mrf.mxu0
  %v717 = vpop.f32.mrf.mxu0
  %v718 = vadd.f32 0.0, %v717
  %v719 = vpop.f32.mrf.mxu0
  %720 = vmatprep.mubr.bf16.mxu0 %v537
  %721 = vmatmul.mubr.bf16.gmra.mxu0 %v536
  %v722 = vpop.f32.mrf.mxu0
  %v723 = vadd.f32 0.0, %v722
  %v724 = vpop.f32.mrf.mxu0
  %v725 = vpop.f32.mrf.mxu0
  %v726 = vadd.f32 0.0, %v725
  %v727 = vpop.f32.mrf.mxu0
  %728 = vmatprep.mubr.bf16.mxu0 %v539
  %729 = vmatmul.mubr.bf16.gmra.mxu0 %v538
  %v730 = vpop.f32.mrf.mxu0
  %v731 = vadd.f32 0.0, %v730
  %v732 = vpop.f32.mrf.mxu0
  %v733 = vpop.f32.mrf.mxu0
  %v734 = vadd.f32 0.0, %v733
  %v735 = vpop.f32.mrf.mxu0
  %736 = vmatprep.mubr.bf16.mxu0 %v541
  %737 = vmatmul.mubr.bf16.gmra.mxu0 %v540
  %v738 = vpop.f32.mrf.mxu0
  %v739 = vadd.f32 0.0, %v738
  %v740 = vpop.f32.mrf.mxu0
  %v741 = vpop.f32.mrf.mxu0
  %v742 = vadd.f32 0.0, %v741
  %v743 = vpop.f32.mrf.mxu0
  %744 = vmatprep.mubr.bf16.mxu0 %v543
  %745 = vmatmul.mubr.bf16.gmra.mxu0 %v542
  %v746 = vpop.f32.mrf.mxu0
  %v747 = vadd.f32 0.0, %v746
  %v748 = vpop.f32.mrf.mxu0
  %v749 = vpop.f32.mrf.mxu0
  %v750 = vadd.f32 0.0, %v749
  %v751 = vpop.f32.mrf.mxu0
  %752 = vdwg.mxu0
  %v769 = vunpack.c.l.b16 %v47
  %v770 = vunpack.c.h.b16 %v47
  %v771 = vunpack.c.l.b16 %v48
  %v772 = vunpack.c.h.b16 %v48
  %v773 = vunpack.c.l.b16 %v49
  %v774 = vunpack.c.h.b16 %v49
  %v775 = vunpack.c.l.b16 %v50
  %v776 = vunpack.c.h.b16 %v50
  %v777 = vunpack.c.l.b16 %v51
  %v778 = vunpack.c.h.b16 %v51
  %v779 = vunpack.c.l.b16 %v52
  %v780 = vunpack.c.h.b16 %v52
  %v781 = vunpack.c.l.b16 %v53
  %v782 = vunpack.c.h.b16 %v53
  %v783 = vunpack.c.l.b16 %v54
  %v784 = vunpack.c.h.b16 %v54
  %v785 = vunpack.c.l.b16 %v55
  %v786 = vunpack.c.h.b16 %v55
  %v787 = vunpack.c.l.b16 %v56
  %v788 = vunpack.c.h.b16 %v56
  %v789 = vunpack.c.l.b16 %v57
  %v790 = vunpack.c.h.b16 %v57
  %v791 = vunpack.c.l.b16 %v58
  %v792 = vunpack.c.h.b16 %v58
  %v793 = vunpack.c.l.b16 %v59
  %v794 = vunpack.c.h.b16 %v59
  %v795 = vunpack.c.l.b16 %v60
  %v796 = vunpack.c.h.b16 %v60
  %v797 = vunpack.c.l.b16 %v61
  %v798 = vunpack.c.h.b16 %v61
  %v799 = vunpack.c.l.b16 %v62
  %v800 = vunpack.c.h.b16 %v62
  %v801 = vpack.c.b16 %v771, %v769
  %v802 = vpack.c.b16 %v772, %v770
  %v803 = vpack.c.b16 %v775, %v773
  %v804 = vpack.c.b16 %v776, %v774
  %v805 = vpack.c.b16 %v779, %v777
  %v806 = vpack.c.b16 %v780, %v778
  %v807 = vpack.c.b16 %v783, %v781
  %v808 = vpack.c.b16 %v784, %v782
  %v809 = vpack.c.b16 %v787, %v785
  %v810 = vpack.c.b16 %v788, %v786
  %v811 = vpack.c.b16 %v791, %v789
  %v812 = vpack.c.b16 %v792, %v790
  %v813 = vpack.c.b16 %v795, %v793
  %v814 = vpack.c.b16 %v796, %v794
  %v815 = vpack.c.b16 %v799, %v797
  %v816 = vpack.c.b16 %v800, %v798
  %v865 = vunpack.c.l.b16 %v143
  %v866 = vunpack.c.l.b16 %v144
  %v867 = vunpack.c.l.b16 %v145
  %v868 = vunpack.c.l.b16 %v146
  %v869 = vunpack.c.l.b16 %v147
  %v870 = vunpack.c.l.b16 %v148
  %v871 = vunpack.c.l.b16 %v149
  %v872 = vunpack.c.l.b16 %v150
  %v873 = vunpack.c.l.b16 %v151
  %v874 = vunpack.c.l.b16 %v152
  %v875 = vunpack.c.l.b16 %v153
  %v876 = vunpack.c.l.b16 %v154
  %v877 = vunpack.c.l.b16 %v155
  %v878 = vunpack.c.l.b16 %v156
  %v879 = vunpack.c.l.b16 %v157
  %v880 = vunpack.c.l.b16 %v158
  %v881 = vunpack.c.l.b16 %v159
  %v882 = vunpack.c.l.b16 %v160
  %v883 = vunpack.c.l.b16 %v161
  %v884 = vunpack.c.l.b16 %v162
  %v885 = vunpack.c.l.b16 %v163
  %v886 = vunpack.c.l.b16 %v164
  %v887 = vunpack.c.l.b16 %v165
  %v888 = vunpack.c.l.b16 %v166
  %v889 = vunpack.c.l.b16 %v167
  %v890 = vunpack.c.l.b16 %v168
  %v891 = vunpack.c.l.b16 %v169
  %v892 = vunpack.c.l.b16 %v170
  %v893 = vunpack.c.l.b16 %v171
  %v894 = vunpack.c.l.b16 %v172
  %v895 = vunpack.c.l.b16 %v173
  %v896 = vunpack.c.l.b16 %v174
  %v897 = vpack.c.b16 %v866, %v865
  %v898 = vpack.c.b16 %v868, %v867
  %v899 = vpack.c.b16 %v870, %v869
  %v900 = vpack.c.b16 %v872, %v871
  %v901 = vpack.c.b16 %v874, %v873
  %v902 = vpack.c.b16 %v876, %v875
  %v903 = vpack.c.b16 %v878, %v877
  %v904 = vpack.c.b16 %v880, %v879
  %v905 = vpack.c.b16 %v882, %v881
  %v906 = vpack.c.b16 %v884, %v883
  %v907 = vpack.c.b16 %v886, %v885
  %v908 = vpack.c.b16 %v888, %v887
  %v909 = vpack.c.b16 %v890, %v889
  %v910 = vpack.c.b16 %v892, %v891
  %v911 = vpack.c.b16 %v894, %v893
  %v912 = vpack.c.b16 %v896, %v895
  %929 = vmatprep.subr.bf16.mxu0 0
  %930 = vmatpush1.bf16.msra.mxu0 %v904
  %931 = vmatprep.subr.bf16.mxu0 0
  %932 = vmatpush1.bf16.msra.mxu0 %v903
  %933 = vmatprep.subr.bf16.mxu0 0
  %934 = vmatpush1.bf16.msra.mxu0 %v902
  %935 = vmatprep.subr.bf16.mxu0 0
  %936 = vmatpush1.bf16.msra.mxu0 %v901
  %937 = vmatprep.subr.bf16.mxu0 0
  %938 = vmatpush1.bf16.msra.mxu0 %v900
  %939 = vmatprep.subr.bf16.mxu0 0
  %940 = vmatpush1.bf16.msra.mxu0 %v899
  %941 = vmatprep.subr.bf16.mxu0 0
  %942 = vmatpush1.bf16.msra.mxu0 %v898
  %943 = vmatprep.subr.bf16.mxu0 0
  %944 = vmatpush1.bf16.msra.mxu0 %v897
  %945 = vmatprep.subr.bf16.mxu0 0
  %946 = vmatpush2.bf16.msra.mxu0 %v912
  %947 = vmatprep.subr.bf16.mxu0 0
  %948 = vmatpush2.bf16.msra.mxu0 %v911
  %949 = vmatprep.subr.bf16.mxu0 0
  %950 = vmatpush2.bf16.msra.mxu0 %v910
  %951 = vmatprep.subr.bf16.mxu0 0
  %952 = vmatpush2.bf16.msra.mxu0 %v909
  %953 = vmatprep.subr.bf16.mxu0 0
  %954 = vmatpush2.bf16.msra.mxu0 %v908
  %955 = vmatprep.subr.bf16.mxu0 0
  %956 = vmatpush2.bf16.msra.mxu0 %v907
  %957 = vmatprep.subr.bf16.mxu0 0
  %958 = vmatpush2.bf16.msra.mxu0 %v906
  %959 = vmatprep.subr.bf16.mxu0 0
  %960 = vmatpush2.bf16.msra.mxu0 %v905
  %961 = vmatprep.mubr.bf16.mxu0 %v802
  %962 = vmatmul.mubr.bf16.gmra.mxu0 %v801
  %v963 = vpop.f32.mrf.mxu0
  %v964 = vadd.f32 0.0, %v963
  %v965 = vpop.f32.mrf.mxu0
  %v966 = vpop.f32.mrf.mxu0
  %v967 = vadd.f32 0.0, %v966
  %v968 = vpop.f32.mrf.mxu0
  %969 = vmatprep.mubr.bf16.mxu0 %v804
  %970 = vmatmul.mubr.bf16.gmra.mxu0 %v803
  %v971 = vpop.f32.mrf.mxu0
  %v972 = vadd.f32 0.0, %v971
  %v973 = vpop.f32.mrf.mxu0
  %v974 = vpop.f32.mrf.mxu0
  %v975 = vadd.f32 0.0, %v974
  %v976 = vpop.f32.mrf.mxu0
  %977 = vmatprep.mubr.bf16.mxu0 %v806
  %978 = vmatmul.mubr.bf16.gmra.mxu0 %v805
  %v979 = vpop.f32.mrf.mxu0
  %v980 = vadd.f32 0.0, %v979
  %v981 = vpop.f32.mrf.mxu0
  %v982 = vpop.f32.mrf.mxu0
  %v983 = vadd.f32 0.0, %v982
  %v984 = vpop.f32.mrf.mxu0
  %985 = vmatprep.mubr.bf16.mxu0 %v808
  %986 = vmatmul.mubr.bf16.gmra.mxu0 %v807
  %v987 = vpop.f32.mrf.mxu0
  %v988 = vadd.f32 0.0, %v987
  %v989 = vpop.f32.mrf.mxu0
  %v990 = vpop.f32.mrf.mxu0
  %v991 = vadd.f32 0.0, %v990
  %v992 = vpop.f32.mrf.mxu0
  %993 = vmatprep.mubr.bf16.mxu0 %v810
  %994 = vmatmul.mubr.bf16.gmra.mxu0 %v809
  %v995 = vpop.f32.mrf.mxu0
  %v996 = vadd.f32 0.0, %v995
  %v997 = vpop.f32.mrf.mxu0
  %v998 = vpop.f32.mrf.mxu0
  %v999 = vadd.f32 0.0, %v998
  %v1000 = vpop.f32.mrf.mxu0
  %1001 = vmatprep.mubr.bf16.mxu0 %v812
  %1002 = vmatmul.mubr.bf16.gmra.mxu0 %v811
  %v1003 = vpop.f32.mrf.mxu0
  %v1004 = vadd.f32 0.0, %v1003
  %v1005 = vpop.f32.mrf.mxu0
  %v1006 = vpop.f32.mrf.mxu0
  %v1007 = vadd.f32 0.0, %v1006
  %v1008 = vpop.f32.mrf.mxu0
  %1009 = vmatprep.mubr.bf16.mxu0 %v814
  %1010 = vmatmul.mubr.bf16.gmra.mxu0 %v813
  %v1011 = vpop.f32.mrf.mxu0
  %v1012 = vadd.f32 0.0, %v1011
  %v1013 = vpop.f32.mrf.mxu0
  %v1014 = vpop.f32.mrf.mxu0
  %v1015 = vadd.f32 0.0, %v1014
  %v1016 = vpop.f32.mrf.mxu0
  %1017 = vmatprep.mubr.bf16.mxu0 %v816
  %1018 = vmatmul.mubr.bf16.gmra.mxu0 %v815
  %v1019 = vpop.f32.mrf.mxu0
  %v1020 = vadd.f32 0.0, %v1019
  %v1021 = vpop.f32.mrf.mxu0
  %v1022 = vpop.f32.mrf.mxu0
  %v1023 = vadd.f32 0.0, %v1022
  %v1024 = vpop.f32.mrf.mxu0
  %1025 = vdwg.mxu0
  %v1042 = vunpack.c.l.b16 %v63
  %v1043 = vunpack.c.h.b16 %v63
  %v1044 = vunpack.c.l.b16 %v64
  %v1045 = vunpack.c.h.b16 %v64
  %v1046 = vunpack.c.l.b16 %v65
  %v1047 = vunpack.c.h.b16 %v65
  %v1048 = vunpack.c.l.b16 %v66
  %v1049 = vunpack.c.h.b16 %v66
  %v1050 = vunpack.c.l.b16 %v67
  %v1051 = vunpack.c.h.b16 %v67
  %v1052 = vunpack.c.l.b16 %v68
  %v1053 = vunpack.c.h.b16 %v68
  %v1054 = vunpack.c.l.b16 %v69
  %v1055 = vunpack.c.h.b16 %v69
  %v1056 = vunpack.c.l.b16 %v70
  %v1057 = vunpack.c.h.b16 %v70
  %v1058 = vunpack.c.l.b16 %v71
  %v1059 = vunpack.c.h.b16 %v71
  %v1060 = vunpack.c.l.b16 %v72
  %v1061 = vunpack.c.h.b16 %v72
  %v1062 = vunpack.c.l.b16 %v73
  %v1063 = vunpack.c.h.b16 %v73
  %v1064 = vunpack.c.l.b16 %v74
  %v1065 = vunpack.c.h.b16 %v74
  %v1066 = vunpack.c.l.b16 %v75
  %v1067 = vunpack.c.h.b16 %v75
  %v1068 = vunpack.c.l.b16 %v76
  %v1069 = vunpack.c.h.b16 %v76
  %v1070 = vunpack.c.l.b16 %v77
  %v1071 = vunpack.c.h.b16 %v77
  %v1072 = vunpack.c.l.b16 %v78
  %v1073 = vunpack.c.h.b16 %v78
  %v1074 = vpack.c.b16 %v1044, %v1042
  %v1075 = vpack.c.b16 %v1045, %v1043
  %v1076 = vpack.c.b16 %v1048, %v1046
  %v1077 = vpack.c.b16 %v1049, %v1047
  %v1078 = vpack.c.b16 %v1052, %v1050
  %v1079 = vpack.c.b16 %v1053, %v1051
  %v1080 = vpack.c.b16 %v1056, %v1054
  %v1081 = vpack.c.b16 %v1057, %v1055
  %v1082 = vpack.c.b16 %v1060, %v1058
  %v1083 = vpack.c.b16 %v1061, %v1059
  %v1084 = vpack.c.b16 %v1064, %v1062
  %v1085 = vpack.c.b16 %v1065, %v1063
  %v1086 = vpack.c.b16 %v1068, %v1066
  %v1087 = vpack.c.b16 %v1069, %v1067
  %v1088 = vpack.c.b16 %v1072, %v1070
  %v1089 = vpack.c.b16 %v1073, %v1071
  %v1138 = vunpack.c.l.b16 %v175
  %v1139 = vunpack.c.l.b16 %v176
  %v1140 = vunpack.c.l.b16 %v177
  %v1141 = vunpack.c.l.b16 %v178
  %v1142 = vunpack.c.l.b16 %v179
  %v1143 = vunpack.c.l.b16 %v180
  %v1144 = vunpack.c.l.b16 %v181
  %v1145 = vunpack.c.l.b16 %v182
  %v1146 = vunpack.c.l.b16 %v183
  %v1147 = vunpack.c.l.b16 %v184
  %v1148 = vunpack.c.l.b16 %v185
  %v1149 = vunpack.c.l.b16 %v186
  %v1150 = vunpack.c.l.b16 %v187
  %v1151 = vunpack.c.l.b16 %v188
  %v1152 = vunpack.c.l.b16 %v189
  %v1153 = vunpack.c.l.b16 %v190
  %v1154 = vunpack.c.l.b16 %v191
  %v1155 = vunpack.c.l.b16 %v192
  %v1156 = vunpack.c.l.b16 %v193
  %v1157 = vunpack.c.l.b16 %v194
  %v1158 = vunpack.c.l.b16 %v195
  %v1159 = vunpack.c.l.b16 %v196
  %v1160 = vunpack.c.l.b16 %v197
  %v1161 = vunpack.c.l.b16 %v198
  %v1162 = vunpack.c.l.b16 %v199
  %v1163 = vunpack.c.l.b16 %v200
  %v1164 = vunpack.c.l.b16 %v201
  %v1165 = vunpack.c.l.b16 %v202
  %v1166 = vunpack.c.l.b16 %v203
  %v1167 = vunpack.c.l.b16 %v204
  %v1168 = vunpack.c.l.b16 %v205
  %v1169 = vunpack.c.l.b16 %v206
  %v1170 = vpack.c.b16 %v1139, %v1138
  %v1171 = vpack.c.b16 %v1141, %v1140
  %v1172 = vpack.c.b16 %v1143, %v1142
  %v1173 = vpack.c.b16 %v1145, %v1144
  %v1174 = vpack.c.b16 %v1147, %v1146
  %v1175 = vpack.c.b16 %v1149, %v1148
  %v1176 = vpack.c.b16 %v1151, %v1150
  %v1177 = vpack.c.b16 %v1153, %v1152
  %v1178 = vpack.c.b16 %v1155, %v1154
  %v1179 = vpack.c.b16 %v1157, %v1156
  %v1180 = vpack.c.b16 %v1159, %v1158
  %v1181 = vpack.c.b16 %v1161, %v1160
  %v1182 = vpack.c.b16 %v1163, %v1162
  %v1183 = vpack.c.b16 %v1165, %v1164
  %v1184 = vpack.c.b16 %v1167, %v1166
  %v1185 = vpack.c.b16 %v1169, %v1168
  %1202 = vmatprep.subr.bf16.mxu0 0
  %1203 = vmatpush1.bf16.msra.mxu0 %v1177
  %1204 = vmatprep.subr.bf16.mxu0 0
  %1205 = vmatpush1.bf16.msra.mxu0 %v1176
  %1206 = vmatprep.subr.bf16.mxu0 0
  %1207 = vmatpush1.bf16.msra.mxu0 %v1175
  %1208 = vmatprep.subr.bf16.mxu0 0
  %1209 = vmatpush1.bf16.msra.mxu0 %v1174
  %1210 = vmatprep.subr.bf16.mxu0 0
  %1211 = vmatpush1.bf16.msra.mxu0 %v1173
  %1212 = vmatprep.subr.bf16.mxu0 0
  %1213 = vmatpush1.bf16.msra.mxu0 %v1172
  %1214 = vmatprep.subr.bf16.mxu0 0
  %1215 = vmatpush1.bf16.msra.mxu0 %v1171
  %1216 = vmatprep.subr.bf16.mxu0 0
  %1217 = vmatpush1.bf16.msra.mxu0 %v1170
  %1218 = vmatprep.subr.bf16.mxu0 0
  %1219 = vmatpush2.bf16.msra.mxu0 %v1185
  %1220 = vmatprep.subr.bf16.mxu0 0
  %1221 = vmatpush2.bf16.msra.mxu0 %v1184
  %1222 = vmatprep.subr.bf16.mxu0 0
  %1223 = vmatpush2.bf16.msra.mxu0 %v1183
  %1224 = vmatprep.subr.bf16.mxu0 0
  %1225 = vmatpush2.bf16.msra.mxu0 %v1182
  %1226 = vmatprep.subr.bf16.mxu0 0
  %1227 = vmatpush2.bf16.msra.mxu0 %v1181
  %1228 = vmatprep.subr.bf16.mxu0 0
  %1229 = vmatpush2.bf16.msra.mxu0 %v1180
  %1230 = vmatprep.subr.bf16.mxu0 0
  %1231 = vmatpush2.bf16.msra.mxu0 %v1179
  %1232 = vmatprep.subr.bf16.mxu0 0
  %1233 = vmatpush2.bf16.msra.mxu0 %v1178
  %1234 = vmatprep.mubr.bf16.mxu0 %v1075
  %1235 = vmatmul.mubr.bf16.gmra.mxu0 %v1074
  %v1236 = vpop.f32.mrf.mxu0
  %v1237 = vadd.f32 0.0, %v1236
  %v1238 = vpop.f32.mrf.mxu0
  %v1239 = vpop.f32.mrf.mxu0
  %v1240 = vadd.f32 0.0, %v1239
  %v1241 = vpop.f32.mrf.mxu0
  %1242 = vmatprep.mubr.bf16.mxu0 %v1077
  %1243 = vmatmul.mubr.bf16.gmra.mxu0 %v1076
  %v1244 = vpop.f32.mrf.mxu0
  %v1245 = vadd.f32 0.0, %v1244
  %v1246 = vpop.f32.mrf.mxu0
  %v1247 = vpop.f32.mrf.mxu0
  %v1248 = vadd.f32 0.0, %v1247
  %v1249 = vpop.f32.mrf.mxu0
  %1250 = vmatprep.mubr.bf16.mxu0 %v1079
  %1251 = vmatmul.mubr.bf16.gmra.mxu0 %v1078
  %v1252 = vpop.f32.mrf.mxu0
  %v1253 = vadd.f32 0.0, %v1252
  %v1254 = vpop.f32.mrf.mxu0
  %v1255 = vpop.f32.mrf.mxu0
  %v1256 = vadd.f32 0.0, %v1255
  %v1257 = vpop.f32.mrf.mxu0
  %1258 = vmatprep.mubr.bf16.mxu0 %v1081
  %1259 = vmatmul.mubr.bf16.gmra.mxu0 %v1080
  %v1260 = vpop.f32.mrf.mxu0
  %v1261 = vadd.f32 0.0, %v1260
  %v1262 = vpop.f32.mrf.mxu0
  %v1263 = vpop.f32.mrf.mxu0
  %v1264 = vadd.f32 0.0, %v1263
  %v1265 = vpop.f32.mrf.mxu0
  %1266 = vmatprep.mubr.bf16.mxu0 %v1083
  %1267 = vmatmul.mubr.bf16.gmra.mxu0 %v1082
  %v1268 = vpop.f32.mrf.mxu0
  %v1269 = vadd.f32 0.0, %v1268
  %v1270 = vpop.f32.mrf.mxu0
  %v1271 = vpop.f32.mrf.mxu0
  %v1272 = vadd.f32 0.0, %v1271
  %v1273 = vpop.f32.mrf.mxu0
  %1274 = vmatprep.mubr.bf16.mxu0 %v1085
  %1275 = vmatmul.mubr.bf16.gmra.mxu0 %v1084
  %v1276 = vpop.f32.mrf.mxu0
  %v1277 = vadd.f32 0.0, %v1276
  %v1278 = vpop.f32.mrf.mxu0
  %v1279 = vpop.f32.mrf.mxu0
  %v1280 = vadd.f32 0.0, %v1279
  %v1281 = vpop.f32.mrf.mxu0
  %1282 = vmatprep.mubr.bf16.mxu0 %v1087
  %1283 = vmatmul.mubr.bf16.gmra.mxu0 %v1086
  %v1284 = vpop.f32.mrf.mxu0
  %v1285 = vadd.f32 0.0, %v1284
  %v1286 = vpop.f32.mrf.mxu0
  %v1287 = vpop.f32.mrf.mxu0
  %v1288 = vadd.f32 0.0, %v1287
  %v1289 = vpop.f32.mrf.mxu0
  %1290 = vmatprep.mubr.bf16.mxu0 %v1089
  %1291 = vmatmul.mubr.bf16.gmra.mxu0 %v1088
  %v1292 = vpop.f32.mrf.mxu0
  %v1293 = vadd.f32 0.0, %v1292
  %v1294 = vpop.f32.mrf.mxu0
  %v1295 = vpop.f32.mrf.mxu0
  %v1296 = vadd.f32 0.0, %v1295
  %v1297 = vpop.f32.mrf.mxu0
  %1298 = vdwg.mxu0
  %v1299 = vadd.f32 %v418, %v421
  %v1300 = vadd.f32 %v1299, %v426
  %v1301 = vadd.f32 %v1300, %v429
  %v1302 = vadd.f32 %v1301, %v434
  %v1303 = vadd.f32 %v1302, %v437
  %v1304 = vadd.f32 %v1303, %v442
  %v1305 = vadd.f32 %v1304, %v445
  %v1306 = vadd.f32 %v1305, %v450
  %v1307 = vadd.f32 %v1306, %v453
  %v1308 = vadd.f32 %v1307, %v458
  %v1309 = vadd.f32 %v1308, %v461
  %v1310 = vadd.f32 %v1309, %v466
  %v1311 = vadd.f32 %v1310, %v469
  %v1312 = vadd.f32 %v1311, %v474
  %v1313 = vadd.f32 %v1312, %v477
  %v1314 = vrot.slane %v1313, 4
  %v1315 = vadd.f32 %v1313, %v1314
  %v1316 = vrot.slane %v1315, 2
  %v1317 = vadd.f32 %v1315, %v1316
  %v1318 = vrot.slane %v1317, 1
  %v1319 = vadd.f32 %v1317, %v1318
  %v1320 = vadd.f32 %v691, %v694
  %v1321 = vadd.f32 %v1320, %v699
  %v1322 = vadd.f32 %v1321, %v702
  %v1323 = vadd.f32 %v1322, %v707
  %v1324 = vadd.f32 %v1323, %v710
  %v1325 = vadd.f32 %v1324, %v715
  %v1326 = vadd.f32 %v1325, %v718
  %v1327 = vadd.f32 %v1326, %v723
  %v1328 = vadd.f32 %v1327, %v726
  %v1329 = vadd.f32 %v1328, %v731
  %v1330 = vadd.f32 %v1329, %v734
  %v1331 = vadd.f32 %v1330, %v739
  %v1332 = vadd.f32 %v1331, %v742
  %v1333 = vadd.f32 %v1332, %v747
  %v1334 = vadd.f32 %v1333, %v750
  %v1335 = vrot.slane %v1334, 4
  %v1336 = vadd.f32 %v1334, %v1335
  %v1337 = vrot.slane %v1336, 2
  %v1338 = vadd.f32 %v1336, %v1337
  %v1339 = vrot.slane %v1338, 1
  %v1340 = vadd.f32 %v1338, %v1339
  %v1341 = vadd.f32 %v964, %v967
  %v1342 = vadd.f32 %v1341, %v972
  %v1343 = vadd.f32 %v1342, %v975
  %v1344 = vadd.f32 %v1343, %v980
  %v1345 = vadd.f32 %v1344, %v983
  %v1346 = vadd.f32 %v1345, %v988
  %v1347 = vadd.f32 %v1346, %v991
  %v1348 = vadd.f32 %v1347, %v996
  %v1349 = vadd.f32 %v1348, %v999
  %v1350 = vadd.f32 %v1349, %v1004
  %v1351 = vadd.f32 %v1350, %v1007
  %v1352 = vadd.f32 %v1351, %v1012
  %v1353 = vadd.f32 %v1352, %v1015
  %v1354 = vadd.f32 %v1353, %v1020
  %v1355 = vadd.f32 %v1354, %v1023
  %v1356 = vrot.slane %v1355, 4
  %v1357 = vadd.f32 %v1355, %v1356
  %v1358 = vrot.slane %v1357, 2
  %v1359 = vadd.f32 %v1357, %v1358
  %v1360 = vrot.slane %v1359, 1
  %v1361 = vadd.f32 %v1359, %v1360
  %v1362 = vadd.f32 %v1237, %v1240
  %v1363 = vadd.f32 %v1362, %v1245
  %v1364 = vadd.f32 %v1363, %v1248
  %v1365 = vadd.f32 %v1364, %v1253
  %v1366 = vadd.f32 %v1365, %v1256
  %v1367 = vadd.f32 %v1366, %v1261
  %v1368 = vadd.f32 %v1367, %v1264
  %v1369 = vadd.f32 %v1368, %v1269
  %v1370 = vadd.f32 %v1369, %v1272
  %v1371 = vadd.f32 %v1370, %v1277
  %v1372 = vadd.f32 %v1371, %v1280
  %v1373 = vadd.f32 %v1372, %v1285
  %v1374 = vadd.f32 %v1373, %v1288
  %v1375 = vadd.f32 %v1374, %v1293
  %v1376 = vadd.f32 %v1375, %v1296
  %v1377 = vrot.slane %v1376, 4
  %v1378 = vadd.f32 %v1376, %v1377
  %v1379 = vrot.slane %v1378, 2
  %v1380 = vadd.f32 %v1378, %v1379
  %v1381 = vrot.slane %v1380, 1
  %v1382 = vadd.f32 %v1380, %v1381
  %v1383 = vadd.f32 %v1319, %v1340
  %v1384 = vadd.f32 %v1383, %v1361
  %v1385 = vadd.f32 %v1384, %v1382
  %v1386 = vmul.f32 %v418, %v418
  %v1387 = vmul.f32 %v421, %v421
  %v1388 = vmul.f32 %v426, %v426
  %v1389 = vmul.f32 %v429, %v429
  %v1390 = vmul.f32 %v434, %v434
  %v1391 = vmul.f32 %v437, %v437
  %v1392 = vmul.f32 %v442, %v442
  %v1393 = vmul.f32 %v445, %v445
  %v1394 = vmul.f32 %v450, %v450
  %v1395 = vmul.f32 %v453, %v453
  %v1396 = vmul.f32 %v458, %v458
  %v1397 = vmul.f32 %v461, %v461
  %v1398 = vmul.f32 %v466, %v466
  %v1399 = vmul.f32 %v469, %v469
  %v1400 = vmul.f32 %v474, %v474
  %v1401 = vmul.f32 %v477, %v477
  %v1402 = vmul.f32 %v691, %v691
  %v1403 = vmul.f32 %v694, %v694
  %v1404 = vmul.f32 %v699, %v699
  %v1405 = vmul.f32 %v702, %v702
  %v1406 = vmul.f32 %v707, %v707
  %v1407 = vmul.f32 %v710, %v710
  %v1408 = vmul.f32 %v715, %v715
  %v1409 = vmul.f32 %v718, %v718
  %v1410 = vmul.f32 %v723, %v723
  %v1411 = vmul.f32 %v726, %v726
  %v1412 = vmul.f32 %v731, %v731
  %v1413 = vmul.f32 %v734, %v734
  %v1414 = vmul.f32 %v739, %v739
  %v1415 = vmul.f32 %v742, %v742
  %v1416 = vmul.f32 %v747, %v747
  %v1417 = vmul.f32 %v750, %v750
  %v1418 = vmul.f32 %v964, %v964
  %v1419 = vmul.f32 %v967, %v967
  %v1420 = vmul.f32 %v972, %v972
  %v1421 = vmul.f32 %v975, %v975
  %v1422 = vmul.f32 %v980, %v980
  %v1423 = vmul.f32 %v983, %v983
  %v1424 = vmul.f32 %v988, %v988
  %v1425 = vmul.f32 %v991, %v991
  %v1426 = vmul.f32 %v996, %v996
  %v1427 = vmul.f32 %v999, %v999
  %v1428 = vmul.f32 %v1004, %v1004
  %v1429 = vmul.f32 %v1007, %v1007
  %v1430 = vmul.f32 %v1012, %v1012
  %v1431 = vmul.f32 %v1015, %v1015
  %v1432 = vmul.f32 %v1020, %v1020
  %v1433 = vmul.f32 %v1023, %v1023
  %v1434 = vmul.f32 %v1237, %v1237
  %v1435 = vmul.f32 %v1240, %v1240
  %v1436 = vmul.f32 %v1245, %v1245
  %v1437 = vmul.f32 %v1248, %v1248
  %v1438 = vmul.f32 %v1253, %v1253
  %v1439 = vmul.f32 %v1256, %v1256
  %v1440 = vmul.f32 %v1261, %v1261
  %v1441 = vmul.f32 %v1264, %v1264
  %v1442 = vmul.f32 %v1269, %v1269
  %v1443 = vmul.f32 %v1272, %v1272
  %v1444 = vmul.f32 %v1277, %v1277
  %v1445 = vmul.f32 %v1280, %v1280
  %v1446 = vmul.f32 %v1285, %v1285
  %v1447 = vmul.f32 %v1288, %v1288
  %v1448 = vmul.f32 %v1293, %v1293
  %v1449 = vmul.f32 %v1296, %v1296
  %v1450 = vadd.f32 %v1386, %v1387
  %v1451 = vadd.f32 %v1450, %v1388
  %v1452 = vadd.f32 %v1451, %v1389
  %v1453 = vadd.f32 %v1452, %v1390
  %v1454 = vadd.f32 %v1453, %v1391
  %v1455 = vadd.f32 %v1454, %v1392
  %v1456 = vadd.f32 %v1455, %v1393
  %v1457 = vadd.f32 %v1456, %v1394
  %v1458 = vadd.f32 %v1457, %v1395
  %v1459 = vadd.f32 %v1458, %v1396
  %v1460 = vadd.f32 %v1459, %v1397
  %v1461 = vadd.f32 %v1460, %v1398
  %v1462 = vadd.f32 %v1461, %v1399
  %v1463 = vadd.f32 %v1462, %v1400
  %v1464 = vadd.f32 %v1463, %v1401
  %v1465 = vrot.slane %v1464, 4
  %v1466 = vadd.f32 %v1464, %v1465
  %v1467 = vrot.slane %v1466, 2
  %v1468 = vadd.f32 %v1466, %v1467
  %v1469 = vrot.slane %v1468, 1
  %v1470 = vadd.f32 %v1468, %v1469
  %v1471 = vadd.f32 %v1402, %v1403
  %v1472 = vadd.f32 %v1471, %v1404
  %v1473 = vadd.f32 %v1472, %v1405
  %v1474 = vadd.f32 %v1473, %v1406
  %v1475 = vadd.f32 %v1474, %v1407
  %v1476 = vadd.f32 %v1475, %v1408
  %v1477 = vadd.f32 %v1476, %v1409
  %v1478 = vadd.f32 %v1477, %v1410
  %v1479 = vadd.f32 %v1478, %v1411
  %v1480 = vadd.f32 %v1479, %v1412
  %v1481 = vadd.f32 %v1480, %v1413
  %v1482 = vadd.f32 %v1481, %v1414
  %v1483 = vadd.f32 %v1482, %v1415
  %v1484 = vadd.f32 %v1483, %v1416
  %v1485 = vadd.f32 %v1484, %v1417
  %v1486 = vrot.slane %v1485, 4
  %v1487 = vadd.f32 %v1485, %v1486
  %v1488 = vrot.slane %v1487, 2
  %v1489 = vadd.f32 %v1487, %v1488
  %v1490 = vrot.slane %v1489, 1
  %v1491 = vadd.f32 %v1489, %v1490
  %v1492 = vadd.f32 %v1418, %v1419
  %v1493 = vadd.f32 %v1492, %v1420
  %v1494 = vadd.f32 %v1493, %v1421
  %v1495 = vadd.f32 %v1494, %v1422
  %v1496 = vadd.f32 %v1495, %v1423
  %v1497 = vadd.f32 %v1496, %v1424
  %v1498 = vadd.f32 %v1497, %v1425
  %v1499 = vadd.f32 %v1498, %v1426
  %v1500 = vadd.f32 %v1499, %v1427
  %v1501 = vadd.f32 %v1500, %v1428
  %v1502 = vadd.f32 %v1501, %v1429
  %v1503 = vadd.f32 %v1502, %v1430
  %v1504 = vadd.f32 %v1503, %v1431
  %v1505 = vadd.f32 %v1504, %v1432
  %v1506 = vadd.f32 %v1505, %v1433
  %v1507 = vrot.slane %v1506, 4
  %v1508 = vadd.f32 %v1506, %v1507
  %v1509 = vrot.slane %v1508, 2
  %v1510 = vadd.f32 %v1508, %v1509
  %v1511 = vrot.slane %v1510, 1
  %v1512 = vadd.f32 %v1510, %v1511
  %v1513 = vadd.f32 %v1434, %v1435
  %v1514 = vadd.f32 %v1513, %v1436
  %v1515 = vadd.f32 %v1514, %v1437
  %v1516 = vadd.f32 %v1515, %v1438
  %v1517 = vadd.f32 %v1516, %v1439
  %v1518 = vadd.f32 %v1517, %v1440
  %v1519 = vadd.f32 %v1518, %v1441
  %v1520 = vadd.f32 %v1519, %v1442
  %v1521 = vadd.f32 %v1520, %v1443
  %v1522 = vadd.f32 %v1521, %v1444
  %v1523 = vadd.f32 %v1522, %v1445
  %v1524 = vadd.f32 %v1523, %v1446
  %v1525 = vadd.f32 %v1524, %v1447
  %v1526 = vadd.f32 %v1525, %v1448
  %v1527 = vadd.f32 %v1526, %v1449
  %v1528 = vrot.slane %v1527, 4
  %v1529 = vadd.f32 %v1527, %v1528
  %v1530 = vrot.slane %v1529, 2
  %v1531 = vadd.f32 %v1529, %v1530
  %v1532 = vrot.slane %v1531, 1
  %v1533 = vadd.f32 %v1531, %v1532
  %v1534 = vadd.f32 %v1470, %v1491
  %v1535 = vadd.f32 %v1534, %v1512
  %v1536 = vadd.f32 %v1535, %v1533
  %v1537 = vmul.f32 %v1385, 0.001953125
  %v1538 = vmul.f32 %v1536, 0.001953125
  %v1539 = vmul.f32 %v1537, %v1537
  %v1540 = vsub.f32 %v1538, %v1539
  %v1541 = vmax.f32 %v1540, 0.0
  %v1542 = vld [vmem:[%s2] sm:$0x3]
  %v1543 = vadd.f32 %v1541, 1e-05
  %v1544 = vrsqrt.pop %v1543
  %v1545 = vmul.f32 %v1542, %v1544
  %v1546 = vmul.f32 %v1545, %v1537
  %v1548 = vrot.slane %v1546, 7
  %v1550 = vsub.f32 %v1542, %v1548
  %v1551 = vlaneseq
  %v1552 = vshrl.u32 %v1551, 7
  %v1553 = vsub.s32 0, %v1552
  %v1554 = vrot.slane %v1545, %v1553
  %v1555 = vmul.f32 %v418, %v1554
  %v1556 = vmul.f32 %v421, %v1554
  %v1557 = vmul.f32 %v426, %v1554
  %v1558 = vmul.f32 %v429, %v1554
  %v1559 = vmul.f32 %v434, %v1554
  %v1560 = vmul.f32 %v437, %v1554
  %v1561 = vmul.f32 %v442, %v1554
  %v1562 = vmul.f32 %v445, %v1554
  %v1563 = vmul.f32 %v450, %v1554
  %v1564 = vmul.f32 %v453, %v1554
  %v1565 = vmul.f32 %v458, %v1554
  %v1566 = vmul.f32 %v461, %v1554
  %v1567 = vmul.f32 %v466, %v1554
  %v1568 = vmul.f32 %v469, %v1554
  %v1569 = vmul.f32 %v474, %v1554
  %v1570 = vmul.f32 %v477, %v1554
  %v1571 = vmul.f32 %v691, %v1554
  %v1572 = vmul.f32 %v694, %v1554
  %v1573 = vmul.f32 %v699, %v1554
  %v1574 = vmul.f32 %v702, %v1554
  %v1575 = vmul.f32 %v707, %v1554
  %v1576 = vmul.f32 %v710, %v1554
  %v1577 = vmul.f32 %v715, %v1554
  %v1578 = vmul.f32 %v718, %v1554
  %v1579 = vmul.f32 %v723, %v1554
  %v1580 = vmul.f32 %v726, %v1554
  %v1581 = vmul.f32 %v731, %v1554
  %v1582 = vmul.f32 %v734, %v1554
  %v1583 = vmul.f32 %v739, %v1554
  %v1584 = vmul.f32 %v742, %v1554
  %v1585 = vmul.f32 %v747, %v1554
  %v1586 = vmul.f32 %v750, %v1554
  %v1587 = vmul.f32 %v964, %v1554
  %v1588 = vmul.f32 %v967, %v1554
  %v1589 = vmul.f32 %v972, %v1554
  %v1590 = vmul.f32 %v975, %v1554
  %v1591 = vmul.f32 %v980, %v1554
  %v1592 = vmul.f32 %v983, %v1554
  %v1593 = vmul.f32 %v988, %v1554
  %v1594 = vmul.f32 %v991, %v1554
  %v1595 = vmul.f32 %v996, %v1554
  %v1596 = vmul.f32 %v999, %v1554
  %v1597 = vmul.f32 %v1004, %v1554
  %v1598 = vmul.f32 %v1007, %v1554
  %v1599 = vmul.f32 %v1012, %v1554
  %v1600 = vmul.f32 %v1015, %v1554
  %v1601 = vmul.f32 %v1020, %v1554
  %v1602 = vmul.f32 %v1023, %v1554
  %v1603 = vmul.f32 %v1237, %v1554
  %v1604 = vmul.f32 %v1240, %v1554
  %v1605 = vmul.f32 %v1245, %v1554
  %v1606 = vmul.f32 %v1248, %v1554
  %v1607 = vmul.f32 %v1253, %v1554
  %v1608 = vmul.f32 %v1256, %v1554
  %v1609 = vmul.f32 %v1261, %v1554
  %v1610 = vmul.f32 %v1264, %v1554
  %v1611 = vmul.f32 %v1269, %v1554
  %v1612 = vmul.f32 %v1272, %v1554
  %v1613 = vmul.f32 %v1277, %v1554
  %v1614 = vmul.f32 %v1280, %v1554
  %v1615 = vmul.f32 %v1285, %v1554
  %v1616 = vmul.f32 %v1288, %v1554
  %v1617 = vmul.f32 %v1293, %v1554
  %v1618 = vmul.f32 %v1296, %v1554
  %v1619 = vlaneseq
  %v1620 = vshrl.u32 %v1619, 7
  %v1621 = vsub.s32 1, %v1620
  %v1622 = vrot.slane %v1550, %v1621
  %v1623 = vadd.f32 %v1555, %v1622
  %v1624 = vadd.f32 %v1556, %v1622
  %v1625 = vadd.f32 %v1557, %v1622
  %v1626 = vadd.f32 %v1558, %v1622
  %v1627 = vadd.f32 %v1559, %v1622
  %v1628 = vadd.f32 %v1560, %v1622
  %v1629 = vadd.f32 %v1561, %v1622
  %v1630 = vadd.f32 %v1562, %v1622
  %v1631 = vadd.f32 %v1563, %v1622
  %v1632 = vadd.f32 %v1564, %v1622
  %v1633 = vadd.f32 %v1565, %v1622
  %v1634 = vadd.f32 %v1566, %v1622
  %v1635 = vadd.f32 %v1567, %v1622
  %v1636 = vadd.f32 %v1568, %v1622
  %v1637 = vadd.f32 %v1569, %v1622
  %v1638 = vadd.f32 %v1570, %v1622
  %v1639 = vadd.f32 %v1571, %v1622
  %v1640 = vadd.f32 %v1572, %v1622
  %v1641 = vadd.f32 %v1573, %v1622
  %v1642 = vadd.f32 %v1574, %v1622
  %v1643 = vadd.f32 %v1575, %v1622
  %v1644 = vadd.f32 %v1576, %v1622
  %v1645 = vadd.f32 %v1577, %v1622
  %v1646 = vadd.f32 %v1578, %v1622
  %v1647 = vadd.f32 %v1579, %v1622
  %v1648 = vadd.f32 %v1580, %v1622
  %v1649 = vadd.f32 %v1581, %v1622
  %v1650 = vadd.f32 %v1582, %v1622
  %v1651 = vadd.f32 %v1583, %v1622
  %v1652 = vadd.f32 %v1584, %v1622
  %v1653 = vadd.f32 %v1585, %v1622
  %v1654 = vadd.f32 %v1586, %v1622
  %v1655 = vadd.f32 %v1587, %v1622
  %v1656 = vadd.f32 %v1588, %v1622
  %v1657 = vadd.f32 %v1589, %v1622
  %v1658 = vadd.f32 %v1590, %v1622
  %v1659 = vadd.f32 %v1591, %v1622
  %v1660 = vadd.f32 %v1592, %v1622
  %v1661 = vadd.f32 %v1593, %v1622
  %v1662 = vadd.f32 %v1594, %v1622
  %v1663 = vadd.f32 %v1595, %v1622
  %v1664 = vadd.f32 %v1596, %v1622
  %v1665 = vadd.f32 %v1597, %v1622
  %v1666 = vadd.f32 %v1598, %v1622
  %v1667 = vadd.f32 %v1599, %v1622
  %v1668 = vadd.f32 %v1600, %v1622
  %v1669 = vadd.f32 %v1601, %v1622
  %v1670 = vadd.f32 %v1602, %v1622
  %v1671 = vadd.f32 %v1603, %v1622
  %v1672 = vadd.f32 %v1604, %v1622
  %v1673 = vadd.f32 %v1605, %v1622
  %v1674 = vadd.f32 %v1606, %v1622
  %v1675 = vadd.f32 %v1607, %v1622
  %v1676 = vadd.f32 %v1608, %v1622
  %v1677 = vadd.f32 %v1609, %v1622
  %v1678 = vadd.f32 %v1610, %v1622
  %v1679 = vadd.f32 %v1611, %v1622
  %v1680 = vadd.f32 %v1612, %v1622
  %v1681 = vadd.f32 %v1613, %v1622
  %v1682 = vadd.f32 %v1614, %v1622
  %v1683 = vadd.f32 %v1615, %v1622
  %v1684 = vadd.f32 %v1616, %v1622
  %v1685 = vadd.f32 %v1617, %v1622
  %v1686 = vadd.f32 %v1618, %v1622
  %v1687 = vmax.f32 %v1623, 0.0
  %v1688 = vmax.f32 %v1624, 0.0
  %v1689 = vmax.f32 %v1625, 0.0
  %v1690 = vmax.f32 %v1626, 0.0
  %v1691 = vmax.f32 %v1627, 0.0
  %v1692 = vmax.f32 %v1628, 0.0
  %v1693 = vmax.f32 %v1629, 0.0
  %v1694 = vmax.f32 %v1630, 0.0
  %v1695 = vmax.f32 %v1631, 0.0
  %v1696 = vmax.f32 %v1632, 0.0
  %v1697 = vmax.f32 %v1633, 0.0
  %v1698 = vmax.f32 %v1634, 0.0
  %v1699 = vmax.f32 %v1635, 0.0
  %v1700 = vmax.f32 %v1636, 0.0
  %v1701 = vmax.f32 %v1637, 0.0
  %v1702 = vmax.f32 %v1638, 0.0
  %v1703 = vmax.f32 %v1639, 0.0
  %v1704 = vmax.f32 %v1640, 0.0
  %v1705 = vmax.f32 %v1641, 0.0
  %v1706 = vmax.f32 %v1642, 0.0
  %v1707 = vmax.f32 %v1643, 0.0
  %v1708 = vmax.f32 %v1644, 0.0
  %v1709 = vmax.f32 %v1645, 0.0
  %v1710 = vmax.f32 %v1646, 0.0
  %v1711 = vmax.f32 %v1647, 0.0
  %v1712 = vmax.f32 %v1648, 0.0
  %v1713 = vmax.f32 %v1649, 0.0
  %v1714 = vmax.f32 %v1650, 0.0
  %v1715 = vmax.f32 %v1651, 0.0
  %v1716 = vmax.f32 %v1652, 0.0
  %v1717 = vmax.f32 %v1653, 0.0
  %v1718 = vmax.f32 %v1654, 0.0
  %v1719 = vmax.f32 %v1655, 0.0
  %v1720 = vmax.f32 %v1656, 0.0
  %v1721 = vmax.f32 %v1657, 0.0
  %v1722 = vmax.f32 %v1658, 0.0
  %v1723 = vmax.f32 %v1659, 0.0
  %v1724 = vmax.f32 %v1660, 0.0
  %v1725 = vmax.f32 %v1661, 0.0
  %v1726 = vmax.f32 %v1662, 0.0
  %v1727 = vmax.f32 %v1663, 0.0
  %v1728 = vmax.f32 %v1664, 0.0
  %v1729 = vmax.f32 %v1665, 0.0
  %v1730 = vmax.f32 %v1666, 0.0
  %v1731 = vmax.f32 %v1667, 0.0
  %v1732 = vmax.f32 %v1668, 0.0
  %v1733 = vmax.f32 %v1669, 0.0
  %v1734 = vmax.f32 %v1670, 0.0
  %v1735 = vmax.f32 %v1671, 0.0
  %v1736 = vmax.f32 %v1672, 0.0
  %v1737 = vmax.f32 %v1673, 0.0
  %v1738 = vmax.f32 %v1674, 0.0
  %v1739 = vmax.f32 %v1675, 0.0
  %v1740 = vmax.f32 %v1676, 0.0
  %v1741 = vmax.f32 %v1677, 0.0
  %v1742 = vmax.f32 %v1678, 0.0
  %v1743 = vmax.f32 %v1679, 0.0
  %v1744 = vmax.f32 %v1680, 0.0
  %v1745 = vmax.f32 %v1681, 0.0
  %v1746 = vmax.f32 %v1682, 0.0
  %v1747 = vmax.f32 %v1683, 0.0
  %v1748 = vmax.f32 %v1684, 0.0
  %v1749 = vmax.f32 %v1685, 0.0
  %v1750 = vmax.f32 %v1686, 0.0
  %1751 = vst [vmem:[%s3] sm:$0xff] %v1687
  %1752 = vst [vmem:[%s3 + $0x8] sm:$0xff] %v1688
  %1753 = vst [vmem:[%s3 + $0x10] sm:$0xff] %v1689
  %1754 = vst [vmem:[%s3 + $0x18] sm:$0xff] %v1690
  %1755 = vst [vmem:[%s3 + $0x20] sm:$0xff] %v1691
  %1756 = vst [vmem:[%s3 + $0x28] sm:$0xff] %v1692
  %1757 = vst [vmem:[%s3 + $0x30] sm:$0xff] %v1693
  %1758 = vst [vmem:[%s3 + $0x38] sm:$0xff] %v1694
  %1759 = vst [vmem:[%s3 + $0x40] sm:$0xff] %v1695
  %1760 = vst [vmem:[%s3 + $0x48] sm:$0xff] %v1696
  %1761 = vst [vmem:[%s3 + $0x50] sm:$0xff] %v1697
  %1762 = vst [vmem:[%s3 + $0x58] sm:$0xff] %v1698
  %1763 = vst [vmem:[%s3 + $0x60] sm:$0xff] %v1699
  %1764 = vst [vmem:[%s3 + $0x68] sm:$0xff] %v1700
  %1765 = vst [vmem:[%s3 + $0x70] sm:$0xff] %v1701
  %1766 = vst [vmem:[%s3 + $0x78] sm:$0xff] %v1702
  %1767 = vst [vmem:[%s3 + $0x80] sm:$0xff] %v1703
  %1768 = vst [vmem:[%s3 + $0x88] sm:$0xff] %v1704
  %1769 = vst [vmem:[%s3 + $0x90] sm:$0xff] %v1705
  %1770 = vst [vmem:[%s3 + $0x98] sm:$0xff] %v1706
  %1771 = vst [vmem:[%s3 + $0xa0] sm:$0xff] %v1707
  %1772 = vst [vmem:[%s3 + $0xa8] sm:$0xff] %v1708
  %1773 = vst [vmem:[%s3 + $0xb0] sm:$0xff] %v1709
  %1774 = vst [vmem:[%s3 + $0xb8] sm:$0xff] %v1710
  %1775 = vst [vmem:[%s3 + $0xc0] sm:$0xff] %v1711
  %1776 = vst [vmem:[%s3 + $0xc8] sm:$0xff] %v1712
  %1777 = vst [vmem:[%s3 + $0xd0] sm:$0xff] %v1713
  %1778 = vst [vmem:[%s3 + $0xd8] sm:$0xff] %v1714
  %1779 = vst [vmem:[%s3 + $0xe0] sm:$0xff] %v1715
  %1780 = vst [vmem:[%s3 + $0xe8] sm:$0xff] %v1716
  %1781 = vst [vmem:[%s3 + $0xf0] sm:$0xff] %v1717
  %1782 = vst [vmem:[%s3 + $0xf8] sm:$0xff] %v1718
  %1783 = vst [vmem:[%s3 + $0x100] sm:$0xff] %v1719
  %1784 = vst [vmem:[%s3 + $0x108] sm:$0xff] %v1720
  %1785 = vst [vmem:[%s3 + $0x110] sm:$0xff] %v1721
  %1786 = vst [vmem:[%s3 + $0x118] sm:$0xff] %v1722
  %1787 = vst [vmem:[%s3 + $0x120] sm:$0xff] %v1723
  %1788 = vst [vmem:[%s3 + $0x128] sm:$0xff] %v1724
  %1789 = vst [vmem:[%s3 + $0x130] sm:$0xff] %v1725
  %1790 = vst [vmem:[%s3 + $0x138] sm:$0xff] %v1726
  %1791 = vst [vmem:[%s3 + $0x140] sm:$0xff] %v1727
  %1792 = vst [vmem:[%s3 + $0x148] sm:$0xff] %v1728
  %1793 = vst [vmem:[%s3 + $0x150] sm:$0xff] %v1729
  %1794 = vst [vmem:[%s3 + $0x158] sm:$0xff] %v1730
  %1795 = vst [vmem:[%s3 + $0x160] sm:$0xff] %v1731
  %1796 = vst [vmem:[%s3 + $0x168] sm:$0xff] %v1732
  %1797 = vst [vmem:[%s3 + $0x170] sm:$0xff] %v1733
  %1798 = vst [vmem:[%s3 + $0x178] sm:$0xff] %v1734
  %1799 = vst [vmem:[%s3 + $0x180] sm:$0xff] %v1735
  %1800 = vst [vmem:[%s3 + $0x188] sm:$0xff] %v1736
  %1801 = vst [vmem:[%s3 + $0x190] sm:$0xff] %v1737
  %1802 = vst [vmem:[%s3 + $0x198] sm:$0xff] %v1738
  %1803 = vst [vmem:[%s3 + $0x1a0] sm:$0xff] %v1739
  %1804 = vst [vmem:[%s3 + $0x1a8] sm:$0xff] %v1740
  %1805 = vst [vmem:[%s3 + $0x1b0] sm:$0xff] %v1741
  %1806 = vst [vmem:[%s3 + $0x1b8] sm:$0xff] %v1742
  %1807 = vst [vmem:[%s3 + $0x1c0] sm:$0xff] %v1743
  %1808 = vst [vmem:[%s3 + $0x1c8] sm:$0xff] %v1744
  %1809 = vst [vmem:[%s3 + $0x1d0] sm:$0xff] %v1745
  %1810 = vst [vmem:[%s3 + $0x1d8] sm:$0xff] %v1746
  %1811 = vst [vmem:[%s3 + $0x1e0] sm:$0xff] %v1747
  %1812 = vst [vmem:[%s3 + $0x1e8] sm:$0xff] %v1748
  %1813 = vst [vmem:[%s3 + $0x1f0] sm:$0xff] %v1749
  %1814 = vst [vmem:[%s3 + $0x1f8] sm:$0xff] %v1750
  // Predicated region
  $region14: #{dc_generator_forward.7} parent=0 // pred_check
    _
  $region15: #{dc_generator_forward.7} parent=0 // pred_check_branch
    %1816 = sbr.rel (0) target = $region17
  $region16: #{dc_generator_forward.7} parent=0 // pred_region
    _
  $region17: #{dc_generator_forward.7} parent=0 // pred_fallthru
    _
  // Predicated region
  $region18: #{dc_generator_forward.7} parent=0 // pred_check
    _
  $region19: #{dc_generator_forward.7} parent=0 // pred_check_branch
    %1818 = sbr.rel (0) target = $region21
  $region20: #{dc_generator_forward.7} parent=0 // pred_region
    _
  $region21: #{dc_generator_forward.7} parent=0 // pred_fallthru
    _

// kernel: dc_generator_forward.8
$region0: #{dc_generator_forward.8}
  #allocation0 [shape = 'u32[]', space=smem, size = 0x4, offset = 0x4, fixed_abs, tag = 'smem constant byte address 0x4 - core index']
  #allocation1 [shape = 'u32[144,128]{1,0:T(1,128)}', space=vmem, size = 0x12000, scoped, tag = 'internal scratch']
  %s0 = inlined_call_operand.vmem [shape: bf16[4,512,128], index: 0, kind: input, shape index: {}]
  %s1 = inlined_call_operand.vmem [shape: bf16[4,128,128], index: 1, kind: input, shape index: {}]
  %s2 = inlined_call_operand.vmem [shape: f32[2,128], index: 2, kind: input, shape index: {}]
  %s3 = inlined_call_operand.vmem [shape: f32[4,512,128], index: 3, kind: output, shape index: {}]
  %s4 = sld [smem:[#allocation0]]
  $region22: #{dc_generator_forward.8} parent=0
    _
  %s6 = ssub.s32 1, %s4
  %s7 = scalar_select 0, %s6, %s4
  // Predicated region
  $region2: #{dc_generator_forward.8} parent=0 // pred_check
    _
  $region3: #{dc_generator_forward.8} parent=0 // pred_check_branch
    %9 = sbr.rel (0) target = $region5
  $region4: #{dc_generator_forward.8} parent=0 // pred_region
    _
  $region5: #{dc_generator_forward.8} parent=0 // pred_fallthru
    _
  // Predicated region
  $region6: #{dc_generator_forward.8} parent=0 // pred_check
    _
  $region7: #{dc_generator_forward.8} parent=0 // pred_check_branch
    %11 = sbr.rel (0) target = $region9
  $region8: #{dc_generator_forward.8} parent=0 // pred_region
    _
  $region9: #{dc_generator_forward.8} parent=0 // pred_fallthru
    _
  // Predicated region
  $region10: #{dc_generator_forward.8} parent=0 // pred_check
    _
  $region11: #{dc_generator_forward.8} parent=0 // pred_check_branch
    %13 = sbr.rel (0) target = $region13
  $region12: #{dc_generator_forward.8} parent=0 // pred_region
    _
  $region13: #{dc_generator_forward.8} parent=0 // pred_fallthru
    _
  %v15 = vld [vmem:[%s0] sm:$0xf]
  %v16 = vld [vmem:[%s0 + $0x4] sm:$0xf]
  %v17 = vld [vmem:[%s0 + $0x8] sm:$0xf]
  %v18 = vld [vmem:[%s0 + $0xc] sm:$0xf]
  %v19 = vld [vmem:[%s0 + $0x10] sm:$0xf]
  %v20 = vld [vmem:[%s0 + $0x14] sm:$0xf]
  %v21 = vld [vmem:[%s0 + $0x18] sm:$0xf]
  %v22 = vld [vmem:[%s0 + $0x1c] sm:$0xf]
  %v23 = vld [vmem:[%s0 + $0x20] sm:$0xf]
  %v24 = vld [vmem:[%s0 + $0x24] sm:$0xf]
  %v25 = vld [vmem:[%s0 + $0x28] sm:$0xf]
  %v26 = vld [vmem:[%s0 + $0x2c] sm:$0xf]
  %v27 = vld [vmem:[%s0 + $0x30] sm:$0xf]
  %v28 = vld [vmem:[%s0 + $0x34] sm:$0xf]
  %v29 = vld [vmem:[%s0 + $0x38] sm:$0xf]
  %v30 = vld [vmem:[%s0 + $0x3c] sm:$0xf]
  %v31 = vld [vmem:[%s0 + $0x40] sm:$0xf]
  %v32 = vld [vmem:[%s0 + $0x44] sm:$0xf]
  %v33 = vld [vmem:[%s0 + $0x48] sm:$0xf]
  %v34 = vld [vmem:[%s0 + $0x4c] sm:$0xf]
  %v35 = vld [vmem:[%s0 + $0x50] sm:$0xf]
  %v36 = vld [vmem:[%s0 + $0x54] sm:$0xf]
  %v37 = vld [vmem:[%s0 + $0x58] sm:$0xf]
  %v38 = vld [vmem:[%s0 + $0x5c] sm:$0xf]
  %v39 = vld [vmem:[%s0 + $0x60] sm:$0xf]
  %v40 = vld [vmem:[%s0 + $0x64] sm:$0xf]
  %v41 = vld [vmem:[%s0 + $0x68] sm:$0xf]
  %v42 = vld [vmem:[%s0 + $0x6c] sm:$0xf]
  %v43 = vld [vmem:[%s0 + $0x70] sm:$0xf]
  %v44 = vld [vmem:[%s0 + $0x74] sm:$0xf]
  %v45 = vld [vmem:[%s0 + $0x78] sm:$0xf]
  %v46 = vld [vmem:[%s0 + $0x7c] sm:$0xf]
  %v47 = vld [vmem:[%s0 + $0x80] sm:$0xf]
  %v48 = vld [vmem:[%s0 + $0x84] sm:$0xf]
  %v49 = vld [vmem:[%s0 + $0x88] sm:$0xf]
  %v50 = vld [vmem:[%s0 + $0x8c] sm:$0xf]
  %v51 = vld [vmem:[%s0 + $0x90] sm:$0xf]
  %v52 = vld [vmem:[%s0 + $0x94] sm:$0xf]
  %v53 = vld [vmem:[%s0 + $0x98] sm:$0xf]
  %v54 = vld [vmem:[%s0 + $0x9c] sm:$0xf]
  %v55 = vld [vmem:[%s0 + $0xa0] sm:$0xf]
  %v56 = vld [vmem:[%s0 + $0xa4] sm:$0xf]
  %v57 = vld [vmem:[%s0 + $0xa8] sm:$0xf]
  %v58 = vld [vmem:[%s0 + $0xac] sm:$0xf]
  %v59 = vld [vmem:[%s0 + $0xb0] sm:$0xf]
  %v60 = vld [vmem:[%s0 + $0xb4] sm:$0xf]
  %v61 = vld [vmem:[%s0 + $0xb8] sm:$0xf]
  %v62 = vld [vmem:[%s0 + $0xbc] sm:$0xf]
  %v63 = vld [vmem:[%s0 + $0xc0] sm:$0xf]
  %v64 = vld [vmem:[%s0 + $0xc4] sm:$0xf]
  %v65 = vld [vmem:[%s0 + $0xc8] sm:$0xf]
  %v66 = vld [vmem:[%s0 + $0xcc] sm:$0xf]
  %v67 = vld [vmem:[%s0 + $0xd0] sm:$0xf]
  %v68 = vld [vmem:[%s0 + $0xd4] sm:$0xf]
  %v69 = vld [vmem:[%s0 + $0xd8] sm:$0xf]
  %v70 = vld [vmem:[%s0 + $0xdc] sm:$0xf]
  %v71 = vld [vmem:[%s0 + $0xe0] sm:$0xf]
  %v72 = vld [vmem:[%s0 + $0xe4] sm:$0xf]
  %v73 = vld [vmem:[%s0 + $0xe8] sm:$0xf]
  %v74 = vld [vmem:[%s0 + $0xec] sm:$0xf]
  %v75 = vld [vmem:[%s0 + $0xf0] sm:$0xf]
  %v76 = vld [vmem:[%s0 + $0xf4] sm:$0xf]
  %v77 = vld [vmem:[%s0 + $0xf8] sm:$0xf]
  %v78 = vld [vmem:[%s0 + $0xfc] sm:$0xf]
  %v79 = vld [vmem:[%s0 + $0x100] sm:$0xf]
  %v80 = vld [vmem:[%s0 + $0x104] sm:$0xf]
  %v81 = vld [vmem:[%s0 + $0x108] sm:$0xf]
  %v82 = vld [vmem:[%s0 + $0x10c] sm:$0xf]
  %v83 = vld [vmem:[%s0 + $0x110] sm:$0xf]
  %v84 = vld [vmem:[%s0 + $0x114] sm:$0xf]
  %v85 = vld [vmem:[%s0 + $0x118] sm:$0xf]
  %v86 = vld [vmem:[%s0 + $0x11c] sm:$0xf]
  %v87 = vld [vmem:[%s0 + $0x120] sm:$0xf]
  %v88 = vld [vmem:[%s0 + $0x124] sm:$0xf]
  %v89 = vld [vmem:[%s0 + $0x128] sm:$0xf]
  %v90 = vld [vmem:[%s0 + $0x12c] sm:$0xf]
  %v91 = vld [vmem:[%s0 + $0x130] sm:$0xf]
  %v92 = vld [vmem:[%s0 + $0x134] sm:$0xf]
  %v93 = vld [vmem:[%s0 + $0x138] sm:$0xf]
  %v94 = vld [vmem:[%s0 + $0x13c] sm:$0xf]
  %v95 = vld [vmem:[%s0 + $0x140] sm:$0xf]
  %v96 = vld [vmem:[%s0 + $0x144] sm:$0xf]
  %v97 = vld [vmem:[%s0 + $0x148] sm:$0xf]
  %v98 = vld [vmem:[%s0 + $0x14c] sm:$0xf]
  %v99 = vld [vmem:[%s0 + $0x150] sm:$0xf]
  %v100 = vld [vmem:[%s0 + $0x154] sm:$0xf]
  %v101 = vld [vmem:[%s0 + $0x158] sm:$0xf]
  %v102 = vld [vmem:[%s0 + $0x15c] sm:$0xf]
  %v103 = vld [vmem:[%s0 + $0x160] sm:$0xf]
  %v104 = vld [vmem:[%s0 + $0x164] sm:$0xf]
  %v105 = vld [vmem:[%s0 + $0x168] sm:$0xf]
  %v106 = vld [vmem:[%s0 + $0x16c] sm:$0xf]
  %v107 = vld [vmem:[%s0 + $0x170] sm:$0xf]
  %v108 = vld [vmem:[%s0 + $0x174] sm:$0xf]
  %v109 = vld [vmem:[%s0 + $0x178] sm:$0xf]
  %v110 = vld [vmem:[%s0 + $0x17c] sm:$0xf]
  %v111 = vld [vmem:[%s0 + $0x180] sm:$0xf]
  %v112 = vld [vmem:[%s0 + $0x184] sm:$0xf]
  %v113 = vld [vmem:[%s0 + $0x188] sm:$0xf]
  %v114 = vld [vmem:[%s0 + $0x18c] sm:$0xf]
  %v115 = vld [vmem:[%s0 + $0x190] sm:$0xf]
  %v116 = vld [vmem:[%s0 + $0x194] sm:$0xf]
  %v117 = vld [vmem:[%s0 + $0x198] sm:$0xf]
  %v118 = vld [vmem:[%s0 + $0x19c] sm:$0xf]
  %v119 = vld [vmem:[%s0 + $0x1a0] sm:$0xf]
  %v120 = vld [vmem:[%s0 + $0x1a4] sm:$0xf]
  %v121 = vld [vmem:[%s0 + $0x1a8] sm:$0xf]
  %v122 = vld [vmem:[%s0 + $0x1ac] sm:$0xf]
  %v123 = vld [vmem:[%s0 + $0x1b0] sm:$0xf]
  %v124 = vld [vmem:[%s0 + $0x1b4] sm:$0xf]
  %v125 = vld [vmem:[%s0 + $0x1b8] sm:$0xf]
  %v126 = vld [vmem:[%s0 + $0x1bc] sm:$0xf]
  %v127 = vld [vmem:[%s0 + $0x1c0] sm:$0xf]
  %v128 = vld [vmem:[%s0 + $0x1c4] sm:$0xf]
  %v129 = vld [vmem:[%s0 + $0x1c8] sm:$0xf]
  %v130 = vld [vmem:[%s0 + $0x1cc] sm:$0xf]
  %v131 = vld [vmem:[%s0 + $0x1d0] sm:$0xf]
  %v132 = vld [vmem:[%s0 + $0x1d4] sm:$0xf]
  %v133 = vld [vmem:[%s0 + $0x1d8] sm:$0xf]
  %v134 = vld [vmem:[%s0 + $0x1dc] sm:$0xf]
  %v135 = vld [vmem:[%s0 + $0x1e0] sm:$0xf]
  %v136 = vld [vmem:[%s0 + $0x1e4] sm:$0xf]
  %v137 = vld [vmem:[%s0 + $0x1e8] sm:$0xf]
  %v138 = vld [vmem:[%s0 + $0x1ec] sm:$0xf]
  %v139 = vld [vmem:[%s0 + $0x1f0] sm:$0xf]
  %v140 = vld [vmem:[%s0 + $0x1f4] sm:$0xf]
  %v141 = vld [vmem:[%s0 + $0x1f8] sm:$0xf]
  %v142 = vld [vmem:[%s0 + $0x1fc] sm:$0xf]
  %v143 = vld [vmem:[%s0 + $0x200] sm:$0xf]
  %v144 = vld [vmem:[%s0 + $0x204] sm:$0xf]
  %v145 = vld [vmem:[%s0 + $0x208] sm:$0xf]
  %v146 = vld [vmem:[%s0 + $0x20c] sm:$0xf]
  %v147 = vld [vmem:[%s0 + $0x210] sm:$0xf]
  %v148 = vld [vmem:[%s0 + $0x214] sm:$0xf]
  %v149 = vld [vmem:[%s0 + $0x218] sm:$0xf]
  %v150 = vld [vmem:[%s0 + $0x21c] sm:$0xf]
  %v151 = vld [vmem:[%s0 + $0x220] sm:$0xf]
  %v152 = vld [vmem:[%s0 + $0x224] sm:$0xf]
  %v153 = vld [vmem:[%s0 + $0x228] sm:$0xf]
  %v154 = vld [vmem:[%s0 + $0x22c] sm:$0xf]
  %v155 = vld [vmem:[%s0 + $0x230] sm:$0xf]
  %v156 = vld [vmem:[%s0 + $0x234] sm:$0xf]
  %v157 = vld [vmem:[%s0 + $0x238] sm:$0xf]
  %v158 = vld [vmem:[%s0 + $0x23c] sm:$0xf]
  %v159 = vld [vmem:[%s0 + $0x240] sm:$0xf]
  %v160 = vld [vmem:[%s0 + $0x244] sm:$0xf]
  %v161 = vld [vmem:[%s0 + $0x248] sm:$0xf]
  %v162 = vld [vmem:[%s0 + $0x24c] sm:$0xf]
  %v163 = vld [vmem:[%s0 + $0x250] sm:$0xf]
  %v164 = vld [vmem:[%s0 + $0x254] sm:$0xf]
  %v165 = vld [vmem:[%s0 + $0x258] sm:$0xf]
  %v166 = vld [vmem:[%s0 + $0x25c] sm:$0xf]
  %v167 = vld [vmem:[%s0 + $0x260] sm:$0xf]
  %v168 = vld [vmem:[%s0 + $0x264] sm:$0xf]
  %v169 = vld [vmem:[%s0 + $0x268] sm:$0xf]
  %v170 = vld [vmem:[%s0 + $0x26c] sm:$0xf]
  %v171 = vld [vmem:[%s0 + $0x270] sm:$0xf]
  %v172 = vld [vmem:[%s0 + $0x274] sm:$0xf]
  %v173 = vld [vmem:[%s0 + $0x278] sm:$0xf]
  %v174 = vld [vmem:[%s0 + $0x27c] sm:$0xf]
  %v175 = vld [vmem:[%s0 + $0x280] sm:$0xf]
  %v176 = vld [vmem:[%s0 + $0x284] sm:$0xf]
  %v177 = vld [vmem:[%s0 + $0x288] sm:$0xf]
  %v178 = vld [vmem:[%s0 + $0x28c] sm:$0xf]
  %v179 = vld [vmem:[%s0 + $0x290] sm:$0xf]
  %v180 = vld [vmem:[%s0 + $0x294] sm:$0xf]
  %v181 = vld [vmem:[%s0 + $0x298] sm:$0xf]
  %v182 = vld [vmem:[%s0 + $0x29c] sm:$0xf]
  %v183 = vld [vmem:[%s0 + $0x2a0] sm:$0xf]
  %v184 = vld [vmem:[%s0 + $0x2a4] sm:$0xf]
  %v185 = vld [vmem:[%s0 + $0x2a8] sm:$0xf]
  %v186 = vld [vmem:[%s0 + $0x2ac] sm:$0xf]
  %v187 = vld [vmem:[%s0 + $0x2b0] sm:$0xf]
  %v188 = vld [vmem:[%s0 + $0x2b4] sm:$0xf]
  %v189 = vld [vmem:[%s0 + $0x2b8] sm:$0xf]
  %v190 = vld [vmem:[%s0 + $0x2bc] sm:$0xf]
  %v191 = vld [vmem:[%s0 + $0x2c0] sm:$0xf]
  %v192 = vld [vmem:[%s0 + $0x2c4] sm:$0xf]
  %v193 = vld [vmem:[%s0 + $0x2c8] sm:$0xf]
  %v194 = vld [vmem:[%s0 + $0x2cc] sm:$0xf]
  %v195 = vld [vmem:[%s0 + $0x2d0] sm:$0xf]
  %v196 = vld [vmem:[%s0 + $0x2d4] sm:$0xf]
  %v197 = vld [vmem:[%s0 + $0x2d8] sm:$0xf]
  %v198 = vld [vmem:[%s0 + $0x2dc] sm:$0xf]
  %v199 = vld [vmem:[%s0 + $0x2e0] sm:$0xf]
  %v200 = vld [vmem:[%s0 + $0x2e4] sm:$0xf]
  %v201 = vld [vmem:[%s0 + $0x2e8] sm:$0xf]
  %v202 = vld [vmem:[%s0 + $0x2ec] sm:$0xf]
  %v203 = vld [vmem:[%s0 + $0x2f0] sm:$0xf]
  %v204 = vld [vmem:[%s0 + $0x2f4] sm:$0xf]
  %v205 = vld [vmem:[%s0 + $0x2f8] sm:$0xf]
  %v206 = vld [vmem:[%s0 + $0x2fc] sm:$0xf]
  %v207 = vld [vmem:[%s0 + $0x300] sm:$0xf]
  %v208 = vld [vmem:[%s0 + $0x304] sm:$0xf]
  %v209 = vld [vmem:[%s0 + $0x308] sm:$0xf]
  %v210 = vld [vmem:[%s0 + $0x30c] sm:$0xf]
  %v211 = vld [vmem:[%s0 + $0x310] sm:$0xf]
  %v212 = vld [vmem:[%s0 + $0x314] sm:$0xf]
  %v213 = vld [vmem:[%s0 + $0x318] sm:$0xf]
  %v214 = vld [vmem:[%s0 + $0x31c] sm:$0xf]
  %v215 = vld [vmem:[%s0 + $0x320] sm:$0xf]
  %v216 = vld [vmem:[%s0 + $0x324] sm:$0xf]
  %v217 = vld [vmem:[%s0 + $0x328] sm:$0xf]
  %v218 = vld [vmem:[%s0 + $0x32c] sm:$0xf]
  %v219 = vld [vmem:[%s0 + $0x330] sm:$0xf]
  %v220 = vld [vmem:[%s0 + $0x334] sm:$0xf]
  %v221 = vld [vmem:[%s0 + $0x338] sm:$0xf]
  %v222 = vld [vmem:[%s0 + $0x33c] sm:$0xf]
  %v223 = vld [vmem:[%s0 + $0x340] sm:$0xf]
  %v224 = vld [vmem:[%s0 + $0x344] sm:$0xf]
  %v225 = vld [vmem:[%s0 + $0x348] sm:$0xf]
  %v226 = vld [vmem:[%s0 + $0x34c] sm:$0xf]
  %v227 = vld [vmem:[%s0 + $0x350] sm:$0xf]
  %v228 = vld [vmem:[%s0 + $0x354] sm:$0xf]
  %v229 = vld [vmem:[%s0 + $0x358] sm:$0xf]
  %v230 = vld [vmem:[%s0 + $0x35c] sm:$0xf]
  %v231 = vld [vmem:[%s0 + $0x360] sm:$0xf]
  %v232 = vld [vmem:[%s0 + $0x364] sm:$0xf]
  %v233 = vld [vmem:[%s0 + $0x368] sm:$0xf]
  %v234 = vld [vmem:[%s0 + $0x36c] sm:$0xf]
  %v235 = vld [vmem:[%s0 + $0x370] sm:$0xf]
  %v236 = vld [vmem:[%s0 + $0x374] sm:$0xf]
  %v237 = vld [vmem:[%s0 + $0x378] sm:$0xf]
  %v238 = vld [vmem:[%s0 + $0x37c] sm:$0xf]
  %v239 = vld [vmem:[%s0 + $0x380] sm:$0xf]
  %v240 = vld [vmem:[%s0 + $0x384] sm:$0xf]
  %v241 = vld [vmem:[%s0 + $0x388] sm:$0xf]
  %v242 = vld [vmem:[%s0 + $0x38c] sm:$0xf]
  %v243 = vld [vmem:[%s0 + $0x390] sm:$0xf]
  %v244 = vld [vmem:[%s0 + $0x394] sm:$0xf]
  %v245 = vld [vmem:[%s0 + $0x398] sm:$0xf]
  %v246 = vld [vmem:[%s0 + $0x39c] sm:$0xf]
  %v247 = vld [vmem:[%s0 + $0x3a0] sm:$0xf]
  %v248 = vld [vmem:[%s0 + $0x3a4] sm:$0xf]
  %v249 = vld [vmem:[%s0 + $0x3a8] sm:$0xf]
  %v250 = vld [vmem:[%s0 + $0x3ac] sm:$0xf]
  %v251 = vld [vmem:[%s0 + $0x3b0] sm:$0xf]
  %v252 = vld [vmem:[%s0 + $0x3b4] sm:$0xf]
  %v253 = vld [vmem:[%s0 + $0x3b8] sm:$0xf]
  %v254 = vld [vmem:[%s0 + $0x3bc] sm:$0xf]
  %v255 = vld [vmem:[%s0 + $0x3c0] sm:$0xf]
  %v256 = vld [vmem:[%s0 + $0x3c4] sm:$0xf]
  %v257 = vld [vmem:[%s0 + $0x3c8] sm:$0xf]
  %v258 = vld [vmem:[%s0 + $0x3cc] sm:$0xf]
  %v259 = vld [vmem:[%s0 + $0x3d0] sm:$0xf]
  %v260 = vld [vmem:[%s0 + $0x3d4] sm:$0xf]
  %v261 = vld [vmem:[%s0 + $0x3d8] sm:$0xf]
  %v262 = vld [vmem:[%s0 + $0x3dc] sm:$0xf]
  %v263 = vld [vmem:[%s0 + $0x3e0] sm:$0xf]
  %v264 = vld [vmem:[%s0 + $0x3e4] sm:$0xf]
  %v265 = vld [vmem:[%s0 + $0x3e8] sm:$0xf]
  %v266 = vld [vmem:[%s0 + $0x3ec] sm:$0xf]
  %v267 = vld [vmem:[%s0 + $0x3f0] sm:$0xf]
  %v268 = vld [vmem:[%s0 + $0x3f4] sm:$0xf]
  %v269 = vld [vmem:[%s0 + $0x3f8] sm:$0xf]
  %v270 = vld [vmem:[%s0 + $0x3fc] sm:$0xf]
  %v271 = vld [vmem:[%s1] sm:$0xf]
  %v272 = vld [vmem:[%s1 + $0x4] sm:$0xf]
  %v273 = vld [vmem:[%s1 + $0x8] sm:$0xf]
  %v274 = vld [vmem:[%s1 + $0xc] sm:$0xf]
  %v275 = vld [vmem:[%s1 + $0x10] sm:$0xf]
  %v276 = vld [vmem:[%s1 + $0x14] sm:$0xf]
  %v277 = vld [vmem:[%s1 + $0x18] sm:$0xf]
  %v278 = vld [vmem:[%s1 + $0x1c] sm:$0xf]
  %v279 = vld [vmem:[%s1 + $0x20] sm:$0xf]
  %v280 = vld [vmem:[%s1 + $0x24] sm:$0xf]
  %v281 = vld [vmem:[%s1 + $0x28] sm:$0xf]
  %v282 = vld [vmem:[%s1 + $0x2c] sm:$0xf]
  %v283 = vld [vmem:[%s1 + $0x30] sm:$0xf]
  %v284 = vld [vmem:[%s1 + $0x34] sm:$0xf]
  %v285 = vld [vmem:[%s1 + $0x38] sm:$0xf]
  %v286 = vld [vmem:[%s1 + $0x3c] sm:$0xf]
  %v287 = vld [vmem:[%s1 + $0x40] sm:$0xf]
  %v288 = vld [vmem:[%s1 + $0x44] sm:$0xf]
  %v289 = vld [vmem:[%s1 + $0x48] sm:$0xf]
  %v290 = vld [vmem:[%s1 + $0x4c] sm:$0xf]
  %v291 = vld [vmem:[%s1 + $0x50] sm:$0xf]
  %v292 = vld [vmem:[%s1 + $0x54] sm:$0xf]
  %v293 = vld [vmem:[%s1 + $0x58] sm:$0xf]
  %v294 = vld [vmem:[%s1 + $0x5c] sm:$0xf]
  %v295 = vld [vmem:[%s1 + $0x60] sm:$0xf]
  %v296 = vld [vmem:[%s1 + $0x64] sm:$0xf]
  %v297 = vld [vmem:[%s1 + $0x68] sm:$0xf]
  %v298 = vld [vmem:[%s1 + $0x6c] sm:$0xf]
  %v299 = vld [vmem:[%s1 + $0x70] sm:$0xf]
  %v300 = vld [vmem:[%s1 + $0x74] sm:$0xf]
  %v301 = vld [vmem:[%s1 + $0x78] sm:$0xf]
  %v302 = vld [vmem:[%s1 + $0x7c] sm:$0xf]
  %v303 = vld [vmem:[%s1 + $0x80] sm:$0xf]
  %v304 = vld [vmem:[%s1 + $0x84] sm:$0xf]
  %v305 = vld [vmem:[%s1 + $0x88] sm:$0xf]
  %v306 = vld [vmem:[%s1 + $0x8c] sm:$0xf]
  %v307 = vld [vmem:[%s1 + $0x90] sm:$0xf]
  %v308 = vld [vmem:[%s1 + $0x94] sm:$0xf]
  %v309 = vld [vmem:[%s1 + $0x98] sm:$0xf]
  %v310 = vld [vmem:[%s1 + $0x9c] sm:$0xf]
  %v311 = vld [vmem:[%s1 + $0xa0] sm:$0xf]
  %v312 = vld [vmem:[%s1 + $0xa4] sm:$0xf]
  %v313 = vld [vmem:[%s1 + $0xa8] sm:$0xf]
  %v314 = vld [vmem:[%s1 + $0xac] sm:$0xf]
  %v315 = vld [vmem:[%s1 + $0xb0] sm:$0xf]
  %v316 = vld [vmem:[%s1 + $0xb4] sm:$0xf]
  %v317 = vld [vmem:[%s1 + $0xb8] sm:$0xf]
  %v318 = vld [vmem:[%s1 + $0xbc] sm:$0xf]
  %v319 = vld [vmem:[%s1 + $0xc0] sm:$0xf]
  %v320 = vld [vmem:[%s1 + $0xc4] sm:$0xf]
  %v321 = vld [vmem:[%s1 + $0xc8] sm:$0xf]
  %v322 = vld [vmem:[%s1 + $0xcc] sm:$0xf]
  %v323 = vld [vmem:[%s1 + $0xd0] sm:$0xf]
  %v324 = vld [vmem:[%s1 + $0xd4] sm:$0xf]
  %v325 = vld [vmem:[%s1 + $0xd8] sm:$0xf]
  %v326 = vld [vmem:[%s1 + $0xdc] sm:$0xf]
  %v327 = vld [vmem:[%s1 + $0xe0] sm:$0xf]
  %v328 = vld [vmem:[%s1 + $0xe4] sm:$0xf]
  %v329 = vld [vmem:[%s1 + $0xe8] sm:$0xf]
  %v330 = vld [vmem:[%s1 + $0xec] sm:$0xf]
  %v331 = vld [vmem:[%s1 + $0xf0] sm:$0xf]
  %v332 = vld [vmem:[%s1 + $0xf4] sm:$0xf]
  %v333 = vld [vmem:[%s1 + $0xf8] sm:$0xf]
  %v334 = vld [vmem:[%s1 + $0xfc] sm:$0xf]
  %v399 = vunpack.c.l.b16 %v15
  %v400 = vunpack.c.l.b16 %v16
  %v401 = vunpack.c.l.b16 %v17
  %v402 = vunpack.c.l.b16 %v18
  %v403 = vunpack.c.l.b16 %v19
  %v404 = vunpack.c.l.b16 %v20
  %v405 = vunpack.c.l.b16 %v21
  %v406 = vunpack.c.l.b16 %v22
  %v407 = vunpack.c.l.b16 %v23
  %v408 = vunpack.c.l.b16 %v24
  %v409 = vunpack.c.l.b16 %v25
  %v410 = vunpack.c.l.b16 %v26
  %v411 = vunpack.c.l.b16 %v27
  %v412 = vunpack.c.l.b16 %v28
  %v413 = vunpack.c.l.b16 %v29
  %v414 = vunpack.c.l.b16 %v30
  %v415 = vunpack.c.l.b16 %v31
  %v416 = vunpack.c.l.b16 %v32
  %v417 = vunpack.c.l.b16 %v33
  %v418 = vunpack.c.l.b16 %v34
  %v419 = vunpack.c.l.b16 %v35
  %v420 = vunpack.c.l.b16 %v36
  %v421 = vunpack.c.l.b16 %v37
  %v422 = vunpack.c.l.b16 %v38
  %v423 = vunpack.c.l.b16 %v39
  %v424 = vunpack.c.l.b16 %v40
  %v425 = vunpack.c.l.b16 %v41
  %v426 = vunpack.c.l.b16 %v42
  %v427 = vunpack.c.l.b16 %v43
  %v428 = vunpack.c.l.b16 %v44
  %v429 = vunpack.c.l.b16 %v45
  %v430 = vunpack.c.l.b16 %v46
  %v431 = vunpack.c.l.b16 %v47
  %v432 = vunpack.c.l.b16 %v48
  %v433 = vunpack.c.l.b16 %v49
  %v434 = vunpack.c.l.b16 %v50
  %v435 = vunpack.c.l.b16 %v51
  %v436 = vunpack.c.l.b16 %v52
  %v437 = vunpack.c.l.b16 %v53
  %v438 = vunpack.c.l.b16 %v54
  %v439 = vunpack.c.l.b16 %v55
  %v440 = vunpack.c.l.b16 %v56
  %v441 = vunpack.c.l.b16 %v57
  %v442 = vunpack.c.l.b16 %v58
  %v443 = vunpack.c.l.b16 %v59
  %v444 = vunpack.c.l.b16 %v60
  %v445 = vunpack.c.l.b16 %v61
  %v446 = vunpack.c.l.b16 %v62
  %v447 = vunpack.c.l.b16 %v63
  %v448 = vunpack.c.l.b16 %v64
  %v449 = vunpack.c.l.b16 %v65
  %v450 = vunpack.c.l.b16 %v66
  %v451 = vunpack.c.l.b16 %v67
  %v452 = vunpack.c.l.b16 %v68
  %v453 = vunpack.c.l.b16 %v69
  %v454 = vunpack.c.l.b16 %v70
  %v455 = vunpack.c.l.b16 %v71
  %v456 = vunpack.c.l.b16 %v72
  %v457 = vunpack.c.l.b16 %v73
  %v458 = vunpack.c.l.b16 %v74
  %v459 = vunpack.c.l.b16 %v75
  %v460 = vunpack.c.l.b16 %v76
  %v461 = vunpack.c.l.b16 %v77
  %v462 = vunpack.c.l.b16 %v78
  %v463 = vpack.c.b16 %v400, %v399
  %v464 = vpack.c.b16 %v402, %v401
  %v465 = vpack.c.b16 %v404, %v403
  %v466 = vpack.c.b16 %v406, %v405
  %v467 = vpack.c.b16 %v408, %v407
  %v468 = vpack.c.b16 %v410, %v409
  %v469 = vpack.c.b16 %v412, %v411
  %v470 = vpack.c.b16 %v414, %v413
  %v471 = vpack.c.b16 %v416, %v415
  %v472 = vpack.c.b16 %v418, %v417
  %v473 = vpack.c.b16 %v420, %v419
  %v474 = vpack.c.b16 %v422, %v421
  %v475 = vpack.c.b16 %v424, %v423
  %v476 = vpack.c.b16 %v426, %v425
  %v477 = vpack.c.b16 %v428, %v427
  %v478 = vpack.c.b16 %v430, %v429
  %v479 = vpack.c.b16 %v432, %v431
  %v480 = vpack.c.b16 %v434, %v433
  %v481 = vpack.c.b16 %v436, %v435
  %v482 = vpack.c.b16 %v438, %v437
  %v483 = vpack.c.b16 %v440, %v439
  %v484 = vpack.c.b16 %v442, %v441
  %v485 = vpack.c.b16 %v444, %v443
  %v486 = vpack.c.b16 %v446, %v445
  %v487 = vpack.c.b16 %v448, %v447
  %v488 = vpack.c.b16 %v450, %v449
  %v489 = vpack.c.b16 %v452, %v451
  %v490 = vpack.c.b16 %v454, %v453
  %v491 = vpack.c.b16 %v456, %v455
  %v492 = vpack.c.b16 %v458, %v457
  %v493 = vpack.c.b16 %v460, %v459
  %v494 = vpack.c.b16 %v462, %v461
  %v543 = vunpack.c.l.b16 %v271
  %v544 = vunpack.c.l.b16 %v272
  %v545 = vunpack.c.l.b16 %v273
  %v546 = vunpack.c.l.b16 %v274
  %v547 = vunpack.c.l.b16 %v275
  %v548 = vunpack.c.l.b16 %v276
  %v549 = vunpack.c.l.b16 %v277
  %v550 = vunpack.c.l.b16 %v278
  %v551 = vunpack.c.l.b16 %v279
  %v552 = vunpack.c.l.b16 %v280
  %v553 = vunpack.c.l.b16 %v281
  %v554 = vunpack.c.l.b16 %v282
  %v555 = vunpack.c.l.b16 %v283
  %v556 = vunpack.c.l.b16 %v284
  %v557 = vunpack.c.l.b16 %v285
  %v558 = vunpack.c.l.b16 %v286
  %v559 = vpack.c.b16 %v544, %v543
  %v560 = vpack.c.b16 %v546, %v545
  %v561 = vpack.c.b16 %v548, %v547
  %v562 = vpack.c.b16 %v550, %v549
  %v563 = vpack.c.b16 %v552, %v551
  %v564 = vpack.c.b16 %v554, %v553
  %v565 = vpack.c.b16 %v556, %v555
  %v566 = vpack.c.b16 %v558, %v557
  %575 = vmatprep.subr.bf16.mxu0 0
  %576 = vmatpush1.bf16.msra.mxu0 %v566
  %577 = vmatprep.subr.bf16.mxu0 0
  %578 = vmatpush1.bf16.msra.mxu0 %v565
  %579 = vmatprep.subr.bf16.mxu0 0
  %580 = vmatpush1.bf16.msra.mxu0 %v564
  %581 = vmatprep.subr.bf16.mxu0 0
  %582 = vmatpush1.bf16.msra.mxu0 %v563
  %583 = vmatprep.subr.bf16.mxu0 0
  %584 = vmatpush1.bf16.msra.mxu0 %v562
  %585 = vmatprep.subr.bf16.mxu0 0
  %586 = vmatpush1.bf16.msra.mxu0 %v561
  %587 = vmatprep.subr.bf16.mxu0 0
  %588 = vmatpush1.bf16.msra.mxu0 %v560
  %589 = vmatprep.subr.bf16.mxu0 0
  %590 = vmatpush1.bf16.msra.mxu0 %v559
  %591 = vmatprep.subr.bf16.mxu0 0
  %592 = vmatpush2.bf16.msra.mxu0 0
  %593 = vmatprep.subr.bf16.mxu0 0
  %594 = vmatpush2.bf16.msra.mxu0 0
  %595 = vmatprep.subr.bf16.mxu0 0
  %596 = vmatpush2.bf16.msra.mxu0 0
  %597 = vmatprep.subr.bf16.mxu0 0
  %598 = vmatpush2.bf16.msra.mxu0 0
  %599 = vmatprep.subr.bf16.mxu0 0
  %600 = vmatpush2.bf16.msra.mxu0 0
  %601 = vmatprep.subr.bf16.mxu0 0
  %602 = vmatpush2.bf16.msra.mxu0 0
  %603 = vmatprep.subr.bf16.mxu0 0
  %604 = vmatpush2.bf16.msra.mxu0 0
  %605 = vmatprep.subr.bf16.mxu0 0
  %606 = vmatpush2.bf16.msra.mxu0 0
  %607 = vmatprep.mubr.bf16.mxu0 0
  %608 = vmatmul.mubr.bf16.gmra.mxu0 %v463
  %v609 = vpop.f32.mrf.mxu0
  %v610 = vadd.f32 0.0, %v609
  %v611 = vpop.f32.mrf.mxu0
  %v612 = vpop.f32.mrf.mxu0
  %v613 = vadd.f32 0.0, %v612
  %v614 = vpop.f32.mrf.mxu0
  %615 = vmatprep.mubr.bf16.mxu0 0
  %616 = vmatmul.mubr.bf16.gmra.mxu0 %v464
  %v617 = vpop.f32.mrf.mxu0
  %v618 = vadd.f32 0.0, %v617
  %v619 = vpop.f32.mrf.mxu0
  %v620 = vpop.f32.mrf.mxu0
  %v621 = vadd.f32 0.0, %v620
  %v622 = vpop.f32.mrf.mxu0
  %623 = vmatprep.mubr.bf16.mxu0 0
  %624 = vmatmul.mubr.bf16.gmra.mxu0 %v465
  %v625 = vpop.f32.mrf.mxu0
  %v626 = vadd.f32 0.0, %v625
  %v627 = vpop.f32.mrf.mxu0
  %v628 = vpop.f32.mrf.mxu0
  %v629 = vadd.f32 0.0, %v628
  %v630 = vpop.f32.mrf.mxu0
  %631 = vmatprep.mubr.bf16.mxu0 0
  %632 = vmatmul.mubr.bf16.gmra.mxu0 %v466
  %v633 = vpop.f32.mrf.mxu0
  %v634 = vadd.f32 0.0, %v633
  %v635 = vpop.f32.mrf.mxu0
  %v636 = vpop.f32.mrf.mxu0
  %v637 = vadd.f32 0.0, %v636
  %v638 = vpop.f32.mrf.mxu0
  %639 = vmatprep.mubr.bf16.mxu0 0
  %640 = vmatmul.mubr.bf16.gmra.mxu0 %v467
  %v641 = vpop.f32.mrf.mxu0
  %v642 = vadd.f32 0.0, %v641
  %v643 = vpop.f32.mrf.mxu0
  %v644 = vpop.f32.mrf.mxu0
  %v645 = vadd.f32 0.0, %v644
  %v646 = vpop.f32.mrf.mxu0
  %647 = vmatprep.mubr.bf16.mxu0 0
  %648 = vmatmul.mubr.bf16.gmra.mxu0 %v468
  %v649 = vpop.f32.mrf.mxu0
  %v650 = vadd.f32 0.0, %v649
  %v651 = vpop.f32.mrf.mxu0
  %v652 = vpop.f32.mrf.mxu0
  %v653 = vadd.f32 0.0, %v652
  %v654 = vpop.f32.mrf.mxu0
  %655 = vmatprep.mubr.bf16.mxu0 0
  %656 = vmatmul.mubr.bf16.gmra.mxu0 %v469
  %v657 = vpop.f32.mrf.mxu0
  %v658 = vadd.f32 0.0, %v657
  %v659 = vpop.f32.mrf.mxu0
  %v660 = vpop.f32.mrf.mxu0
  %v661 = vadd.f32 0.0, %v660
  %v662 = vpop.f32.mrf.mxu0
  %663 = vmatprep.mubr.bf16.mxu0 0
  %664 = vmatmul.mubr.bf16.gmra.mxu0 %v470
  %v665 = vpop.f32.mrf.mxu0
  %v666 = vadd.f32 0.0, %v665
  %v667 = vpop.f32.mrf.mxu0
  %v668 = vpop.f32.mrf.mxu0
  %v669 = vadd.f32 0.0, %v668
  %v670 = vpop.f32.mrf.mxu0
  %671 = vmatprep.mubr.bf16.mxu0 0
  %672 = vmatmul.mubr.bf16.gmra.mxu0 %v471
  %v673 = vpop.f32.mrf.mxu0
  %v674 = vadd.f32 0.0, %v673
  %v675 = vpop.f32.mrf.mxu0
  %v676 = vpop.f32.mrf.mxu0
  %v677 = vadd.f32 0.0, %v676
  %v678 = vpop.f32.mrf.mxu0
  %679 = vmatprep.mubr.bf16.mxu0 0
  %680 = vmatmul.mubr.bf16.gmra.mxu0 %v472
  %v681 = vpop.f32.mrf.mxu0
  %v682 = vadd.f32 0.0, %v681
  %v683 = vpop.f32.mrf.mxu0
  %v684 = vpop.f32.mrf.mxu0
  %v685 = vadd.f32 0.0, %v684
  %v686 = vpop.f32.mrf.mxu0
  %687 = vmatprep.mubr.bf16.mxu0 0
  %688 = vmatmul.mubr.bf16.gmra.mxu0 %v473
  %v689 = vpop.f32.mrf.mxu0
  %v690 = vadd.f32 0.0, %v689
  %v691 = vpop.f32.mrf.mxu0
  %v692 = vpop.f32.mrf.mxu0
  %v693 = vadd.f32 0.0, %v692
  %v694 = vpop.f32.mrf.mxu0
  %695 = vmatprep.mubr.bf16.mxu0 0
  %696 = vmatmul.mubr.bf16.gmra.mxu0 %v474
  %v697 = vpop.f32.mrf.mxu0
  %v698 = vadd.f32 0.0, %v697
  %v699 = vpop.f32.mrf.mxu0
  %v700 = vpop.f32.mrf.mxu0
  %v701 = vadd.f32 0.0, %v700
  %v702 = vpop.f32.mrf.mxu0
  %703 = vmatprep.mubr.bf16.mxu0 0
  %704 = vmatmul.mubr.bf16.gmra.mxu0 %v475
  %v705 = vpop.f32.mrf.mxu0
  %v706 = vadd.f32 0.0, %v705
  %v707 = vpop.f32.mrf.mxu0
  %v708 = vpop.f32.mrf.mxu0
  %v709 = vadd.f32 0.0, %v708
  %v710 = vpop.f32.mrf.mxu0
  %711 = vmatprep.mubr.bf16.mxu0 0
  %712 = vmatmul.mubr.bf16.gmra.mxu0 %v476
  %v713 = vpop.f32.mrf.mxu0
  %v714 = vadd.f32 0.0, %v713
  %v715 = vpop.f32.mrf.mxu0
  %v716 = vpop.f32.mrf.mxu0
  %v717 = vadd.f32 0.0, %v716
  %v718 = vpop.f32.mrf.mxu0
  %719 = vmatprep.mubr.bf16.mxu0 0
  %720 = vmatmul.mubr.bf16.gmra.mxu0 %v477
  %v721 = vpop.f32.mrf.mxu0
  %v722 = vadd.f32 0.0, %v721
  %v723 = vpop.f32.mrf.mxu0
  %v724 = vpop.f32.mrf.mxu0
  %v725 = vadd.f32 0.0, %v724
  %v726 = vpop.f32.mrf.mxu0
  %727 = vmatprep.mubr.bf16.mxu0 0
  %728 = vmatmul.mubr.bf16.gmra.mxu0 %v478
  %v729 = vpop.f32.mrf.mxu0
  %v730 = vadd.f32 0.0, %v729
  %v731 = vpop.f32.mrf.mxu0
  %v732 = vpop.f32.mrf.mxu0
  %v733 = vadd.f32 0.0, %v732
  %v734 = vpop.f32.mrf.mxu0
  %735 = vmatprep.mubr.bf16.mxu0 0
  %736 = vmatmul.mubr.bf16.gmra.mxu0 %v479
  %v737 = vpop.f32.mrf.mxu0
  %v738 = vadd.f32 0.0, %v737
  %v739 = vpop.f32.mrf.mxu0
  %v740 = vpop.f32.mrf.mxu0
  %v741 = vadd.f32 0.0, %v740
  %v742 = vpop.f32.mrf.mxu0
  %743 = vmatprep.mubr.bf16.mxu0 0
  %744 = vmatmul.mubr.bf16.gmra.mxu0 %v480
  %v745 = vpop.f32.mrf.mxu0
  %v746 = vadd.f32 0.0, %v745
  %v747 = vpop.f32.mrf.mxu0
  %v748 = vpop.f32.mrf.mxu0
  %v749 = vadd.f32 0.0, %v748
  %v750 = vpop.f32.mrf.mxu0
  %751 = vmatprep.mubr.bf16.mxu0 0
  %752 = vmatmul.mubr.bf16.gmra.mxu0 %v481
  %v753 = vpop.f32.mrf.mxu0
  %v754 = vadd.f32 0.0, %v753
  %v755 = vpop.f32.mrf.mxu0
  %v756 = vpop.f32.mrf.mxu0
  %v757 = vadd.f32 0.0, %v756
  %v758 = vpop.f32.mrf.mxu0
  %759 = vmatprep.mubr.bf16.mxu0 0
  %760 = vmatmul.mubr.bf16.gmra.mxu0 %v482
  %v761 = vpop.f32.mrf.mxu0
  %v762 = vadd.f32 0.0, %v761
  %v763 = vpop.f32.mrf.mxu0
  %v764 = vpop.f32.mrf.mxu0
  %v765 = vadd.f32 0.0, %v764
  %v766 = vpop.f32.mrf.mxu0
  %767 = vmatprep.mubr.bf16.mxu0 0
  %768 = vmatmul.mubr.bf16.gmra.mxu0 %v483
  %v769 = vpop.f32.mrf.mxu0
  %v770 = vadd.f32 0.0, %v769
  %v771 = vpop.f32.mrf.mxu0
  %v772 = vpop.f32.mrf.mxu0
  %v773 = vadd.f32 0.0, %v772
  %v774 = vpop.f32.mrf.mxu0
  %775 = vmatprep.mubr.bf16.mxu0 0
  %776 = vmatmul.mubr.bf16.gmra.mxu0 %v484
  %v777 = vpop.f32.mrf.mxu0
  %v778 = vadd.f32 0.0, %v777
  %v779 = vpop.f32.mrf.mxu0
  %v780 = vpop.f32.mrf.mxu0
  %v781 = vadd.f32 0.0, %v780
  %v782 = vpop.f32.mrf.mxu0
  %783 = vmatprep.mubr.bf16.mxu0 0
  %784 = vmatmul.mubr.bf16.gmra.mxu0 %v485
  %v785 = vpop.f32.mrf.mxu0
  %v786 = vadd.f32 0.0, %v785
  %v787 = vpop.f32.mrf.mxu0
  %v788 = vpop.f32.mrf.mxu0
  %v789 = vadd.f32 0.0, %v788
  %v790 = vpop.f32.mrf.mxu0
  %791 = vmatprep.mubr.bf16.mxu0 0
  %792 = vmatmul.mubr.bf16.gmra.mxu0 %v486
  %v793 = vpop.f32.mrf.mxu0
  %v794 = vadd.f32 0.0, %v793
  %v795 = vpop.f32.mrf.mxu0
  %v796 = vpop.f32.mrf.mxu0
  %v797 = vadd.f32 0.0, %v796
  %v798 = vpop.f32.mrf.mxu0
  %799 = vmatprep.mubr.bf16.mxu0 0
  %800 = vmatmul.mubr.bf16.gmra.mxu0 %v487
  %v801 = vpop.f32.mrf.mxu0
  %v802 = vadd.f32 0.0, %v801
  %v803 = vpop.f32.mrf.mxu0
  %v804 = vpop.f32.mrf.mxu0
  %v805 = vadd.f32 0.0, %v804
  %v806 = vpop.f32.mrf.mxu0
  %807 = vmatprep.mubr.bf16.mxu0 0
  %808 = vmatmul.mubr.bf16.gmra.mxu0 %v488
  %v809 = vpop.f32.mrf.mxu0
  %v810 = vadd.f32 0.0, %v809
  %v811 = vpop.f32.mrf.mxu0
  %v812 = vpop.f32.mrf.mxu0
  %v813 = vadd.f32 0.0, %v812
  %v814 = vpop.f32.mrf.mxu0
  %815 = vmatprep.mubr.bf16.mxu0 0
  %816 = vmatmul.mubr.bf16.gmra.mxu0 %v489
  %v817 = vpop.f32.mrf.mxu0
  %v818 = vadd.f32 0.0, %v817
  %v819 = vpop.f32.mrf.mxu0
  %v820 = vpop.f32.mrf.mxu0
  %v821 = vadd.f32 0.0, %v820
  %v822 = vpop.f32.mrf.mxu0
  %823 = vmatprep.mubr.bf16.mxu0 0
  %824 = vmatmul.mubr.bf16.gmra.mxu0 %v490
  %v825 = vpop.f32.mrf.mxu0
  %v826 = vadd.f32 0.0, %v825
  %v827 = vpop.f32.mrf.mxu0
  %v828 = vpop.f32.mrf.mxu0
  %v829 = vadd.f32 0.0, %v828
  %v830 = vpop.f32.mrf.mxu0
  %831 = vmatprep.mubr.bf16.mxu0 0
  %832 = vmatmul.mubr.bf16.gmra.mxu0 %v491
  %v833 = vpop.f32.mrf.mxu0
  %v834 = vadd.f32 0.0, %v833
  %v835 = vpop.f32.mrf.mxu0
  %v836 = vpop.f32.mrf.mxu0
  %v837 = vadd.f32 0.0, %v836
  %v838 = vpop.f32.mrf.mxu0
  %839 = vmatprep.mubr.bf16.mxu0 0
  %840 = vmatmul.mubr.bf16.gmra.mxu0 %v492
  %v841 = vpop.f32.mrf.mxu0
  %v842 = vadd.f32 0.0, %v841
  %v843 = vpop.f32.mrf.mxu0
  %v844 = vpop.f32.mrf.mxu0
  %v845 = vadd.f32 0.0, %v844
  %v846 = vpop.f32.mrf.mxu0
  %847 = vmatprep.mubr.bf16.mxu0 0
  %848 = vmatmul.mubr.bf16.gmra.mxu0 %v493
  %v849 = vpop.f32.mrf.mxu0
  %v850 = vadd.f32 0.0, %v849
  %v851 = vpop.f32.mrf.mxu0
  %v852 = vpop.f32.mrf.mxu0
  %v853 = vadd.f32 0.0, %v852
  %v854 = vpop.f32.mrf.mxu0
  %855 = vmatprep.mubr.bf16.mxu0 0
  %856 = vmatmul.mubr.bf16.gmra.mxu0 %v494
  %v857 = vpop.f32.mrf.mxu0
  %v858 = vadd.f32 0.0, %v857
  %v859 = vpop.f32.mrf.mxu0
  %v860 = vpop.f32.mrf.mxu0
  %v861 = vadd.f32 0.0, %v860
  %v862 = vpop.f32.mrf.mxu0
  %863 = vdwg.mxu0
  %v928 = vunpack.c.l.b16 %v79
  %v929 = vunpack.c.l.b16 %v80
  %v930 = vunpack.c.l.b16 %v81
  %v931 = vunpack.c.l.b16 %v82
  %v932 = vunpack.c.l.b16 %v83
  %v933 = vunpack.c.l.b16 %v84
  %v934 = vunpack.c.l.b16 %v85
  %v935 = vunpack.c.l.b16 %v86
  %v936 = vunpack.c.l.b16 %v87
  %v937 = vunpack.c.l.b16 %v88
  %v938 = vunpack.c.l.b16 %v89
  %v939 = vunpack.c.l.b16 %v90
  %v940 = vunpack.c.l.b16 %v91
  %v941 = vunpack.c.l.b16 %v92
  %v942 = vunpack.c.l.b16 %v93
  %v943 = vunpack.c.l.b16 %v94
  %v944 = vunpack.c.l.b16 %v95
  %v945 = vunpack.c.l.b16 %v96
  %v946 = vunpack.c.l.b16 %v97
  %v947 = vunpack.c.l.b16 %v98
  %v948 = vunpack.c.l.b16 %v99
  %v949 = vunpack.c.l.b16 %v100
  %v950 = vunpack.c.l.b16 %v101
  %v951 = vunpack.c.l.b16 %v102
  %v952 = vunpack.c.l.b16 %v103
  %v953 = vunpack.c.l.b16 %v104
  %v954 = vunpack.c.l.b16 %v105
  %v955 = vunpack.c.l.b16 %v106
  %v956 = vunpack.c.l.b16 %v107
  %v957 = vunpack.c.l.b16 %v108
  %v958 = vunpack.c.l.b16 %v109
  %v959 = vunpack.c.l.b16 %v110
  %v960 = vunpack.c.l.b16 %v111
  %v961 = vunpack.c.l.b16 %v112
  %v962 = vunpack.c.l.b16 %v113
  %v963 = vunpack.c.l.b16 %v114
  %v964 = vunpack.c.l.b16 %v115
  %v965 = vunpack.c.l.b16 %v116
  %v966 = vunpack.c.l.b16 %v117
  %v967 = vunpack.c.l.b16 %v118
  %v968 = vunpack.c.l.b16 %v119
  %v969 = vunpack.c.l.b16 %v120
  %v970 = vunpack.c.l.b16 %v121
  %v971 = vunpack.c.l.b16 %v122
  %v972 = vunpack.c.l.b16 %v123
  %v973 = vunpack.c.l.b16 %v124
  %v974 = vunpack.c.l.b16 %v125
  %v975 = vunpack.c.l.b16 %v126
  %v976 = vunpack.c.l.b16 %v127
  %v977 = vunpack.c.l.b16 %v128
  %v978 = vunpack.c.l.b16 %v129
  %v979 = vunpack.c.l.b16 %v130
  %v980 = vunpack.c.l.b16 %v131
  %v981 = vunpack.c.l.b16 %v132
  %v982 = vunpack.c.l.b16 %v133
  %v983 = vunpack.c.l.b16 %v134
  %v984 = vunpack.c.l.b16 %v135
  %v985 = vunpack.c.l.b16 %v136
  %v986 = vunpack.c.l.b16 %v137
  %v987 = vunpack.c.l.b16 %v138
  %v988 = vunpack.c.l.b16 %v139
  %v989 = vunpack.c.l.b16 %v140
  %v990 = vunpack.c.l.b16 %v141
  %v991 = vunpack.c.l.b16 %v142
  %v992 = vpack.c.b16 %v929, %v928
  %v993 = vpack.c.b16 %v931, %v930
  %v994 = vpack.c.b16 %v933, %v932
  %v995 = vpack.c.b16 %v935, %v934
  %v996 = vpack.c.b16 %v937, %v936
  %v997 = vpack.c.b16 %v939, %v938
  %v998 = vpack.c.b16 %v941, %v940
  %v999 = vpack.c.b16 %v943, %v942
  %v1000 = vpack.c.b16 %v945, %v944
  %v1001 = vpack.c.b16 %v947, %v946
  %v1002 = vpack.c.b16 %v949, %v948
  %v1003 = vpack.c.b16 %v951, %v950
  %v1004 = vpack.c.b16 %v953, %v952
  %v1005 = vpack.c.b16 %v955, %v954
  %v1006 = vpack.c.b16 %v957, %v956
  %v1007 = vpack.c.b16 %v959, %v958
  %v1008 = vpack.c.b16 %v961, %v960
  %v1009 = vpack.c.b16 %v963, %v962
  %v1010 = vpack.c.b16 %v965, %v964
  %v1011 = vpack.c.b16 %v967, %v966
  %v1012 = vpack.c.b16 %v969, %v968
  %v1013 = vpack.c.b16 %v971, %v970
  %v1014 = vpack.c.b16 %v973, %v972
  %v1015 = vpack.c.b16 %v975, %v974
  %v1016 = vpack.c.b16 %v977, %v976
  %v1017 = vpack.c.b16 %v979, %v978
  %v1018 = vpack.c.b16 %v981, %v980
  %v1019 = vpack.c.b16 %v983, %v982
  %v1020 = vpack.c.b16 %v985, %v984
  %v1021 = vpack.c.b16 %v987, %v986
  %v1022 = vpack.c.b16 %v989, %v988
  %v1023 = vpack.c.b16 %v991, %v990
  %v1072 = vunpack.c.l.b16 %v287
  %v1073 = vunpack.c.l.b16 %v288
  %v1074 = vunpack.c.l.b16 %v289
  %v1075 = vunpack.c.l.b16 %v290
  %v1076 = vunpack.c.l.b16 %v291
  %v1077 = vunpack.c.l.b16 %v292
  %v1078 = vunpack.c.l.b16 %v293
  %v1079 = vunpack.c.l.b16 %v294
  %v1080 = vunpack.c.l.b16 %v295
  %v1081 = vunpack.c.l.b16 %v296
  %v1082 = vunpack.c.l.b16 %v297
  %v1083 = vunpack.c.l.b16 %v298
  %v1084 = vunpack.c.l.b16 %v299
  %v1085 = vunpack.c.l.b16 %v300
  %v1086 = vunpack.c.l.b16 %v301
  %v1087 = vunpack.c.l.b16 %v302
  %v1088 = vpack.c.b16 %v1073, %v1072
  %v1089 = vpack.c.b16 %v1075, %v1074
  %v1090 = vpack.c.b16 %v1077, %v1076
  %v1091 = vpack.c.b16 %v1079, %v1078
  %v1092 = vpack.c.b16 %v1081, %v1080
  %v1093 = vpack.c.b16 %v1083, %v1082
  %v1094 = vpack.c.b16 %v1085, %v1084
  %v1095 = vpack.c.b16 %v1087, %v1086
  %1104 = vmatprep.subr.bf16.mxu0 0
  %1105 = vmatpush1.bf16.msra.mxu0 %v1095
  %1106 = vmatprep.subr.bf16.mxu0 0
  %1107 = vmatpush1.bf16.msra.mxu0 %v1094
  %1108 = vmatprep.subr.bf16.mxu0 0
  %1109 = vmatpush1.bf16.msra.mxu0 %v1093
  %1110 = vmatprep.subr.bf16.mxu0 0
  %1111 = vmatpush1.bf16.msra.mxu0 %v1092
  %1112 = vmatprep.subr.bf16.mxu0 0
  %1113 = vmatpush1.bf16.msra.mxu0 %v1091
  %1114 = vmatprep.subr.bf16.mxu0 0
  %1115 = vmatpush1.bf16.msra.mxu0 %v1090
  %1116 = vmatprep.subr.bf16.mxu0 0
  %1117 = vmatpush1.bf16.msra.mxu0 %v1089
  %1118 = vmatprep.subr.bf16.mxu0 0
  %1119 = vmatpush1.bf16.msra.mxu0 %v1088
  %1120 = vmatprep.subr.bf16.mxu0 0
  %1121 = vmatpush2.bf16.msra.mxu0 0
  %1122 = vmatprep.subr.bf16.mxu0 0
  %1123 = vmatpush2.bf16.msra.mxu0 0
  %1124 = vmatprep.subr.bf16.mxu0 0
  %1125 = vmatpush2.bf16.msra.mxu0 0
  %1126 = vmatprep.subr.bf16.mxu0 0
  %1127 = vmatpush2.bf16.msra.mxu0 0
  %1128 = vmatprep.subr.bf16.mxu0 0
  %1129 = vmatpush2.bf16.msra.mxu0 0
  %1130 = vmatprep.subr.bf16.mxu0 0
  %1131 = vmatpush2.bf16.msra.mxu0 0
  %1132 = vmatprep.subr.bf16.mxu0 0
  %1133 = vmatpush2.bf16.msra.mxu0 0
  %1134 = vmatprep.subr.bf16.mxu0 0
  %1135 = vmatpush2.bf16.msra.mxu0 0
  %1136 = vmatprep.mubr.bf16.mxu0 0
  %1137 = vmatmul.mubr.bf16.gmra.mxu0 %v992
  %v1138 = vpop.f32.mrf.mxu0
  %v1139 = vadd.f32 0.0, %v1138
  %v1140 = vpop.f32.mrf.mxu0
  %v1141 = vpop.f32.mrf.mxu0
  %v1142 = vadd.f32 0.0, %v1141
  %v1143 = vpop.f32.mrf.mxu0
  %1144 = vmatprep.mubr.bf16.mxu0 0
  %1145 = vmatmul.mubr.bf16.gmra.mxu0 %v993
  %v1146 = vpop.f32.mrf.mxu0
  %v1147 = vadd.f32 0.0, %v1146
  %v1148 = vpop.f32.mrf.mxu0
  %v1149 = vpop.f32.mrf.mxu0
  %v1150 = vadd.f32 0.0, %v1149
  %v1151 = vpop.f32.mrf.mxu0
  %1152 = vmatprep.mubr.bf16.mxu0 0
  %1153 = vmatmul.mubr.bf16.gmra.mxu0 %v994
  %v1154 = vpop.f32.mrf.mxu0
  %v1155 = vadd.f32 0.0, %v1154
  %v1156 = vpop.f32.mrf.mxu0
  %v1157 = vpop.f32.mrf.mxu0
  %v1158 = vadd.f32 0.0, %v1157
  %v1159 = vpop.f32.mrf.mxu0
  %1160 = vmatprep.mubr.bf16.mxu0 0
  %1161 = vmatmul.mubr.bf16.gmra.mxu0 %v995
  %v1162 = vpop.f32.mrf.mxu0
  %v1163 = vadd.f32 0.0, %v1162
  %v1164 = vpop.f32.mrf.mxu0
  %v1165 = vpop.f32.mrf.mxu0
  %v1166 = vadd.f32 0.0, %v1165
  %v1167 = vpop.f32.mrf.mxu0
  %1168 = vmatprep.mubr.bf16.mxu0 0
  %1169 = vmatmul.mubr.bf16.gmra.mxu0 %v996
  %v1170 = vpop.f32.mrf.mxu0
  %v1171 = vadd.f32 0.0, %v1170
  %v1172 = vpop.f32.mrf.mxu0
  %v1173 = vpop.f32.mrf.mxu0
  %v1174 = vadd.f32 0.0, %v1173
  %v1175 = vpop.f32.mrf.mxu0
  %1176 = vmatprep.mubr.bf16.mxu0 0
  %1177 = vmatmul.mubr.bf16.gmra.mxu0 %v997
  %v1178 = vpop.f32.mrf.mxu0
  %v1179 = vadd.f32 0.0, %v1178
  %v1180 = vpop.f32.mrf.mxu0
  %v1181 = vpop.f32.mrf.mxu0
  %v1182 = vadd.f32 0.0, %v1181
  %v1183 = vpop.f32.mrf.mxu0
  %1184 = vmatprep.mubr.bf16.mxu0 0
  %1185 = vmatmul.mubr.bf16.gmra.mxu0 %v998
  %v1186 = vpop.f32.mrf.mxu0
  %v1187 = vadd.f32 0.0, %v1186
  %v1188 = vpop.f32.mrf.mxu0
  %v1189 = vpop.f32.mrf.mxu0
  %v1190 = vadd.f32 0.0, %v1189
  %v1191 = vpop.f32.mrf.mxu0
  %1192 = vmatprep.mubr.bf16.mxu0 0
  %1193 = vmatmul.mubr.bf16.gmra.mxu0 %v999
  %v1194 = vpop.f32.mrf.mxu0
  %v1195 = vadd.f32 0.0, %v1194
  %v1196 = vpop.f32.mrf.mxu0
  %v1197 = vpop.f32.mrf.mxu0
  %v1198 = vadd.f32 0.0, %v1197
  %v1199 = vpop.f32.mrf.mxu0
  %1200 = vmatprep.mubr.bf16.mxu0 0
  %1201 = vmatmul.mubr.bf16.gmra.mxu0 %v1000
  %v1202 = vpop.f32.mrf.mxu0
  %v1203 = vadd.f32 0.0, %v1202
  %v1204 = vpop.f32.mrf.mxu0
  %v1205 = vpop.f32.mrf.mxu0
  %v1206 = vadd.f32 0.0, %v1205
  %v1207 = vpop.f32.mrf.mxu0
  %1208 = vmatprep.mubr.bf16.mxu0 0
  %1209 = vmatmul.mubr.bf16.gmra.mxu0 %v1001
  %v1210 = vpop.f32.mrf.mxu0
  %v1211 = vadd.f32 0.0, %v1210
  %v1212 = vpop.f32.mrf.mxu0
  %v1213 = vpop.f32.mrf.mxu0
  %v1214 = vadd.f32 0.0, %v1213
  %v1215 = vpop.f32.mrf.mxu0
  %1216 = vmatprep.mubr.bf16.mxu0 0
  %1217 = vmatmul.mubr.bf16.gmra.mxu0 %v1002
  %v1218 = vpop.f32.mrf.mxu0
  %v1219 = vadd.f32 0.0, %v1218
  %v1220 = vpop.f32.mrf.mxu0
  %v1221 = vpop.f32.mrf.mxu0
  %v1222 = vadd.f32 0.0, %v1221
  %v1223 = vpop.f32.mrf.mxu0
  %1224 = vmatprep.mubr.bf16.mxu0 0
  %1225 = vmatmul.mubr.bf16.gmra.mxu0 %v1003
  %v1226 = vpop.f32.mrf.mxu0
  %v1227 = vadd.f32 0.0, %v1226
  %v1228 = vpop.f32.mrf.mxu0
  %v1229 = vpop.f32.mrf.mxu0
  %v1230 = vadd.f32 0.0, %v1229
  %v1231 = vpop.f32.mrf.mxu0
  %1232 = vmatprep.mubr.bf16.mxu0 0
  %1233 = vmatmul.mubr.bf16.gmra.mxu0 %v1004
  %v1234 = vpop.f32.mrf.mxu0
  %v1235 = vadd.f32 0.0, %v1234
  %v1236 = vpop.f32.mrf.mxu0
  %v1237 = vpop.f32.mrf.mxu0
  %v1238 = vadd.f32 0.0, %v1237
  %v1239 = vpop.f32.mrf.mxu0
  %1240 = vmatprep.mubr.bf16.mxu0 0
  %1241 = vmatmul.mubr.bf16.gmra.mxu0 %v1005
  %v1242 = vpop.f32.mrf.mxu0
  %v1243 = vadd.f32 0.0, %v1242
  %v1244 = vpop.f32.mrf.mxu0
  %v1245 = vpop.f32.mrf.mxu0
  %v1246 = vadd.f32 0.0, %v1245
  %v1247 = vpop.f32.mrf.mxu0
  %1248 = vmatprep.mubr.bf16.mxu0 0
  %1249 = vmatmul.mubr.bf16.gmra.mxu0 %v1006
  %v1250 = vpop.f32.mrf.mxu0
  %v1251 = vadd.f32 0.0, %v1250
  %v1252 = vpop.f32.mrf.mxu0
  %v1253 = vpop.f32.mrf.mxu0
  %v1254 = vadd.f32 0.0, %v1253
  %v1255 = vpop.f32.mrf.mxu0
  %1256 = vmatprep.mubr.bf16.mxu0 0
  %1257 = vmatmul.mubr.bf16.gmra.mxu0 %v1007
  %v1258 = vpop.f32.mrf.mxu0
  %v1259 = vadd.f32 0.0, %v1258
  %v1260 = vpop.f32.mrf.mxu0
  %v1261 = vpop.f32.mrf.mxu0
  %v1262 = vadd.f32 0.0, %v1261
  %v1263 = vpop.f32.mrf.mxu0
  %1264 = vmatprep.mubr.bf16.mxu0 0
  %1265 = vmatmul.mubr.bf16.gmra.mxu0 %v1008
  %v1266 = vpop.f32.mrf.mxu0
  %v1267 = vadd.f32 0.0, %v1266
  %v1268 = vpop.f32.mrf.mxu0
  %v1269 = vpop.f32.mrf.mxu0
  %v1270 = vadd.f32 0.0, %v1269
  %v1271 = vpop.f32.mrf.mxu0
  %1272 = vmatprep.mubr.bf16.mxu0 0
  %1273 = vmatmul.mubr.bf16.gmra.mxu0 %v1009
  %v1274 = vpop.f32.mrf.mxu0
  %v1275 = vadd.f32 0.0, %v1274
  %v1276 = vpop.f32.mrf.mxu0
  %v1277 = vpop.f32.mrf.mxu0
  %v1278 = vadd.f32 0.0, %v1277
  %v1279 = vpop.f32.mrf.mxu0
  %1280 = vmatprep.mubr.bf16.mxu0 0
  %1281 = vmatmul.mubr.bf16.gmra.mxu0 %v1010
  %v1282 = vpop.f32.mrf.mxu0
  %v1283 = vadd.f32 0.0, %v1282
  %v1284 = vpop.f32.mrf.mxu0
  %v1285 = vpop.f32.mrf.mxu0
  %v1286 = vadd.f32 0.0, %v1285
  %v1287 = vpop.f32.mrf.mxu0
  %1288 = vmatprep.mubr.bf16.mxu0 0
  %1289 = vmatmul.mubr.bf16.gmra.mxu0 %v1011
  %v1290 = vpop.f32.mrf.mxu0
  %v1291 = vadd.f32 0.0, %v1290
  %v1292 = vpop.f32.mrf.mxu0
  %v1293 = vpop.f32.mrf.mxu0
  %v1294 = vadd.f32 0.0, %v1293
  %v1295 = vpop.f32.mrf.mxu0
  %1296 = vmatprep.mubr.bf16.mxu0 0
  %1297 = vmatmul.mubr.bf16.gmra.mxu0 %v1012
  %v1298 = vpop.f32.mrf.mxu0
  %v1299 = vadd.f32 0.0, %v1298
  %v1300 = vpop.f32.mrf.mxu0
  %v1301 = vpop.f32.mrf.mxu0
  %v1302 = vadd.f32 0.0, %v1301
  %v1303 = vpop.f32.mrf.mxu0
  %1304 = vmatprep.mubr.bf16.mxu0 0
  %1305 = vmatmul.mubr.bf16.gmra.mxu0 %v1013
  %v1306 = vpop.f32.mrf.mxu0
  %v1307 = vadd.f32 0.0, %v1306
  %v1308 = vpop.f32.mrf.mxu0
  %v1309 = vpop.f32.mrf.mxu0
  %v1310 = vadd.f32 0.0, %v1309
  %v1311 = vpop.f32.mrf.mxu0
  %1312 = vmatprep.mubr.bf16.mxu0 0
  %1313 = vmatmul.mubr.bf16.gmra.mxu0 %v1014
  %v1314 = vpop.f32.mrf.mxu0
  %v1315 = vadd.f32 0.0, %v1314
  %v1316 = vpop.f32.mrf.mxu0
  %v1317 = vpop.f32.mrf.mxu0
  %v1318 = vadd.f32 0.0, %v1317
  %v1319 = vpop.f32.mrf.mxu0
  %1320 = vmatprep.mubr.bf16.mxu0 0
  %1321 = vmatmul.mubr.bf16.gmra.mxu0 %v1015
  %v1322 = vpop.f32.mrf.mxu0
  %v1323 = vadd.f32 0.0, %v1322
  %v1324 = vpop.f32.mrf.mxu0
  %v1325 = vpop.f32.mrf.mxu0
  %v1326 = vadd.f32 0.0, %v1325
  %v1327 = vpop.f32.mrf.mxu0
  %1328 = vmatprep.mubr.bf16.mxu0 0
  %1329 = vmatmul.mubr.bf16.gmra.mxu0 %v1016
  %v1330 = vpop.f32.mrf.mxu0
  %v1331 = vadd.f32 0.0, %v1330
  %v1332 = vpop.f32.mrf.mxu0
  %v1333 = vpop.f32.mrf.mxu0
  %v1334 = vadd.f32 0.0, %v1333
  %v1335 = vpop.f32.mrf.mxu0
  %1336 = vmatprep.mubr.bf16.mxu0 0
  %1337 = vmatmul.mubr.bf16.gmra.mxu0 %v1017
  %v1338 = vpop.f32.mrf.mxu0
  %v1339 = vadd.f32 0.0, %v1338
  %v1340 = vpop.f32.mrf.mxu0
  %v1341 = vpop.f32.mrf.mxu0
  %v1342 = vadd.f32 0.0, %v1341
  %v1343 = vpop.f32.mrf.mxu0
  %1344 = vmatprep.mubr.bf16.mxu0 0
  %1345 = vmatmul.mubr.bf16.gmra.mxu0 %v1018
  %v1346 = vpop.f32.mrf.mxu0
  %v1347 = vadd.f32 0.0, %v1346
  %v1348 = vpop.f32.mrf.mxu0
  %v1349 = vpop.f32.mrf.mxu0
  %v1350 = vadd.f32 0.0, %v1349
  %v1351 = vpop.f32.mrf.mxu0
  %1352 = vmatprep.mubr.bf16.mxu0 0
  %1353 = vmatmul.mubr.bf16.gmra.mxu0 %v1019
  %v1354 = vpop.f32.mrf.mxu0
  %v1355 = vadd.f32 0.0, %v1354
  %v1356 = vpop.f32.mrf.mxu0
  %v1357 = vpop.f32.mrf.mxu0
  %v1358 = vadd.f32 0.0, %v1357
  %v1359 = vpop.f32.mrf.mxu0
  %1360 = vmatprep.mubr.bf16.mxu0 0
  %1361 = vmatmul.mubr.bf16.gmra.mxu0 %v1020
  %v1362 = vpop.f32.mrf.mxu0
  %v1363 = vadd.f32 0.0, %v1362
  %v1364 = vpop.f32.mrf.mxu0
  %v1365 = vpop.f32.mrf.mxu0
  %v1366 = vadd.f32 0.0, %v1365
  %v1367 = vpop.f32.mrf.mxu0
  %1368 = vmatprep.mubr.bf16.mxu0 0
  %1369 = vmatmul.mubr.bf16.gmra.mxu0 %v1021
  %v1370 = vpop.f32.mrf.mxu0
  %v1371 = vadd.f32 0.0, %v1370
  %v1372 = vpop.f32.mrf.mxu0
  %v1373 = vpop.f32.mrf.mxu0
  %v1374 = vadd.f32 0.0, %v1373
  %v1375 = vpop.f32.mrf.mxu0
  %1376 = vmatprep.mubr.bf16.mxu0 0
  %1377 = vmatmul.mubr.bf16.gmra.mxu0 %v1022
  %v1378 = vpop.f32.mrf.mxu0
  %v1379 = vadd.f32 0.0, %v1378
  %v1380 = vpop.f32.mrf.mxu0
  %v1381 = vpop.f32.mrf.mxu0
  %v1382 = vadd.f32 0.0, %v1381
  %v1383 = vpop.f32.mrf.mxu0
  %1384 = vmatprep.mubr.bf16.mxu0 0
  %1385 = vmatmul.mubr.bf16.gmra.mxu0 %v1023
  %v1386 = vpop.f32.mrf.mxu0
  %v1387 = vadd.f32 0.0, %v1386
  %v1388 = vpop.f32.mrf.mxu0
  %v1389 = vpop.f32.mrf.mxu0
  %v1390 = vadd.f32 0.0, %v1389
  %v1391 = vpop.f32.mrf.mxu0
  %1392 = vdwg.mxu0
  %v1457 = vunpack.c.l.b16 %v143
  %v1458 = vunpack.c.l.b16 %v144
  %v1459 = vunpack.c.l.b16 %v145
  %v1460 = vunpack.c.l.b16 %v146
  %v1461 = vunpack.c.l.b16 %v147
  %v1462 = vunpack.c.l.b16 %v148
  %v1463 = vunpack.c.l.b16 %v149
  %v1464 = vunpack.c.l.b16 %v150
  %v1465 = vunpack.c.l.b16 %v151
  %v1466 = vunpack.c.l.b16 %v152
  %v1467 = vunpack.c.l.b16 %v153
  %v1468 = vunpack.c.l.b16 %v154
  %v1469 = vunpack.c.l.b16 %v155
  %v1470 = vunpack.c.l.b16 %v156
  %v1471 = vunpack.c.l.b16 %v157
  %v1472 = vunpack.c.l.b16 %v158
  %v1473 = vunpack.c.l.b16 %v159
  %v1474 = vunpack.c.l.b16 %v160
  %v1475 = vunpack.c.l.b16 %v161
  %v1476 = vunpack.c.l.b16 %v162
  %v1477 = vunpack.c.l.b16 %v163
  %v1478 = vunpack.c.l.b16 %v164
  %v1479 = vunpack.c.l.b16 %v165
  %v1480 = vunpack.c.l.b16 %v166
  %v1481 = vunpack.c.l.b16 %v167
  %v1482 = vunpack.c.l.b16 %v168
  %v1483 = vunpack.c.l.b16 %v169
  %v1484 = vunpack.c.l.b16 %v170
  %v1485 = vunpack.c.l.b16 %v171
  %v1486 = vunpack.c.l.b16 %v172
  %v1487 = vunpack.c.l.b16 %v173
  %v1488 = vunpack.c.l.b16 %v174
  %v1489 = vunpack.c.l.b16 %v175
  %v1490 = vunpack.c.l.b16 %v176
  %v1491 = vunpack.c.l.b16 %v177
  %v1492 = vunpack.c.l.b16 %v178
  %v1493 = vunpack.c.l.b16 %v179
  %v1494 = vunpack.c.l.b16 %v180
  %v1495 = vunpack.c.l.b16 %v181
  %v1496 = vunpack.c.l.b16 %v182
  %v1497 = vunpack.c.l.b16 %v183
  %v1498 = vunpack.c.l.b16 %v184
  %v1499 = vunpack.c.l.b16 %v185
  %v1500 = vunpack.c.l.b16 %v186
  %v1501 = vunpack.c.l.b16 %v187
  %v1502 = vunpack.c.l.b16 %v188
  %v1503 = vunpack.c.l.b16 %v189
  %v1504 = vunpack.c.l.b16 %v190
  %v1505 = vunpack.c.l.b16 %v191
  %v1506 = vunpack.c.l.b16 %v192
  %v1507 = vunpack.c.l.b16 %v193
  %v1508 = vunpack.c.l.b16 %v194
  %v1509 = vunpack.c.l.b16 %v195
  %v1510 = vunpack.c.l.b16 %v196
  %v1511 = vunpack.c.l.b16 %v197
  %v1512 = vunpack.c.l.b16 %v198
  %v1513 = vunpack.c.l.b16 %v199
  %v1514 = vunpack.c.l.b16 %v200
  %v1515 = vunpack.c.l.b16 %v201
  %v1516 = vunpack.c.l.b16 %v202
  %v1517 = vunpack.c.l.b16 %v203
  %v1518 = vunpack.c.l.b16 %v204
  %v1519 = vunpack.c.l.b16 %v205
  %v1520 = vunpack.c.l.b16 %v206
  %v1521 = vpack.c.b16 %v1458, %v1457
  %v1522 = vpack.c.b16 %v1460, %v1459
  %v1523 = vpack.c.b16 %v1462, %v1461
  %v1524 = vpack.c.b16 %v1464, %v1463
  %v1525 = vpack.c.b16 %v1466, %v1465
  %v1526 = vpack.c.b16 %v1468, %v1467
  %v1527 = vpack.c.b16 %v1470, %v1469
  %v1528 = vpack.c.b16 %v1472, %v1471
  %v1529 = vpack.c.b16 %v1474, %v1473
  %v1530 = vpack.c.b16 %v1476, %v1475
  %v1531 = vpack.c.b16 %v1478, %v1477
  %v1532 = vpack.c.b16 %v1480, %v1479
  %v1533 = vpack.c.b16 %v1482, %v1481
  %v1534 = vpack.c.b16 %v1484, %v1483
  %v1535 = vpack.c.b16 %v1486, %v1485
  %v1536 = vpack.c.b16 %v1488, %v1487
  %v1537 = vpack.c.b16 %v1490, %v1489
  %v1538 = vpack.c.b16 %v1492, %v1491
  %v1539 = vpack.c.b16 %v1494, %v1493
  %v1540 = vpack.c.b16 %v1496, %v1495
  %v1541 = vpack.c.b16 %v1498, %v1497
  %v1542 = vpack.c.b16 %v1500, %v1499
  %v1543 = vpack.c.b16 %v1502, %v1501
  %v1544 = vpack.c.b16 %v1504, %v1503
  %v1545 = vpack.c.b16 %v1506, %v1505
  %v1546 = vpack.c.b16 %v1508, %v1507
  %v1547 = vpack.c.b16 %v1510, %v1509
  %v1548 = vpack.c.b16 %v1512, %v1511
  %v1549 = vpack.c.b16 %v1514, %v1513
  %v1550 = vpack.c.b16 %v1516, %v1515
  %v1551 = vpack.c.b16 %v1518, %v1517
  %v1552 = vpack.c.b16 %v1520, %v1519
  %v1601 = vunpack.c.l.b16 %v303
  %v1602 = vunpack.c.l.b16 %v304
  %v1603 = vunpack.c.l.b16 %v305
  %v1604 = vunpack.c.l.b16 %v306
  %v1605 = vunpack.c.l.b16 %v307
  %v1606 = vunpack.c.l.b16 %v308
  %v1607 = vunpack.c.l.b16 %v309
  %v1608 = vunpack.c.l.b16 %v310
  %v1609 = vunpack.c.l.b16 %v311
  %v1610 = vunpack.c.l.b16 %v312
  %v1611 = vunpack.c.l.b16 %v313
  %v1612 = vunpack.c.l.b16 %v314
  %v1613 = vunpack.c.l.b16 %v315
  %v1614 = vunpack.c.l.b16 %v316
  %v1615 = vunpack.c.l.b16 %v317
  %v1616 = vunpack.c.l.b16 %v318
  %v1617 = vpack.c.b16 %v1602, %v1601
  %v1618 = vpack.c.b16 %v1604, %v1603
  %v1619 = vpack.c.b16 %v1606, %v1605
  %v1620 = vpack.c.b16 %v1608, %v1607
  %v1621 = vpack.c.b16 %v1610, %v1609
  %v1622 = vpack.c.b16 %v1612, %v1611
  %v1623 = vpack.c.b16 %v1614, %v1613
  %v1624 = vpack.c.b16 %v1616, %v1615
  %1633 = vmatprep.subr.bf16.mxu0 0
  %1634 = vmatpush1.bf16.msra.mxu0 %v1624
  %1635 = vmatprep.subr.bf16.mxu0 0
  %1636 = vmatpush1.bf16.msra.mxu0 %v1623
  %1637 = vmatprep.subr.bf16.mxu0 0
  %1638 = vmatpush1.bf16.msra.mxu0 %v1622
  %1639 = vmatprep.subr.bf16.mxu0 0
  %1640 = vmatpush1.bf16.msra.mxu0 %v1621
  %1641 = vmatprep.subr.bf16.mxu0 0
  %1642 = vmatpush1.bf16.msra.mxu0 %v1620
  %1643 = vmatprep.subr.bf16.mxu0 0
  %1644 = vmatpush1.bf16.msra.mxu0 %v1619
  %1645 = vmatprep.subr.bf16.mxu0 0
  %1646 = vmatpush1.bf16.msra.mxu0 %v1618
  %1647 = vmatprep.subr.bf16.mxu0 0
  %1648 = vmatpush1.bf16.msra.mxu0 %v1617
  %1649 = vmatprep.subr.bf16.mxu0 0
  %1650 = vmatpush2.bf16.msra.mxu0 0
  %1651 = vmatprep.subr.bf16.mxu0 0
  %1652 = vmatpush2.bf16.msra.mxu0 0
  %1653 = vmatprep.subr.bf16.mxu0 0
  %1654 = vmatpush2.bf16.msra.mxu0 0
  %1655 = vmatprep.subr.bf16.mxu0 0
  %1656 = vmatpush2.bf16.msra.mxu0 0
  %1657 = vmatprep.subr.bf16.mxu0 0
  %1658 = vmatpush2.bf16.msra.mxu0 0
  %1659 = vmatprep.subr.bf16.mxu0 0
  %1660 = vmatpush2.bf16.msra.mxu0 0
  %1661 = vmatprep.subr.bf16.mxu0 0
  %1662 = vmatpush2.bf16.msra.mxu0 0
  %1663 = vmatprep.subr.bf16.mxu0 0
  %1664 = vmatpush2.bf16.msra.mxu0 0
  %1665 = vmatprep.mubr.bf16.mxu0 0
  %1666 = vmatmul.mubr.bf16.gmra.mxu0 %v1521
  %v1667 = vpop.f32.mrf.mxu0
  %v1668 = vadd.f32 0.0, %v1667
  %v1669 = vpop.f32.mrf.mxu0
  %v1670 = vpop.f32.mrf.mxu0
  %v1671 = vadd.f32 0.0, %v1670
  %v1672 = vpop.f32.mrf.mxu0
  %1673 = vmatprep.mubr.bf16.mxu0 0
  %1674 = vmatmul.mubr.bf16.gmra.mxu0 %v1522
  %v1675 = vpop.f32.mrf.mxu0
  %v1676 = vadd.f32 0.0, %v1675
  %v1677 = vpop.f32.mrf.mxu0
  %v1678 = vpop.f32.mrf.mxu0
  %v1679 = vadd.f32 0.0, %v1678
  %v1680 = vpop.f32.mrf.mxu0
  %1681 = vmatprep.mubr.bf16.mxu0 0
  %1682 = vmatmul.mubr.bf16.gmra.mxu0 %v1523
  %v1683 = vpop.f32.mrf.mxu0
  %v1684 = vadd.f32 0.0, %v1683
  %v1685 = vpop.f32.mrf.mxu0
  %v1686 = vpop.f32.mrf.mxu0
  %v1687 = vadd.f32 0.0, %v1686
  %v1688 = vpop.f32.mrf.mxu0
  %1689 = vmatprep.mubr.bf16.mxu0 0
  %1690 = vmatmul.mubr.bf16.gmra.mxu0 %v1524
  %v1691 = vpop.f32.mrf.mxu0
  %v1692 = vadd.f32 0.0, %v1691
  %v1693 = vpop.f32.mrf.mxu0
  %v1694 = vpop.f32.mrf.mxu0
  %v1695 = vadd.f32 0.0, %v1694
  %v1696 = vpop.f32.mrf.mxu0
  %1697 = vmatprep.mubr.bf16.mxu0 0
  %1698 = vmatmul.mubr.bf16.gmra.mxu0 %v1525
  %v1699 = vpop.f32.mrf.mxu0
  %v1700 = vadd.f32 0.0, %v1699
  %v1701 = vpop.f32.mrf.mxu0
  %v1702 = vpop.f32.mrf.mxu0
  %v1703 = vadd.f32 0.0, %v1702
  %v1704 = vpop.f32.mrf.mxu0
  %1705 = vmatprep.mubr.bf16.mxu0 0
  %1706 = vmatmul.mubr.bf16.gmra.mxu0 %v1526
  %v1707 = vpop.f32.mrf.mxu0
  %v1708 = vadd.f32 0.0, %v1707
  %v1709 = vpop.f32.mrf.mxu0
  %v1710 = vpop.f32.mrf.mxu0
  %v1711 = vadd.f32 0.0, %v1710
  %v1712 = vpop.f32.mrf.mxu0
  %1713 = vmatprep.mubr.bf16.mxu0 0
  %1714 = vmatmul.mubr.bf16.gmra.mxu0 %v1527
  %v1715 = vpop.f32.mrf.mxu0
  %v1716 = vadd.f32 0.0, %v1715
  %v1717 = vpop.f32.mrf.mxu0
  %v1718 = vpop.f32.mrf.mxu0
  %v1719 = vadd.f32 0.0, %v1718
  %v1720 = vpop.f32.mrf.mxu0
  %1721 = vmatprep.mubr.bf16.mxu0 0
  %1722 = vmatmul.mubr.bf16.gmra.mxu0 %v1528
  %v1723 = vpop.f32.mrf.mxu0
  %v1724 = vadd.f32 0.0, %v1723
  %v1725 = vpop.f32.mrf.mxu0
  %v1726 = vpop.f32.mrf.mxu0
  %v1727 = vadd.f32 0.0, %v1726
  %v1728 = vpop.f32.mrf.mxu0
  %1729 = vmatprep.mubr.bf16.mxu0 0
  %1730 = vmatmul.mubr.bf16.gmra.mxu0 %v1529
  %v1731 = vpop.f32.mrf.mxu0
  %v1732 = vadd.f32 0.0, %v1731
  %v1733 = vpop.f32.mrf.mxu0
  %v1734 = vpop.f32.mrf.mxu0
  %v1735 = vadd.f32 0.0, %v1734
  %v1736 = vpop.f32.mrf.mxu0
  %1737 = vmatprep.mubr.bf16.mxu0 0
  %1738 = vmatmul.mubr.bf16.gmra.mxu0 %v1530
  %v1739 = vpop.f32.mrf.mxu0
  %v1740 = vadd.f32 0.0, %v1739
  %v1741 = vpop.f32.mrf.mxu0
  %v1742 = vpop.f32.mrf.mxu0
  %v1743 = vadd.f32 0.0, %v1742
  %v1744 = vpop.f32.mrf.mxu0
  %1745 = vmatprep.mubr.bf16.mxu0 0
  %1746 = vmatmul.mubr.bf16.gmra.mxu0 %v1531
  %v1747 = vpop.f32.mrf.mxu0
  %v1748 = vadd.f32 0.0, %v1747
  %v1749 = vpop.f32.mrf.mxu0
  %v1750 = vpop.f32.mrf.mxu0
  %v1751 = vadd.f32 0.0, %v1750
  %v1752 = vpop.f32.mrf.mxu0
  %1753 = vmatprep.mubr.bf16.mxu0 0
  %1754 = vmatmul.mubr.bf16.gmra.mxu0 %v1532
  %v1755 = vpop.f32.mrf.mxu0
  %v1756 = vadd.f32 0.0, %v1755
  %v1757 = vpop.f32.mrf.mxu0
  %v1758 = vpop.f32.mrf.mxu0
  %v1759 = vadd.f32 0.0, %v1758
  %v1760 = vpop.f32.mrf.mxu0
  %1761 = vmatprep.mubr.bf16.mxu0 0
  %1762 = vmatmul.mubr.bf16.gmra.mxu0 %v1533
  %v1763 = vpop.f32.mrf.mxu0
  %v1764 = vadd.f32 0.0, %v1763
  %v1765 = vpop.f32.mrf.mxu0
  %v1766 = vpop.f32.mrf.mxu0
  %v1767 = vadd.f32 0.0, %v1766
  %v1768 = vpop.f32.mrf.mxu0
  %1769 = vmatprep.mubr.bf16.mxu0 0
  %1770 = vmatmul.mubr.bf16.gmra.mxu0 %v1534
  %v1771 = vpop.f32.mrf.mxu0
  %v1772 = vadd.f32 0.0, %v1771
  %v1773 = vpop.f32.mrf.mxu0
  %v1774 = vpop.f32.mrf.mxu0
  %v1775 = vadd.f32 0.0, %v1774
  %v1776 = vpop.f32.mrf.mxu0
  %1777 = vmatprep.mubr.bf16.mxu0 0
  %1778 = vmatmul.mubr.bf16.gmra.mxu0 %v1535
  %v1779 = vpop.f32.mrf.mxu0
  %v1780 = vadd.f32 0.0, %v1779
  %v1781 = vpop.f32.mrf.mxu0
  %v1782 = vpop.f32.mrf.mxu0
  %v1783 = vadd.f32 0.0, %v1782
  %v1784 = vpop.f32.mrf.mxu0
  %1785 = vmatprep.mubr.bf16.mxu0 0
  %1786 = vmatmul.mubr.bf16.gmra.mxu0 %v1536
  %v1787 = vpop.f32.mrf.mxu0
  %v1788 = vadd.f32 0.0, %v1787
  %v1789 = vpop.f32.mrf.mxu0
  %v1790 = vpop.f32.mrf.mxu0
  %v1791 = vadd.f32 0.0, %v1790
  %v1792 = vpop.f32.mrf.mxu0
  %1793 = vmatprep.mubr.bf16.mxu0 0
  %1794 = vmatmul.mubr.bf16.gmra.mxu0 %v1537
  %v1795 = vpop.f32.mrf.mxu0
  %v1796 = vadd.f32 0.0, %v1795
  %v1797 = vpop.f32.mrf.mxu0
  %v1798 = vpop.f32.mrf.mxu0
  %v1799 = vadd.f32 0.0, %v1798
  %v1800 = vpop.f32.mrf.mxu0
  %1801 = vmatprep.mubr.bf16.mxu0 0
  %1802 = vmatmul.mubr.bf16.gmra.mxu0 %v1538
  %v1803 = vpop.f32.mrf.mxu0
  %v1804 = vadd.f32 0.0, %v1803
  %v1805 = vpop.f32.mrf.mxu0
  %v1806 = vpop.f32.mrf.mxu0
  %v1807 = vadd.f32 0.0, %v1806
  %v1808 = vpop.f32.mrf.mxu0
  %1809 = vmatprep.mubr.bf16.mxu0 0
  %1810 = vmatmul.mubr.bf16.gmra.mxu0 %v1539
  %v1811 = vpop.f32.mrf.mxu0
  %v1812 = vadd.f32 0.0, %v1811
  %v1813 = vpop.f32.mrf.mxu0
  %v1814 = vpop.f32.mrf.mxu0
  %v1815 = vadd.f32 0.0, %v1814
  %v1816 = vpop.f32.mrf.mxu0
  %1817 = vmatprep.mubr.bf16.mxu0 0
  %1818 = vmatmul.mubr.bf16.gmra.mxu0 %v1540
  %v1819 = vpop.f32.mrf.mxu0
  %v1820 = vadd.f32 0.0, %v1819
  %v1821 = vpop.f32.mrf.mxu0
  %v1822 = vpop.f32.mrf.mxu0
  %v1823 = vadd.f32 0.0, %v1822
  %v1824 = vpop.f32.mrf.mxu0
  %1825 = vmatprep.mubr.bf16.mxu0 0
  %1826 = vmatmul.mubr.bf16.gmra.mxu0 %v1541
  %v1827 = vpop.f32.mrf.mxu0
  %v1828 = vadd.f32 0.0, %v1827
  %v1829 = vpop.f32.mrf.mxu0
  %v1830 = vpop.f32.mrf.mxu0
  %v1831 = vadd.f32 0.0, %v1830
  %v1832 = vpop.f32.mrf.mxu0
  %1833 = vmatprep.mubr.bf16.mxu0 0
  %1834 = vmatmul.mubr.bf16.gmra.mxu0 %v1542
  %v1835 = vpop.f32.mrf.mxu0
  %v1836 = vadd.f32 0.0, %v1835
  %v1837 = vpop.f32.mrf.mxu0
  %v1838 = vpop.f32.mrf.mxu0
  %v1839 = vadd.f32 0.0, %v1838
  %v1840 = vpop.f32.mrf.mxu0
  %1841 = vmatprep.mubr.bf16.mxu0 0
  %1842 = vmatmul.mubr.bf16.gmra.mxu0 %v1543
  %v1843 = vpop.f32.mrf.mxu0
  %v1844 = vadd.f32 0.0, %v1843
  %v1845 = vpop.f32.mrf.mxu0
  %v1846 = vpop.f32.mrf.mxu0
  %v1847 = vadd.f32 0.0, %v1846
  %v1848 = vpop.f32.mrf.mxu0
  %1849 = vmatprep.mubr.bf16.mxu0 0
  %1850 = vmatmul.mubr.bf16.gmra.mxu0 %v1544
  %v1851 = vpop.f32.mrf.mxu0
  %v1852 = vadd.f32 0.0, %v1851
  %v1853 = vpop.f32.mrf.mxu0
  %v1854 = vpop.f32.mrf.mxu0
  %v1855 = vadd.f32 0.0, %v1854
  %v1856 = vpop.f32.mrf.mxu0
  %1857 = vmatprep.mubr.bf16.mxu0 0
  %1858 = vmatmul.mubr.bf16.gmra.mxu0 %v1545
  %v1859 = vpop.f32.mrf.mxu0
  %v1860 = vadd.f32 0.0, %v1859
  %v1861 = vpop.f32.mrf.mxu0
  %v1862 = vpop.f32.mrf.mxu0
  %v1863 = vadd.f32 0.0, %v1862
  %v1864 = vpop.f32.mrf.mxu0
  %1865 = vmatprep.mubr.bf16.mxu0 0
  %1866 = vmatmul.mubr.bf16.gmra.mxu0 %v1546
  %v1867 = vpop.f32.mrf.mxu0
  %v1868 = vadd.f32 0.0, %v1867
  %v1869 = vpop.f32.mrf.mxu0
  %v1870 = vpop.f32.mrf.mxu0
  %v1871 = vadd.f32 0.0, %v1870
  %v1872 = vpop.f32.mrf.mxu0
  %1873 = vmatprep.mubr.bf16.mxu0 0
  %1874 = vmatmul.mubr.bf16.gmra.mxu0 %v1547
  %v1875 = vpop.f32.mrf.mxu0
  %v1876 = vadd.f32 0.0, %v1875
  %v1877 = vpop.f32.mrf.mxu0
  %v1878 = vpop.f32.mrf.mxu0
  %v1879 = vadd.f32 0.0, %v1878
  %v1880 = vpop.f32.mrf.mxu0
  %1881 = vmatprep.mubr.bf16.mxu0 0
  %1882 = vmatmul.mubr.bf16.gmra.mxu0 %v1548
  %v1883 = vpop.f32.mrf.mxu0
  %v1884 = vadd.f32 0.0, %v1883
  %v1885 = vpop.f32.mrf.mxu0
  %v1886 = vpop.f32.mrf.mxu0
  %v1887 = vadd.f32 0.0, %v1886
  %v1888 = vpop.f32.mrf.mxu0
  %1889 = vmatprep.mubr.bf16.mxu0 0
  %1890 = vmatmul.mubr.bf16.gmra.mxu0 %v1549
  %v1891 = vpop.f32.mrf.mxu0
  %v1892 = vadd.f32 0.0, %v1891
  %v1893 = vpop.f32.mrf.mxu0
  %v1894 = vpop.f32.mrf.mxu0
  %v1895 = vadd.f32 0.0, %v1894
  %v1896 = vpop.f32.mrf.mxu0
  %1897 = vmatprep.mubr.bf16.mxu0 0
  %1898 = vmatmul.mubr.bf16.gmra.mxu0 %v1550
  %v1899 = vpop.f32.mrf.mxu0
  %v1900 = vadd.f32 0.0, %v1899
  %v1901 = vpop.f32.mrf.mxu0
  %v1902 = vpop.f32.mrf.mxu0
  %v1903 = vadd.f32 0.0, %v1902
  %v1904 = vpop.f32.mrf.mxu0
  %1905 = vmatprep.mubr.bf16.mxu0 0
  %1906 = vmatmul.mubr.bf16.gmra.mxu0 %v1551
  %v1907 = vpop.f32.mrf.mxu0
  %v1908 = vadd.f32 0.0, %v1907
  %v1909 = vpop.f32.mrf.mxu0
  %v1910 = vpop.f32.mrf.mxu0
  %v1911 = vadd.f32 0.0, %v1910
  %v1912 = vpop.f32.mrf.mxu0
  %1913 = vmatprep.mubr.bf16.mxu0 0
  %1914 = vmatmul.mubr.bf16.gmra.mxu0 %v1552
  %v1915 = vpop.f32.mrf.mxu0
  %v1916 = vadd.f32 0.0, %v1915
  %v1917 = vpop.f32.mrf.mxu0
  %v1918 = vpop.f32.mrf.mxu0
  %v1919 = vadd.f32 0.0, %v1918
  %v1920 = vpop.f32.mrf.mxu0
  %1921 = vdwg.mxu0
  %v1986 = vunpack.c.l.b16 %v207
  %v1987 = vunpack.c.l.b16 %v208
  %v1988 = vunpack.c.l.b16 %v209
  %v1989 = vunpack.c.l.b16 %v210
  %v1990 = vunpack.c.l.b16 %v211
  %v1991 = vunpack.c.l.b16 %v212
  %v1992 = vunpack.c.l.b16 %v213
  %v1993 = vunpack.c.l.b16 %v214
  %v1994 = vunpack.c.l.b16 %v215
  %v1995 = vunpack.c.l.b16 %v216
  %v1996 = vunpack.c.l.b16 %v217
  %v1997 = vunpack.c.l.b16 %v218
  %v1998 = vunpack.c.l.b16 %v219
  %v1999 = vunpack.c.l.b16 %v220
  %v2000 = vunpack.c.l.b16 %v221
  %v2001 = vunpack.c.l.b16 %v222
  %v2002 = vunpack.c.l.b16 %v223
  %v2003 = vunpack.c.l.b16 %v224
  %v2004 = vunpack.c.l.b16 %v225
  %v2005 = vunpack.c.l.b16 %v226
  %v2006 = vunpack.c.l.b16 %v227
  %v2007 = vunpack.c.l.b16 %v228
  %v2008 = vunpack.c.l.b16 %v229
  %v2009 = vunpack.c.l.b16 %v230
  %v2010 = vunpack.c.l.b16 %v231
  %v2011 = vunpack.c.l.b16 %v232
  %v2012 = vunpack.c.l.b16 %v233
  %v2013 = vunpack.c.l.b16 %v234
  %v2014 = vunpack.c.l.b16 %v235
  %v2015 = vunpack.c.l.b16 %v236
  %v2016 = vunpack.c.l.b16 %v237
  %v2017 = vunpack.c.l.b16 %v238
  %v2018 = vunpack.c.l.b16 %v239
  %v2019 = vunpack.c.l.b16 %v240
  %v2020 = vunpack.c.l.b16 %v241
  %v2021 = vunpack.c.l.b16 %v242
  %v2022 = vunpack.c.l.b16 %v243
  %v2023 = vunpack.c.l.b16 %v244
  %v2024 = vunpack.c.l.b16 %v245
  %v2025 = vunpack.c.l.b16 %v246
  %v2026 = vunpack.c.l.b16 %v247
  %v2027 = vunpack.c.l.b16 %v248
  %v2028 = vunpack.c.l.b16 %v249
  %v2029 = vunpack.c.l.b16 %v250
  %v2030 = vunpack.c.l.b16 %v251
  %v2031 = vunpack.c.l.b16 %v252
  %v2032 = vunpack.c.l.b16 %v253
  %v2033 = vunpack.c.l.b16 %v254
  %v2034 = vunpack.c.l.b16 %v255
  %v2035 = vunpack.c.l.b16 %v256
  %v2036 = vunpack.c.l.b16 %v257
  %v2037 = vunpack.c.l.b16 %v258
  %v2038 = vunpack.c.l.b16 %v259
  %v2039 = vunpack.c.l.b16 %v260
  %v2040 = vunpack.c.l.b16 %v261
  %v2041 = vunpack.c.l.b16 %v262
  %v2042 = vunpack.c.l.b16 %v263
  %v2043 = vunpack.c.l.b16 %v264
  %v2044 = vunpack.c.l.b16 %v265
  %v2045 = vunpack.c.l.b16 %v266
  %v2046 = vunpack.c.l.b16 %v267
  %v2047 = vunpack.c.l.b16 %v268
  %v2048 = vunpack.c.l.b16 %v269
  %v2049 = vunpack.c.l.b16 %v270
  %v2050 = vpack.c.b16 %v1987, %v1986
  %v2051 = vpack.c.b16 %v1989, %v1988
  %v2052 = vpack.c.b16 %v1991, %v1990
  %v2053 = vpack.c.b16 %v1993, %v1992
  %v2054 = vpack.c.b16 %v1995, %v1994
  %v2055 = vpack.c.b16 %v1997, %v1996
  %v2056 = vpack.c.b16 %v1999, %v1998
  %v2057 = vpack.c.b16 %v2001, %v2000
  %v2058 = vpack.c.b16 %v2003, %v2002
  %v2059 = vpack.c.b16 %v2005, %v2004
  %v2060 = vpack.c.b16 %v2007, %v2006
  %v2061 = vpack.c.b16 %v2009, %v2008
  %v2062 = vpack.c.b16 %v2011, %v2010
  %v2063 = vpack.c.b16 %v2013, %v2012
  %v2064 = vpack.c.b16 %v2015, %v2014
  %v2065 = vpack.c.b16 %v2017, %v2016
  %v2066 = vpack.c.b16 %v2019, %v2018
  %v2067 = vpack.c.b16 %v2021, %v2020
  %v2068 = vpack.c.b16 %v2023, %v2022
  %v2069 = vpack.c.b16 %v2025, %v2024
  %v2070 = vpack.c.b16 %v2027, %v2026
  %v2071 = vpack.c.b16 %v2029, %v2028
  %v2072 = vpack.c.b16 %v2031, %v2030
  %v2073 = vpack.c.b16 %v2033, %v2032
  %v2074 = vpack.c.b16 %v2035, %v2034
  %v2075 = vpack.c.b16 %v2037, %v2036
  %v2076 = vpack.c.b16 %v2039, %v2038
  %v2077 = vpack.c.b16 %v2041, %v2040
  %v2078 = vpack.c.b16 %v2043, %v2042
  %v2079 = vpack.c.b16 %v2045, %v2044
  %v2080 = vpack.c.b16 %v2047, %v2046
  %v2081 = vpack.c.b16 %v2049, %v2048
  %v2130 = vunpack.c.l.b16 %v319
  %v2131 = vunpack.c.l.b16 %v320
  %v2132 = vunpack.c.l.b16 %v321
  %v2133 = vunpack.c.l.b16 %v322
  %v2134 = vunpack.c.l.b16 %v323
  %v2135 = vunpack.c.l.b16 %v324
  %v2136 = vunpack.c.l.b16 %v325
  %v2137 = vunpack.c.l.b16 %v326
  %v2138 = vunpack.c.l.b16 %v327
  %v2139 = vunpack.c.l.b16 %v328
  %v2140 = vunpack.c.l.b16 %v329
  %v2141 = vunpack.c.l.b16 %v330
  %v2142 = vunpack.c.l.b16 %v331
  %v2143 = vunpack.c.l.b16 %v332
  %v2144 = vunpack.c.l.b16 %v333
  %v2145 = vunpack.c.l.b16 %v334
  %v2146 = vpack.c.b16 %v2131, %v2130
  %v2147 = vpack.c.b16 %v2133, %v2132
  %v2148 = vpack.c.b16 %v2135, %v2134
  %v2149 = vpack.c.b16 %v2137, %v2136
  %v2150 = vpack.c.b16 %v2139, %v2138
  %v2151 = vpack.c.b16 %v2141, %v2140
  %v2152 = vpack.c.b16 %v2143, %v2142
  %v2153 = vpack.c.b16 %v2145, %v2144
  %2162 = vmatprep.subr.bf16.mxu0 0
  %2163 = vmatpush1.bf16.msra.mxu0 %v2153
  %2164 = vmatprep.subr.bf16.mxu0 0
  %2165 = vmatpush1.bf16.msra.mxu0 %v2152
  %2166 = vmatprep.subr.bf16.mxu0 0
  %2167 = vmatpush1.bf16.msra.mxu0 %v2151
  %2168 = vmatprep.subr.bf16.mxu0 0
  %2169 = vmatpush1.bf16.msra.mxu0 %v2150
  %2170 = vmatprep.subr.bf16.mxu0 0
  %2171 = vmatpush1.bf16.msra.mxu0 %v2149
  %2172 = vmatprep.subr.bf16.mxu0 0
  %2173 = vmatpush1.bf16.msra.mxu0 %v2148
  %2174 = vmatprep.subr.bf16.mxu0 0
  %2175 = vmatpush1.bf16.msra.mxu0 %v2147
  %2176 = vmatprep.subr.bf16.mxu0 0
  %2177 = vmatpush1.bf16.msra.mxu0 %v2146
  %2178 = vmatprep.subr.bf16.mxu0 0
  %2179 = vmatpush2.bf16.msra.mxu0 0
  %2180 = vmatprep.subr.bf16.mxu0 0
  %2181 = vmatpush2.bf16.msra.mxu0 0
  %2182 = vmatprep.subr.bf16.mxu0 0
  %2183 = vmatpush2.bf16.msra.mxu0 0
  %2184 = vmatprep.subr.bf16.mxu0 0
  %2185 = vmatpush2.bf16.msra.mxu0 0
  %2186 = vmatprep.subr.bf16.mxu0 0
  %2187 = vmatpush2.bf16.msra.mxu0 0
  %2188 = vmatprep.subr.bf16.mxu0 0
  %2189 = vmatpush2.bf16.msra.mxu0 0
  %2190 = vmatprep.subr.bf16.mxu0 0
  %2191 = vmatpush2.bf16.msra.mxu0 0
  %2192 = vmatprep.subr.bf16.mxu0 0
  %2193 = vmatpush2.bf16.msra.mxu0 0
  %2194 = vmatprep.mubr.bf16.mxu0 0
  %2195 = vmatmul.mubr.bf16.gmra.mxu0 %v2050
  %v2196 = vpop.f32.mrf.mxu0
  %v2197 = vadd.f32 0.0, %v2196
  %v2198 = vpop.f32.mrf.mxu0
  %v2199 = vpop.f32.mrf.mxu0
  %v2200 = vadd.f32 0.0, %v2199
  %v2201 = vpop.f32.mrf.mxu0
  %2202 = vmatprep.mubr.bf16.mxu0 0
  %2203 = vmatmul.mubr.bf16.gmra.mxu0 %v2051
  %v2204 = vpop.f32.mrf.mxu0
  %v2205 = vadd.f32 0.0, %v2204
  %v2206 = vpop.f32.mrf.mxu0
  %v2207 = vpop.f32.mrf.mxu0
  %v2208 = vadd.f32 0.0, %v2207
  %v2209 = vpop.f32.mrf.mxu0
  %2210 = vmatprep.mubr.bf16.mxu0 0
  %2211 = vmatmul.mubr.bf16.gmra.mxu0 %v2052
  %v2212 = vpop.f32.mrf.mxu0
  %v2213 = vadd.f32 0.0, %v2212
  %v2214 = vpop.f32.mrf.mxu0
  %v2215 = vpop.f32.mrf.mxu0
  %v2216 = vadd.f32 0.0, %v2215
  %v2217 = vpop.f32.mrf.mxu0
  %2218 = vmatprep.mubr.bf16.mxu0 0
  %2219 = vmatmul.mubr.bf16.gmra.mxu0 %v2053
  %v2220 = vpop.f32.mrf.mxu0
  %v2221 = vadd.f32 0.0, %v2220
  %v2222 = vpop.f32.mrf.mxu0
  %v2223 = vpop.f32.mrf.mxu0
  %v2224 = vadd.f32 0.0, %v2223
  %v2225 = vpop.f32.mrf.mxu0
  %2226 = vmatprep.mubr.bf16.mxu0 0
  %2227 = vmatmul.mubr.bf16.gmra.mxu0 %v2054
  %v2228 = vpop.f32.mrf.mxu0
  %v2229 = vadd.f32 0.0, %v2228
  %v2230 = vpop.f32.mrf.mxu0
  %v2231 = vpop.f32.mrf.mxu0
  %v2232 = vadd.f32 0.0, %v2231
  %v2233 = vpop.f32.mrf.mxu0
  %2234 = vmatprep.mubr.bf16.mxu0 0
  %2235 = vmatmul.mubr.bf16.gmra.mxu0 %v2055
  %v2236 = vpop.f32.mrf.mxu0
  %v2237 = vadd.f32 0.0, %v2236
  %v2238 = vpop.f32.mrf.mxu0
  %v2239 = vpop.f32.mrf.mxu0
  %v2240 = vadd.f32 0.0, %v2239
  %v2241 = vpop.f32.mrf.mxu0
  %2242 = vmatprep.mubr.bf16.mxu0 0
  %2243 = vmatmul.mubr.bf16.gmra.mxu0 %v2056
  %v2244 = vpop.f32.mrf.mxu0
  %v2245 = vadd.f32 0.0, %v2244
  %v2246 = vpop.f32.mrf.mxu0
  %v2247 = vpop.f32.mrf.mxu0
  %v2248 = vadd.f32 0.0, %v2247
  %v2249 = vpop.f32.mrf.mxu0
  %2250 = vmatprep.mubr.bf16.mxu0 0
  %2251 = vmatmul.mubr.bf16.gmra.mxu0 %v2057
  %v2252 = vpop.f32.mrf.mxu0
  %v2253 = vadd.f32 0.0, %v2252
  %v2254 = vpop.f32.mrf.mxu0
  %v2255 = vpop.f32.mrf.mxu0
  %v2256 = vadd.f32 0.0, %v2255
  %v2257 = vpop.f32.mrf.mxu0
  %2258 = vmatprep.mubr.bf16.mxu0 0
  %2259 = vmatmul.mubr.bf16.gmra.mxu0 %v2058
  %v2260 = vpop.f32.mrf.mxu0
  %v2261 = vadd.f32 0.0, %v2260
  %v2262 = vpop.f32.mrf.mxu0
  %v2263 = vpop.f32.mrf.mxu0
  %v2264 = vadd.f32 0.0, %v2263
  %v2265 = vpop.f32.mrf.mxu0
  %2266 = vmatprep.mubr.bf16.mxu0 0
  %2267 = vmatmul.mubr.bf16.gmra.mxu0 %v2059
  %v2268 = vpop.f32.mrf.mxu0
  %v2269 = vadd.f32 0.0, %v2268
  %v2270 = vpop.f32.mrf.mxu0
  %v2271 = vpop.f32.mrf.mxu0
  %v2272 = vadd.f32 0.0, %v2271
  %v2273 = vpop.f32.mrf.mxu0
  %2274 = vmatprep.mubr.bf16.mxu0 0
  %2275 = vmatmul.mubr.bf16.gmra.mxu0 %v2060
  %v2276 = vpop.f32.mrf.mxu0
  %v2277 = vadd.f32 0.0, %v2276
  %v2278 = vpop.f32.mrf.mxu0
  %v2279 = vpop.f32.mrf.mxu0
  %v2280 = vadd.f32 0.0, %v2279
  %v2281 = vpop.f32.mrf.mxu0
  %2282 = vmatprep.mubr.bf16.mxu0 0
  %2283 = vmatmul.mubr.bf16.gmra.mxu0 %v2061
  %v2284 = vpop.f32.mrf.mxu0
  %v2285 = vadd.f32 0.0, %v2284
  %v2286 = vpop.f32.mrf.mxu0
  %v2287 = vpop.f32.mrf.mxu0
  %v2288 = vadd.f32 0.0, %v2287
  %v2289 = vpop.f32.mrf.mxu0
  %2290 = vmatprep.mubr.bf16.mxu0 0
  %2291 = vmatmul.mubr.bf16.gmra.mxu0 %v2062
  %v2292 = vpop.f32.mrf.mxu0
  %v2293 = vadd.f32 0.0, %v2292
  %v2294 = vpop.f32.mrf.mxu0
  %v2295 = vpop.f32.mrf.mxu0
  %v2296 = vadd.f32 0.0, %v2295
  %v2297 = vpop.f32.mrf.mxu0
  %2298 = vmatprep.mubr.bf16.mxu0 0
  %2299 = vmatmul.mubr.bf16.gmra.mxu0 %v2063
  %v2300 = vpop.f32.mrf.mxu0
  %v2301 = vadd.f32 0.0, %v2300
  %v2302 = vpop.f32.mrf.mxu0
  %v2303 = vpop.f32.mrf.mxu0
  %v2304 = vadd.f32 0.0, %v2303
  %v2305 = vpop.f32.mrf.mxu0
  %2306 = vmatprep.mubr.bf16.mxu0 0
  %2307 = vmatmul.mubr.bf16.gmra.mxu0 %v2064
  %v2308 = vpop.f32.mrf.mxu0
  %v2309 = vadd.f32 0.0, %v2308
  %v2310 = vpop.f32.mrf.mxu0
  %v2311 = vpop.f32.mrf.mxu0
  %v2312 = vadd.f32 0.0, %v2311
  %v2313 = vpop.f32.mrf.mxu0
  %2314 = vmatprep.mubr.bf16.mxu0 0
  %2315 = vmatmul.mubr.bf16.gmra.mxu0 %v2065
  %v2316 = vpop.f32.mrf.mxu0
  %v2317 = vadd.f32 0.0, %v2316
  %v2318 = vpop.f32.mrf.mxu0
  %v2319 = vpop.f32.mrf.mxu0
  %v2320 = vadd.f32 0.0, %v2319
  %v2321 = vpop.f32.mrf.mxu0
  %2322 = vmatprep.mubr.bf16.mxu0 0
  %2323 = vmatmul.mubr.bf16.gmra.mxu0 %v2066
  %v2324 = vpop.f32.mrf.mxu0
  %v2325 = vadd.f32 0.0, %v2324
  %v2326 = vpop.f32.mrf.mxu0
  %v2327 = vpop.f32.mrf.mxu0
  %v2328 = vadd.f32 0.0, %v2327
  %v2329 = vpop.f32.mrf.mxu0
  %2330 = vmatprep.mubr.bf16.mxu0 0
  %2331 = vmatmul.mubr.bf16.gmra.mxu0 %v2067
  %v2332 = vpop.f32.mrf.mxu0
  %v2333 = vadd.f32 0.0, %v2332
  %v2334 = vpop.f32.mrf.mxu0
  %v2335 = vpop.f32.mrf.mxu0
  %v2336 = vadd.f32 0.0, %v2335
  %v2337 = vpop.f32.mrf.mxu0
  %2338 = vmatprep.mubr.bf16.mxu0 0
  %2339 = vmatmul.mubr.bf16.gmra.mxu0 %v2068
  %v2340 = vpop.f32.mrf.mxu0
  %v2341 = vadd.f32 0.0, %v2340
  %v2342 = vpop.f32.mrf.mxu0
  %v2343 = vpop.f32.mrf.mxu0
  %v2344 = vadd.f32 0.0, %v2343
  %v2345 = vpop.f32.mrf.mxu0
  %2346 = vmatprep.mubr.bf16.mxu0 0
  %2347 = vmatmul.mubr.bf16.gmra.mxu0 %v2069
  %v2348 = vpop.f32.mrf.mxu0
  %v2349 = vadd.f32 0.0, %v2348
  %v2350 = vpop.f32.mrf.mxu0
  %v2351 = vpop.f32.mrf.mxu0
  %v2352 = vadd.f32 0.0, %v2351
  %v2353 = vpop.f32.mrf.mxu0
  %2354 = vmatprep.mubr.bf16.mxu0 0
  %2355 = vmatmul.mubr.bf16.gmra.mxu0 %v2070
  %v2356 = vpop.f32.mrf.mxu0
  %v2357 = vadd.f32 0.0, %v2356
  %v2358 = vpop.f32.mrf.mxu0
  %v2359 = vpop.f32.mrf.mxu0
  %v2360 = vadd.f32 0.0, %v2359
  %v2361 = vpop.f32.mrf.mxu0
  %2362 = vmatprep.mubr.bf16.mxu0 0
  %2363 = vmatmul.mubr.bf16.gmra.mxu0 %v2071
  %v2364 = vpop.f32.mrf.mxu0
  %v2365 = vadd.f32 0.0, %v2364
  %v2366 = vpop.f32.mrf.mxu0
  %v2367 = vpop.f32.mrf.mxu0
  %v2368 = vadd.f32 0.0, %v2367
  %v2369 = vpop.f32.mrf.mxu0
  %2370 = vmatprep.mubr.bf16.mxu0 0
  %2371 = vmatmul.mubr.bf16.gmra.mxu0 %v2072
  %v2372 = vpop.f32.mrf.mxu0
  %v2373 = vadd.f32 0.0, %v2372
  %v2374 = vpop.f32.mrf.mxu0
  %v2375 = vpop.f32.mrf.mxu0
  %v2376 = vadd.f32 0.0, %v2375
  %v2377 = vpop.f32.mrf.mxu0
  %2378 = vmatprep.mubr.bf16.mxu0 0
  %2379 = vmatmul.mubr.bf16.gmra.mxu0 %v2073
  %v2380 = vpop.f32.mrf.mxu0
  %v2381 = vadd.f32 0.0, %v2380
  %v2382 = vpop.f32.mrf.mxu0
  %v2383 = vpop.f32.mrf.mxu0
  %v2384 = vadd.f32 0.0, %v2383
  %v2385 = vpop.f32.mrf.mxu0
  %2386 = vmatprep.mubr.bf16.mxu0 0
  %2387 = vmatmul.mubr.bf16.gmra.mxu0 %v2074
  %v2388 = vpop.f32.mrf.mxu0
  %v2389 = vadd.f32 0.0, %v2388
  %v2390 = vpop.f32.mrf.mxu0
  %v2391 = vpop.f32.mrf.mxu0
  %v2392 = vadd.f32 0.0, %v2391
  %v2393 = vpop.f32.mrf.mxu0
  %2394 = vmatprep.mubr.bf16.mxu0 0
  %2395 = vmatmul.mubr.bf16.gmra.mxu0 %v2075
  %v2396 = vpop.f32.mrf.mxu0
  %v2397 = vadd.f32 0.0, %v2396
  %v2398 = vpop.f32.mrf.mxu0
  %v2399 = vpop.f32.mrf.mxu0
  %v2400 = vadd.f32 0.0, %v2399
  %v2401 = vpop.f32.mrf.mxu0
  %2402 = vmatprep.mubr.bf16.mxu0 0
  %2403 = vmatmul.mubr.bf16.gmra.mxu0 %v2076
  %v2404 = vpop.f32.mrf.mxu0
  %v2405 = vadd.f32 0.0, %v2404
  %v2406 = vpop.f32.mrf.mxu0
  %v2407 = vpop.f32.mrf.mxu0
  %v2408 = vadd.f32 0.0, %v2407
  %v2409 = vpop.f32.mrf.mxu0
  %2410 = vmatprep.mubr.bf16.mxu0 0
  %2411 = vmatmul.mubr.bf16.gmra.mxu0 %v2077
  %v2412 = vpop.f32.mrf.mxu0
  %v2413 = vadd.f32 0.0, %v2412
  %v2414 = vpop.f32.mrf.mxu0
  %v2415 = vpop.f32.mrf.mxu0
  %v2416 = vadd.f32 0.0, %v2415
  %v2417 = vpop.f32.mrf.mxu0
  %2418 = vmatprep.mubr.bf16.mxu0 0
  %2419 = vmatmul.mubr.bf16.gmra.mxu0 %v2078
  %v2420 = vpop.f32.mrf.mxu0
  %v2421 = vadd.f32 0.0, %v2420
  %v2422 = vpop.f32.mrf.mxu0
  %v2423 = vpop.f32.mrf.mxu0
  %v2424 = vadd.f32 0.0, %v2423
  %v2425 = vpop.f32.mrf.mxu0
  %2426 = vmatprep.mubr.bf16.mxu0 0
  %2427 = vmatmul.mubr.bf16.gmra.mxu0 %v2079
  %v2428 = vpop.f32.mrf.mxu0
  %v2429 = vadd.f32 0.0, %v2428
  %v2430 = vpop.f32.mrf.mxu0
  %v2431 = vpop.f32.mrf.mxu0
  %v2432 = vadd.f32 0.0, %v2431
  %v2433 = vpop.f32.mrf.mxu0
  %2434 = vmatprep.mubr.bf16.mxu0 0
  %2435 = vmatmul.mubr.bf16.gmra.mxu0 %v2080
  %v2436 = vpop.f32.mrf.mxu0
  %v2437 = vadd.f32 0.0, %v2436
  %v2438 = vpop.f32.mrf.mxu0
  %v2439 = vpop.f32.mrf.mxu0
  %v2440 = vadd.f32 0.0, %v2439
  %v2441 = vpop.f32.mrf.mxu0
  %2442 = vmatprep.mubr.bf16.mxu0 0
  %2443 = vmatmul.mubr.bf16.gmra.mxu0 %v2081
  %v2444 = vpop.f32.mrf.mxu0
  %v2445 = vadd.f32 0.0, %v2444
  %v2446 = vpop.f32.mrf.mxu0
  %v2447 = vpop.f32.mrf.mxu0
  %v2448 = vadd.f32 0.0, %v2447
  %v2449 = vpop.f32.mrf.mxu0
  %2450 = vdwg.mxu0
  %v2451 = vadd.f32 %v610, %v613
  %v2452 = vadd.f32 %v2451, %v618
  %v2453 = vadd.f32 %v2452, %v621
  %v2454 = vadd.f32 %v2453, %v626
  %v2455 = vadd.f32 %v2454, %v629
  %v2456 = vadd.f32 %v2455, %v634
  %v2457 = vadd.f32 %v2456, %v637
  %v2458 = vadd.f32 %v2457, %v642
  %v2459 = vadd.f32 %v2458, %v645
  %v2460 = vadd.f32 %v2459, %v650
  %v2461 = vadd.f32 %v2460, %v653
  %v2462 = vadd.f32 %v2461, %v658
  %v2463 = vadd.f32 %v2462, %v661
  %v2464 = vadd.f32 %v2463, %v666
  %v2465 = vadd.f32 %v2464, %v669
  %v2466 = vadd.f32 %v2465, %v674
  %v2467 = vadd.f32 %v2466, %v677
  %v2468 = vadd.f32 %v2467, %v682
  %v2469 = vadd.f32 %v2468, %v685
  %v2470 = vadd.f32 %v2469, %v690
  %v2471 = vadd.f32 %v2470, %v693
  %v2472 = vadd.f32 %v2471, %v698
  %v2473 = vadd.f32 %v2472, %v701
  %v2474 = vadd.f32 %v2473, %v706
  %v2475 = vadd.f32 %v2474, %v709
  %v2476 = vadd.f32 %v2475, %v714
  %v2477 = vadd.f32 %v2476, %v717
  %v2478 = vadd.f32 %v2477, %v722
  %v2479 = vadd.f32 %v2478, %v725
  %v2480 = vadd.f32 %v2479, %v730
  %v2481 = vadd.f32 %v2480, %v733
  %v2482 = vadd.f32 %v2481, %v738
  %v2483 = vadd.f32 %v2482, %v741
  %v2484 = vadd.f32 %v2483, %v746
  %v2485 = vadd.f32 %v2484, %v749
  %v2486 = vadd.f32 %v2485, %v754
  %v2487 = vadd.f32 %v2486, %v757
  %v2488 = vadd.f32 %v2487, %v762
  %v2489 = vadd.f32 %v2488, %v765
  %v2490 = vadd.f32 %v2489, %v770
  %v2491 = vadd.f32 %v2490, %v773
  %v2492 = vadd.f32 %v2491, %v778
  %v2493 = vadd.f32 %v2492, %v781
  %v2494 = vadd.f32 %v2493, %v786
  %v2495 = vadd.f32 %v2494, %v789
  %v2496 = vadd.f32 %v2495, %v794
  %v2497 = vadd.f32 %v2496, %v797
  %v2498 = vadd.f32 %v2497, %v802
  %v2499 = vadd.f32 %v2498, %v805
  %v2500 = vadd.f32 %v2499, %v810
  %v2501 = vadd.f32 %v2500, %v813
  %v2502 = vadd.f32 %v2501, %v818
  %v2503 = vadd.f32 %v2502, %v821
  %v2504 = vadd.f32 %v2503, %v826
  %v2505 = vadd.f32 %v2504, %v829
  %v2506 = vadd.f32 %v2505, %v834
  %v2507 = vadd.f32 %v2506, %v837
  %v2508 = vadd.f32 %v2507, %v842
  %v2509 = vadd.f32 %v2508, %v845
  %v2510 = vadd.f32 %v2509, %v850
  %v2511 = vadd.f32 %v2510, %v853
  %v2512 = vadd.f32 %v2511, %v858
  %v2513 = vadd.f32 %v2512, %v861
  %v2514 = vrot.slane %v2513, 4
  %v2515 = vadd.f32 %v2513, %v2514
  %v2516 = vrot.slane %v2515, 2
  %v2517 = vadd.f32 %v2515, %v2516
  %v2518 = vrot.slane %v2517, 1
  %v2519 = vadd.f32 %v2517, %v2518
  %v2520 = vadd.f32 %v1139, %v1142
  %v2521 = vadd.f32 %v2520, %v1147
  %v2522 = vadd.f32 %v2521, %v1150
  %v2523 = vadd.f32 %v2522, %v1155
  %v2524 = vadd.f32 %v2523, %v1158
  %v2525 = vadd.f32 %v2524, %v1163
  %v2526 = vadd.f32 %v2525, %v1166
  %v2527 = vadd.f32 %v2526, %v1171
  %v2528 = vadd.f32 %v2527, %v1174
  %v2529 = vadd.f32 %v2528, %v1179
  %v2530 = vadd.f32 %v2529, %v1182
  %v2531 = vadd.f32 %v2530, %v1187
  %v2532 = vadd.f32 %v2531, %v1190
  %v2533 = vadd.f32 %v2532, %v1195
  %v2534 = vadd.f32 %v2533, %v1198
  %v2535 = vadd.f32 %v2534, %v1203
  %v2536 = vadd.f32 %v2535, %v1206
  %v2537 = vadd.f32 %v2536, %v1211
  %v2538 = vadd.f32 %v2537, %v1214
  %v2539 = vadd.f32 %v2538, %v1219
  %v2540 = vadd.f32 %v2539, %v1222
  %v2541 = vadd.f32 %v2540, %v1227
  %v2542 = vadd.f32 %v2541, %v1230
  %v2543 = vadd.f32 %v2542, %v1235
  %v2544 = vadd.f32 %v2543, %v1238
  %v2545 = vadd.f32 %v2544, %v1243
  %v2546 = vadd.f32 %v2545, %v1246
  %v2547 = vadd.f32 %v2546, %v1251
  %v2548 = vadd.f32 %v2547, %v1254
  %v2549 = vadd.f32 %v2548, %v1259
  %v2550 = vadd.f32 %v2549, %v1262
  %v2551 = vadd.f32 %v2550, %v1267
  %v2552 = vadd.f32 %v2551, %v1270
  %v2553 = vadd.f32 %v2552, %v1275
  %v2554 = vadd.f32 %v2553, %v1278
  %v2555 = vadd.f32 %v2554, %v1283
  %v2556 = vadd.f32 %v2555, %v1286
  %v2557 = vadd.f32 %v2556, %v1291
  %v2558 = vadd.f32 %v2557, %v1294
  %v2559 = vadd.f32 %v2558, %v1299
  %v2560 = vadd.f32 %v2559, %v1302
  %v2561 = vadd.f32 %v2560, %v1307
  %v2562 = vadd.f32 %v2561, %v1310
  %v2563 = vadd.f32 %v2562, %v1315
  %v2564 = vadd.f32 %v2563, %v1318
  %v2565 = vadd.f32 %v2564, %v1323
  %v2566 = vadd.f32 %v2565, %v1326
  %v2567 = vadd.f32 %v2566, %v1331
  %v2568 = vadd.f32 %v2567, %v1334
  %v2569 = vadd.f32 %v2568, %v1339
  %v2570 = vadd.f32 %v2569, %v1342
  %v2571 = vadd.f32 %v2570, %v1347
  %v2572 = vadd.f32 %v2571, %v1350
  %v2573 = vadd.f32 %v2572, %v1355
  %v2574 = vadd.f32 %v2573, %v1358
  %v2575 = vadd.f32 %v2574, %v1363
  %v2576 = vadd.f32 %v2575, %v1366
  %v2577 = vadd.f32 %v2576, %v1371
  %v2578 = vadd.f32 %v2577, %v1374
  %v2579 = vadd.f32 %v2578, %v1379
  %v2580 = vadd.f32 %v2579, %v1382
  %v2581 = vadd.f32 %v2580, %v1387
  %v2582 = vadd.f32 %v2581, %v1390
  %v2583 = vrot.slane %v2582, 4
  %v2584 = vadd.f32 %v2582, %v2583
  %v2585 = vrot.slane %v2584, 2
  %v2586 = vadd.f32 %v2584, %v2585
  %v2587 = vrot.slane %v2586, 1
  %v2588 = vadd.f32 %v2586, %v2587
  %v2589 = vadd.f32 %v1668, %v1671
  %v2590 = vadd.f32 %v2589, %v1676
  %v2591 = vadd.f32 %v2590, %v1679
  %v2592 = vadd.f32 %v2591, %v1684
  %v2593 = vadd.f32 %v2592, %v1687
  %v2594 = vadd.f32 %v2593, %v1692
  %v2595 = vadd.f32 %v2594, %v1695
  %v2596 = vadd.f32 %v2595, %v1700
  %v2597 = vadd.f32 %v2596, %v1703
  %v2598 = vadd.f32 %v2597, %v1708
  %v2599 = vadd.f32 %v2598, %v1711
  %v2600 = vadd.f32 %v2599, %v1716
  %v2601 = vadd.f32 %v2600, %v1719
  %v2602 = vadd.f32 %v2601, %v1724
  %v2603 = vadd.f32 %v2602, %v1727
  %v2604 = vadd.f32 %v2603, %v1732
  %v2605 = vadd.f32 %v2604, %v1735
  %v2606 = vadd.f32 %v2605, %v1740
  %v2607 = vadd.f32 %v2606, %v1743
  %v2608 = vadd.f32 %v2607, %v1748
  %v2609 = vadd.f32 %v2608, %v1751
  %v2610 = vadd.f32 %v2609, %v1756
  %v2611 = vadd.f32 %v2610, %v1759
  %v2612 = vadd.f32 %v2611, %v1764
  %v2613 = vadd.f32 %v2612, %v1767
  %v2614 = vadd.f32 %v2613, %v1772
  %v2615 = vadd.f32 %v2614, %v1775
  %v2616 = vadd.f32 %v2615, %v1780
  %v2617 = vadd.f32 %v2616, %v1783
  %v2618 = vadd.f32 %v2617, %v1788
  %v2619 = vadd.f32 %v2618, %v1791
  %v2620 = vadd.f32 %v2619, %v1796
  %v2621 = vadd.f32 %v2620, %v1799
  %v2622 = vadd.f32 %v2621, %v1804
  %v2623 = vadd.f32 %v2622, %v1807
  %v2624 = vadd.f32 %v2623, %v1812
  %v2625 = vadd.f32 %v2624, %v1815
  %v2626 = vadd.f32 %v2625, %v1820
  %v2627 = vadd.f32 %v2626, %v1823
  %v2628 = vadd.f32 %v2627, %v1828
  %v2629 = vadd.f32 %v2628, %v1831
  %v2630 = vadd.f32 %v2629, %v1836
  %v2631 = vadd.f32 %v2630, %v1839
  %v2632 = vadd.f32 %v2631, %v1844
  %v2633 = vadd.f32 %v2632, %v1847
  %v2634 = vadd.f32 %v2633, %v1852
  %v2635 = vadd.f32 %v2634, %v1855
  %v2636 = vadd.f32 %v2635, %v1860
  %v2637 = vadd.f32 %v2636, %v1863
  %v2638 = vadd.f32 %v2637, %v1868
  %v2639 = vadd.f32 %v2638, %v1871
  %v2640 = vadd.f32 %v2639, %v1876
  %v2641 = vadd.f32 %v2640, %v1879
  %v2642 = vadd.f32 %v2641, %v1884
  %v2643 = vadd.f32 %v2642, %v1887
  %v2644 = vadd.f32 %v2643, %v1892
  %v2645 = vadd.f32 %v2644, %v1895
  %v2646 = vadd.f32 %v2645, %v1900
  %v2647 = vadd.f32 %v2646, %v1903
  %v2648 = vadd.f32 %v2647, %v1908
  %v2649 = vadd.f32 %v2648, %v1911
  %v2650 = vadd.f32 %v2649, %v1916
  %v2651 = vadd.f32 %v2650, %v1919
  %v2652 = vrot.slane %v2651, 4
  %v2653 = vadd.f32 %v2651, %v2652
  %v2654 = vrot.slane %v2653, 2
  %v2655 = vadd.f32 %v2653, %v2654
  %v2656 = vrot.slane %v2655, 1
  %v2657 = vadd.f32 %v2655, %v2656
  %v2658 = vadd.f32 %v2197, %v2200
  %v2659 = vadd.f32 %v2658, %v2205
  %v2660 = vadd.f32 %v2659, %v2208
  %v2661 = vadd.f32 %v2660, %v2213
  %v2662 = vadd.f32 %v2661, %v2216
  %v2663 = vadd.f32 %v2662, %v2221
  %v2664 = vadd.f32 %v2663, %v2224
  %v2665 = vadd.f32 %v2664, %v2229
  %v2666 = vadd.f32 %v2665, %v2232
  %v2667 = vadd.f32 %v2666, %v2237
  %v2668 = vadd.f32 %v2667, %v2240
  %v2669 = vadd.f32 %v2668, %v2245
  %v2670 = vadd.f32 %v2669, %v2248
  %v2671 = vadd.f32 %v2670, %v2253
  %v2672 = vadd.f32 %v2671, %v2256
  %v2673 = vadd.f32 %v2672, %v2261
  %v2674 = vadd.f32 %v2673, %v2264
  %v2675 = vadd.f32 %v2674, %v2269
  %v2676 = vadd.f32 %v2675, %v2272
  %v2677 = vadd.f32 %v2676, %v2277
  %v2678 = vadd.f32 %v2677, %v2280
  %v2679 = vadd.f32 %v2678, %v2285
  %v2680 = vadd.f32 %v2679, %v2288
  %v2681 = vadd.f32 %v2680, %v2293
  %v2682 = vadd.f32 %v2681, %v2296
  %v2683 = vadd.f32 %v2682, %v2301
  %v2684 = vadd.f32 %v2683, %v2304
  %v2685 = vadd.f32 %v2684, %v2309
  %v2686 = vadd.f32 %v2685, %v2312
  %v2687 = vadd.f32 %v2686, %v2317
  %v2688 = vadd.f32 %v2687, %v2320
  %v2689 = vadd.f32 %v2688, %v2325
  %v2690 = vadd.f32 %v2689, %v2328
  %v2691 = vadd.f32 %v2690, %v2333
  %v2692 = vadd.f32 %v2691, %v2336
  %v2693 = vadd.f32 %v2692, %v2341
  %v2694 = vadd.f32 %v2693, %v2344
  %v2695 = vadd.f32 %v2694, %v2349
  %v2696 = vadd.f32 %v2695, %v2352
  %v2697 = vadd.f32 %v2696, %v2357
  %v2698 = vadd.f32 %v2697, %v2360
  %v2699 = vadd.f32 %v2698, %v2365
  %v2700 = vadd.f32 %v2699, %v2368
  %v2701 = vadd.f32 %v2700, %v2373
  %v2702 = vadd.f32 %v2701, %v2376
  %v2703 = vadd.f32 %v2702, %v2381
  %v2704 = vadd.f32 %v2703, %v2384
  %v2705 = vadd.f32 %v2704, %v2389
  %v2706 = vadd.f32 %v2705, %v2392
  %v2707 = vadd.f32 %v2706, %v2397
  %v2708 = vadd.f32 %v2707, %v2400
  %v2709 = vadd.f32 %v2708, %v2405
  %v2710 = vadd.f32 %v2709, %v2408
  %v2711 = vadd.f32 %v2710, %v2413
  %v2712 = vadd.f32 %v2711, %v2416
  %v2713 = vadd.f32 %v2712, %v2421
  %v2714 = vadd.f32 %v2713, %v2424
  %v2715 = vadd.f32 %v2714, %v2429
  %v2716 = vadd.f32 %v2715, %v2432
  %v2717 = vadd.f32 %v2716, %v2437
  %v2718 = vadd.f32 %v2717, %v2440
  %v2719 = vadd.f32 %v2718, %v2445
  %v2720 = vadd.f32 %v2719, %v2448
  %v2721 = vrot.slane %v2720, 4
  %v2722 = vadd.f32 %v2720, %v2721
  %v2723 = vrot.slane %v2722, 2
  %v2724 = vadd.f32 %v2722, %v2723
  %v2725 = vrot.slane %v2724, 1
  %v2726 = vadd.f32 %v2724, %v2725
  %v2727 = vadd.f32 %v2519, %v2588
  %v2728 = vadd.f32 %v2727, %v2657
  %v2729 = vadd.f32 %v2728, %v2726
  %v2730 = vmul.f32 %v610, %v610
  %v2731 = vmul.f32 %v613, %v613
  %v2732 = vmul.f32 %v618, %v618
  %v2733 = vmul.f32 %v621, %v621
  %v2734 = vmul.f32 %v626, %v626
  %v2735 = vmul.f32 %v629, %v629
  %v2736 = vmul.f32 %v634, %v634
  %v2737 = vmul.f32 %v637, %v637
  %v2738 = vmul.f32 %v642, %v642
  %v2739 = vmul.f32 %v645, %v645
  %v2740 = vmul.f32 %v650, %v650
  %v2741 = vmul.f32 %v653, %v653
  %v2742 = vmul.f32 %v658, %v658
  %v2743 = vmul.f32 %v661, %v661
  %v2744 = vmul.f32 %v666, %v666
  %v2745 = vmul.f32 %v669, %v669
  %v2746 = vmul.f32 %v674, %v674
  %v2747 = vmul.f32 %v677, %v677
  %v2748 = vmul.f32 %v682, %v682
  %v2749 = vmul.f32 %v685, %v685
  %v2750 = vmul.f32 %v690, %v690
  %v2751 = vmul.f32 %v693, %v693
  %v2752 = vmul.f32 %v698, %v698
  %v2753 = vmul.f32 %v701, %v701
  %v2754 = vmul.f32 %v706, %v706
  %v2755 = vmul.f32 %v709, %v709
  %v2756 = vmul.f32 %v714, %v714
  %v2757 = vmul.f32 %v717, %v717
  %v2758 = vmul.f32 %v722, %v722
  %v2759 = vmul.f32 %v725, %v725
  %v2760 = vmul.f32 %v730, %v730
  %v2761 = vmul.f32 %v733, %v733
  %v2762 = vmul.f32 %v738, %v738
  %v2763 = vmul.f32 %v741, %v741
  %v2764 = vmul.f32 %v746, %v746
  %v2765 = vmul.f32 %v749, %v749
  %v2766 = vmul.f32 %v754, %v754
  %v2767 = vmul.f32 %v757, %v757
  %v2768 = vmul.f32 %v762, %v762
  %v2769 = vmul.f32 %v765, %v765
  %v2770 = vmul.f32 %v770, %v770
  %v2771 = vmul.f32 %v773, %v773
  %v2772 = vmul.f32 %v778, %v778
  %v2773 = vmul.f32 %v781, %v781
  %v2774 = vmul.f32 %v786, %v786
  %v2775 = vmul.f32 %v789, %v789
  %v2776 = vmul.f32 %v794, %v794
  %v2777 = vmul.f32 %v797, %v797
  %v2778 = vmul.f32 %v802, %v802
  %v2779 = vmul.f32 %v805, %v805
  %v2780 = vmul.f32 %v810, %v810
  %v2781 = vmul.f32 %v813, %v813
  %v2782 = vmul.f32 %v818, %v818
  %v2783 = vmul.f32 %v821, %v821
  %v2784 = vmul.f32 %v826, %v826
  %v2785 = vmul.f32 %v829, %v829
  %v2786 = vmul.f32 %v834, %v834
  %v2787 = vmul.f32 %v837, %v837
  %v2788 = vmul.f32 %v842, %v842
  %v2789 = vmul.f32 %v845, %v845
  %v2790 = vmul.f32 %v850, %v850
  %v2791 = vmul.f32 %v853, %v853
  %v2792 = vmul.f32 %v858, %v858
  %v2793 = vmul.f32 %v861, %v861
  %v2794 = vmul.f32 %v1139, %v1139
  %v2795 = vmul.f32 %v1142, %v1142
  %v2796 = vmul.f32 %v1147, %v1147
  %v2797 = vmul.f32 %v1150, %v1150
  %v2798 = vmul.f32 %v1155, %v1155
  %v2799 = vmul.f32 %v1158, %v1158
  %v2800 = vmul.f32 %v1163, %v1163
  %v2801 = vmul.f32 %v1166, %v1166
  %v2802 = vmul.f32 %v1171, %v1171
  %v2803 = vmul.f32 %v1174, %v1174
  %v2804 = vmul.f32 %v1179, %v1179
  %v2805 = vmul.f32 %v1182, %v1182
  %v2806 = vmul.f32 %v1187, %v1187
  %v2807 = vmul.f32 %v1190, %v1190
  %v2808 = vmul.f32 %v1195, %v1195
  %v2809 = vmul.f32 %v1198, %v1198
  %v2810 = vmul.f32 %v1203, %v1203
  %v2811 = vmul.f32 %v1206, %v1206
  %v2812 = vmul.f32 %v1211, %v1211
  %v2813 = vmul.f32 %v1214, %v1214
  %v2814 = vmul.f32 %v1219, %v1219
  %v2815 = vmul.f32 %v1222, %v1222
  %v2816 = vmul.f32 %v1227, %v1227
  %v2817 = vmul.f32 %v1230, %v1230
  %v2818 = vmul.f32 %v1235, %v1235
  %v2819 = vmul.f32 %v1238, %v1238
  %v2820 = vmul.f32 %v1243, %v1243
  %v2821 = vmul.f32 %v1246, %v1246
  %v2822 = vmul.f32 %v1251, %v1251
  %v2823 = vmul.f32 %v1254, %v1254
  %v2824 = vmul.f32 %v1259, %v1259
  %v2825 = vmul.f32 %v1262, %v1262
  %v2826 = vmul.f32 %v1267, %v1267
  %v2827 = vmul.f32 %v1270, %v1270
  %v2828 = vmul.f32 %v1275, %v1275
  %v2829 = vmul.f32 %v1278, %v1278
  %v2830 = vmul.f32 %v1283, %v1283
  %v2831 = vmul.f32 %v1286, %v1286
  %v2832 = vmul.f32 %v1291, %v1291
  %v2833 = vmul.f32 %v1294, %v1294
  %v2834 = vmul.f32 %v1299, %v1299
  %v2835 = vmul.f32 %v1302, %v1302
  %v2836 = vmul.f32 %v1307, %v1307
  %v2837 = vmul.f32 %v1310, %v1310
  %v2838 = vmul.f32 %v1315, %v1315
  %v2839 = vmul.f32 %v1318, %v1318
  %v2840 = vmul.f32 %v1323, %v1323
  %v2841 = vmul.f32 %v1326, %v1326
  %v2842 = vmul.f32 %v1331, %v1331
  %v2843 = vmul.f32 %v1334, %v1334
  %v2844 = vmul.f32 %v1339, %v1339
  %v2845 = vmul.f32 %v1342, %v1342
  %v2846 = vmul.f32 %v1347, %v1347
  %v2847 = vmul.f32 %v1350, %v1350
  %v2848 = vmul.f32 %v1355, %v1355
  %v2849 = vmul.f32 %v1358, %v1358
  %v2850 = vmul.f32 %v1363, %v1363
  %v2851 = vmul.f32 %v1366, %v1366
  %v2852 = vmul.f32 %v1371, %v1371
  %v2853 = vmul.f32 %v1374, %v1374
  %v2854 = vmul.f32 %v1379, %v1379
  %v2855 = vmul.f32 %v1382, %v1382
  %v2856 = vmul.f32 %v1387, %v1387
  %v2857 = vmul.f32 %v1390, %v1390
  %v2858 = vmul.f32 %v1668, %v1668
  %v2859 = vmul.f32 %v1671, %v1671
  %v2860 = vmul.f32 %v1676, %v1676
  %v2861 = vmul.f32 %v1679, %v1679
  %v2862 = vmul.f32 %v1684, %v1684
  %v2863 = vmul.f32 %v1687, %v1687
  %v2864 = vmul.f32 %v1692, %v1692
  %v2865 = vmul.f32 %v1695, %v1695
  %v2866 = vmul.f32 %v1700, %v1700
  %v2867 = vmul.f32 %v1703, %v1703
  %v2868 = vmul.f32 %v1708, %v1708
  %v2869 = vmul.f32 %v1711, %v1711
  %v2870 = vmul.f32 %v1716, %v1716
  %v2871 = vmul.f32 %v1719, %v1719
  %v2872 = vmul.f32 %v1724, %v1724
  %v2873 = vmul.f32 %v1727, %v1727
  %v2874 = vmul.f32 %v1732, %v1732
  %v2875 = vmul.f32 %v1735, %v1735
  %v2876 = vmul.f32 %v1740, %v1740
  %v2877 = vmul.f32 %v1743, %v1743
  %v2878 = vmul.f32 %v1748, %v1748
  %v2879 = vmul.f32 %v1751, %v1751
  %v2880 = vmul.f32 %v1756, %v1756
  %v2881 = vmul.f32 %v1759, %v1759
  %v2882 = vmul.f32 %v1764, %v1764
  %v2883 = vmul.f32 %v1767, %v1767
  %v2884 = vmul.f32 %v1772, %v1772
  %v2885 = vmul.f32 %v1775, %v1775
  %v2886 = vmul.f32 %v1780, %v1780
  %v2887 = vmul.f32 %v1783, %v1783
  %v2888 = vmul.f32 %v1788, %v1788
  %v2889 = vmul.f32 %v1791, %v1791
  %v2890 = vmul.f32 %v1796, %v1796
  %v2891 = vmul.f32 %v1799, %v1799
  %v2892 = vmul.f32 %v1804, %v1804
  %v2893 = vmul.f32 %v1807, %v1807
  %v2894 = vmul.f32 %v1812, %v1812
  %v2895 = vmul.f32 %v1815, %v1815
  %v2896 = vmul.f32 %v1820, %v1820
  %v2897 = vmul.f32 %v1823, %v1823
  %v2898 = vmul.f32 %v1828, %v1828
  %v2899 = vmul.f32 %v1831, %v1831
  %v2900 = vmul.f32 %v1836, %v1836
  %v2901 = vmul.f32 %v1839, %v1839
  %v2902 = vmul.f32 %v1844, %v1844
  %v2903 = vmul.f32 %v1847, %v1847
  %v2904 = vmul.f32 %v1852, %v1852
  %v2905 = vmul.f32 %v1855, %v1855
  %v2906 = vmul.f32 %v1860, %v1860
  %v2907 = vmul.f32 %v1863, %v1863
  %v2908 = vmul.f32 %v1868, %v1868
  %v2909 = vmul.f32 %v1871, %v1871
  %v2910 = vmul.f32 %v1876, %v1876
  %v2911 = vmul.f32 %v1879, %v1879
  %v2912 = vmul.f32 %v1884, %v1884
  %v2913 = vmul.f32 %v1887, %v1887
  %v2914 = vmul.f32 %v1892, %v1892
  %v2915 = vmul.f32 %v1895, %v1895
  %v2916 = vmul.f32 %v1900, %v1900
  %v2917 = vmul.f32 %v1903, %v1903
  %v2918 = vmul.f32 %v1908, %v1908
  %v2919 = vmul.f32 %v1911, %v1911
  %v2920 = vmul.f32 %v1916, %v1916
  %v2921 = vmul.f32 %v1919, %v1919
  %v2922 = vmul.f32 %v2197, %v2197
  %v2923 = vmul.f32 %v2200, %v2200
  %v2924 = vmul.f32 %v2205, %v2205
  %v2925 = vmul.f32 %v2208, %v2208
  %v2926 = vmul.f32 %v2213, %v2213
  %v2927 = vmul.f32 %v2216, %v2216
  %v2928 = vmul.f32 %v2221, %v2221
  %v2929 = vmul.f32 %v2224, %v2224
  %v2930 = vmul.f32 %v2229, %v2229
  %v2931 = vmul.f32 %v2232, %v2232
  %v2932 = vmul.f32 %v2237, %v2237
  %v2933 = vmul.f32 %v2240, %v2240
  %v2934 = vmul.f32 %v2245, %v2245
  %v2935 = vmul.f32 %v2248, %v2248
  %v2936 = vmul.f32 %v2253, %v2253
  %v2937 = vmul.f32 %v2256, %v2256
  %v2938 = vmul.f32 %v2261, %v2261
  %v2939 = vmul.f32 %v2264, %v2264
  %v2940 = vmul.f32 %v2269, %v2269
  %v2941 = vmul.f32 %v2272, %v2272
  %v2942 = vmul.f32 %v2277, %v2277
  %v2943 = vmul.f32 %v2280, %v2280
  %v2944 = vmul.f32 %v2285, %v2285
  %v2945 = vmul.f32 %v2288, %v2288
  %v2946 = vmul.f32 %v2293, %v2293
  %v2947 = vmul.f32 %v2296, %v2296
  %v2948 = vmul.f32 %v2301, %v2301
  %v2949 = vmul.f32 %v2304, %v2304
  %v2950 = vmul.f32 %v2309, %v2309
  %v2951 = vmul.f32 %v2312, %v2312
  %v2952 = vmul.f32 %v2317, %v2317
  %v2953 = vmul.f32 %v2320, %v2320
  %v2954 = vmul.f32 %v2325, %v2325
  %v2955 = vmul.f32 %v2328, %v2328
  %v2956 = vmul.f32 %v2333, %v2333
  %v2957 = vmul.f32 %v2336, %v2336
  %v2958 = vmul.f32 %v2341, %v2341
  %v2959 = vmul.f32 %v2344, %v2344
  %v2960 = vmul.f32 %v2349, %v2349
  %v2961 = vmul.f32 %v2352, %v2352
  %v2962 = vmul.f32 %v2357, %v2357
  %v2963 = vmul.f32 %v2360, %v2360
  %v2964 = vmul.f32 %v2365, %v2365
  %v2965 = vmul.f32 %v2368, %v2368
  %v2966 = vmul.f32 %v2373, %v2373
  %v2967 = vmul.f32 %v2376, %v2376
  %v2968 = vmul.f32 %v2381, %v2381
  %v2969 = vmul.f32 %v2384, %v2384
  %v2970 = vmul.f32 %v2389, %v2389
  %v2971 = vmul.f32 %v2392, %v2392
  %v2972 = vmul.f32 %v2397, %v2397
  %v2973 = vmul.f32 %v2400, %v2400
  %v2974 = vmul.f32 %v2405, %v2405
  %v2975 = vmul.f32 %v2408, %v2408
  %v2976 = vmul.f32 %v2413, %v2413
  %v2977 = vmul.f32 %v2416, %v2416
  %v2978 = vmul.f32 %v2421, %v2421
  %v2979 = vmul.f32 %v2424, %v2424
  %v2980 = vmul.f32 %v2429, %v2429
  %v2981 = vmul.f32 %v2432, %v2432
  %v2982 = vmul.f32 %v2437, %v2437
  %v2983 = vmul.f32 %v2440, %v2440
  %v2984 = vmul.f32 %v2445, %v2445
  %v2985 = vmul.f32 %v2448, %v2448
  %v2986 = vadd.f32 %v2730, %v2731
  %v2987 = vadd.f32 %v2986, %v2732
  %v2988 = vadd.f32 %v2987, %v2733
  %v2989 = vadd.f32 %v2988, %v2734
  %v2990 = vadd.f32 %v2989, %v2735
  %v2991 = vadd.f32 %v2990, %v2736
  %v2992 = vadd.f32 %v2991, %v2737
  %v2993 = vadd.f32 %v2992, %v2738
  %v2994 = vadd.f32 %v2993, %v2739
  %v2995 = vadd.f32 %v2994, %v2740
  %v2996 = vadd.f32 %v2995, %v2741
  %v2997 = vadd.f32 %v2996, %v2742
  %v2998 = vadd.f32 %v2997, %v2743
  %v2999 = vadd.f32 %v2998, %v2744
  %v3000 = vadd.f32 %v2999, %v2745
  %v3001 = vadd.f32 %v3000, %v2746
  %v3002 = vadd.f32 %v3001, %v2747
  %v3003 = vadd.f32 %v3002, %v2748
  %v3004 = vadd.f32 %v3003, %v2749
  %v3005 = vadd.f32 %v3004, %v2750
  %v3006 = vadd.f32 %v3005, %v2751
  %v3007 = vadd.f32 %v3006, %v2752
  %v3008 = vadd.f32 %v3007, %v2753
  %v3009 = vadd.f32 %v3008, %v2754
  %v3010 = vadd.f32 %v3009, %v2755
  %v3011 = vadd.f32 %v3010, %v2756
  %v3012 = vadd.f32 %v3011, %v2757
  %v3013 = vadd.f32 %v3012, %v2758
  %v3014 = vadd.f32 %v3013, %v2759
  %v3015 = vadd.f32 %v3014, %v2760
  %v3016 = vadd.f32 %v3015, %v2761
  %v3017 = vadd.f32 %v3016, %v2762
  %v3018 = vadd.f32 %v3017, %v2763
  %v3019 = vadd.f32 %v3018, %v2764
  %v3020 = vadd.f32 %v3019, %v2765
  %v3021 = vadd.f32 %v3020, %v2766
  %v3022 = vadd.f32 %v3021, %v2767
  %v3023 = vadd.f32 %v3022, %v2768
  %v3024 = vadd.f32 %v3023, %v2769
  %v3025 = vadd.f32 %v3024, %v2770
  %v3026 = vadd.f32 %v3025, %v2771
  %v3027 = vadd.f32 %v3026, %v2772
  %v3028 = vadd.f32 %v3027, %v2773
  %v3029 = vadd.f32 %v3028, %v2774
  %v3030 = vadd.f32 %v3029, %v2775
  %v3031 = vadd.f32 %v3030, %v2776
  %v3032 = vadd.f32 %v3031, %v2777
  %v3033 = vadd.f32 %v3032, %v2778
  %v3034 = vadd.f32 %v3033, %v2779
  %v3035 = vadd.f32 %v3034, %v2780
  %v3036 = vadd.f32 %v3035, %v2781
  %v3037 = vadd.f32 %v3036, %v2782
  %v3038 = vadd.f32 %v3037, %v2783
  %v3039 = vadd.f32 %v3038, %v2784
  %v3040 = vadd.f32 %v3039, %v2785
  %v3041 = vadd.f32 %v3040, %v2786
  %v3042 = vadd.f32 %v3041, %v2787
  %v3043 = vadd.f32 %v3042, %v2788
  %v3044 = vadd.f32 %v3043, %v2789
  %v3045 = vadd.f32 %v3044, %v2790
  %v3046 = vadd.f32 %v3045, %v2791
  %v3047 = vadd.f32 %v3046, %v2792
  %v3048 = vadd.f32 %v3047, %v2793
  %v3049 = vrot.slane %v3048, 4
  %v3050 = vadd.f32 %v3048, %v3049
  %v3051 = vrot.slane %v3050, 2
  %v3052 = vadd.f32 %v3050, %v3051
  %v3053 = vrot.slane %v3052, 1
  %v3054 = vadd.f32 %v3052, %v3053
  %v3055 = vadd.f32 %v2794, %v2795
  %v3056 = vadd.f32 %v3055, %v2796
  %v3057 = vadd.f32 %v3056, %v2797
  %v3058 = vadd.f32 %v3057, %v2798
  %v3059 = vadd.f32 %v3058, %v2799
  %v3060 = vadd.f32 %v3059, %v2800
  %v3061 = vadd.f32 %v3060, %v2801
  %v3062 = vadd.f32 %v3061, %v2802
  %v3063 = vadd.f32 %v3062, %v2803
  %v3064 = vadd.f32 %v3063, %v2804
  %v3065 = vadd.f32 %v3064, %v2805
  %v3066 = vadd.f32 %v3065, %v2806
  %v3067 = vadd.f32 %v3066, %v2807
  %v3068 = vadd.f32 %v3067, %v2808
  %v3069 = vadd.f32 %v3068, %v2809
  %v3070 = vadd.f32 %v3069, %v2810
  %v3071 = vadd.f32 %v3070, %v2811
  %v3072 = vadd.f32 %v3071, %v2812
  %v3073 = vadd.f32 %v3072, %v2813
  %v3074 = vadd.f32 %v3073, %v2814
  %v3075 = vadd.f32 %v3074, %v2815
  %v3076 = vadd.f32 %v3075, %v2816
  %v3077 = vadd.f32 %v3076, %v2817
  %v3078 = vadd.f32 %v3077, %v2818
  %v3079 = vadd.f32 %v3078, %v2819
  %v3080 = vadd.f32 %v3079, %v2820
  %v3081 = vadd.f32 %v3080, %v2821
  %v3082 = vadd.f32 %v3081, %v2822
  %v3083 = vadd.f32 %v3082, %v2823
  %v3084 = vadd.f32 %v3083, %v2824
  %v3085 = vadd.f32 %v3084, %v2825
  %v3086 = vadd.f32 %v3085, %v2826
  %v3087 = vadd.f32 %v3086, %v2827
  %v3088 = vadd.f32 %v3087, %v2828
  %v3089 = vadd.f32 %v3088, %v2829
  %v3090 = vadd.f32 %v3089, %v2830
  %v3091 = vadd.f32 %v3090, %v2831
  %v3092 = vadd.f32 %v3091, %v2832
  %v3093 = vadd.f32 %v3092, %v2833
  %v3094 = vadd.f32 %v3093, %v2834
  %v3095 = vadd.f32 %v3094, %v2835
  %v3096 = vadd.f32 %v3095, %v2836
  %v3097 = vadd.f32 %v3096, %v2837
  %v3098 = vadd.f32 %v3097, %v2838
  %v3099 = vadd.f32 %v3098, %v2839
  %v3100 = vadd.f32 %v3099, %v2840
  %v3101 = vadd.f32 %v3100, %v2841
  %v3102 = vadd.f32 %v3101, %v2842
  %v3103 = vadd.f32 %v3102, %v2843
  %v3104 = vadd.f32 %v3103, %v2844
  %v3105 = vadd.f32 %v3104, %v2845
  %v3106 = vadd.f32 %v3105, %v2846
  %v3107 = vadd.f32 %v3106, %v2847
  %v3108 = vadd.f32 %v3107, %v2848
  %v3109 = vadd.f32 %v3108, %v2849
  %v3110 = vadd.f32 %v3109, %v2850
  %v3111 = vadd.f32 %v3110, %v2851
  %v3112 = vadd.f32 %v3111, %v2852
  %v3113 = vadd.f32 %v3112, %v2853
  %v3114 = vadd.f32 %v3113, %v2854
  %v3115 = vadd.f32 %v3114, %v2855
  %v3116 = vadd.f32 %v3115, %v2856
  %v3117 = vadd.f32 %v3116, %v2857
  %v3118 = vrot.slane %v3117, 4
  %v3119 = vadd.f32 %v3117, %v3118
  %v3120 = vrot.slane %v3119, 2
  %v3121 = vadd.f32 %v3119, %v3120
  %v3122 = vrot.slane %v3121, 1
  %v3123 = vadd.f32 %v3121, %v3122
  %v3124 = vadd.f32 %v2858, %v2859
  %v3125 = vadd.f32 %v3124, %v2860
  %v3126 = vadd.f32 %v3125, %v2861
  %v3127 = vadd.f32 %v3126, %v2862
  %v3128 = vadd.f32 %v3127, %v2863
  %v3129 = vadd.f32 %v3128, %v2864
  %v3130 = vadd.f32 %v3129, %v2865
  %v3131 = vadd.f32 %v3130, %v2866
  %v3132 = vadd.f32 %v3131, %v2867
  %v3133 = vadd.f32 %v3132, %v2868
  %v3134 = vadd.f32 %v3133, %v2869
  %v3135 = vadd.f32 %v3134, %v2870
  %v3136 = vadd.f32 %v3135, %v2871
  %v3137 = vadd.f32 %v3136, %v2872
  %v3138 = vadd.f32 %v3137, %v2873
  %v3139 = vadd.f32 %v3138, %v2874
  %v3140 = vadd.f32 %v3139, %v2875
  %v3141 = vadd.f32 %v3140, %v2876
  %v3142 = vadd.f32 %v3141, %v2877
  %v3143 = vadd.f32 %v3142, %v2878
  %v3144 = vadd.f32 %v3143, %v2879
  %v3145 = vadd.f32 %v3144, %v2880
  %v3146 = vadd.f32 %v3145, %v2881
  %v3147 = vadd.f32 %v3146, %v2882
  %v3148 = vadd.f32 %v3147, %v2883
  %v3149 = vadd.f32 %v3148, %v2884
  %v3150 = vadd.f32 %v3149, %v2885
  %v3151 = vadd.f32 %v3150, %v2886
  %v3152 = vadd.f32 %v3151, %v2887
  %v3153 = vadd.f32 %v3152, %v2888
  %v3154 = vadd.f32 %v3153, %v2889
  %v3155 = vadd.f32 %v3154, %v2890
  %v3156 = vadd.f32 %v3155, %v2891
  %v3157 = vadd.f32 %v3156, %v2892
  %v3158 = vadd.f32 %v3157, %v2893
  %v3159 = vadd.f32 %v3158, %v2894
  %v3160 = vadd.f32 %v3159, %v2895
  %v3161 = vadd.f32 %v3160, %v2896
  %v3162 = vadd.f32 %v3161, %v2897
  %v3163 = vadd.f32 %v3162, %v2898
  %v3164 = vadd.f32 %v3163, %v2899
  %v3165 = vadd.f32 %v3164, %v2900
  %v3166 = vadd.f32 %v3165, %v2901
  %v3167 = vadd.f32 %v3166, %v2902
  %v3168 = vadd.f32 %v3167, %v2903
  %v3169 = vadd.f32 %v3168, %v2904
  %v3170 = vadd.f32 %v3169, %v2905
  %v3171 = vadd.f32 %v3170, %v2906
  %v3172 = vadd.f32 %v3171, %v2907
  %v3173 = vadd.f32 %v3172, %v2908
  %v3174 = vadd.f32 %v3173, %v2909
  %v3175 = vadd.f32 %v3174, %v2910
  %v3176 = vadd.f32 %v3175, %v2911
  %v3177 = vadd.f32 %v3176, %v2912
  %v3178 = vadd.f32 %v3177, %v2913
  %v3179 = vadd.f32 %v3178, %v2914
  %v3180 = vadd.f32 %v3179, %v2915
  %v3181 = vadd.f32 %v3180, %v2916
  %v3182 = vadd.f32 %v3181, %v2917
  %v3183 = vadd.f32 %v3182, %v2918
  %v3184 = vadd.f32 %v3183, %v2919
  %v3185 = vadd.f32 %v3184, %v2920
  %v3186 = vadd.f32 %v3185, %v2921
  %v3187 = vrot.slane %v3186, 4
  %v3188 = vadd.f32 %v3186, %v3187
  %v3189 = vrot.slane %v3188, 2
  %v3190 = vadd.f32 %v3188, %v3189
  %v3191 = vrot.slane %v3190, 1
  %v3192 = vadd.f32 %v3190, %v3191
  %v3193 = vadd.f32 %v2922, %v2923
  %v3194 = vadd.f32 %v3193, %v2924
  %v3195 = vadd.f32 %v3194, %v2925
  %v3196 = vadd.f32 %v3195, %v2926
  %v3197 = vadd.f32 %v3196, %v2927
  %v3198 = vadd.f32 %v3197, %v2928
  %v3199 = vadd.f32 %v3198, %v2929
  %v3200 = vadd.f32 %v3199, %v2930
  %v3201 = vadd.f32 %v3200, %v2931
  %v3202 = vadd.f32 %v3201, %v2932
  %v3203 = vadd.f32 %v3202, %v2933
  %v3204 = vadd.f32 %v3203, %v2934
  %v3205 = vadd.f32 %v3204, %v2935
  %v3206 = vadd.f32 %v3205, %v2936
  %v3207 = vadd.f32 %v3206, %v2937
  %v3208 = vadd.f32 %v3207, %v2938
  %v3209 = vadd.f32 %v3208, %v2939
  %v3210 = vadd.f32 %v3209, %v2940
  %v3211 = vadd.f32 %v3210, %v2941
  %v3212 = vadd.f32 %v3211, %v2942
  %v3213 = vadd.f32 %v3212, %v2943
  %v3214 = vadd.f32 %v3213, %v2944
  %v3215 = vadd.f32 %v3214, %v2945
  %v3216 = vadd.f32 %v3215, %v2946
  %v3217 = vadd.f32 %v3216, %v2947
  %v3218 = vadd.f32 %v3217, %v2948
  %v3219 = vadd.f32 %v3218, %v2949
  %v3220 = vadd.f32 %v3219, %v2950
  %v3221 = vadd.f32 %v3220, %v2951
  %v3222 = vadd.f32 %v3221, %v2952
  %v3223 = vadd.f32 %v3222, %v2953
  %v3224 = vadd.f32 %v3223, %v2954
  %v3225 = vadd.f32 %v3224, %v2955
  %v3226 = vadd.f32 %v3225, %v2956
  %v3227 = vadd.f32 %v3226, %v2957
  %v3228 = vadd.f32 %v3227, %v2958
  %v3229 = vadd.f32 %v3228, %v2959
  %v3230 = vadd.f32 %v3229, %v2960
  %v3231 = vadd.f32 %v3230, %v2961
  %v3232 = vadd.f32 %v3231, %v2962
  %v3233 = vadd.f32 %v3232, %v2963
  %v3234 = vadd.f32 %v3233, %v2964
  %v3235 = vadd.f32 %v3234, %v2965
  %v3236 = vadd.f32 %v3235, %v2966
  %v3237 = vadd.f32 %v3236, %v2967
  %v3238 = vadd.f32 %v3237, %v2968
  %v3239 = vadd.f32 %v3238, %v2969
  %v3240 = vadd.f32 %v3239, %v2970
  %v3241 = vadd.f32 %v3240, %v2971
  %v3242 = vadd.f32 %v3241, %v2972
  %v3243 = vadd.f32 %v3242, %v2973
  %v3244 = vadd.f32 %v3243, %v2974
  %v3245 = vadd.f32 %v3244, %v2975
  %v3246 = vadd.f32 %v3245, %v2976
  %v3247 = vadd.f32 %v3246, %v2977
  %v3248 = vadd.f32 %v3247, %v2978
  %v3249 = vadd.f32 %v3248, %v2979
  %v3250 = vadd.f32 %v3249, %v2980
  %v3251 = vadd.f32 %v3250, %v2981
  %v3252 = vadd.f32 %v3251, %v2982
  %v3253 = vadd.f32 %v3252, %v2983
  %v3254 = vadd.f32 %v3253, %v2984
  %v3255 = vadd.f32 %v3254, %v2985
  %v3256 = vrot.slane %v3255, 4
  %v3257 = vadd.f32 %v3255, %v3256
  %v3258 = vrot.slane %v3257, 2
  %v3259 = vadd.f32 %v3257, %v3258
  %v3260 = vrot.slane %v3259, 1
  %v3261 = vadd.f32 %v3259, %v3260
  %v3262 = vadd.f32 %v3054, %v3123
  %v3263 = vadd.f32 %v3262, %v3192
  %v3264 = vadd.f32 %v3263, %v3261
  %v3265 = vmul.f32 %v2729, 0.00048828125
  %v3266 = vmul.f32 %v3264, 0.00048828125
  %v3267 = vmul.f32 %v3265, %v3265
  %v3268 = vsub.f32 %v3266, %v3267
  %v3269 = vmax.f32 %v3268, 0.0
  %v3270 = vld [vmem:[%s2] sm:$0x3]
  %v3271 = vadd.f32 %v3269, 1e-05
  %v3272 = vrsqrt.pop %v3271
  %v3273 = vmul.f32 %v3270, %v3272
  %v3274 = vmul.f32 %v3273, %v3265
  %v3276 = vrot.slane %v3274, 7
  %v3278 = vsub.f32 %v3270, %v3276
  %v3279 = vlaneseq
  %v3280 = vshrl.u32 %v3279, 7
  %v3281 = vsub.s32 0, %v3280
  %v3282 = vrot.slane %v3273, %v3281
  %v3283 = vmul.f32 %v610, %v3282
  %v3284 = vmul.f32 %v613, %v3282
  %v3285 = vmul.f32 %v618, %v3282
  %v3286 = vmul.f32 %v621, %v3282
  %v3287 = vmul.f32 %v626, %v3282
  %v3288 = vmul.f32 %v629, %v3282
  %v3289 = vmul.f32 %v634, %v3282
  %v3290 = vmul.f32 %v637, %v3282
  %v3291 = vmul.f32 %v642, %v3282
  %v3292 = vmul.f32 %v645, %v3282
  %v3293 = vmul.f32 %v650, %v3282
  %v3294 = vmul.f32 %v653, %v3282
  %v3295 = vmul.f32 %v658, %v3282
  %v3296 = vmul.f32 %v661, %v3282
  %v3297 = vmul.f32 %v666, %v3282
  %v3298 = vmul.f32 %v669, %v3282
  %v3299 = vmul.f32 %v674, %v3282
  %v3300 = vmul.f32 %v677, %v3282
  %v3301 = vmul.f32 %v682, %v3282
  %v3302 = vmul.f32 %v685, %v3282
  %v3303 = vmul.f32 %v690, %v3282
  %v3304 = vmul.f32 %v693, %v3282
  %v3305 = vmul.f32 %v698, %v3282
  %v3306 = vmul.f32 %v701, %v3282
  %v3307 = vmul.f32 %v706, %v3282
  %v3308 = vmul.f32 %v709, %v3282
  %v3309 = vmul.f32 %v714, %v3282
  %v3310 = vmul.f32 %v717, %v3282
  %v3311 = vmul.f32 %v722, %v3282
  %v3312 = vmul.f32 %v725, %v3282
  %v3313 = vmul.f32 %v730, %v3282
  %v3314 = vmul.f32 %v733, %v3282
  %v3315 = vmul.f32 %v738, %v3282
  %v3316 = vmul.f32 %v741, %v3282
  %v3317 = vmul.f32 %v746, %v3282
  %v3318 = vmul.f32 %v749, %v3282
  %v3319 = vmul.f32 %v754, %v3282
  %v3320 = vmul.f32 %v757, %v3282
  %v3321 = vmul.f32 %v762, %v3282
  %v3322 = vmul.f32 %v765, %v3282
  %v3323 = vmul.f32 %v770, %v3282
  %v3324 = vmul.f32 %v773, %v3282
  %v3325 = vmul.f32 %v778, %v3282
  %v3326 = vmul.f32 %v781, %v3282
  %v3327 = vmul.f32 %v786, %v3282
  %v3328 = vmul.f32 %v789, %v3282
  %v3329 = vmul.f32 %v794, %v3282
  %v3330 = vmul.f32 %v797, %v3282
  %v3331 = vmul.f32 %v802, %v3282
  %v3332 = vmul.f32 %v805, %v3282
  %v3333 = vmul.f32 %v810, %v3282
  %v3334 = vmul.f32 %v813, %v3282
  %v3335 = vmul.f32 %v818, %v3282
  %v3336 = vmul.f32 %v821, %v3282
  %v3337 = vmul.f32 %v826, %v3282
  %v3338 = vmul.f32 %v829, %v3282
  %v3339 = vmul.f32 %v834, %v3282
  %v3340 = vmul.f32 %v837, %v3282
  %v3341 = vmul.f32 %v842, %v3282
  %v3342 = vmul.f32 %v845, %v3282
  %v3343 = vmul.f32 %v850, %v3282
  %v3344 = vmul.f32 %v853, %v3282
  %v3345 = vmul.f32 %v858, %v3282
  %v3346 = vmul.f32 %v861, %v3282
  %v3347 = vmul.f32 %v1139, %v3282
  %v3348 = vmul.f32 %v1142, %v3282
  %v3349 = vmul.f32 %v1147, %v3282
  %v3350 = vmul.f32 %v1150, %v3282
  %v3351 = vmul.f32 %v1155, %v3282
  %v3352 = vmul.f32 %v1158, %v3282
  %v3353 = vmul.f32 %v1163, %v3282
  %v3354 = vmul.f32 %v1166, %v3282
  %v3355 = vmul.f32 %v1171, %v3282
  %v3356 = vmul.f32 %v1174, %v3282
  %v3357 = vmul.f32 %v1179, %v3282
  %v3358 = vmul.f32 %v1182, %v3282
  %v3359 = vmul.f32 %v1187, %v3282
  %v3360 = vmul.f32 %v1190, %v3282
  %v3361 = vmul.f32 %v1195, %v3282
  %v3362 = vmul.f32 %v1198, %v3282
  %v3363 = vmul.f32 %v1203, %v3282
  %v3364 = vmul.f32 %v1206, %v3282
  %v3365 = vmul.f32 %v1211, %v3282
  %v3366 = vmul.f32 %v1214, %v3282
  %v3367 = vmul.f32 %v1219, %v3282
  %v3368 = vmul.f32 %v1222, %v3282
  %v3369 = vmul.f32 %v1227, %v3282
  %v3370 = vmul.f32 %v1230, %v3282
  %v3371 = vmul.f32 %v1235, %v3282
  %v3372 = vmul.f32 %v1238, %v3282
  %v3373 = vmul.f32 %v1243, %v3282
  %v3374 = vmul.f32 %v1246, %v3282
  %v3375 = vmul.f32 %v1251, %v3282
  %v3376 = vmul.f32 %v1254, %v3282
  %v3377 = vmul.f32 %v1259, %v3282
  %v3378 = vmul.f32 %v1262, %v3282
  %v3379 = vmul.f32 %v1267, %v3282
  %v3380 = vmul.f32 %v1270, %v3282
  %v3381 = vmul.f32 %v1275, %v3282
  %v3382 = vmul.f32 %v1278, %v3282
  %v3383 = vmul.f32 %v1283, %v3282
  %v3384 = vmul.f32 %v1286, %v3282
  %v3385 = vmul.f32 %v1291, %v3282
  %v3386 = vmul.f32 %v1294, %v3282
  %v3387 = vmul.f32 %v1299, %v3282
  %v3388 = vmul.f32 %v1302, %v3282
  %v3389 = vmul.f32 %v1307, %v3282
  %v3390 = vmul.f32 %v1310, %v3282
  %v3391 = vmul.f32 %v1315, %v3282
  %v3392 = vmul.f32 %v1318, %v3282
  %v3393 = vmul.f32 %v1323, %v3282
  %v3394 = vmul.f32 %v1326, %v3282
  %v3395 = vmul.f32 %v1331, %v3282
  %v3396 = vmul.f32 %v1334, %v3282
  %v3397 = vmul.f32 %v1339, %v3282
  %v3398 = vmul.f32 %v1342, %v3282
  %v3399 = vmul.f32 %v1347, %v3282
  %v3400 = vmul.f32 %v1350, %v3282
  %v3401 = vmul.f32 %v1355, %v3282
  %v3402 = vmul.f32 %v1358, %v3282
  %v3403 = vmul.f32 %v1363, %v3282
  %v3404 = vmul.f32 %v1366, %v3282
  %v3405 = vmul.f32 %v1371, %v3282
  %v3406 = vmul.f32 %v1374, %v3282
  %v3407 = vmul.f32 %v1379, %v3282
  %v3408 = vmul.f32 %v1382, %v3282
  %v3409 = vmul.f32 %v1387, %v3282
  %v3410 = vmul.f32 %v1390, %v3282
  %v3411 = vmul.f32 %v1668, %v3282
  %v3412 = vmul.f32 %v1671, %v3282
  %v3413 = vmul.f32 %v1676, %v3282
  %v3414 = vmul.f32 %v1679, %v3282
  %v3415 = vmul.f32 %v1684, %v3282
  %v3416 = vmul.f32 %v1687, %v3282
  %v3417 = vmul.f32 %v1692, %v3282
  %v3418 = vmul.f32 %v1695, %v3282
  %v3419 = vmul.f32 %v1700, %v3282
  %v3420 = vmul.f32 %v1703, %v3282
  %v3421 = vmul.f32 %v1708, %v3282
  %v3422 = vmul.f32 %v1711, %v3282
  %v3423 = vmul.f32 %v1716, %v3282
  %v3424 = vmul.f32 %v1719, %v3282
  %v3425 = vmul.f32 %v1724, %v3282
  %v3426 = vmul.f32 %v1727, %v3282
  %v3427 = vmul.f32 %v1732, %v3282
  %v3428 = vmul.f32 %v1735, %v3282
  %v3429 = vmul.f32 %v1740, %v3282
  %v3430 = vmul.f32 %v1743, %v3282
  %v3431 = vmul.f32 %v1748, %v3282
  %v3432 = vmul.f32 %v1751, %v3282
  %v3433 = vmul.f32 %v1756, %v3282
  %v3434 = vmul.f32 %v1759, %v3282
  %v3435 = vmul.f32 %v1764, %v3282
  %v3436 = vmul.f32 %v1767, %v3282
  %v3437 = vmul.f32 %v1772, %v3282
  %v3438 = vmul.f32 %v1775, %v3282
  %v3439 = vmul.f32 %v1780, %v3282
  %v3440 = vmul.f32 %v1783, %v3282
  %v3441 = vmul.f32 %v1788, %v3282
  %v3442 = vmul.f32 %v1791, %v3282
  %v3443 = vmul.f32 %v1796, %v3282
  %v3444 = vmul.f32 %v1799, %v3282
  %v3445 = vmul.f32 %v1804, %v3282
  %v3446 = vmul.f32 %v1807, %v3282
  %v3447 = vmul.f32 %v1812, %v3282
  %v3448 = vmul.f32 %v1815, %v3282
  %v3449 = vmul.f32 %v1820, %v3282
  %v3450 = vmul.f32 %v1823, %v3282
  %v3451 = vmul.f32 %v1828, %v3282
  %v3452 = vmul.f32 %v1831, %v3282
  %v3453 = vmul.f32 %v1836, %v3282
  %v3454 = vmul.f32 %v1839, %v3282
  %v3455 = vmul.f32 %v1844, %v3282
  %v3456 = vmul.f32 %v1847, %v3282
  %v3457 = vmul.f32 %v1852, %v3282
  %v3458 = vmul.f32 %v1855, %v3282
  %v3459 = vmul.f32 %v1860, %v3282
  %v3460 = vmul.f32 %v1863, %v3282
  %v3461 = vmul.f32 %v1868, %v3282
  %v3462 = vmul.f32 %v1871, %v3282
  %v3463 = vmul.f32 %v1876, %v3282
  %v3464 = vmul.f32 %v1879, %v3282
  %v3465 = vmul.f32 %v1884, %v3282
  %v3466 = vmul.f32 %v1887, %v3282
  %v3467 = vmul.f32 %v1892, %v3282
  %v3468 = vmul.f32 %v1895, %v3282
  %v3469 = vmul.f32 %v1900, %v3282
  %v3470 = vmul.f32 %v1903, %v3282
  %v3471 = vmul.f32 %v1908, %v3282
  %v3472 = vmul.f32 %v1911, %v3282
  %v3473 = vmul.f32 %v1916, %v3282
  %v3474 = vmul.f32 %v1919, %v3282
  %v3475 = vmul.f32 %v2197, %v3282
  %v3476 = vmul.f32 %v2200, %v3282
  %v3477 = vmul.f32 %v2205, %v3282
  %v3478 = vmul.f32 %v2208, %v3282
  %v3479 = vmul.f32 %v2213, %v3282
  %v3480 = vmul.f32 %v2216, %v3282
  %v3481 = vmul.f32 %v2221, %v3282
  %v3482 = vmul.f32 %v2224, %v3282
  %v3483 = vmul.f32 %v2229, %v3282
  %v3484 = vmul.f32 %v2232, %v3282
  %v3485 = vmul.f32 %v2237, %v3282
  %v3486 = vmul.f32 %v2240, %v3282
  %v3487 = vmul.f32 %v2245, %v3282
  %v3488 = vmul.f32 %v2248, %v3282
  %v3489 = vmul.f32 %v2253, %v3282
  %v3490 = vmul.f32 %v2256, %v3282
  %v3491 = vmul.f32 %v2261, %v3282
  %v3492 = vmul.f32 %v2264, %v3282
  %v3493 = vmul.f32 %v2269, %v3282
  %v3494 = vmul.f32 %v2272, %v3282
  %v3495 = vmul.f32 %v2277, %v3282
  %v3496 = vmul.f32 %v2280, %v3282
  %v3497 = vmul.f32 %v2285, %v3282
  %v3498 = vmul.f32 %v2288, %v3282
  %v3499 = vmul.f32 %v2293, %v3282
  %v3500 = vmul.f32 %v2296, %v3282
  %v3501 = vmul.f32 %v2301, %v3282
  %v3502 = vmul.f32 %v2304, %v3282
  %v3503 = vmul.f32 %v2309, %v3282
  %v3504 = vmul.f32 %v2312, %v3282
  %v3505 = vmul.f32 %v2317, %v3282
  %v3506 = vmul.f32 %v2320, %v3282
  %v3507 = vmul.f32 %v2325, %v3282
  %v3508 = vmul.f32 %v2328, %v3282
  %v3509 = vmul.f32 %v2333, %v3282
  %v3510 = vmul.f32 %v2336, %v3282
  %v3511 = vmul.f32 %v2341, %v3282
  %v3512 = vmul.f32 %v2344, %v3282
  %v3513 = vmul.f32 %v2349, %v3282
  %v3514 = vmul.f32 %v2352, %v3282
  %v3515 = vmul.f32 %v2357, %v3282
  %v3516 = vmul.f32 %v2360, %v3282
  %v3517 = vmul.f32 %v2365, %v3282
  %v3518 = vmul.f32 %v2368, %v3282
  %v3519 = vmul.f32 %v2373, %v3282
  %v3520 = vmul.f32 %v2376, %v3282
  %v3521 = vmul.f32 %v2381, %v3282
  %v3522 = vmul.f32 %v2384, %v3282
  %v3523 = vmul.f32 %v2389, %v3282
  %v3524 = vmul.f32 %v2392, %v3282
  %v3525 = vmul.f32 %v2397, %v3282
  %v3526 = vmul.f32 %v2400, %v3282
  %v3527 = vmul.f32 %v2405, %v3282
  %v3528 = vmul.f32 %v2408, %v3282
  %v3529 = vmul.f32 %v2413, %v3282
  %v3530 = vmul.f32 %v2416, %v3282
  %v3531 = vmul.f32 %v2421, %v3282
  %v3532 = vmul.f32 %v2424, %v3282
  %v3533 = vmul.f32 %v2429, %v3282
  %v3534 = vmul.f32 %v2432, %v3282
  %v3535 = vmul.f32 %v2437, %v3282
  %v3536 = vmul.f32 %v2440, %v3282
  %v3537 = vmul.f32 %v2445, %v3282
  %v3538 = vmul.f32 %v2448, %v3282
  %v3539 = vlaneseq
  %v3540 = vshrl.u32 %v3539, 7
  %v3541 = vsub.s32 1, %v3540
  %v3542 = vrot.slane %v3278, %v3541
  %v3543 = vadd.f32 %v3283, %v3542
  %v3544 = vadd.f32 %v3284, %v3542
  %v3545 = vadd.f32 %v3285, %v3542
  %v3546 = vadd.f32 %v3286, %v3542
  %v3547 = vadd.f32 %v3287, %v3542
  %v3548 = vadd.f32 %v3288, %v3542
  %v3549 = vadd.f32 %v3289, %v3542
  %v3550 = vadd.f32 %v3290, %v3542
  %v3551 = vadd.f32 %v3291, %v3542
  %v3552 = vadd.f32 %v3292, %v3542
  %v3553 = vadd.f32 %v3293, %v3542
  %v3554 = vadd.f32 %v3294, %v3542
  %v3555 = vadd.f32 %v3295, %v3542
  %v3556 = vadd.f32 %v3296, %v3542
  %v3557 = vadd.f32 %v3297, %v3542
  %v3558 = vadd.f32 %v3298, %v3542
  %v3559 = vadd.f32 %v3299, %v3542
  %v3560 = vadd.f32 %v3300, %v3542
  %v3561 = vadd.f32 %v3301, %v3542
  %v3562 = vadd.f32 %v3302, %v3542
  %v3563 = vadd.f32 %v3303, %v3542
  %v3564 = vadd.f32 %v3304, %v3542
  %v3565 = vadd.f32 %v3305, %v3542
  %v3566 = vadd.f32 %v3306, %v3542
  %v3567 = vadd.f32 %v3307, %v3542
  %v3568 = vadd.f32 %v3308, %v3542
  %v3569 = vadd.f32 %v3309, %v3542
  %v3570 = vadd.f32 %v3310, %v3542
  %v3571 = vadd.f32 %v3311, %v3542
  %v3572 = vadd.f32 %v3312, %v3542
  %v3573 = vadd.f32 %v3313, %v3542
  %v3574 = vadd.f32 %v3314, %v3542
  %v3575 = vadd.f32 %v3315, %v3542
  %v3576 = vadd.f32 %v3316, %v3542
  %v3577 = vadd.f32 %v3317, %v3542
  %v3578 = vadd.f32 %v3318, %v3542
  %v3579 = vadd.f32 %v3319, %v3542
  %v3580 = vadd.f32 %v3320, %v3542
  %v3581 = vadd.f32 %v3321, %v3542
  %v3582 = vadd.f32 %v3322, %v3542
  %v3583 = vadd.f32 %v3323, %v3542
  %v3584 = vadd.f32 %v3324, %v3542
  %v3585 = vadd.f32 %v3325, %v3542
  %v3586 = vadd.f32 %v3326, %v3542
  %v3587 = vadd.f32 %v3327, %v3542
  %v3588 = vadd.f32 %v3328, %v3542
  %v3589 = vadd.f32 %v3329, %v3542
  %v3590 = vadd.f32 %v3330, %v3542
  %v3591 = vadd.f32 %v3331, %v3542
  %v3592 = vadd.f32 %v3332, %v3542
  %v3593 = vadd.f32 %v3333, %v3542
  %v3594 = vadd.f32 %v3334, %v3542
  %v3595 = vadd.f32 %v3335, %v3542
  %v3596 = vadd.f32 %v3336, %v3542
  %v3597 = vadd.f32 %v3337, %v3542
  %v3598 = vadd.f32 %v3338, %v3542
  %v3599 = vadd.f32 %v3339, %v3542
  %v3600 = vadd.f32 %v3340, %v3542
  %v3601 = vadd.f32 %v3341, %v3542
  %v3602 = vadd.f32 %v3342, %v3542
  %v3603 = vadd.f32 %v3343, %v3542
  %v3604 = vadd.f32 %v3344, %v3542
  %v3605 = vadd.f32 %v3345, %v3542
  %v3606 = vadd.f32 %v3346, %v3542
  %v3607 = vadd.f32 %v3347, %v3542
  %v3608 = vadd.f32 %v3348, %v3542
  %v3609 = vadd.f32 %v3349, %v3542
  %v3610 = vadd.f32 %v3350, %v3542
  %v3611 = vadd.f32 %v3351, %v3542
  %v3612 = vadd.f32 %v3352, %v3542
  %v3613 = vadd.f32 %v3353, %v3542
  %v3614 = vadd.f32 %v3354, %v3542
  %v3615 = vadd.f32 %v3355, %v3542
  %v3616 = vadd.f32 %v3356, %v3542
  %v3617 = vadd.f32 %v3357, %v3542
  %v3618 = vadd.f32 %v3358, %v3542
  %v3619 = vadd.f32 %v3359, %v3542
  %v3620 = vadd.f32 %v3360, %v3542
  %v3621 = vadd.f32 %v3361, %v3542
  %v3622 = vadd.f32 %v3362, %v3542
  %v3623 = vadd.f32 %v3363, %v3542
  %v3624 = vadd.f32 %v3364, %v3542
  %v3625 = vadd.f32 %v3365, %v3542
  %v3626 = vadd.f32 %v3366, %v3542
  %v3627 = vadd.f32 %v3367, %v3542
  %v3628 = vadd.f32 %v3368, %v3542
  %v3629 = vadd.f32 %v3369, %v3542
  %v3630 = vadd.f32 %v3370, %v3542
  %v3631 = vadd.f32 %v3371, %v3542
  %v3632 = vadd.f32 %v3372, %v3542
  %v3633 = vadd.f32 %v3373, %v3542
  %v3634 = vadd.f32 %v3374, %v3542
  %v3635 = vadd.f32 %v3375, %v3542
  %v3636 = vadd.f32 %v3376, %v3542
  %v3637 = vadd.f32 %v3377, %v3542
  %v3638 = vadd.f32 %v3378, %v3542
  %v3639 = vadd.f32 %v3379, %v3542
  %v3640 = vadd.f32 %v3380, %v3542
  %v3641 = vadd.f32 %v3381, %v3542
  %v3642 = vadd.f32 %v3382, %v3542
  %v3643 = vadd.f32 %v3383, %v3542
  %v3644 = vadd.f32 %v3384, %v3542
  %v3645 = vadd.f32 %v3385, %v3542
  %v3646 = vadd.f32 %v3386, %v3542
  %v3647 = vadd.f32 %v3387, %v3542
  %v3648 = vadd.f32 %v3388, %v3542
  %v3649 = vadd.f32 %v3389, %v3542
  %v3650 = vadd.f32 %v3390, %v3542
  %v3651 = vadd.f32 %v3391, %v3542
  %v3652 = vadd.f32 %v3392, %v3542
  %v3653 = vadd.f32 %v3393, %v3542
  %v3654 = vadd.f32 %v3394, %v3542
  %v3655 = vadd.f32 %v3395, %v3542
  %v3656 = vadd.f32 %v3396, %v3542
  %v3657 = vadd.f32 %v3397, %v3542
  %v3658 = vadd.f32 %v3398, %v3542
  %v3659 = vadd.f32 %v3399, %v3542
  %v3660 = vadd.f32 %v3400, %v3542
  %v3661 = vadd.f32 %v3401, %v3542
  %v3662 = vadd.f32 %v3402, %v3542
  %v3663 = vadd.f32 %v3403, %v3542
  %v3664 = vadd.f32 %v3404, %v3542
  %v3665 = vadd.f32 %v3405, %v3542
  %v3666 = vadd.f32 %v3406, %v3542
  %v3667 = vadd.f32 %v3407, %v3542
  %v3668 = vadd.f32 %v3408, %v3542
  %v3669 = vadd.f32 %v3409, %v3542
  %v3670 = vadd.f32 %v3410, %v3542
  %v3671 = vadd.f32 %v3411, %v3542
  %v3672 = vadd.f32 %v3412, %v3542
  %v3673 = vadd.f32 %v3413, %v3542
  %v3674 = vadd.f32 %v3414, %v3542
  %v3675 = vadd.f32 %v3415, %v3542
  %v3676 = vadd.f32 %v3416, %v3542
  %v3677 = vadd.f32 %v3417, %v3542
  %v3678 = vadd.f32 %v3418, %v3542
  %v3679 = vadd.f32 %v3419, %v3542
  %v3680 = vadd.f32 %v3420, %v3542
  %v3681 = vadd.f32 %v3421, %v3542
  %v3682 = vadd.f32 %v3422, %v3542
  %v3683 = vadd.f32 %v3423, %v3542
  %v3684 = vadd.f32 %v3424, %v3542
  %v3685 = vadd.f32 %v3425, %v3542
  %v3686 = vadd.f32 %v3426, %v3542
  %v3687 = vadd.f32 %v3427, %v3542
  %v3688 = vadd.f32 %v3428, %v3542
  %v3689 = vadd.f32 %v3429, %v3542
  %v3690 = vadd.f32 %v3430, %v3542
  %v3691 = vadd.f32 %v3431, %v3542
  %v3692 = vadd.f32 %v3432, %v3542
  %v3693 = vadd.f32 %v3433, %v3542
  %v3694 = vadd.f32 %v3434, %v3542
  %v3695 = vadd.f32 %v3435, %v3542
  %v3696 = vadd.f32 %v3436, %v3542
  %v3697 = vadd.f32 %v3437, %v3542
  %v3698 = vadd.f32 %v3438, %v3542
  %v3699 = vadd.f32 %v3439, %v3542
  %v3700 = vadd.f32 %v3440, %v3542
  %v3701 = vadd.f32 %v3441, %v3542
  %v3702 = vadd.f32 %v3442, %v3542
  %v3703 = vadd.f32 %v3443, %v3542
  %v3704 = vadd.f32 %v3444, %v3542
  %v3705 = vadd.f32 %v3445, %v3542
  %v3706 = vadd.f32 %v3446, %v3542
  %v3707 = vadd.f32 %v3447, %v3542
  %v3708 = vadd.f32 %v3448, %v3542
  %v3709 = vadd.f32 %v3449, %v3542
  %v3710 = vadd.f32 %v3450, %v3542
  %v3711 = vadd.f32 %v3451, %v3542
  %v3712 = vadd.f32 %v3452, %v3542
  %v3713 = vadd.f32 %v3453, %v3542
  %v3714 = vadd.f32 %v3454, %v3542
  %v3715 = vadd.f32 %v3455, %v3542
  %v3716 = vadd.f32 %v3456, %v3542
  %v3717 = vadd.f32 %v3457, %v3542
  %v3718 = vadd.f32 %v3458, %v3542
  %v3719 = vadd.f32 %v3459, %v3542
  %v3720 = vadd.f32 %v3460, %v3542
  %v3721 = vadd.f32 %v3461, %v3542
  %v3722 = vadd.f32 %v3462, %v3542
  %v3723 = vadd.f32 %v3463, %v3542
  %v3724 = vadd.f32 %v3464, %v3542
  %v3725 = vadd.f32 %v3465, %v3542
  %v3726 = vadd.f32 %v3466, %v3542
  %v3727 = vadd.f32 %v3467, %v3542
  %v3728 = vadd.f32 %v3468, %v3542
  %v3729 = vadd.f32 %v3469, %v3542
  %v3730 = vadd.f32 %v3470, %v3542
  %v3731 = vadd.f32 %v3471, %v3542
  %v3732 = vadd.f32 %v3472, %v3542
  %v3733 = vadd.f32 %v3473, %v3542
  %v3734 = vadd.f32 %v3474, %v3542
  %v3735 = vadd.f32 %v3475, %v3542
  %v3736 = vadd.f32 %v3476, %v3542
  %v3737 = vadd.f32 %v3477, %v3542
  %v3738 = vadd.f32 %v3478, %v3542
  %v3739 = vadd.f32 %v3479, %v3542
  %v3740 = vadd.f32 %v3480, %v3542
  %v3741 = vadd.f32 %v3481, %v3542
  %v3742 = vadd.f32 %v3482, %v3542
  %v3743 = vadd.f32 %v3483, %v3542
  %v3744 = vadd.f32 %v3484, %v3542
  %v3745 = vadd.f32 %v3485, %v3542
  %v3746 = vadd.f32 %v3486, %v3542
  %v3747 = vadd.f32 %v3487, %v3542
  %v3748 = vadd.f32 %v3488, %v3542
  %v3749 = vadd.f32 %v3489, %v3542
  %v3750 = vadd.f32 %v3490, %v3542
  %v3751 = vadd.f32 %v3491, %v3542
  %v3752 = vadd.f32 %v3492, %v3542
  %v3753 = vadd.f32 %v3493, %v3542
  %v3754 = vadd.f32 %v3494, %v3542
  %v3755 = vadd.f32 %v3495, %v3542
  %v3756 = vadd.f32 %v3496, %v3542
  %v3757 = vadd.f32 %v3497, %v3542
  %v3758 = vadd.f32 %v3498, %v3542
  %v3759 = vadd.f32 %v3499, %v3542
  %v3760 = vadd.f32 %v3500, %v3542
  %v3761 = vadd.f32 %v3501, %v3542
  %v3762 = vadd.f32 %v3502, %v3542
  %v3763 = vadd.f32 %v3503, %v3542
  %v3764 = vadd.f32 %v3504, %v3542
  %v3765 = vadd.f32 %v3505, %v3542
  %v3766 = vadd.f32 %v3506, %v3542
  %v3767 = vadd.f32 %v3507, %v3542
  %v3768 = vadd.f32 %v3508, %v3542
  %v3769 = vadd.f32 %v3509, %v3542
  %v3770 = vadd.f32 %v3510, %v3542
  %v3771 = vadd.f32 %v3511, %v3542
  %v3772 = vadd.f32 %v3512, %v3542
  %v3773 = vadd.f32 %v3513, %v3542
  %v3774 = vadd.f32 %v3514, %v3542
  %v3775 = vadd.f32 %v3515, %v3542
  %v3776 = vadd.f32 %v3516, %v3542
  %v3777 = vadd.f32 %v3517, %v3542
  %v3778 = vadd.f32 %v3518, %v3542
  %v3779 = vadd.f32 %v3519, %v3542
  %v3780 = vadd.f32 %v3520, %v3542
  %v3781 = vadd.f32 %v3521, %v3542
  %v3782 = vadd.f32 %v3522, %v3542
  %v3783 = vadd.f32 %v3523, %v3542
  %v3784 = vadd.f32 %v3524, %v3542
  %v3785 = vadd.f32 %v3525, %v3542
  %v3786 = vadd.f32 %v3526, %v3542
  %v3787 = vadd.f32 %v3527, %v3542
  %v3788 = vadd.f32 %v3528, %v3542
  %v3789 = vadd.f32 %v3529, %v3542
  %v3790 = vadd.f32 %v3530, %v3542
  %v3791 = vadd.f32 %v3531, %v3542
  %v3792 = vadd.f32 %v3532, %v3542
  %v3793 = vadd.f32 %v3533, %v3542
  %v3794 = vadd.f32 %v3534, %v3542
  %v3795 = vadd.f32 %v3535, %v3542
  %v3796 = vadd.f32 %v3536, %v3542
  %v3797 = vadd.f32 %v3537, %v3542
  %v3798 = vadd.f32 %v3538, %v3542
  %v3799 = vmax.f32 %v3543, 0.0
  %v3800 = vmax.f32 %v3544, 0.0
  %v3801 = vmax.f32 %v3545, 0.0
  %v3802 = vmax.f32 %v3546, 0.0
  %v3803 = vmax.f32 %v3547, 0.0
  %v3804 = vmax.f32 %v3548, 0.0
  %v3805 = vmax.f32 %v3549, 0.0
  %v3806 = vmax.f32 %v3550, 0.0
  %v3807 = vmax.f32 %v3551, 0.0
  %v3808 = vmax.f32 %v3552, 0.0
  %v3809 = vmax.f32 %v3553, 0.0
  %v3810 = vmax.f32 %v3554, 0.0
  %v3811 = vmax.f32 %v3555, 0.0
  %v3812 = vmax.f32 %v3556, 0.0
  %v3813 = vmax.f32 %v3557, 0.0
  %v3814 = vmax.f32 %v3558, 0.0
  %v3815 = vmax.f32 %v3559, 0.0
  %v3816 = vmax.f32 %v3560, 0.0
  %v3817 = vmax.f32 %v3561, 0.0
  %v3818 = vmax.f32 %v3562, 0.0
  %v3819 = vmax.f32 %v3563, 0.0
  %v3820 = vmax.f32 %v3564, 0.0
  %v3821 = vmax.f32 %v3565, 0.0
  %v3822 = vmax.f32 %v3566, 0.0
  %v3823 = vmax.f32 %v3567, 0.0
  %v3824 = vmax.f32 %v3568, 0.0
  %v3825 = vmax.f32 %v3569, 0.0
  %v3826 = vmax.f32 %v3570, 0.0
  %v3827 = vmax.f32 %v3571, 0.0
  %v3828 = vmax.f32 %v3572, 0.0
  %v3829 = vmax.f32 %v3573, 0.0
  %v3830 = vmax.f32 %v3574, 0.0
  %v3831 = vmax.f32 %v3575, 0.0
  %v3832 = vmax.f32 %v3576, 0.0
  %v3833 = vmax.f32 %v3577, 0.0
  %v3834 = vmax.f32 %v3578, 0.0
  %v3835 = vmax.f32 %v3579, 0.0
  %v3836 = vmax.f32 %v3580, 0.0
  %v3837 = vmax.f32 %v3581, 0.0
  %v3838 = vmax.f32 %v3582, 0.0
  %v3839 = vmax.f32 %v3583, 0.0
  %v3840 = vmax.f32 %v3584, 0.0
  %v3841 = vmax.f32 %v3585, 0.0
  %v3842 = vmax.f32 %v3586, 0.0
  %v3843 = vmax.f32 %v3587, 0.0
  %v3844 = vmax.f32 %v3588, 0.0
  %v3845 = vmax.f32 %v3589, 0.0
  %v3846 = vmax.f32 %v3590, 0.0
  %v3847 = vmax.f32 %v3591, 0.0
  %v3848 = vmax.f32 %v3592, 0.0
  %v3849 = vmax.f32 %v3593, 0.0
  %v3850 = vmax.f32 %v3594, 0.0
  %v3851 = vmax.f32 %v3595, 0.0
  %v3852 = vmax.f32 %v3596, 0.0
  %v3853 = vmax.f32 %v3597, 0.0
  %v3854 = vmax.f32 %v3598, 0.0
  %v3855 = vmax.f32 %v3599, 0.0
  %v3856 = vmax.f32 %v3600, 0.0
  %v3857 = vmax.f32 %v3601, 0.0
  %v3858 = vmax.f32 %v3602, 0.0
  %v3859 = vmax.f32 %v3603, 0.0
  %v3860 = vmax.f32 %v3604, 0.0
  %v3861 = vmax.f32 %v3605, 0.0
  %v3862 = vmax.f32 %v3606, 0.0
  %v3863 = vmax.f32 %v3607, 0.0
  %v3864 = vmax.f32 %v3608, 0.0
  %v3865 = vmax.f32 %v3609, 0.0
  %v3866 = vmax.f32 %v3610, 0.0
  %v3867 = vmax.f32 %v3611, 0.0
  %v3868 = vmax.f32 %v3612, 0.0
  %v3869 = vmax.f32 %v3613, 0.0
  %v3870 = vmax.f32 %v3614, 0.0
  %v3871 = vmax.f32 %v3615, 0.0
  %v3872 = vmax.f32 %v3616, 0.0
  %v3873 = vmax.f32 %v3617, 0.0
  %v3874 = vmax.f32 %v3618, 0.0
  %v3875 = vmax.f32 %v3619, 0.0
  %v3876 = vmax.f32 %v3620, 0.0
  %v3877 = vmax.f32 %v3621, 0.0
  %v3878 = vmax.f32 %v3622, 0.0
  %v3879 = vmax.f32 %v3623, 0.0
  %v3880 = vmax.f32 %v3624, 0.0
  %v3881 = vmax.f32 %v3625, 0.0
  %v3882 = vmax.f32 %v3626, 0.0
  %v3883 = vmax.f32 %v3627, 0.0
  %v3884 = vmax.f32 %v3628, 0.0
  %v3885 = vmax.f32 %v3629, 0.0
  %v3886 = vmax.f32 %v3630, 0.0
  %v3887 = vmax.f32 %v3631, 0.0
  %v3888 = vmax.f32 %v3632, 0.0
  %v3889 = vmax.f32 %v3633, 0.0
  %v3890 = vmax.f32 %v3634, 0.0
  %v3891 = vmax.f32 %v3635, 0.0
  %v3892 = vmax.f32 %v3636, 0.0
  %v3893 = vmax.f32 %v3637, 0.0
  %v3894 = vmax.f32 %v3638, 0.0
  %v3895 = vmax.f32 %v3639, 0.0
  %v3896 = vmax.f32 %v3640, 0.0
  %v3897 = vmax.f32 %v3641, 0.0
  %v3898 = vmax.f32 %v3642, 0.0
  %v3899 = vmax.f32 %v3643, 0.0
  %v3900 = vmax.f32 %v3644, 0.0
  %v3901 = vmax.f32 %v3645, 0.0
  %v3902 = vmax.f32 %v3646, 0.0
  %v3903 = vmax.f32 %v3647, 0.0
  %v3904 = vmax.f32 %v3648, 0.0
  %v3905 = vmax.f32 %v3649, 0.0
  %v3906 = vmax.f32 %v3650, 0.0
  %v3907 = vmax.f32 %v3651, 0.0
  %v3908 = vmax.f32 %v3652, 0.0
  %v3909 = vmax.f32 %v3653, 0.0
  %v3910 = vmax.f32 %v3654, 0.0
  %v3911 = vmax.f32 %v3655, 0.0
  %v3912 = vmax.f32 %v3656, 0.0
  %v3913 = vmax.f32 %v3657, 0.0
  %v3914 = vmax.f32 %v3658, 0.0
  %v3915 = vmax.f32 %v3659, 0.0
  %v3916 = vmax.f32 %v3660, 0.0
  %v3917 = vmax.f32 %v3661, 0.0
  %v3918 = vmax.f32 %v3662, 0.0
  %v3919 = vmax.f32 %v3663, 0.0
  %v3920 = vmax.f32 %v3664, 0.0
  %v3921 = vmax.f32 %v3665, 0.0
  %v3922 = vmax.f32 %v3666, 0.0
  %v3923 = vmax.f32 %v3667, 0.0
  %v3924 = vmax.f32 %v3668, 0.0
  %v3925 = vmax.f32 %v3669, 0.0
  %v3926 = vmax.f32 %v3670, 0.0
  %v3927 = vmax.f32 %v3671, 0.0
  %v3928 = vmax.f32 %v3672, 0.0
  %v3929 = vmax.f32 %v3673, 0.0
  %v3930 = vmax.f32 %v3674, 0.0
  %v3931 = vmax.f32 %v3675, 0.0
  %v3932 = vmax.f32 %v3676, 0.0
  %v3933 = vmax.f32 %v3677, 0.0
  %v3934 = vmax.f32 %v3678, 0.0
  %v3935 = vmax.f32 %v3679, 0.0
  %v3936 = vmax.f32 %v3680, 0.0
  %v3937 = vmax.f32 %v3681, 0.0
  %v3938 = vmax.f32 %v3682, 0.0
  %v3939 = vmax.f32 %v3683, 0.0
  %v3940 = vmax.f32 %v3684, 0.0
  %v3941 = vmax.f32 %v3685, 0.0
  %v3942 = vmax.f32 %v3686, 0.0
  %v3943 = vmax.f32 %v3687, 0.0
  %v3944 = vmax.f32 %v3688, 0.0
  %v3945 = vmax.f32 %v3689, 0.0
  %v3946 = vmax.f32 %v3690, 0.0
  %v3947 = vmax.f32 %v3691, 0.0
  %v3948 = vmax.f32 %v3692, 0.0
  %v3949 = vmax.f32 %v3693, 0.0
  %v3950 = vmax.f32 %v3694, 0.0
  %v3951 = vmax.f32 %v3695, 0.0
  %v3952 = vmax.f32 %v3696, 0.0
  %v3953 = vmax.f32 %v3697, 0.0
  %v3954 = vmax.f32 %v3698, 0.0
  %v3955 = vmax.f32 %v3699, 0.0
  %v3956 = vmax.f32 %v3700, 0.0
  %v3957 = vmax.f32 %v3701, 0.0
  %v3958 = vmax.f32 %v3702, 0.0
  %v3959 = vmax.f32 %v3703, 0.0
  %v3960 = vmax.f32 %v3704, 0.0
  %v3961 = vmax.f32 %v3705, 0.0
  %v3962 = vmax.f32 %v3706, 0.0
  %v3963 = vmax.f32 %v3707, 0.0
  %v3964 = vmax.f32 %v3708, 0.0
  %v3965 = vmax.f32 %v3709, 0.0
  %v3966 = vmax.f32 %v3710, 0.0
  %v3967 = vmax.f32 %v3711, 0.0
  %v3968 = vmax.f32 %v3712, 0.0
  %v3969 = vmax.f32 %v3713, 0.0
  %v3970 = vmax.f32 %v3714, 0.0
  %v3971 = vmax.f32 %v3715, 0.0
  %v3972 = vmax.f32 %v3716, 0.0
  %v3973 = vmax.f32 %v3717, 0.0
  %v3974 = vmax.f32 %v3718, 0.0
  %v3975 = vmax.f32 %v3719, 0.0
  %v3976 = vmax.f32 %v3720, 0.0
  %v3977 = vmax.f32 %v3721, 0.0
  %v3978 = vmax.f32 %v3722, 0.0
  %v3979 = vmax.f32 %v3723, 0.0
  %v3980 = vmax.f32 %v3724, 0.0
  %v3981 = vmax.f32 %v3725, 0.0
  %v3982 = vmax.f32 %v3726, 0.0
  %v3983 = vmax.f32 %v3727, 0.0
  %v3984 = vmax.f32 %v3728, 0.0
  %v3985 = vmax.f32 %v3729, 0.0
  %v3986 = vmax.f32 %v3730, 0.0
  %v3987 = vmax.f32 %v3731, 0.0
  %v3988 = vmax.f32 %v3732, 0.0
  %v3989 = vmax.f32 %v3733, 0.0
  %v3990 = vmax.f32 %v3734, 0.0
  %v3991 = vmax.f32 %v3735, 0.0
  %v3992 = vmax.f32 %v3736, 0.0
  %v3993 = vmax.f32 %v3737, 0.0
  %v3994 = vmax.f32 %v3738, 0.0
  %v3995 = vmax.f32 %v3739, 0.0
  %v3996 = vmax.f32 %v3740, 0.0
  %v3997 = vmax.f32 %v3741, 0.0
  %v3998 = vmax.f32 %v3742, 0.0
  %v3999 = vmax.f32 %v3743, 0.0
  %v4000 = vmax.f32 %v3744, 0.0
  %v4001 = vmax.f32 %v3745, 0.0
  %v4002 = vmax.f32 %v3746, 0.0
  %v4003 = vmax.f32 %v3747, 0.0
  %v4004 = vmax.f32 %v3748, 0.0
  %v4005 = vmax.f32 %v3749, 0.0
  %v4006 = vmax.f32 %v3750, 0.0
  %v4007 = vmax.f32 %v3751, 0.0
  %v4008 = vmax.f32 %v3752, 0.0
  %v4009 = vmax.f32 %v3753, 0.0
  %v4010 = vmax.f32 %v3754, 0.0
  %v4011 = vmax.f32 %v3755, 0.0
  %v4012 = vmax.f32 %v3756, 0.0
  %v4013 = vmax.f32 %v3757, 0.0
  %v4014 = vmax.f32 %v3758, 0.0
  %v4015 = vmax.f32 %v3759, 0.0
  %v4016 = vmax.f32 %v3760, 0.0
  %v4017 = vmax.f32 %v3761, 0.0
  %v4018 = vmax.f32 %v3762, 0.0
  %v4019 = vmax.f32 %v3763, 0.0
  %v4020 = vmax.f32 %v3764, 0.0
  %v4021 = vmax.f32 %v3765, 0.0
  %v4022 = vmax.f32 %v3766, 0.0
  %v4023 = vmax.f32 %v3767, 0.0
  %v4024 = vmax.f32 %v3768, 0.0
  %v4025 = vmax.f32 %v3769, 0.0
  %v4026 = vmax.f32 %v3770, 0.0
  %v4027 = vmax.f32 %v3771, 0.0
  %v4028 = vmax.f32 %v3772, 0.0
  %v4029 = vmax.f32 %v3773, 0.0
  %v4030 = vmax.f32 %v3774, 0.0
  %v4031 = vmax.f32 %v3775, 0.0
  %v4032 = vmax.f32 %v3776, 0.0
  %v4033 = vmax.f32 %v3777, 0.0
  %v4034 = vmax.f32 %v3778, 0.0
  %v4035 = vmax.f32 %v3779, 0.0
  %v4036 = vmax.f32 %v3780, 0.0
  %v4037 = vmax.f32 %v3781, 0.0
  %v4038 = vmax.f32 %v3782, 0.0
  %v4039 = vmax.f32 %v3783, 0.0
  %v4040 = vmax.f32 %v3784, 0.0
  %v4041 = vmax.f32 %v3785, 0.0
  %v4042 = vmax.f32 %v3786, 0.0
  %v4043 = vmax.f32 %v3787, 0.0
  %v4044 = vmax.f32 %v3788, 0.0
  %v4045 = vmax.f32 %v3789, 0.0
  %v4046 = vmax.f32 %v3790, 0.0
  %v4047 = vmax.f32 %v3791, 0.0
  %v4048 = vmax.f32 %v3792, 0.0
  %v4049 = vmax.f32 %v3793, 0.0
  %v4050 = vmax.f32 %v3794, 0.0
  %v4051 = vmax.f32 %v3795, 0.0
  %v4052 = vmax.f32 %v3796, 0.0
  %v4053 = vmax.f32 %v3797, 0.0
  %v4054 = vmax.f32 %v3798, 0.0
  %4055 = vst [vmem:[%s3] sm:$0xff] %v3799
  %4056 = vst [vmem:[%s3 + $0x8] sm:$0xff] %v3800
  %4057 = vst [vmem:[%s3 + $0x10] sm:$0xff] %v3801
  %4058 = vst [vmem:[%s3 + $0x18] sm:$0xff] %v3802
  %4059 = vst [vmem:[%s3 + $0x20] sm:$0xff] %v3803
  %4060 = vst [vmem:[%s3 + $0x28] sm:$0xff] %v3804
  %4061 = vst [vmem:[%s3 + $0x30] sm:$0xff] %v3805
  %4062 = vst [vmem:[%s3 + $0x38] sm:$0xff] %v3806
  %4063 = vst [vmem:[%s3 + $0x40] sm:$0xff] %v3807
  %4064 = vst [vmem:[%s3 + $0x48] sm:$0xff] %v3808
  %4065 = vst [vmem:[%s3 + $0x50] sm:$0xff] %v3809
  %4066 = vst [vmem:[%s3 + $0x58] sm:$0xff] %v3810
  %4067 = vst [vmem:[%s3 + $0x60] sm:$0xff] %v3811
  %4068 = vst [vmem:[%s3 + $0x68] sm:$0xff] %v3812
  %4069 = vst [vmem:[%s3 + $0x70] sm:$0xff] %v3813
  %4070 = vst [vmem:[%s3 + $0x78] sm:$0xff] %v3814
  %4071 = vst [vmem:[%s3 + $0x80] sm:$0xff] %v3815
  %4072 = vst [vmem:[%s3 + $0x88] sm:$0xff] %v3816
  %4073 = vst [vmem:[%s3 + $0x90] sm:$0xff] %v3817
  %4074 = vst [vmem:[%s3 + $0x98] sm:$0xff] %v3818
  %4075 = vst [vmem:[%s3 + $0xa0] sm:$0xff] %v3819
  %4076 = vst [vmem:[%s3 + $0xa8] sm:$0xff] %v3820
  %4077 = vst [vmem:[%s3 + $0xb0] sm:$0xff] %v3821
  %4078 = vst [vmem:[%s3 + $0xb8] sm:$0xff] %v3822
  %4079 = vst [vmem:[%s3 + $0xc0] sm:$0xff] %v3823
  %4080 = vst [vmem:[%s3 + $0xc8] sm:$0xff] %v3824
  %4081 = vst [vmem:[%s3 + $0xd0] sm:$0xff] %v3825
  %4082 = vst [vmem:[%s3 + $0xd8] sm:$0xff] %v3826
  %4083 = vst [vmem:[%s3 + $0xe0] sm:$0xff] %v3827
  %4084 = vst [vmem:[%s3 + $0xe8] sm:$0xff] %v3828
  %4085 = vst [vmem:[%s3 + $0xf0] sm:$0xff] %v3829
  %4086 = vst [vmem:[%s3 + $0xf8] sm:$0xff] %v3830
  %4087 = vst [vmem:[%s3 + $0x100] sm:$0xff] %v3831
  %4088 = vst [vmem:[%s3 + $0x108] sm:$0xff] %v3832
  %4089 = vst [vmem:[%s3 + $0x110] sm:$0xff] %v3833
  %4090 = vst [vmem:[%s3 + $0x118] sm:$0xff] %v3834
  %4091 = vst [vmem:[%s3 + $0x120] sm:$0xff] %v3835
  %4092 = vst [vmem:[%s3 + $0x128] sm:$0xff] %v3836
  %4093 = vst [vmem:[%s3 + $0x130] sm:$0xff] %v3837
  %4094 = vst [vmem:[%s3 + $0x138] sm:$0xff] %v3838
  %4095 = vst [vmem:[%s3 + $0x140] sm:$0xff] %v3839
  %4096 = vst [vmem:[%s3 + $0x148] sm:$0xff] %v3840
  %4097 = vst [vmem:[%s3 + $0x150] sm:$0xff] %v3841
  %4098 = vst [vmem:[%s3 + $0x158] sm:$0xff] %v3842
  %4099 = vst [vmem:[%s3 + $0x160] sm:$0xff] %v3843
  %4100 = vst [vmem:[%s3 + $0x168] sm:$0xff] %v3844
  %4101 = vst [vmem:[%s3 + $0x170] sm:$0xff] %v3845
  %4102 = vst [vmem:[%s3 + $0x178] sm:$0xff] %v3846
  %4103 = vst [vmem:[%s3 + $0x180] sm:$0xff] %v3847
  %4104 = vst [vmem:[%s3 + $0x188] sm:$0xff] %v3848
  %4105 = vst [vmem:[%s3 + $0x190] sm:$0xff] %v3849
  %4106 = vst [vmem:[%s3 + $0x198] sm:$0xff] %v3850
  %4107 = vst [vmem:[%s3 + $0x1a0] sm:$0xff] %v3851
  %4108 = vst [vmem:[%s3 + $0x1a8] sm:$0xff] %v3852
  %4109 = vst [vmem:[%s3 + $0x1b0] sm:$0xff] %v3853
  %4110 = vst [vmem:[%s3 + $0x1b8] sm:$0xff] %v3854
  %4111 = vst [vmem:[%s3 + $0x1c0] sm:$0xff] %v3855
  %4112 = vst [vmem:[%s3 + $0x1c8] sm:$0xff] %v3856
  %4113 = vst [vmem:[%s3 + $0x1d0] sm:$0xff] %v3857
  %4114 = vst [vmem:[%s3 + $0x1d8] sm:$0xff] %v3858
  %4115 = vst [vmem:[%s3 + $0x1e0] sm:$0xff] %v3859
  %4116 = vst [vmem:[%s3 + $0x1e8] sm:$0xff] %v3860
  %4117 = vst [vmem:[%s3 + $0x1f0] sm:$0xff] %v3861
  %4118 = vst [vmem:[%s3 + $0x1f8] sm:$0xff] %v3862
  %4119 = vst [vmem:[%s3 + $0x200] sm:$0xff] %v3863
  %4120 = vst [vmem:[%s3 + $0x208] sm:$0xff] %v3864
  %4121 = vst [vmem:[%s3 + $0x210] sm:$0xff] %v3865
  %4122 = vst [vmem:[%s3 + $0x218] sm:$0xff] %v3866
  %4123 = vst [vmem:[%s3 + $0x220] sm:$0xff] %v3867
  %4124 = vst [vmem:[%s3 + $0x228] sm:$0xff] %v3868
  %4125 = vst [vmem:[%s3 + $0x230] sm:$0xff] %v3869
  %4126 = vst [vmem:[%s3 + $0x238] sm:$0xff] %v3870
  %4127 = vst [vmem:[%s3 + $0x240] sm:$0xff] %v3871
  %4128 = vst [vmem:[%s3 + $0x248] sm:$0xff] %v3872
  %4129 = vst [vmem:[%s3 + $0x250] sm:$0xff] %v3873
  %4130 = vst [vmem:[%s3 + $0x258] sm:$0xff] %v3874
  %4131 = vst [vmem:[%s3 + $0x260] sm:$0xff] %v3875
  %4132 = vst [vmem:[%s3 + $0x268] sm:$0xff] %v3876
  %4133 = vst [vmem:[%s3 + $0x270] sm:$0xff] %v3877
  %4134 = vst [vmem:[%s3 + $0x278] sm:$0xff] %v3878
  %4135 = vst [vmem:[%s3 + $0x280] sm:$0xff] %v3879
  %4136 = vst [vmem:[%s3 + $0x288] sm:$0xff] %v3880
  %4137 = vst [vmem:[%s3 + $0x290] sm:$0xff] %v3881
  %4138 = vst [vmem:[%s3 + $0x298] sm:$0xff] %v3882
  %4139 = vst [vmem:[%s3 + $0x2a0] sm:$0xff] %v3883
  %4140 = vst [vmem:[%s3 + $0x2a8] sm:$0xff] %v3884
  %4141 = vst [vmem:[%s3 + $0x2b0] sm:$0xff] %v3885
  %4142 = vst [vmem:[%s3 + $0x2b8] sm:$0xff] %v3886
  %4143 = vst [vmem:[%s3 + $0x2c0] sm:$0xff] %v3887
  %4144 = vst [vmem:[%s3 + $0x2c8] sm:$0xff] %v3888
  %4145 = vst [vmem:[%s3 + $0x2d0] sm:$0xff] %v3889
  %4146 = vst [vmem:[%s3 + $0x2d8] sm:$0xff] %v3890
  %4147 = vst [vmem:[%s3 + $0x2e0] sm:$0xff] %v3891
  %4148 = vst [vmem:[%s3 + $0x2e8] sm:$0xff] %v3892
  %4149 = vst [vmem:[%s3 + $0x2f0] sm:$0xff] %v3893
  %4150 = vst [vmem:[%s3 + $0x2f8] sm:$0xff] %v3894
  %4151 = vst [vmem:[%s3 + $0x300] sm:$0xff] %v3895
  %4152 = vst [vmem:[%s3 + $0x308] sm:$0xff] %v3896
  %4153 = vst [vmem:[%s3 + $0x310] sm:$0xff] %v3897
  %4154 = vst [vmem:[%s3 + $0x318] sm:$0xff] %v3898
  %4155 = vst [vmem:[%s3 + $0x320] sm:$0xff] %v3899
  %4156 = vst [vmem:[%s3 + $0x328] sm:$0xff] %v3900
  %4157 = vst [vmem:[%s3 + $0x330] sm:$0xff] %v3901
  %4158 = vst [vmem:[%s3 + $0x338] sm:$0xff] %v3902
  %4159 = vst [vmem:[%s3 + $0x340] sm:$0xff] %v3903
  %4160 = vst [vmem:[%s3 + $0x348] sm:$0xff] %v3904
  %4161 = vst [vmem:[%s3 + $0x350] sm:$0xff] %v3905
  %4162 = vst [vmem:[%s3 + $0x358] sm:$0xff] %v3906
  %4163 = vst [vmem:[%s3 + $0x360] sm:$0xff] %v3907
  %4164 = vst [vmem:[%s3 + $0x368] sm:$0xff] %v3908
  %4165 = vst [vmem:[%s3 + $0x370] sm:$0xff] %v3909
  %4166 = vst [vmem:[%s3 + $0x378] sm:$0xff] %v3910
  %4167 = vst [vmem:[%s3 + $0x380] sm:$0xff] %v3911
  %4168 = vst [vmem:[%s3 + $0x388] sm:$0xff] %v3912
  %4169 = vst [vmem:[%s3 + $0x390] sm:$0xff] %v3913
  %4170 = vst [vmem:[%s3 + $0x398] sm:$0xff] %v3914
  %4171 = vst [vmem:[%s3 + $0x3a0] sm:$0xff] %v3915
  %4172 = vst [vmem:[%s3 + $0x3a8] sm:$0xff] %v3916
  %4173 = vst [vmem:[%s3 + $0x3b0] sm:$0xff] %v3917
  %4174 = vst [vmem:[%s3 + $0x3b8] sm:$0xff] %v3918
  %4175 = vst [vmem:[%s3 + $0x3c0] sm:$0xff] %v3919
  %4176 = vst [vmem:[%s3 + $0x3c8] sm:$0xff] %v3920
  %4177 = vst [vmem:[%s3 + $0x3d0] sm:$0xff] %v3921
  %4178 = vst [vmem:[%s3 + $0x3d8] sm:$0xff] %v3922
  %4179 = vst [vmem:[%s3 + $0x3e0] sm:$0xff] %v3923
  %4180 = vst [vmem:[%s3 + $0x3e8] sm:$0xff] %v3924
  %4181 = vst [vmem:[%s3 + $0x3f0] sm:$0xff] %v3925
  %4182 = vst [vmem:[%s3 + $0x3f8] sm:$0xff] %v3926
  %4183 = vst [vmem:[%s3 + $0x400] sm:$0xff] %v3927
  %4184 = vst [vmem:[%s3 + $0x408] sm:$0xff] %v3928
  %4185 = vst [vmem:[%s3 + $0x410] sm:$0xff] %v3929
  %4186 = vst [vmem:[%s3 + $0x418] sm:$0xff] %v3930
  %4187 = vst [vmem:[%s3 + $0x420] sm:$0xff] %v3931
  %4188 = vst [vmem:[%s3 + $0x428] sm:$0xff] %v3932
  %4189 = vst [vmem:[%s3 + $0x430] sm:$0xff] %v3933
  %4190 = vst [vmem:[%s3 + $0x438] sm:$0xff] %v3934
  %4191 = vst [vmem:[%s3 + $0x440] sm:$0xff] %v3935
  %4192 = vst [vmem:[%s3 + $0x448] sm:$0xff] %v3936
  %4193 = vst [vmem:[%s3 + $0x450] sm:$0xff] %v3937
  %4194 = vst [vmem:[%s3 + $0x458] sm:$0xff] %v3938
  %4195 = vst [vmem:[%s3 + $0x460] sm:$0xff] %v3939
  %4196 = vst [vmem:[%s3 + $0x468] sm:$0xff] %v3940
  %4197 = vst [vmem:[%s3 + $0x470] sm:$0xff] %v3941
  %4198 = vst [vmem:[%s3 + $0x478] sm:$0xff] %v3942
  %4199 = vst [vmem:[%s3 + $0x480] sm:$0xff] %v3943
  %4200 = vst [vmem:[%s3 + $0x488] sm:$0xff] %v3944
  %4201 = vst [vmem:[%s3 + $0x490] sm:$0xff] %v3945
  %4202 = vst [vmem:[%s3 + $0x498] sm:$0xff] %v3946
  %4203 = vst [vmem:[%s3 + $0x4a0] sm:$0xff] %v3947
  %4204 = vst [vmem:[%s3 + $0x4a8] sm:$0xff] %v3948
  %4205 = vst [vmem:[%s3 + $0x4b0] sm:$0xff] %v3949
  %4206 = vst [vmem:[%s3 + $0x4b8] sm:$0xff] %v3950
  %4207 = vst [vmem:[%s3 + $0x4c0] sm:$0xff] %v3951
  %4208 = vst [vmem:[%s3 + $0x4c8] sm:$0xff] %v3952
  %4209 = vst [vmem:[%s3 + $0x4d0] sm:$0xff] %v3953
  %4210 = vst [vmem:[%s3 + $0x4d8] sm:$0xff] %v3954
  %4211 = vst [vmem:[%s3 + $0x4e0] sm:$0xff] %v3955
  %4212 = vst [vmem:[%s3 + $0x4e8] sm:$0xff] %v3956
  %4213 = vst [vmem:[%s3 + $0x4f0] sm:$0xff] %v3957
  %4214 = vst [vmem:[%s3 + $0x4f8] sm:$0xff] %v3958
  %4215 = vst [vmem:[%s3 + $0x500] sm:$0xff] %v3959
  %4216 = vst [vmem:[%s3 + $0x508] sm:$0xff] %v3960
  %4217 = vst [vmem:[%s3 + $0x510] sm:$0xff] %v3961
  %4218 = vst [vmem:[%s3 + $0x518] sm:$0xff] %v3962
  %4219 = vst [vmem:[%s3 + $0x520] sm:$0xff] %v3963
  %4220 = vst [vmem:[%s3 + $0x528] sm:$0xff] %v3964
  %4221 = vst [vmem:[%s3 + $0x530] sm:$0xff] %v3965
  %4222 = vst [vmem:[%s3 + $0x538] sm:$0xff] %v3966
  %4223 = vst [vmem:[%s3 + $0x540] sm:$0xff] %v3967
  %4224 = vst [vmem:[%s3 + $0x548] sm:$0xff] %v3968
  %4225 = vst [vmem:[%s3 + $0x550] sm:$0xff] %v3969
  %4226 = vst [vmem:[%s3 + $0x558] sm:$0xff] %v3970
  %4227 = vst [vmem:[%s3 + $0x560] sm:$0xff] %v3971
  %4228 = vst [vmem:[%s3 + $0x568] sm:$0xff] %v3972
  %4229 = vst [vmem:[%s3 + $0x570] sm:$0xff] %v3973
  %4230 = vst [vmem:[%s3 + $0x578] sm:$0xff] %v3974
  %4231 = vst [vmem:[%s3 + $0x580] sm:$0xff] %v3975
  %4232 = vst [vmem:[%s3 + $0x588] sm:$0xff] %v3976
  %4233 = vst [vmem:[%s3 + $0x590] sm:$0xff] %v3977
  %4234 = vst [vmem:[%s3 + $0x598] sm:$0xff] %v3978
  %4235 = vst [vmem:[%s3 + $0x5a0] sm:$0xff] %v3979
  %4236 = vst [vmem:[%s3 + $0x5a8] sm:$0xff] %v3980
  %4237 = vst [vmem:[%s3 + $0x5b0] sm:$0xff] %v3981
  %4238 = vst [vmem:[%s3 + $0x5b8] sm:$0xff] %v3982
  %4239 = vst [vmem:[%s3 + $0x5c0] sm:$0xff] %v3983
  %4240 = vst [vmem:[%s3 + $0x5c8] sm:$0xff] %v3984
  %4241 = vst [vmem:[%s3 + $0x5d0] sm:$0xff] %v3985
  %4242 = vst [vmem:[%s3 + $0x5d8] sm:$0xff] %v3986
  %4243 = vst [vmem:[%s3 + $0x5e0] sm:$0xff] %v3987
  %4244 = vst [vmem:[%s3 + $0x5e8] sm:$0xff] %v3988
  %4245 = vst [vmem:[%s3 + $0x5f0] sm:$0xff] %v3989
  %4246 = vst [vmem:[%s3 + $0x5f8] sm:$0xff] %v3990
  %4247 = vst [vmem:[%s3 + $0x600] sm:$0xff] %v3991
  %4248 = vst [vmem:[%s3 + $0x608] sm:$0xff] %v3992
  %4249 = vst [vmem:[%s3 + $0x610] sm:$0xff] %v3993
  %4250 = vst [vmem:[%s3 + $0x618] sm:$0xff] %v3994
  %4251 = vst [vmem:[%s3 + $0x620] sm:$0xff] %v3995
  %4252 = vst [vmem:[%s3 + $0x628] sm:$0xff] %v3996
  %4253 = vst [vmem:[%s3 + $0x630] sm:$0xff] %v3997
  %4254 = vst [vmem:[%s3 + $0x638] sm:$0xff] %v3998
  %4255 = vst [vmem:[%s3 + $0x640] sm:$0xff] %v3999
  %4256 = vst [vmem:[%s3 + $0x648] sm:$0xff] %v4000
  %4257 = vst [vmem:[%s3 + $0x650] sm:$0xff] %v4001
  %4258 = vst [vmem:[%s3 + $0x658] sm:$0xff] %v4002
  %4259 = vst [vmem:[%s3 + $0x660] sm:$0xff] %v4003
  %4260 = vst [vmem:[%s3 + $0x668] sm:$0xff] %v4004
  %4261 = vst [vmem:[%s3 + $0x670] sm:$0xff] %v4005
  %4262 = vst [vmem:[%s3 + $0x678] sm:$0xff] %v4006
  %4263 = vst [vmem:[%s3 + $0x680] sm:$0xff] %v4007
  %4264 = vst [vmem:[%s3 + $0x688] sm:$0xff] %v4008
  %4265 = vst [vmem:[%s3 + $0x690] sm:$0xff] %v4009
  %4266 = vst [vmem:[%s3 + $0x698] sm:$0xff] %v4010
  %4267 = vst [vmem:[%s3 + $0x6a0] sm:$0xff] %v4011
  %4268 = vst [vmem:[%s3 + $0x6a8] sm:$0xff] %v4012
  %4269 = vst [vmem:[%s3 + $0x6b0] sm:$0xff] %v4013
  %4270 = vst [vmem:[%s3 + $0x6b8] sm:$0xff] %v4014
  %4271 = vst [vmem:[%s3 + $0x6c0] sm:$0xff] %v4015
  %4272 = vst [vmem:[%s3 + $0x6c8] sm:$0xff] %v4016
  %4273 = vst [vmem:[%s3 + $0x6d0] sm:$0xff] %v4017
  %4274 = vst [vmem:[%s3 + $0x6d8] sm:$0xff] %v4018
  %4275 = vst [vmem:[%s3 + $0x6e0] sm:$0xff] %v4019
  %4276 = vst [vmem:[%s3 + $0x6e8] sm:$0xff] %v4020
  %4277 = vst [vmem:[%s3 + $0x6f0] sm:$0xff] %v4021
  %4278 = vst [vmem:[%s3 + $0x6f8] sm:$0xff] %v4022
  %4279 = vst [vmem:[%s3 + $0x700] sm:$0xff] %v4023
  %4280 = vst [vmem:[%s3 + $0x708] sm:$0xff] %v4024
  %4281 = vst [vmem:[%s3 + $0x710] sm:$0xff] %v4025
  %4282 = vst [vmem:[%s3 + $0x718] sm:$0xff] %v4026
  %4283 = vst [vmem:[%s3 + $0x720] sm:$0xff] %v4027
  %4284 = vst [vmem:[%s3 + $0x728] sm:$0xff] %v4028
  %4285 = vst [vmem:[%s3 + $0x730] sm:$0xff] %v4029
  %4286 = vst [vmem:[%s3 + $0x738] sm:$0xff] %v4030
  %4287 = vst [vmem:[%s3 + $0x740] sm:$0xff] %v4031
  %4288 = vst [vmem:[%s3 + $0x748] sm:$0xff] %v4032
  %4289 = vst [vmem:[%s3 + $0x750] sm:$0xff] %v4033
  %4290 = vst [vmem:[%s3 + $0x758] sm:$0xff] %v4034
  %4291 = vst [vmem:[%s3 + $0x760] sm:$0xff] %v4035
  %4292 = vst [vmem:[%s3 + $0x768] sm:$0xff] %v4036
  %4293 = vst [vmem:[%s3 + $0x770] sm:$0xff] %v4037
  %4294 = vst [vmem:[%s3 + $0x778] sm:$0xff] %v4038
  %4295 = vst [vmem:[%s3 + $0x780] sm:$0xff] %v4039
  %4296 = vst [vmem:[%s3 + $0x788] sm:$0xff] %v4040
  %4297 = vst [vmem:[%s3 + $0x790] sm:$0xff] %v4041
  %4298 = vst [vmem:[%s3 + $0x798] sm:$0xff] %v4042
  %4299 = vst [vmem:[%s3 + $0x7a0] sm:$0xff] %v4043
  %4300 = vst [vmem:[%s3 + $0x7a8] sm:$0xff] %v4044
  %4301 = vst [vmem:[%s3 + $0x7b0] sm:$0xff] %v4045
  %4302 = vst [vmem:[%s3 + $0x7b8] sm:$0xff] %v4046
  %4303 = vst [vmem:[%s3 + $0x7c0] sm:$0xff] %v4047
  %4304 = vst [vmem:[%s3 + $0x7c8] sm:$0xff] %v4048
  %4305 = vst [vmem:[%s3 + $0x7d0] sm:$0xff] %v4049
  %4306 = vst [vmem:[%s3 + $0x7d8] sm:$0xff] %v4050
  %4307 = vst [vmem:[%s3 + $0x7e0] sm:$0xff] %v4051
  %4308 = vst [vmem:[%s3 + $0x7e8] sm:$0xff] %v4052
  %4309 = vst [vmem:[%s3 + $0x7f0] sm:$0xff] %v4053
  %4310 = vst [vmem:[%s3 + $0x7f8] sm:$0xff] %v4054
  // Predicated region
  $region14: #{dc_generator_forward.8} parent=0 // pred_check
    _
  $region15: #{dc_generator_forward.8} parent=0 // pred_check_branch
    %4312 = sbr.rel (0) target = $region17
  $region16: #{dc_generator_forward.8} parent=0 // pred_region
    _
  $region17: #{dc_generator_forward.8} parent=0 // pred_fallthru
    _
  // Predicated region
  $region18: #{dc_generator_forward.8} parent=0 // pred_check
    _
  $region19: #{dc_generator_forward.8} parent=0 // pred_check_branch
    %4314 = sbr.rel (0) target = $region21
  $region20: #{dc_generator_forward.8} parent=0 // pred_region
    _
  $region21: #{dc_generator_forward.8} parent=0 // pred_fallthru
    _

// kernel: dc_generator_forward.9
$region0: #{dc_generator_forward.9}
  #allocation0 [shape = 'u32[]', space=smem, size = 0x4, offset = 0x4, fixed_abs, tag = 'smem constant byte address 0x4 - core index']
  #allocation1 [shape = 'u32[144,128]{1,0:T(1,128)}', space=vmem, size = 0x12000, scoped, tag = 'internal scratch']
  %s0 = inlined_call_operand.vmem [shape: bf16[4,2048,64], index: 0, kind: input, shape index: {}]
  %s1 = inlined_call_operand.vmem [shape: bf16[4,64,128], index: 1, kind: input, shape index: {}]
  %s2 = inlined_call_operand.vmem [shape: f32[1,128], index: 2, kind: input, shape index: {}]
  %s3 = inlined_call_operand.vmem [shape: f32[4,2048,128], index: 3, kind: output, shape index: {}]
  %s4 = sld [smem:[#allocation0]]
  $region45: #{dc_generator_forward.9} parent=0
    _
  %s6 = ssub.s32 1, %s4
  %s7 = scalar_select 0, %s6, %s4
  loop: start=0, step=1, limit=6
  $region2: #{dc_generator_forward.9} parent=0 // loop_pre_header
    _
  $region3: #{dc_generator_forward.9} parent=0 // loop_header
    %s9 = sphi 0, %s13
    %p10 = scmp.ge.s32.totalorder %s9, 6
    %s19 = sphi 0, %s21
    %s22 = sphi 0, %s19
    %s23 = sphi 0, %s22
    %s39 = sphi 0, %s23
    %s45 = sphi 0, %s47
    %s48 = sphi 0, %s45
    %s49 = sphi 0, %s48
    %s65 = sphi 0, %s49
    %s69 = sphi 0, %s69
    %s71 = sphi 0, %s69
    %s72 = sphi 0, %s71
    %s86 = sphi 0, %s72
    %s92 = sphi 0, %s94
    %s95 = sphi 0, %s92
    %s96 = sphi 0, %s95
    %s112 = sphi 0, %s96
  $region4: #{dc_generator_forward.9} parent=0 // loop_header_branch
    %12 = sbr.rel (%p10) target = $region8
  $region5: #{dc_generator_forward.9} parent=0 // loop_body
    %s14 = ssub.s32 %s9, 1
    %s15 = ssub.s32 %s9, 2
    %s16 = sadd.s32 %s9, 1
    %s17 = ssub.s32 %s9, %s16
    %p18 = scmp.eq.s32.totalorder %s17, 0
    %s20 = sadd.s32 %s19, 1
    %s21 = scalar_select %p18, %s19, %s20
    %p24 = pneg %p18
    %p25 = scmp.eq.s32.totalorder %s9, 3
    %p26 = por %p24, %p25
    %p27 = scmp.ne.s32.totalorder %s19, %s22
    %p28 = scmp.eq.s32.totalorder %s9, 0
    %p29 = por %p27, %p28
    %p30 = scmp.ne.s32.totalorder %s19, %s22
    %p31 = scmp.eq.s32.totalorder %s14, 3
    %p32 = por %p30, %p31
    %p33 = scmp.ne.s32.totalorder %s22, %s23
    %p34 = scmp.eq.s32.totalorder %s14, 0
    %p35 = por %p33, %p34
    %p36 = scmp.ne.s32.totalorder %s22, %s23
    %p37 = scmp.eq.s32.totalorder %s15, 3
    %p38 = por %p36, %p37
    %p40 = scmp.ne.s32.totalorder %s23, %s39
    %p41 = scmp.eq.s32.totalorder %s15, 0
    %p42 = por %p40, %p41
    %s43 = ssub.s32 %s9, %s16
    %p44 = scmp.eq.s32.totalorder %s43, 0
    %s46 = sadd.s32 %s45, 1
    %s47 = scalar_select %p44, %s45, %s46
    %p50 = pneg %p44
    %p51 = scmp.eq.s32.totalorder %s9, 3
    %p52 = por %p50, %p51
    %p53 = scmp.ne.s32.totalorder %s45, %s48
    %p54 = scmp.eq.s32.totalorder %s9, 0
    %p55 = por %p53, %p54
    %p56 = scmp.ne.s32.totalorder %s45, %s48
    %p57 = scmp.eq.s32.totalorder %s14, 3
    %p58 = por %p56, %p57
    %p59 = scmp.ne.s32.totalorder %s48, %s49
    %p60 = scmp.eq.s32.totalorder %s14, 0
    %p61 = por %p59, %p60
    %p62 = scmp.ne.s32.totalorder %s48, %s49
    %p63 = scmp.eq.s32.totalorder %s15, 3
    %p64 = por %p62, %p63
    %p66 = scmp.ne.s32.totalorder %s49, %s65
    %p67 = scmp.eq.s32.totalorder %s15, 0
    %p68 = por %p66, %p67
    %s70 = sadd.s32 %s69, 1
    %p73 = scmp.eq.s32.totalorder %s9, 3
    %p74 = scmp.ne.s32.totalorder %s69, %s71
    %p75 = scmp.eq.s32.totalorder %s9, 0
    %p76 = por %p74, %p75
    %p77 = scmp.ne.s32.totalorder %s69, %s71
    %p78 = scmp.eq.s32.totalorder %s14, 3
    %p79 = por %p77, %p78
    %p80 = scmp.ne.s32.totalorder %s71, %s72
    %p81 = scmp.eq.s32.totalorder %s14, 0
    %p82 = por %p80, %p81
    %p83 = scmp.ne.s32.totalorder %s71, %s72
    %p84 = scmp.eq.s32.totalorder %s15, 3
    %p85 = por %p83, %p84
    %p87 = scmp.ne.s32.totalorder %s72, %s86
    %p88 = scmp.eq.s32.totalorder %s15, 0
    %p89 = por %p87, %p88
    %s90 = ssub.s32 %s9, %s16
    %p91 = scmp.eq.s32.totalorder %s90, 0
    %s93 = sadd.s32 %s92, 1
    %s94 = scalar_select %p91, %s92, %s93
    %p97 = pneg %p91
    %p98 = scmp.eq.s32.totalorder %s9, 3
    %p99 = por %p97, %p98
    %p100 = scmp.ne.s32.totalorder %s92, %s95
    %p101 = scmp.eq.s32.totalorder %s9, 0
    %p102 = por %p100, %p101
    %p103 = scmp.ne.s32.totalorder %s92, %s95
    %p104 = scmp.eq.s32.totalorder %s14, 3
    %p105 = por %p103, %p104
    %p106 = scmp.ne.s32.totalorder %s95, %s96
    %p107 = scmp.eq.s32.totalorder %s14, 0
    %p108 = por %p106, %p107
    %p109 = scmp.ne.s32.totalorder %s95, %s96
    %p110 = scmp.eq.s32.totalorder %s15, 3
    %p111 = por %p109, %p110
    %p113 = scmp.ne.s32.totalorder %s96, %s112
    %p114 = scmp.eq.s32.totalorder %s15, 0
    %p115 = por %p113, %p114
    %p116 = scmp.le.s32.totalorder 1, %s9
    %p117 = scmp.lt.s32.totalorder %s9, 5
    %p118 = pnand %p116, %p117
    %p119 = pneg %p118
    // Predicated region
    $region9: #{dc_generator_forward.9} parent=5 // pred_check
      _
    $region10: #{dc_generator_forward.9} parent=5 // pred_check_branch
      %121 = sbr.rel (%p118) target = $region12
    $region11: #{dc_generator_forward.9} parent=5 // pred_region
      %s122 = ssub.s32 %s9, 1
      // Predicated region
      $region13: #{dc_generator_forward.9} parent=11 // pred_check
        %p123 = pneg %p82
      $region14: #{dc_generator_forward.9} parent=11 // pred_check_branch
        %125 = sbr.rel (%p123) target = $region16
      $region15: #{dc_generator_forward.9} parent=11 // pred_region
        _
      $region16: #{dc_generator_forward.9} parent=11 // pred_fallthru
        _
    $region12: #{dc_generator_forward.9} parent=5 // pred_fallthru
      _
    %p126 = scmp.lt.s32.totalorder %s9, 4
    // Predicated region
    $region17: #{dc_generator_forward.9} parent=5 // pred_check
      %p127 = pneg %p126
    $region18: #{dc_generator_forward.9} parent=5 // pred_check_branch
      %129 = sbr.rel (%p127) target = $region20
    $region19: #{dc_generator_forward.9} parent=5 // pred_region
      // Predicated region
      $region21: #{dc_generator_forward.9} parent=19 // pred_check
        %p130 = pneg %p29
      $region22: #{dc_generator_forward.9} parent=19 // pred_check_branch
        %132 = sbr.rel (%p130) target = $region24
      $region23: #{dc_generator_forward.9} parent=19 // pred_region
        %p133 = scmp.lt.s32.totalorder %s9, 3
        %s134 = scalar_select %p133, %s9, 3
        %s135 = smul.addr %s134, 256
        %s136 = smul.addr %s135, 4
        %s137 = scalar_lea.vmem %s0, %s136
      $region24: #{dc_generator_forward.9} parent=19 // pred_fallthru
        _
      // Predicated region
      $region25: #{dc_generator_forward.9} parent=19 // pred_check
        %p138 = pneg %p55
      $region26: #{dc_generator_forward.9} parent=19 // pred_check_branch
        %140 = sbr.rel (%p138) target = $region28
      $region27: #{dc_generator_forward.9} parent=19 // pred_region
        %p141 = scmp.lt.s32.totalorder %s9, 3
        %s142 = scalar_select %p141, %s9, 3
        %s143 = smul.addr %s142, 8
        %s144 = smul.addr %s143, 4
        %s145 = scalar_lea.vmem %s1, %s144
      $region28: #{dc_generator_forward.9} parent=19 // pred_fallthru
        _
    $region20: #{dc_generator_forward.9} parent=5 // pred_fallthru
      _
    %p146 = scmp.le.s32.totalorder 1, %s9
    %p147 = scmp.lt.s32.totalorder %s9, 5
    %p148 = pnand %p146, %p147
    %p149 = pneg %p148
    // Predicated region
    $region29: #{dc_generator_forward.9} parent=5 // pred_check
      _
    $region30: #{dc_generator_forward.9} parent=5 // pred_check_branch
      %151 = sbr.rel (%p148) target = $region32
    $region31: #{dc_generator_forward.9} parent=5 // pred_region
      %s152 = ssub.s32 %s9, 1
      %p153 = scmp.lt.s32.totalorder %s14, 3
      %s154 = scalar_select %p153, %s14, 3
      %s155 = smul.addr %s154, 256
      %s156 = smul.addr %s155, 4
      %s157 = scalar_lea.vmem %s0, %s156
      %p158 = pneg %p35
      %p159 = pneg %p32
      %p160 = scmp.lt.s32.totalorder %s14, 3
      %s161 = scalar_select %p160, %s14, 3
      %s162 = smul.addr %s161, 8
      %s163 = smul.addr %s162, 4
      %s164 = scalar_lea.vmem %s1, %s163
      %p165 = pneg %p61
      %p166 = pneg %p58
      %p167 = pneg %p82
      %p168 = pneg %p79
      %p169 = pneg %p108
      %p170 = pneg %p105
      %p171 = scmp.lt.s32.totalorder %s14, 3
      %s172 = scalar_select %p171, %s14, 3
      %s173 = smul.addr %s172, 256
      %s174 = smul.addr %s173, 8
      %s175 = scalar_lea.vmem %s3, %s174
      %p176 = scmp.lt.s32.totalorder %s14, 3
      %s177 = scalar_select %p176, %s14, 3
      %s178 = smul.addr %s177, 256
      %s179 = smul.addr %s178, 4
      %s180 = scalar_lea.vmem %s0, %s179
      %p181 = scmp.lt.s32.totalorder %s14, 3
      %s182 = scalar_select %p181, %s14, 3
      %s183 = smul.addr %s182, 8
      %s184 = smul.addr %s183, 4
      %s185 = scalar_lea.vmem %s1, %s184
      %p186 = scmp.lt.s32.totalorder %s14, 3
      %s187 = scalar_select %p186, %s14, 3
      %s188 = smul.addr %s187, 256
      %s189 = smul.addr %s188, 8
      %s190 = scalar_lea.vmem %s3, %s189
      %v192 = vld [vmem:[%s180] sm:$0xf]
      %v193 = vld [vmem:[%s180 + $0x4] sm:$0xf]
      %v194 = vld [vmem:[%s180 + $0x8] sm:$0xf]
      %v195 = vld [vmem:[%s180 + $0xc] sm:$0xf]
      %v196 = vld [vmem:[%s180 + $0x10] sm:$0xf]
      %v197 = vld [vmem:[%s180 + $0x14] sm:$0xf]
      %v198 = vld [vmem:[%s180 + $0x18] sm:$0xf]
      %v199 = vld [vmem:[%s180 + $0x1c] sm:$0xf]
      %v200 = vld [vmem:[%s180 + $0x20] sm:$0xf]
      %v201 = vld [vmem:[%s180 + $0x24] sm:$0xf]
      %v202 = vld [vmem:[%s180 + $0x28] sm:$0xf]
      %v203 = vld [vmem:[%s180 + $0x2c] sm:$0xf]
      %v204 = vld [vmem:[%s180 + $0x30] sm:$0xf]
      %v205 = vld [vmem:[%s180 + $0x34] sm:$0xf]
      %v206 = vld [vmem:[%s180 + $0x38] sm:$0xf]
      %v207 = vld [vmem:[%s180 + $0x3c] sm:$0xf]
      %v208 = vld [vmem:[%s180 + $0x40] sm:$0xf]
      %v209 = vld [vmem:[%s180 + $0x44] sm:$0xf]
      %v210 = vld [vmem:[%s180 + $0x48] sm:$0xf]
      %v211 = vld [vmem:[%s180 + $0x4c] sm:$0xf]
      %v212 = vld [vmem:[%s180 + $0x50] sm:$0xf]
      %v213 = vld [vmem:[%s180 + $0x54] sm:$0xf]
      %v214 = vld [vmem:[%s180 + $0x58] sm:$0xf]
      %v215 = vld [vmem:[%s180 + $0x5c] sm:$0xf]
      %v216 = vld [vmem:[%s180 + $0x60] sm:$0xf]
      %v217 = vld [vmem:[%s180 + $0x64] sm:$0xf]
      %v218 = vld [vmem:[%s180 + $0x68] sm:$0xf]
      %v219 = vld [vmem:[%s180 + $0x6c] sm:$0xf]
      %v220 = vld [vmem:[%s180 + $0x70] sm:$0xf]
      %v221 = vld [vmem:[%s180 + $0x74] sm:$0xf]
      %v222 = vld [vmem:[%s180 + $0x78] sm:$0xf]
      %v223 = vld [vmem:[%s180 + $0x7c] sm:$0xf]
      %v224 = vld [vmem:[%s180 + $0x80] sm:$0xf]
      %v225 = vld [vmem:[%s180 + $0x84] sm:$0xf]
      %v226 = vld [vmem:[%s180 + $0x88] sm:$0xf]
      %v227 = vld [vmem:[%s180 + $0x8c] sm:$0xf]
      %v228 = vld [vmem:[%s180 + $0x90] sm:$0xf]
      %v229 = vld [vmem:[%s180 + $0x94] sm:$0xf]
      %v230 = vld [vmem:[%s180 + $0x98] sm:$0xf]
      %v231 = vld [vmem:[%s180 + $0x9c] sm:$0xf]
      %v232 = vld [vmem:[%s180 + $0xa0] sm:$0xf]
      %v233 = vld [vmem:[%s180 + $0xa4] sm:$0xf]
      %v234 = vld [vmem:[%s180 + $0xa8] sm:$0xf]
      %v235 = vld [vmem:[%s180 + $0xac] sm:$0xf]
      %v236 = vld [vmem:[%s180 + $0xb0] sm:$0xf]
      %v237 = vld [vmem:[%s180 + $0xb4] sm:$0xf]
      %v238 = vld [vmem:[%s180 + $0xb8] sm:$0xf]
      %v239 = vld [vmem:[%s180 + $0xbc] sm:$0xf]
      %v240 = vld [vmem:[%s180 + $0xc0] sm:$0xf]
      %v241 = vld [vmem:[%s180 + $0xc4] sm:$0xf]
      %v242 = vld [vmem:[%s180 + $0xc8] sm:$0xf]
      %v243 = vld [vmem:[%s180 + $0xcc] sm:$0xf]
      %v244 = vld [vmem:[%s180 + $0xd0] sm:$0xf]
      %v245 = vld [vmem:[%s180 + $0xd4] sm:$0xf]
      %v246 = vld [vmem:[%s180 + $0xd8] sm:$0xf]
      %v247 = vld [vmem:[%s180 + $0xdc] sm:$0xf]
      %v248 = vld [vmem:[%s180 + $0xe0] sm:$0xf]
      %v249 = vld [vmem:[%s180 + $0xe4] sm:$0xf]
      %v250 = vld [vmem:[%s180 + $0xe8] sm:$0xf]
      %v251 = vld [vmem:[%s180 + $0xec] sm:$0xf]
      %v252 = vld [vmem:[%s180 + $0xf0] sm:$0xf]
      %v253 = vld [vmem:[%s180 + $0xf4] sm:$0xf]
      %v254 = vld [vmem:[%s180 + $0xf8] sm:$0xf]
      %v255 = vld [vmem:[%s180 + $0xfc] sm:$0xf]
      %v256 = vld [vmem:[%s180 + $0x100] sm:$0xf]
      %v257 = vld [vmem:[%s180 + $0x104] sm:$0xf]
      %v258 = vld [vmem:[%s180 + $0x108] sm:$0xf]
      %v259 = vld [vmem:[%s180 + $0x10c] sm:$0xf]
      %v260 = vld [vmem:[%s180 + $0x110] sm:$0xf]
      %v261 = vld [vmem:[%s180 + $0x114] sm:$0xf]
      %v262 = vld [vmem:[%s180 + $0x118] sm:$0xf]
      %v263 = vld [vmem:[%s180 + $0x11c] sm:$0xf]
      %v264 = vld [vmem:[%s180 + $0x120] sm:$0xf]
      %v265 = vld [vmem:[%s180 + $0x124] sm:$0xf]
      %v266 = vld [vmem:[%s180 + $0x128] sm:$0xf]
      %v267 = vld [vmem:[%s180 + $0x12c] sm:$0xf]
      %v268 = vld [vmem:[%s180 + $0x130] sm:$0xf]
      %v269 = vld [vmem:[%s180 + $0x134] sm:$0xf]
      %v270 = vld [vmem:[%s180 + $0x138] sm:$0xf]
      %v271 = vld [vmem:[%s180 + $0x13c] sm:$0xf]
      %v272 = vld [vmem:[%s180 + $0x140] sm:$0xf]
      %v273 = vld [vmem:[%s180 + $0x144] sm:$0xf]
      %v274 = vld [vmem:[%s180 + $0x148] sm:$0xf]
      %v275 = vld [vmem:[%s180 + $0x14c] sm:$0xf]
      %v276 = vld [vmem:[%s180 + $0x150] sm:$0xf]
      %v277 = vld [vmem:[%s180 + $0x154] sm:$0xf]
      %v278 = vld [vmem:[%s180 + $0x158] sm:$0xf]
      %v279 = vld [vmem:[%s180 + $0x15c] sm:$0xf]
      %v280 = vld [vmem:[%s180 + $0x160] sm:$0xf]
      %v281 = vld [vmem:[%s180 + $0x164] sm:$0xf]
      %v282 = vld [vmem:[%s180 + $0x168] sm:$0xf]
      %v283 = vld [vmem:[%s180 + $0x16c] sm:$0xf]
      %v284 = vld [vmem:[%s180 + $0x170] sm:$0xf]
      %v285 = vld [vmem:[%s180 + $0x174] sm:$0xf]
      %v286 = vld [vmem:[%s180 + $0x178] sm:$0xf]
      %v287 = vld [vmem:[%s180 + $0x17c] sm:$0xf]
      %v288 = vld [vmem:[%s180 + $0x180] sm:$0xf]
      %v289 = vld [vmem:[%s180 + $0x184] sm:$0xf]
      %v290 = vld [vmem:[%s180 + $0x188] sm:$0xf]
      %v291 = vld [vmem:[%s180 + $0x18c] sm:$0xf]
      %v292 = vld [vmem:[%s180 + $0x190] sm:$0xf]
      %v293 = vld [vmem:[%s180 + $0x194] sm:$0xf]
      %v294 = vld [vmem:[%s180 + $0x198] sm:$0xf]
      %v295 = vld [vmem:[%s180 + $0x19c] sm:$0xf]
      %v296 = vld [vmem:[%s180 + $0x1a0] sm:$0xf]
      %v297 = vld [vmem:[%s180 + $0x1a4] sm:$0xf]
      %v298 = vld [vmem:[%s180 + $0x1a8] sm:$0xf]
      %v299 = vld [vmem:[%s180 + $0x1ac] sm:$0xf]
      %v300 = vld [vmem:[%s180 + $0x1b0] sm:$0xf]
      %v301 = vld [vmem:[%s180 + $0x1b4] sm:$0xf]
      %v302 = vld [vmem:[%s180 + $0x1b8] sm:$0xf]
      %v303 = vld [vmem:[%s180 + $0x1bc] sm:$0xf]
      %v304 = vld [vmem:[%s180 + $0x1c0] sm:$0xf]
      %v305 = vld [vmem:[%s180 + $0x1c4] sm:$0xf]
      %v306 = vld [vmem:[%s180 + $0x1c8] sm:$0xf]
      %v307 = vld [vmem:[%s180 + $0x1cc] sm:$0xf]
      %v308 = vld [vmem:[%s180 + $0x1d0] sm:$0xf]
      %v309 = vld [vmem:[%s180 + $0x1d4] sm:$0xf]
      %v310 = vld [vmem:[%s180 + $0x1d8] sm:$0xf]
      %v311 = vld [vmem:[%s180 + $0x1dc] sm:$0xf]
      %v312 = vld [vmem:[%s180 + $0x1e0] sm:$0xf]
      %v313 = vld [vmem:[%s180 + $0x1e4] sm:$0xf]
      %v314 = vld [vmem:[%s180 + $0x1e8] sm:$0xf]
      %v315 = vld [vmem:[%s180 + $0x1ec] sm:$0xf]
      %v316 = vld [vmem:[%s180 + $0x1f0] sm:$0xf]
      %v317 = vld [vmem:[%s180 + $0x1f4] sm:$0xf]
      %v318 = vld [vmem:[%s180 + $0x1f8] sm:$0xf]
      %v319 = vld [vmem:[%s180 + $0x1fc] sm:$0xf]
      %v320 = vld [vmem:[%s180 + $0x200] sm:$0xf]
      %v321 = vld [vmem:[%s180 + $0x204] sm:$0xf]
      %v322 = vld [vmem:[%s180 + $0x208] sm:$0xf]
      %v323 = vld [vmem:[%s180 + $0x20c] sm:$0xf]
      %v324 = vld [vmem:[%s180 + $0x210] sm:$0xf]
      %v325 = vld [vmem:[%s180 + $0x214] sm:$0xf]
      %v326 = vld [vmem:[%s180 + $0x218] sm:$0xf]
      %v327 = vld [vmem:[%s180 + $0x21c] sm:$0xf]
      %v328 = vld [vmem:[%s180 + $0x220] sm:$0xf]
      %v329 = vld [vmem:[%s180 + $0x224] sm:$0xf]
      %v330 = vld [vmem:[%s180 + $0x228] sm:$0xf]
      %v331 = vld [vmem:[%s180 + $0x22c] sm:$0xf]
      %v332 = vld [vmem:[%s180 + $0x230] sm:$0xf]
      %v333 = vld [vmem:[%s180 + $0x234] sm:$0xf]
      %v334 = vld [vmem:[%s180 + $0x238] sm:$0xf]
      %v335 = vld [vmem:[%s180 + $0x23c] sm:$0xf]
      %v336 = vld [vmem:[%s180 + $0x240] sm:$0xf]
      %v337 = vld [vmem:[%s180 + $0x244] sm:$0xf]
      %v338 = vld [vmem:[%s180 + $0x248] sm:$0xf]
      %v339 = vld [vmem:[%s180 + $0x24c] sm:$0xf]
      %v340 = vld [vmem:[%s180 + $0x250] sm:$0xf]
      %v341 = vld [vmem:[%s180 + $0x254] sm:$0xf]
      %v342 = vld [vmem:[%s180 + $0x258] sm:$0xf]
      %v343 = vld [vmem:[%s180 + $0x25c] sm:$0xf]
      %v344 = vld [vmem:[%s180 + $0x260] sm:$0xf]
      %v345 = vld [vmem:[%s180 + $0x264] sm:$0xf]
      %v346 = vld [vmem:[%s180 + $0x268] sm:$0xf]
      %v347 = vld [vmem:[%s180 + $0x26c] sm:$0xf]
      %v348 = vld [vmem:[%s180 + $0x270] sm:$0xf]
      %v349 = vld [vmem:[%s180 + $0x274] sm:$0xf]
      %v350 = vld [vmem:[%s180 + $0x278] sm:$0xf]
      %v351 = vld [vmem:[%s180 + $0x27c] sm:$0xf]
      %v352 = vld [vmem:[%s180 + $0x280] sm:$0xf]
      %v353 = vld [vmem:[%s180 + $0x284] sm:$0xf]
      %v354 = vld [vmem:[%s180 + $0x288] sm:$0xf]
      %v355 = vld [vmem:[%s180 + $0x28c] sm:$0xf]
      %v356 = vld [vmem:[%s180 + $0x290] sm:$0xf]
      %v357 = vld [vmem:[%s180 + $0x294] sm:$0xf]
      %v358 = vld [vmem:[%s180 + $0x298] sm:$0xf]
      %v359 = vld [vmem:[%s180 + $0x29c] sm:$0xf]
      %v360 = vld [vmem:[%s180 + $0x2a0] sm:$0xf]
      %v361 = vld [vmem:[%s180 + $0x2a4] sm:$0xf]
      %v362 = vld [vmem:[%s180 + $0x2a8] sm:$0xf]
      %v363 = vld [vmem:[%s180 + $0x2ac] sm:$0xf]
      %v364 = vld [vmem:[%s180 + $0x2b0] sm:$0xf]
      %v365 = vld [vmem:[%s180 + $0x2b4] sm:$0xf]
      %v366 = vld [vmem:[%s180 + $0x2b8] sm:$0xf]
      %v367 = vld [vmem:[%s180 + $0x2bc] sm:$0xf]
      %v368 = vld [vmem:[%s180 + $0x2c0] sm:$0xf]
      %v369 = vld [vmem:[%s180 + $0x2c4] sm:$0xf]
      %v370 = vld [vmem:[%s180 + $0x2c8] sm:$0xf]
      %v371 = vld [vmem:[%s180 + $0x2cc] sm:$0xf]
      %v372 = vld [vmem:[%s180 + $0x2d0] sm:$0xf]
      %v373 = vld [vmem:[%s180 + $0x2d4] sm:$0xf]
      %v374 = vld [vmem:[%s180 + $0x2d8] sm:$0xf]
      %v375 = vld [vmem:[%s180 + $0x2dc] sm:$0xf]
      %v376 = vld [vmem:[%s180 + $0x2e0] sm:$0xf]
      %v377 = vld [vmem:[%s180 + $0x2e4] sm:$0xf]
      %v378 = vld [vmem:[%s180 + $0x2e8] sm:$0xf]
      %v379 = vld [vmem:[%s180 + $0x2ec] sm:$0xf]
      %v380 = vld [vmem:[%s180 + $0x2f0] sm:$0xf]
      %v381 = vld [vmem:[%s180 + $0x2f4] sm:$0xf]
      %v382 = vld [vmem:[%s180 + $0x2f8] sm:$0xf]
      %v383 = vld [vmem:[%s180 + $0x2fc] sm:$0xf]
      %v384 = vld [vmem:[%s180 + $0x300] sm:$0xf]
      %v385 = vld [vmem:[%s180 + $0x304] sm:$0xf]
      %v386 = vld [vmem:[%s180 + $0x308] sm:$0xf]
      %v387 = vld [vmem:[%s180 + $0x30c] sm:$0xf]
      %v388 = vld [vmem:[%s180 + $0x310] sm:$0xf]
      %v389 = vld [vmem:[%s180 + $0x314] sm:$0xf]
      %v390 = vld [vmem:[%s180 + $0x318] sm:$0xf]
      %v391 = vld [vmem:[%s180 + $0x31c] sm:$0xf]
      %v392 = vld [vmem:[%s180 + $0x320] sm:$0xf]
      %v393 = vld [vmem:[%s180 + $0x324] sm:$0xf]
      %v394 = vld [vmem:[%s180 + $0x328] sm:$0xf]
      %v395 = vld [vmem:[%s180 + $0x32c] sm:$0xf]
      %v396 = vld [vmem:[%s180 + $0x330] sm:$0xf]
      %v397 = vld [vmem:[%s180 + $0x334] sm:$0xf]
      %v398 = vld [vmem:[%s180 + $0x338] sm:$0xf]
      %v399 = vld [vmem:[%s180 + $0x33c] sm:$0xf]
      %v400 = vld [vmem:[%s180 + $0x340] sm:$0xf]
      %v401 = vld [vmem:[%s180 + $0x344] sm:$0xf]
      %v402 = vld [vmem:[%s180 + $0x348] sm:$0xf]
      %v403 = vld [vmem:[%s180 + $0x34c] sm:$0xf]
      %v404 = vld [vmem:[%s180 + $0x350] sm:$0xf]
      %v405 = vld [vmem:[%s180 + $0x354] sm:$0xf]
      %v406 = vld [vmem:[%s180 + $0x358] sm:$0xf]
      %v407 = vld [vmem:[%s180 + $0x35c] sm:$0xf]
      %v408 = vld [vmem:[%s180 + $0x360] sm:$0xf]
      %v409 = vld [vmem:[%s180 + $0x364] sm:$0xf]
      %v410 = vld [vmem:[%s180 + $0x368] sm:$0xf]
      %v411 = vld [vmem:[%s180 + $0x36c] sm:$0xf]
      %v412 = vld [vmem:[%s180 + $0x370] sm:$0xf]
      %v413 = vld [vmem:[%s180 + $0x374] sm:$0xf]
      %v414 = vld [vmem:[%s180 + $0x378] sm:$0xf]
      %v415 = vld [vmem:[%s180 + $0x37c] sm:$0xf]
      %v416 = vld [vmem:[%s180 + $0x380] sm:$0xf]
      %v417 = vld [vmem:[%s180 + $0x384] sm:$0xf]
      %v418 = vld [vmem:[%s180 + $0x388] sm:$0xf]
      %v419 = vld [vmem:[%s180 + $0x38c] sm:$0xf]
      %v420 = vld [vmem:[%s180 + $0x390] sm:$0xf]
      %v421 = vld [vmem:[%s180 + $0x394] sm:$0xf]
      %v422 = vld [vmem:[%s180 + $0x398] sm:$0xf]
      %v423 = vld [vmem:[%s180 + $0x39c] sm:$0xf]
      %v424 = vld [vmem:[%s180 + $0x3a0] sm:$0xf]
      %v425 = vld [vmem:[%s180 + $0x3a4] sm:$0xf]
      %v426 = vld [vmem:[%s180 + $0x3a8] sm:$0xf]
      %v427 = vld [vmem:[%s180 + $0x3ac] sm:$0xf]
      %v428 = vld [vmem:[%s180 + $0x3b0] sm:$0xf]
      %v429 = vld [vmem:[%s180 + $0x3b4] sm:$0xf]
      %v430 = vld [vmem:[%s180 + $0x3b8] sm:$0xf]
      %v431 = vld [vmem:[%s180 + $0x3bc] sm:$0xf]
      %v432 = vld [vmem:[%s180 + $0x3c0] sm:$0xf]
      %v433 = vld [vmem:[%s180 + $0x3c4] sm:$0xf]
      %v434 = vld [vmem:[%s180 + $0x3c8] sm:$0xf]
      %v435 = vld [vmem:[%s180 + $0x3cc] sm:$0xf]
      %v436 = vld [vmem:[%s180 + $0x3d0] sm:$0xf]
      %v437 = vld [vmem:[%s180 + $0x3d4] sm:$0xf]
      %v438 = vld [vmem:[%s180 + $0x3d8] sm:$0xf]
      %v439 = vld [vmem:[%s180 + $0x3dc] sm:$0xf]
      %v440 = vld [vmem:[%s180 + $0x3e0] sm:$0xf]
      %v441 = vld [vmem:[%s180 + $0x3e4] sm:$0xf]
      %v442 = vld [vmem:[%s180 + $0x3e8] sm:$0xf]
      %v443 = vld [vmem:[%s180 + $0x3ec] sm:$0xf]
      %v444 = vld [vmem:[%s180 + $0x3f0] sm:$0xf]
      %v445 = vld [vmem:[%s180 + $0x3f4] sm:$0xf]
      %v446 = vld [vmem:[%s180 + $0x3f8] sm:$0xf]
      %v447 = vld [vmem:[%s180 + $0x3fc] sm:$0xf]
      %v448 = vld [vmem:[%s185] sm:$0xf]
      %v449 = vld [vmem:[%s185 + $0x4] sm:$0xf]
      %v450 = vld [vmem:[%s185 + $0x8] sm:$0xf]
      %v451 = vld [vmem:[%s185 + $0xc] sm:$0xf]
      %v452 = vld [vmem:[%s185 + $0x10] sm:$0xf]
      %v453 = vld [vmem:[%s185 + $0x14] sm:$0xf]
      %v454 = vld [vmem:[%s185 + $0x18] sm:$0xf]
      %v455 = vld [vmem:[%s185 + $0x1c] sm:$0xf]
      %v456 = vld [vmem:[%s2] sm:$0x1]
      %v458 = vlaneseq
      %v459 = vshrl.u32 %v458, 7
      %v460 = vsub.s32 0, %v459
      %v461 = vrot.slane %v456, %v460
      %v719 = vunpack.c.l.b16 %v192
      %v720 = vunpack.c.l.b16 %v193
      %v721 = vunpack.c.l.b16 %v194
      %v722 = vunpack.c.l.b16 %v195
      %v723 = vunpack.c.l.b16 %v196
      %v724 = vunpack.c.l.b16 %v197
      %v725 = vunpack.c.l.b16 %v198
      %v726 = vunpack.c.l.b16 %v199
      %v727 = vunpack.c.l.b16 %v200
      %v728 = vunpack.c.l.b16 %v201
      %v729 = vunpack.c.l.b16 %v202
      %v730 = vunpack.c.l.b16 %v203
      %v731 = vunpack.c.l.b16 %v204
      %v732 = vunpack.c.l.b16 %v205
      %v733 = vunpack.c.l.b16 %v206
      %v734 = vunpack.c.l.b16 %v207
      %v735 = vunpack.c.l.b16 %v208
      %v736 = vunpack.c.l.b16 %v209
      %v737 = vunpack.c.l.b16 %v210
      %v738 = vunpack.c.l.b16 %v211
      %v739 = vunpack.c.l.b16 %v212
      %v740 = vunpack.c.l.b16 %v213
      %v741 = vunpack.c.l.b16 %v214
      %v742 = vunpack.c.l.b16 %v215
      %v743 = vunpack.c.l.b16 %v216
      %v744 = vunpack.c.l.b16 %v217
      %v745 = vunpack.c.l.b16 %v218
      %v746 = vunpack.c.l.b16 %v219
      %v747 = vunpack.c.l.b16 %v220
      %v748 = vunpack.c.l.b16 %v221
      %v749 = vunpack.c.l.b16 %v222
      %v750 = vunpack.c.l.b16 %v223
      %v751 = vunpack.c.l.b16 %v224
      %v752 = vunpack.c.l.b16 %v225
      %v753 = vunpack.c.l.b16 %v226
      %v754 = vunpack.c.l.b16 %v227
      %v755 = vunpack.c.l.b16 %v228
      %v756 = vunpack.c.l.b16 %v229
      %v757 = vunpack.c.l.b16 %v230
      %v758 = vunpack.c.l.b16 %v231
      %v759 = vunpack.c.l.b16 %v232
      %v760 = vunpack.c.l.b16 %v233
      %v761 = vunpack.c.l.b16 %v234
      %v762 = vunpack.c.l.b16 %v235
      %v763 = vunpack.c.l.b16 %v236
      %v764 = vunpack.c.l.b16 %v237
      %v765 = vunpack.c.l.b16 %v238
      %v766 = vunpack.c.l.b16 %v239
      %v767 = vunpack.c.l.b16 %v240
      %v768 = vunpack.c.l.b16 %v241
      %v769 = vunpack.c.l.b16 %v242
      %v770 = vunpack.c.l.b16 %v243
      %v771 = vunpack.c.l.b16 %v244
      %v772 = vunpack.c.l.b16 %v245
      %v773 = vunpack.c.l.b16 %v246
      %v774 = vunpack.c.l.b16 %v247
      %v775 = vunpack.c.l.b16 %v248
      %v776 = vunpack.c.l.b16 %v249
      %v777 = vunpack.c.l.b16 %v250
      %v778 = vunpack.c.l.b16 %v251
      %v779 = vunpack.c.l.b16 %v252
      %v780 = vunpack.c.l.b16 %v253
      %v781 = vunpack.c.l.b16 %v254
      %v782 = vunpack.c.l.b16 %v255
      %v783 = vunpack.c.l.b16 %v256
      %v784 = vunpack.c.l.b16 %v257
      %v785 = vunpack.c.l.b16 %v258
      %v786 = vunpack.c.l.b16 %v259
      %v787 = vunpack.c.l.b16 %v260
      %v788 = vunpack.c.l.b16 %v261
      %v789 = vunpack.c.l.b16 %v262
      %v790 = vunpack.c.l.b16 %v263
      %v791 = vunpack.c.l.b16 %v264
      %v792 = vunpack.c.l.b16 %v265
      %v793 = vunpack.c.l.b16 %v266
      %v794 = vunpack.c.l.b16 %v267
      %v795 = vunpack.c.l.b16 %v268
      %v796 = vunpack.c.l.b16 %v269
      %v797 = vunpack.c.l.b16 %v270
      %v798 = vunpack.c.l.b16 %v271
      %v799 = vunpack.c.l.b16 %v272
      %v800 = vunpack.c.l.b16 %v273
      %v801 = vunpack.c.l.b16 %v274
      %v802 = vunpack.c.l.b16 %v275
      %v803 = vunpack.c.l.b16 %v276
      %v804 = vunpack.c.l.b16 %v277
      %v805 = vunpack.c.l.b16 %v278
      %v806 = vunpack.c.l.b16 %v279
      %v807 = vunpack.c.l.b16 %v280
      %v808 = vunpack.c.l.b16 %v281
      %v809 = vunpack.c.l.b16 %v282
      %v810 = vunpack.c.l.b16 %v283
      %v811 = vunpack.c.l.b16 %v284
      %v812 = vunpack.c.l.b16 %v285
      %v813 = vunpack.c.l.b16 %v286
      %v814 = vunpack.c.l.b16 %v287
      %v815 = vunpack.c.l.b16 %v288
      %v816 = vunpack.c.l.b16 %v289
      %v817 = vunpack.c.l.b16 %v290
      %v818 = vunpack.c.l.b16 %v291
      %v819 = vunpack.c.l.b16 %v292
      %v820 = vunpack.c.l.b16 %v293
      %v821 = vunpack.c.l.b16 %v294
      %v822 = vunpack.c.l.b16 %v295
      %v823 = vunpack.c.l.b16 %v296
      %v824 = vunpack.c.l.b16 %v297
      %v825 = vunpack.c.l.b16 %v298
      %v826 = vunpack.c.l.b16 %v299
      %v827 = vunpack.c.l.b16 %v300
      %v828 = vunpack.c.l.b16 %v301
      %v829 = vunpack.c.l.b16 %v302
      %v830 = vunpack.c.l.b16 %v303
      %v831 = vunpack.c.l.b16 %v304
      %v832 = vunpack.c.l.b16 %v305
      %v833 = vunpack.c.l.b16 %v306
      %v834 = vunpack.c.l.b16 %v307
      %v835 = vunpack.c.l.b16 %v308
      %v836 = vunpack.c.l.b16 %v309
      %v837 = vunpack.c.l.b16 %v310
      %v838 = vunpack.c.l.b16 %v311
      %v839 = vunpack.c.l.b16 %v312
      %v840 = vunpack.c.l.b16 %v313
      %v841 = vunpack.c.l.b16 %v314
      %v842 = vunpack.c.l.b16 %v315
      %v843 = vunpack.c.l.b16 %v316
      %v844 = vunpack.c.l.b16 %v317
      %v845 = vunpack.c.l.b16 %v318
      %v846 = vunpack.c.l.b16 %v319
      %v847 = vunpack.c.l.b16 %v320
      %v848 = vunpack.c.l.b16 %v321
      %v849 = vunpack.c.l.b16 %v322
      %v850 = vunpack.c.l.b16 %v323
      %v851 = vunpack.c.l.b16 %v324
      %v852 = vunpack.c.l.b16 %v325
      %v853 = vunpack.c.l.b16 %v326
      %v854 = vunpack.c.l.b16 %v327
      %v855 = vunpack.c.l.b16 %v328
      %v856 = vunpack.c.l.b16 %v329
      %v857 = vunpack.c.l.b16 %v330
      %v858 = vunpack.c.l.b16 %v331
      %v859 = vunpack.c.l.b16 %v332
      %v860 = vunpack.c.l.b16 %v333
      %v861 = vunpack.c.l.b16 %v334
      %v862 = vunpack.c.l.b16 %v335
      %v863 = vunpack.c.l.b16 %v336
      %v864 = vunpack.c.l.b16 %v337
      %v865 = vunpack.c.l.b16 %v338
      %v866 = vunpack.c.l.b16 %v339
      %v867 = vunpack.c.l.b16 %v340
      %v868 = vunpack.c.l.b16 %v341
      %v869 = vunpack.c.l.b16 %v342
      %v870 = vunpack.c.l.b16 %v343
      %v871 = vunpack.c.l.b16 %v344
      %v872 = vunpack.c.l.b16 %v345
      %v873 = vunpack.c.l.b16 %v346
      %v874 = vunpack.c.l.b16 %v347
      %v875 = vunpack.c.l.b16 %v348
      %v876 = vunpack.c.l.b16 %v349
      %v877 = vunpack.c.l.b16 %v350
      %v878 = vunpack.c.l.b16 %v351
      %v879 = vunpack.c.l.b16 %v352
      %v880 = vunpack.c.l.b16 %v353
      %v881 = vunpack.c.l.b16 %v354
      %v882 = vunpack.c.l.b16 %v355
      %v883 = vunpack.c.l.b16 %v356
      %v884 = vunpack.c.l.b16 %v357
      %v885 = vunpack.c.l.b16 %v358
      %v886 = vunpack.c.l.b16 %v359
      %v887 = vunpack.c.l.b16 %v360
      %v888 = vunpack.c.l.b16 %v361
      %v889 = vunpack.c.l.b16 %v362
      %v890 = vunpack.c.l.b16 %v363
      %v891 = vunpack.c.l.b16 %v364
      %v892 = vunpack.c.l.b16 %v365
      %v893 = vunpack.c.l.b16 %v366
      %v894 = vunpack.c.l.b16 %v367
      %v895 = vunpack.c.l.b16 %v368
      %v896 = vunpack.c.l.b16 %v369
      %v897 = vunpack.c.l.b16 %v370
      %v898 = vunpack.c.l.b16 %v371
      %v899 = vunpack.c.l.b16 %v372
      %v900 = vunpack.c.l.b16 %v373
      %v901 = vunpack.c.l.b16 %v374
      %v902 = vunpack.c.l.b16 %v375
      %v903 = vunpack.c.l.b16 %v376
      %v904 = vunpack.c.l.b16 %v377
      %v905 = vunpack.c.l.b16 %v378
      %v906 = vunpack.c.l.b16 %v379
      %v907 = vunpack.c.l.b16 %v380
      %v908 = vunpack.c.l.b16 %v381
      %v909 = vunpack.c.l.b16 %v382
      %v910 = vunpack.c.l.b16 %v383
      %v911 = vunpack.c.l.b16 %v384
      %v912 = vunpack.c.l.b16 %v385
      %v913 = vunpack.c.l.b16 %v386
      %v914 = vunpack.c.l.b16 %v387
      %v915 = vunpack.c.l.b16 %v388
      %v916 = vunpack.c.l.b16 %v389
      %v917 = vunpack.c.l.b16 %v390
      %v918 = vunpack.c.l.b16 %v391
      %v919 = vunpack.c.l.b16 %v392
      %v920 = vunpack.c.l.b16 %v393
      %v921 = vunpack.c.l.b16 %v394
      %v922 = vunpack.c.l.b16 %v395
      %v923 = vunpack.c.l.b16 %v396
      %v924 = vunpack.c.l.b16 %v397
      %v925 = vunpack.c.l.b16 %v398
      %v926 = vunpack.c.l.b16 %v399
      %v927 = vunpack.c.l.b16 %v400
      %v928 = vunpack.c.l.b16 %v401
      %v929 = vunpack.c.l.b16 %v402
      %v930 = vunpack.c.l.b16 %v403
      %v931 = vunpack.c.l.b16 %v404
      %v932 = vunpack.c.l.b16 %v405
      %v933 = vunpack.c.l.b16 %v406
      %v934 = vunpack.c.l.b16 %v407
      %v935 = vunpack.c.l.b16 %v408
      %v936 = vunpack.c.l.b16 %v409
      %v937 = vunpack.c.l.b16 %v410
      %v938 = vunpack.c.l.b16 %v411
      %v939 = vunpack.c.l.b16 %v412
      %v940 = vunpack.c.l.b16 %v413
      %v941 = vunpack.c.l.b16 %v414
      %v942 = vunpack.c.l.b16 %v415
      %v943 = vunpack.c.l.b16 %v416
      %v944 = vunpack.c.l.b16 %v417
      %v945 = vunpack.c.l.b16 %v418
      %v946 = vunpack.c.l.b16 %v419
      %v947 = vunpack.c.l.b16 %v420
      %v948 = vunpack.c.l.b16 %v421
      %v949 = vunpack.c.l.b16 %v422
      %v950 = vunpack.c.l.b16 %v423
      %v951 = vunpack.c.l.b16 %v424
      %v952 = vunpack.c.l.b16 %v425
      %v953 = vunpack.c.l.b16 %v426
      %v954 = vunpack.c.l.b16 %v427
      %v955 = vunpack.c.l.b16 %v428
      %v956 = vunpack.c.l.b16 %v429
      %v957 = vunpack.c.l.b16 %v430
      %v958 = vunpack.c.l.b16 %v431
      %v959 = vunpack.c.l.b16 %v432
      %v960 = vunpack.c.l.b16 %v433
      %v961 = vunpack.c.l.b16 %v434
      %v962 = vunpack.c.l.b16 %v435
      %v963 = vunpack.c.l.b16 %v436
      %v964 = vunpack.c.l.b16 %v437
      %v965 = vunpack.c.l.b16 %v438
      %v966 = vunpack.c.l.b16 %v439
      %v967 = vunpack.c.l.b16 %v440
      %v968 = vunpack.c.l.b16 %v441
      %v969 = vunpack.c.l.b16 %v442
      %v970 = vunpack.c.l.b16 %v443
      %v971 = vunpack.c.l.b16 %v444
      %v972 = vunpack.c.l.b16 %v445
      %v973 = vunpack.c.l.b16 %v446
      %v974 = vunpack.c.l.b16 %v447
      %v975 = vpack.c.b16 %v720, %v719
      %v976 = vpack.c.b16 %v722, %v721
      %v977 = vpack.c.b16 %v724, %v723
      %v978 = vpack.c.b16 %v726, %v725
      %v979 = vpack.c.b16 %v728, %v727
      %v980 = vpack.c.b16 %v730, %v729
      %v981 = vpack.c.b16 %v732, %v731
      %v982 = vpack.c.b16 %v734, %v733
      %v983 = vpack.c.b16 %v736, %v735
      %v984 = vpack.c.b16 %v738, %v737
      %v985 = vpack.c.b16 %v740, %v739
      %v986 = vpack.c.b16 %v742, %v741
      %v987 = vpack.c.b16 %v744, %v743
      %v988 = vpack.c.b16 %v746, %v745
      %v989 = vpack.c.b16 %v748, %v747
      %v990 = vpack.c.b16 %v750, %v749
      %v991 = vpack.c.b16 %v752, %v751
      %v992 = vpack.c.b16 %v754, %v753
      %v993 = vpack.c.b16 %v756, %v755
      %v994 = vpack.c.b16 %v758, %v757
      %v995 = vpack.c.b16 %v760, %v759
      %v996 = vpack.c.b16 %v762, %v761
      %v997 = vpack.c.b16 %v764, %v763
      %v998 = vpack.c.b16 %v766, %v765
      %v999 = vpack.c.b16 %v768, %v767
      %v1000 = vpack.c.b16 %v770, %v769
      %v1001 = vpack.c.b16 %v772, %v771
      %v1002 = vpack.c.b16 %v774, %v773
      %v1003 = vpack.c.b16 %v776, %v775
      %v1004 = vpack.c.b16 %v778, %v777
      %v1005 = vpack.c.b16 %v780, %v779
      %v1006 = vpack.c.b16 %v782, %v781
      %v1007 = vpack.c.b16 %v784, %v783
      %v1008 = vpack.c.b16 %v786, %v785
      %v1009 = vpack.c.b16 %v788, %v787
      %v1010 = vpack.c.b16 %v790, %v789
      %v1011 = vpack.c.b16 %v792, %v791
      %v1012 = vpack.c.b16 %v794, %v793
      %v1013 = vpack.c.b16 %v796, %v795
      %v1014 = vpack.c.b16 %v798, %v797
      %v1015 = vpack.c.b16 %v800, %v799
      %v1016 = vpack.c.b16 %v802, %v801
      %v1017 = vpack.c.b16 %v804, %v803
      %v1018 = vpack.c.b16 %v806, %v805
      %v1019 = vpack.c.b16 %v808, %v807
      %v1020 = vpack.c.b16 %v810, %v809
      %v1021 = vpack.c.b16 %v812, %v811
      %v1022 = vpack.c.b16 %v814, %v813
      %v1023 = vpack.c.b16 %v816, %v815
      %v1024 = vpack.c.b16 %v818, %v817
      %v1025 = vpack.c.b16 %v820, %v819
      %v1026 = vpack.c.b16 %v822, %v821
      %v1027 = vpack.c.b16 %v824, %v823
      %v1028 = vpack.c.b16 %v826, %v825
      %v1029 = vpack.c.b16 %v828, %v827
      %v1030 = vpack.c.b16 %v830, %v829
      %v1031 = vpack.c.b16 %v832, %v831
      %v1032 = vpack.c.b16 %v834, %v833
      %v1033 = vpack.c.b16 %v836, %v835
      %v1034 = vpack.c.b16 %v838, %v837
      %v1035 = vpack.c.b16 %v840, %v839
      %v1036 = vpack.c.b16 %v842, %v841
      %v1037 = vpack.c.b16 %v844, %v843
      %v1038 = vpack.c.b16 %v846, %v845
      %v1039 = vpack.c.b16 %v848, %v847
      %v1040 = vpack.c.b16 %v850, %v849
      %v1041 = vpack.c.b16 %v852, %v851
      %v1042 = vpack.c.b16 %v854, %v853
      %v1043 = vpack.c.b16 %v856, %v855
      %v1044 = vpack.c.b16 %v858, %v857
      %v1045 = vpack.c.b16 %v860, %v859
      %v1046 = vpack.c.b16 %v862, %v861
      %v1047 = vpack.c.b16 %v864, %v863
      %v1048 = vpack.c.b16 %v866, %v865
      %v1049 = vpack.c.b16 %v868, %v867
      %v1050 = vpack.c.b16 %v870, %v869
      %v1051 = vpack.c.b16 %v872, %v871
      %v1052 = vpack.c.b16 %v874, %v873
      %v1053 = vpack.c.b16 %v876, %v875
      %v1054 = vpack.c.b16 %v878, %v877
      %v1055 = vpack.c.b16 %v880, %v879
      %v1056 = vpack.c.b16 %v882, %v881
      %v1057 = vpack.c.b16 %v884, %v883
      %v1058 = vpack.c.b16 %v886, %v885
      %v1059 = vpack.c.b16 %v888, %v887
      %v1060 = vpack.c.b16 %v890, %v889
      %v1061 = vpack.c.b16 %v892, %v891
      %v1062 = vpack.c.b16 %v894, %v893
      %v1063 = vpack.c.b16 %v896, %v895
      %v1064 = vpack.c.b16 %v898, %v897
      %v1065 = vpack.c.b16 %v900, %v899
      %v1066 = vpack.c.b16 %v902, %v901
      %v1067 = vpack.c.b16 %v904, %v903
      %v1068 = vpack.c.b16 %v906, %v905
      %v1069 = vpack.c.b16 %v908, %v907
      %v1070 = vpack.c.b16 %v910, %v909
      %v1071 = vpack.c.b16 %v912, %v911
      %v1072 = vpack.c.b16 %v914, %v913
      %v1073 = vpack.c.b16 %v916, %v915
      %v1074 = vpack.c.b16 %v918, %v917
      %v1075 = vpack.c.b16 %v920, %v919
      %v1076 = vpack.c.b16 %v922, %v921
      %v1077 = vpack.c.b16 %v924, %v923
      %v1078 = vpack.c.b16 %v926, %v925
      %v1079 = vpack.c.b16 %v928, %v927
      %v1080 = vpack.c.b16 %v930, %v929
      %v1081 = vpack.c.b16 %v932, %v931
      %v1082 = vpack.c.b16 %v934, %v933
      %v1083 = vpack.c.b16 %v936, %v935
      %v1084 = vpack.c.b16 %v938, %v937
      %v1085 = vpack.c.b16 %v940, %v939
      %v1086 = vpack.c.b16 %v942, %v941
      %v1087 = vpack.c.b16 %v944, %v943
      %v1088 = vpack.c.b16 %v946, %v945
      %v1089 = vpack.c.b16 %v948, %v947
      %v1090 = vpack.c.b16 %v950, %v949
      %v1091 = vpack.c.b16 %v952, %v951
      %v1092 = vpack.c.b16 %v954, %v953
      %v1093 = vpack.c.b16 %v956, %v955
      %v1094 = vpack.c.b16 %v958, %v957
      %v1095 = vpack.c.b16 %v960, %v959
      %v1096 = vpack.c.b16 %v962, %v961
      %v1097 = vpack.c.b16 %v964, %v963
      %v1098 = vpack.c.b16 %v966, %v965
      %v1099 = vpack.c.b16 %v968, %v967
      %v1100 = vpack.c.b16 %v970, %v969
      %v1101 = vpack.c.b16 %v972, %v971
      %v1102 = vpack.c.b16 %v974, %v973
      %v1111 = vunpack.c.l.b16 %v448
      %v1112 = vunpack.c.l.b16 %v449
      %v1113 = vunpack.c.l.b16 %v450
      %v1114 = vunpack.c.l.b16 %v451
      %v1115 = vunpack.c.l.b16 %v452
      %v1116 = vunpack.c.l.b16 %v453
      %v1117 = vunpack.c.l.b16 %v454
      %v1118 = vunpack.c.l.b16 %v455
      %v1119 = vpack.c.b16 %v1112, %v1111
      %v1120 = vpack.c.b16 %v1114, %v1113
      %v1121 = vpack.c.b16 %v1116, %v1115
      %v1122 = vpack.c.b16 %v1118, %v1117
      %vm1127 = vcmask 523264
      %v1129 = vsel %vm1127, %v975, 0
      %v1132 = vsel %vm1127, %v976, 0
      %v1135 = vsel %vm1127, %v977, 0
      %v1138 = vsel %vm1127, %v978, 0
      %v1141 = vsel %vm1127, %v979, 0
      %v1144 = vsel %vm1127, %v980, 0
      %v1147 = vsel %vm1127, %v981, 0
      %v1150 = vsel %vm1127, %v982, 0
      %v1153 = vsel %vm1127, %v983, 0
      %v1156 = vsel %vm1127, %v984, 0
      %v1159 = vsel %vm1127, %v985, 0
      %v1162 = vsel %vm1127, %v986, 0
      %v1165 = vsel %vm1127, %v987, 0
      %v1168 = vsel %vm1127, %v988, 0
      %v1171 = vsel %vm1127, %v989, 0
      %v1174 = vsel %vm1127, %v990, 0
      %v1177 = vsel %vm1127, %v991, 0
      %v1180 = vsel %vm1127, %v992, 0
      %v1183 = vsel %vm1127, %v993, 0
      %v1186 = vsel %vm1127, %v994, 0
      %v1189 = vsel %vm1127, %v995, 0
      %v1192 = vsel %vm1127, %v996, 0
      %v1195 = vsel %vm1127, %v997, 0
      %v1198 = vsel %vm1127, %v998, 0
      %v1201 = vsel %vm1127, %v999, 0
      %v1204 = vsel %vm1127, %v1000, 0
      %v1207 = vsel %vm1127, %v1001, 0
      %v1210 = vsel %vm1127, %v1002, 0
      %v1213 = vsel %vm1127, %v1003, 0
      %v1216 = vsel %vm1127, %v1004, 0
      %v1219 = vsel %vm1127, %v1005, 0
      %v1222 = vsel %vm1127, %v1006, 0
      %v1225 = vsel %vm1127, %v1007, 0
      %v1228 = vsel %vm1127, %v1008, 0
      %v1231 = vsel %vm1127, %v1009, 0
      %v1234 = vsel %vm1127, %v1010, 0
      %v1237 = vsel %vm1127, %v1011, 0
      %v1240 = vsel %vm1127, %v1012, 0
      %v1243 = vsel %vm1127, %v1013, 0
      %v1246 = vsel %vm1127, %v1014, 0
      %v1249 = vsel %vm1127, %v1015, 0
      %v1252 = vsel %vm1127, %v1016, 0
      %v1255 = vsel %vm1127, %v1017, 0
      %v1258 = vsel %vm1127, %v1018, 0
      %v1261 = vsel %vm1127, %v1019, 0
      %v1264 = vsel %vm1127, %v1020, 0
      %v1267 = vsel %vm1127, %v1021, 0
      %v1270 = vsel %vm1127, %v1022, 0
      %v1273 = vsel %vm1127, %v1023, 0
      %v1276 = vsel %vm1127, %v1024, 0
      %v1279 = vsel %vm1127, %v1025, 0
      %v1282 = vsel %vm1127, %v1026, 0
      %v1285 = vsel %vm1127, %v1027, 0
      %v1288 = vsel %vm1127, %v1028, 0
      %v1291 = vsel %vm1127, %v1029, 0
      %v1294 = vsel %vm1127, %v1030, 0
      %v1297 = vsel %vm1127, %v1031, 0
      %v1300 = vsel %vm1127, %v1032, 0
      %v1303 = vsel %vm1127, %v1033, 0
      %v1306 = vsel %vm1127, %v1034, 0
      %v1309 = vsel %vm1127, %v1035, 0
      %v1312 = vsel %vm1127, %v1036, 0
      %v1315 = vsel %vm1127, %v1037, 0
      %v1318 = vsel %vm1127, %v1038, 0
      %v1321 = vsel %vm1127, %v1039, 0
      %v1324 = vsel %vm1127, %v1040, 0
      %v1327 = vsel %vm1127, %v1041, 0
      %v1330 = vsel %vm1127, %v1042, 0
      %v1333 = vsel %vm1127, %v1043, 0
      %v1336 = vsel %vm1127, %v1044, 0
      %v1339 = vsel %vm1127, %v1045, 0
      %v1342 = vsel %vm1127, %v1046, 0
      %v1345 = vsel %vm1127, %v1047, 0
      %v1348 = vsel %vm1127, %v1048, 0
      %v1351 = vsel %vm1127, %v1049, 0
      %v1354 = vsel %vm1127, %v1050, 0
      %v1357 = vsel %vm1127, %v1051, 0
      %v1360 = vsel %vm1127, %v1052, 0
      %v1363 = vsel %vm1127, %v1053, 0
      %v1366 = vsel %vm1127, %v1054, 0
      %v1369 = vsel %vm1127, %v1055, 0
      %v1372 = vsel %vm1127, %v1056, 0
      %v1375 = vsel %vm1127, %v1057, 0
      %v1378 = vsel %vm1127, %v1058, 0
      %v1381 = vsel %vm1127, %v1059, 0
      %v1384 = vsel %vm1127, %v1060, 0
      %v1387 = vsel %vm1127, %v1061, 0
      %v1390 = vsel %vm1127, %v1062, 0
      %v1393 = vsel %vm1127, %v1063, 0
      %v1396 = vsel %vm1127, %v1064, 0
      %v1399 = vsel %vm1127, %v1065, 0
      %v1402 = vsel %vm1127, %v1066, 0
      %v1405 = vsel %vm1127, %v1067, 0
      %v1408 = vsel %vm1127, %v1068, 0
      %v1411 = vsel %vm1127, %v1069, 0
      %v1414 = vsel %vm1127, %v1070, 0
      %v1417 = vsel %vm1127, %v1071, 0
      %v1420 = vsel %vm1127, %v1072, 0
      %v1423 = vsel %vm1127, %v1073, 0
      %v1426 = vsel %vm1127, %v1074, 0
      %v1429 = vsel %vm1127, %v1075, 0
      %v1432 = vsel %vm1127, %v1076, 0
      %v1435 = vsel %vm1127, %v1077, 0
      %v1438 = vsel %vm1127, %v1078, 0
      %v1441 = vsel %vm1127, %v1079, 0
      %v1444 = vsel %vm1127, %v1080, 0
      %v1447 = vsel %vm1127, %v1081, 0
      %v1450 = vsel %vm1127, %v1082, 0
      %v1453 = vsel %vm1127, %v1083, 0
      %v1456 = vsel %vm1127, %v1084, 0
      %v1459 = vsel %vm1127, %v1085, 0
      %v1462 = vsel %vm1127, %v1086, 0
      %v1465 = vsel %vm1127, %v1087, 0
      %v1468 = vsel %vm1127, %v1088, 0
      %v1471 = vsel %vm1127, %v1089, 0
      %v1474 = vsel %vm1127, %v1090, 0
      %v1477 = vsel %vm1127, %v1091, 0
      %v1480 = vsel %vm1127, %v1092, 0
      %v1483 = vsel %vm1127, %v1093, 0
      %v1486 = vsel %vm1127, %v1094, 0
      %v1489 = vsel %vm1127, %v1095, 0
      %v1492 = vsel %vm1127, %v1096, 0
      %v1495 = vsel %vm1127, %v1097, 0
      %v1498 = vsel %vm1127, %v1098, 0
      %v1501 = vsel %vm1127, %v1099, 0
      %v1504 = vsel %vm1127, %v1100, 0
      %v1507 = vsel %vm1127, %v1101, 0
      %v1510 = vsel %vm1127, %v1102, 0
      %1512 = vmatprep.subr.bf16.mxu0 0
      %1513 = vmatpush1.bf16.msra.mxu0 0
      %1514 = vmatprep.subr.bf16.mxu0 0
      %1515 = vmatpush1.bf16.msra.mxu0 0
      %1516 = vmatprep.subr.bf16.mxu0 0
      %1517 = vmatpush1.bf16.msra.mxu0 0
      %1518 = vmatprep.subr.bf16.mxu0 0
      %1519 = vmatpush1.bf16.msra.mxu0 0
      %1520 = vmatprep.subr.bf16.mxu0 0
      %1521 = vmatpush1.bf16.msra.mxu0 %v1122
      %1522 = vmatprep.subr.bf16.mxu0 0
      %1523 = vmatpush1.bf16.msra.mxu0 %v1121
      %1524 = vmatprep.subr.bf16.mxu0 0
      %1525 = vmatpush1.bf16.msra.mxu0 %v1120
      %1526 = vmatprep.subr.bf16.mxu0 0
      %1527 = vmatpush1.bf16.msra.mxu0 %v1119
      %1528 = vmatprep.subr.bf16.mxu0 0
      %1529 = vmatpush2.bf16.msra.mxu0 0
      %1530 = vmatprep.subr.bf16.mxu0 0
      %1531 = vmatpush2.bf16.msra.mxu0 0
      %1532 = vmatprep.subr.bf16.mxu0 0
      %1533 = vmatpush2.bf16.msra.mxu0 0
      %1534 = vmatprep.subr.bf16.mxu0 0
      %1535 = vmatpush2.bf16.msra.mxu0 0
      %1536 = vmatprep.subr.bf16.mxu0 0
      %1537 = vmatpush2.bf16.msra.mxu0 0
      %1538 = vmatprep.subr.bf16.mxu0 0
      %1539 = vmatpush2.bf16.msra.mxu0 0
      %1540 = vmatprep.subr.bf16.mxu0 0
      %1541 = vmatpush2.bf16.msra.mxu0 0
      %1542 = vmatprep.subr.bf16.mxu0 0
      %1543 = vmatpush2.bf16.msra.mxu0 0
      %1544 = vmatprep.mubr.bf16.mxu0 0
      %1545 = vmatmul.mubr.bf16.gmra.mxu0 %v1129
      %v1546 = vpop.f32.mrf.mxu0
      %v1547 = vadd.f32 %v461, %v1546
      %v1548 = vpop.f32.mrf.mxu0
      %v1549 = vpop.f32.mrf.mxu0
      %v1550 = vadd.f32 %v461, %v1549
      %v1551 = vpop.f32.mrf.mxu0
      %1552 = vmatprep.mubr.bf16.mxu0 0
      %1553 = vmatmul.mubr.bf16.gmra.mxu0 %v1132
      %v1554 = vpop.f32.mrf.mxu0
      %v1555 = vadd.f32 %v461, %v1554
      %v1556 = vpop.f32.mrf.mxu0
      %v1557 = vpop.f32.mrf.mxu0
      %v1558 = vadd.f32 %v461, %v1557
      %v1559 = vpop.f32.mrf.mxu0
      %1560 = vmatprep.mubr.bf16.mxu0 0
      %1561 = vmatmul.mubr.bf16.gmra.mxu0 %v1135
      %v1562 = vpop.f32.mrf.mxu0
      %v1563 = vadd.f32 %v461, %v1562
      %v1564 = vpop.f32.mrf.mxu0
      %v1565 = vpop.f32.mrf.mxu0
      %v1566 = vadd.f32 %v461, %v1565
      %v1567 = vpop.f32.mrf.mxu0
      %1568 = vmatprep.mubr.bf16.mxu0 0
      %1569 = vmatmul.mubr.bf16.gmra.mxu0 %v1138
      %v1570 = vpop.f32.mrf.mxu0
      %v1571 = vadd.f32 %v461, %v1570
      %v1572 = vpop.f32.mrf.mxu0
      %v1573 = vpop.f32.mrf.mxu0
      %v1574 = vadd.f32 %v461, %v1573
      %v1575 = vpop.f32.mrf.mxu0
      %1576 = vmatprep.mubr.bf16.mxu0 0
      %1577 = vmatmul.mubr.bf16.gmra.mxu0 %v1141
      %v1578 = vpop.f32.mrf.mxu0
      %v1579 = vadd.f32 %v461, %v1578
      %v1580 = vpop.f32.mrf.mxu0
      %v1581 = vpop.f32.mrf.mxu0
      %v1582 = vadd.f32 %v461, %v1581
      %v1583 = vpop.f32.mrf.mxu0
      %1584 = vmatprep.mubr.bf16.mxu0 0
      %1585 = vmatmul.mubr.bf16.gmra.mxu0 %v1144
      %v1586 = vpop.f32.mrf.mxu0
      %v1587 = vadd.f32 %v461, %v1586
      %v1588 = vpop.f32.mrf.mxu0
      %v1589 = vpop.f32.mrf.mxu0
      %v1590 = vadd.f32 %v461, %v1589
      %v1591 = vpop.f32.mrf.mxu0
      %1592 = vmatprep.mubr.bf16.mxu0 0
      %1593 = vmatmul.mubr.bf16.gmra.mxu0 %v1147
      %v1594 = vpop.f32.mrf.mxu0
      %v1595 = vadd.f32 %v461, %v1594
      %v1596 = vpop.f32.mrf.mxu0
      %v1597 = vpop.f32.mrf.mxu0
      %v1598 = vadd.f32 %v461, %v1597
      %v1599 = vpop.f32.mrf.mxu0
      %1600 = vmatprep.mubr.bf16.mxu0 0
      %1601 = vmatmul.mubr.bf16.gmra.mxu0 %v1150
      %v1602 = vpop.f32.mrf.mxu0
      %v1603 = vadd.f32 %v461, %v1602
      %v1604 = vpop.f32.mrf.mxu0
      %v1605 = vpop.f32.mrf.mxu0
      %v1606 = vadd.f32 %v461, %v1605
      %v1607 = vpop.f32.mrf.mxu0
      %1608 = vmatprep.mubr.bf16.mxu0 0
      %1609 = vmatmul.mubr.bf16.gmra.mxu0 %v1153
      %v1610 = vpop.f32.mrf.mxu0
      %v1611 = vadd.f32 %v461, %v1610
      %v1612 = vpop.f32.mrf.mxu0
      %v1613 = vpop.f32.mrf.mxu0
      %v1614 = vadd.f32 %v461, %v1613
      %v1615 = vpop.f32.mrf.mxu0
      %1616 = vmatprep.mubr.bf16.mxu0 0
      %1617 = vmatmul.mubr.bf16.gmra.mxu0 %v1156
      %v1618 = vpop.f32.mrf.mxu0
      %v1619 = vadd.f32 %v461, %v1618
      %v1620 = vpop.f32.mrf.mxu0
      %v1621 = vpop.f32.mrf.mxu0
      %v1622 = vadd.f32 %v461, %v1621
      %v1623 = vpop.f32.mrf.mxu0
      %1624 = vmatprep.mubr.bf16.mxu0 0
      %1625 = vmatmul.mubr.bf16.gmra.mxu0 %v1159
      %v1626 = vpop.f32.mrf.mxu0
      %v1627 = vadd.f32 %v461, %v1626
      %v1628 = vpop.f32.mrf.mxu0
      %v1629 = vpop.f32.mrf.mxu0
      %v1630 = vadd.f32 %v461, %v1629
      %v1631 = vpop.f32.mrf.mxu0
      %1632 = vmatprep.mubr.bf16.mxu0 0
      %1633 = vmatmul.mubr.bf16.gmra.mxu0 %v1162
      %v1634 = vpop.f32.mrf.mxu0
      %v1635 = vadd.f32 %v461, %v1634
      %v1636 = vpop.f32.mrf.mxu0
      %v1637 = vpop.f32.mrf.mxu0
      %v1638 = vadd.f32 %v461, %v1637
      %v1639 = vpop.f32.mrf.mxu0
      %1640 = vmatprep.mubr.bf16.mxu0 0
      %1641 = vmatmul.mubr.bf16.gmra.mxu0 %v1165
      %v1642 = vpop.f32.mrf.mxu0
      %v1643 = vadd.f32 %v461, %v1642
      %v1644 = vpop.f32.mrf.mxu0
      %v1645 = vpop.f32.mrf.mxu0
      %v1646 = vadd.f32 %v461, %v1645
      %v1647 = vpop.f32.mrf.mxu0
      %1648 = vmatprep.mubr.bf16.mxu0 0
      %1649 = vmatmul.mubr.bf16.gmra.mxu0 %v1168
      %v1650 = vpop.f32.mrf.mxu0
      %v1651 = vadd.f32 %v461, %v1650
      %v1652 = vpop.f32.mrf.mxu0
      %v1653 = vpop.f32.mrf.mxu0
      %v1654 = vadd.f32 %v461, %v1653
      %v1655 = vpop.f32.mrf.mxu0
      %1656 = vmatprep.mubr.bf16.mxu0 0
      %1657 = vmatmul.mubr.bf16.gmra.mxu0 %v1171
      %v1658 = vpop.f32.mrf.mxu0
      %v1659 = vadd.f32 %v461, %v1658
      %v1660 = vpop.f32.mrf.mxu0
      %v1661 = vpop.f32.mrf.mxu0
      %v1662 = vadd.f32 %v461, %v1661
      %v1663 = vpop.f32.mrf.mxu0
      %1664 = vmatprep.mubr.bf16.mxu0 0
      %1665 = vmatmul.mubr.bf16.gmra.mxu0 %v1174
      %v1666 = vpop.f32.mrf.mxu0
      %v1667 = vadd.f32 %v461, %v1666
      %v1668 = vpop.f32.mrf.mxu0
      %v1669 = vpop.f32.mrf.mxu0
      %v1670 = vadd.f32 %v461, %v1669
      %v1671 = vpop.f32.mrf.mxu0
      %1672 = vmatprep.mubr.bf16.mxu0 0
      %1673 = vmatmul.mubr.bf16.gmra.mxu0 %v1177
      %v1674 = vpop.f32.mrf.mxu0
      %v1675 = vadd.f32 %v461, %v1674
      %v1676 = vpop.f32.mrf.mxu0
      %v1677 = vpop.f32.mrf.mxu0
      %v1678 = vadd.f32 %v461, %v1677
      %v1679 = vpop.f32.mrf.mxu0
      %1680 = vmatprep.mubr.bf16.mxu0 0
      %1681 = vmatmul.mubr.bf16.gmra.mxu0 %v1180
      %v1682 = vpop.f32.mrf.mxu0
      %v1683 = vadd.f32 %v461, %v1682
      %v1684 = vpop.f32.mrf.mxu0
      %v1685 = vpop.f32.mrf.mxu0
      %v1686 = vadd.f32 %v461, %v1685
      %v1687 = vpop.f32.mrf.mxu0
      %1688 = vmatprep.mubr.bf16.mxu0 0
      %1689 = vmatmul.mubr.bf16.gmra.mxu0 %v1183
      %v1690 = vpop.f32.mrf.mxu0
      %v1691 = vadd.f32 %v461, %v1690
      %v1692 = vpop.f32.mrf.mxu0
      %v1693 = vpop.f32.mrf.mxu0
      %v1694 = vadd.f32 %v461, %v1693
      %v1695 = vpop.f32.mrf.mxu0
      %1696 = vmatprep.mubr.bf16.mxu0 0
      %1697 = vmatmul.mubr.bf16.gmra.mxu0 %v1186
      %v1698 = vpop.f32.mrf.mxu0
      %v1699 = vadd.f32 %v461, %v1698
      %v1700 = vpop.f32.mrf.mxu0
      %v1701 = vpop.f32.mrf.mxu0
      %v1702 = vadd.f32 %v461, %v1701
      %v1703 = vpop.f32.mrf.mxu0
      %1704 = vmatprep.mubr.bf16.mxu0 0
      %1705 = vmatmul.mubr.bf16.gmra.mxu0 %v1189
      %v1706 = vpop.f32.mrf.mxu0
      %v1707 = vadd.f32 %v461, %v1706
      %v1708 = vpop.f32.mrf.mxu0
      %v1709 = vpop.f32.mrf.mxu0
      %v1710 = vadd.f32 %v461, %v1709
      %v1711 = vpop.f32.mrf.mxu0
      %1712 = vmatprep.mubr.bf16.mxu0 0
      %1713 = vmatmul.mubr.bf16.gmra.mxu0 %v1192
      %v1714 = vpop.f32.mrf.mxu0
      %v1715 = vadd.f32 %v461, %v1714
      %v1716 = vpop.f32.mrf.mxu0
      %v1717 = vpop.f32.mrf.mxu0
      %v1718 = vadd.f32 %v461, %v1717
      %v1719 = vpop.f32.mrf.mxu0
      %1720 = vmatprep.mubr.bf16.mxu0 0
      %1721 = vmatmul.mubr.bf16.gmra.mxu0 %v1195
      %v1722 = vpop.f32.mrf.mxu0
      %v1723 = vadd.f32 %v461, %v1722
      %v1724 = vpop.f32.mrf.mxu0
      %v1725 = vpop.f32.mrf.mxu0
      %v1726 = vadd.f32 %v461, %v1725
      %v1727 = vpop.f32.mrf.mxu0
      %1728 = vmatprep.mubr.bf16.mxu0 0
      %1729 = vmatmul.mubr.bf16.gmra.mxu0 %v1198
      %v1730 = vpop.f32.mrf.mxu0
      %v1731 = vadd.f32 %v461, %v1730
      %v1732 = vpop.f32.mrf.mxu0
      %v1733 = vpop.f32.mrf.mxu0
      %v1734 = vadd.f32 %v461, %v1733
      %v1735 = vpop.f32.mrf.mxu0
      %1736 = vmatprep.mubr.bf16.mxu0 0
      %1737 = vmatmul.mubr.bf16.gmra.mxu0 %v1201
      %v1738 = vpop.f32.mrf.mxu0
      %v1739 = vadd.f32 %v461, %v1738
      %v1740 = vpop.f32.mrf.mxu0
      %v1741 = vpop.f32.mrf.mxu0
      %v1742 = vadd.f32 %v461, %v1741
      %v1743 = vpop.f32.mrf.mxu0
      %1744 = vmatprep.mubr.bf16.mxu0 0
      %1745 = vmatmul.mubr.bf16.gmra.mxu0 %v1204
      %v1746 = vpop.f32.mrf.mxu0
      %v1747 = vadd.f32 %v461, %v1746
      %v1748 = vpop.f32.mrf.mxu0
      %v1749 = vpop.f32.mrf.mxu0
      %v1750 = vadd.f32 %v461, %v1749
      %v1751 = vpop.f32.mrf.mxu0
      %1752 = vmatprep.mubr.bf16.mxu0 0
      %1753 = vmatmul.mubr.bf16.gmra.mxu0 %v1207
      %v1754 = vpop.f32.mrf.mxu0
      %v1755 = vadd.f32 %v461, %v1754
      %v1756 = vpop.f32.mrf.mxu0
      %v1757 = vpop.f32.mrf.mxu0
      %v1758 = vadd.f32 %v461, %v1757
      %v1759 = vpop.f32.mrf.mxu0
      %1760 = vmatprep.mubr.bf16.mxu0 0
      %1761 = vmatmul.mubr.bf16.gmra.mxu0 %v1210
      %v1762 = vpop.f32.mrf.mxu0
      %v1763 = vadd.f32 %v461, %v1762
      %v1764 = vpop.f32.mrf.mxu0
      %v1765 = vpop.f32.mrf.mxu0
      %v1766 = vadd.f32 %v461, %v1765
      %v1767 = vpop.f32.mrf.mxu0
      %1768 = vmatprep.mubr.bf16.mxu0 0
      %1769 = vmatmul.mubr.bf16.gmra.mxu0 %v1213
      %v1770 = vpop.f32.mrf.mxu0
      %v1771 = vadd.f32 %v461, %v1770
      %v1772 = vpop.f32.mrf.mxu0
      %v1773 = vpop.f32.mrf.mxu0
      %v1774 = vadd.f32 %v461, %v1773
      %v1775 = vpop.f32.mrf.mxu0
      %1776 = vmatprep.mubr.bf16.mxu0 0
      %1777 = vmatmul.mubr.bf16.gmra.mxu0 %v1216
      %v1778 = vpop.f32.mrf.mxu0
      %v1779 = vadd.f32 %v461, %v1778
      %v1780 = vpop.f32.mrf.mxu0
      %v1781 = vpop.f32.mrf.mxu0
      %v1782 = vadd.f32 %v461, %v1781
      %v1783 = vpop.f32.mrf.mxu0
      %1784 = vmatprep.mubr.bf16.mxu0 0
      %1785 = vmatmul.mubr.bf16.gmra.mxu0 %v1219
      %v1786 = vpop.f32.mrf.mxu0
      %v1787 = vadd.f32 %v461, %v1786
      %v1788 = vpop.f32.mrf.mxu0
      %v1789 = vpop.f32.mrf.mxu0
      %v1790 = vadd.f32 %v461, %v1789
      %v1791 = vpop.f32.mrf.mxu0
      %1792 = vmatprep.mubr.bf16.mxu0 0
      %1793 = vmatmul.mubr.bf16.gmra.mxu0 %v1222
      %v1794 = vpop.f32.mrf.mxu0
      %v1795 = vadd.f32 %v461, %v1794
      %v1796 = vpop.f32.mrf.mxu0
      %v1797 = vpop.f32.mrf.mxu0
      %v1798 = vadd.f32 %v461, %v1797
      %v1799 = vpop.f32.mrf.mxu0
      %1800 = vmatprep.mubr.bf16.mxu0 0
      %1801 = vmatmul.mubr.bf16.gmra.mxu0 %v1225
      %v1802 = vpop.f32.mrf.mxu0
      %v1803 = vadd.f32 %v461, %v1802
      %v1804 = vpop.f32.mrf.mxu0
      %v1805 = vpop.f32.mrf.mxu0
      %v1806 = vadd.f32 %v461, %v1805
      %v1807 = vpop.f32.mrf.mxu0
      %1808 = vmatprep.mubr.bf16.mxu0 0
      %1809 = vmatmul.mubr.bf16.gmra.mxu0 %v1228
      %v1810 = vpop.f32.mrf.mxu0
      %v1811 = vadd.f32 %v461, %v1810
      %v1812 = vpop.f32.mrf.mxu0
      %v1813 = vpop.f32.mrf.mxu0
      %v1814 = vadd.f32 %v461, %v1813
      %v1815 = vpop.f32.mrf.mxu0
      %1816 = vmatprep.mubr.bf16.mxu0 0
      %1817 = vmatmul.mubr.bf16.gmra.mxu0 %v1231
      %v1818 = vpop.f32.mrf.mxu0
      %v1819 = vadd.f32 %v461, %v1818
      %v1820 = vpop.f32.mrf.mxu0
      %v1821 = vpop.f32.mrf.mxu0
      %v1822 = vadd.f32 %v461, %v1821
      %v1823 = vpop.f32.mrf.mxu0
      %1824 = vmatprep.mubr.bf16.mxu0 0
      %1825 = vmatmul.mubr.bf16.gmra.mxu0 %v1234
      %v1826 = vpop.f32.mrf.mxu0
      %v1827 = vadd.f32 %v461, %v1826
      %v1828 = vpop.f32.mrf.mxu0
      %v1829 = vpop.f32.mrf.mxu0
      %v1830 = vadd.f32 %v461, %v1829
      %v1831 = vpop.f32.mrf.mxu0
      %1832 = vmatprep.mubr.bf16.mxu0 0
      %1833 = vmatmul.mubr.bf16.gmra.mxu0 %v1237
      %v1834 = vpop.f32.mrf.mxu0
      %v1835 = vadd.f32 %v461, %v1834
      %v1836 = vpop.f32.mrf.mxu0
      %v1837 = vpop.f32.mrf.mxu0
      %v1838 = vadd.f32 %v461, %v1837
      %v1839 = vpop.f32.mrf.mxu0
      %1840 = vmatprep.mubr.bf16.mxu0 0
      %1841 = vmatmul.mubr.bf16.gmra.mxu0 %v1240
      %v1842 = vpop.f32.mrf.mxu0
      %v1843 = vadd.f32 %v461, %v1842
      %v1844 = vpop.f32.mrf.mxu0
      %v1845 = vpop.f32.mrf.mxu0
      %v1846 = vadd.f32 %v461, %v1845
      %v1847 = vpop.f32.mrf.mxu0
      %1848 = vmatprep.mubr.bf16.mxu0 0
      %1849 = vmatmul.mubr.bf16.gmra.mxu0 %v1243
      %v1850 = vpop.f32.mrf.mxu0
      %v1851 = vadd.f32 %v461, %v1850
      %v1852 = vpop.f32.mrf.mxu0
      %v1853 = vpop.f32.mrf.mxu0
      %v1854 = vadd.f32 %v461, %v1853
      %v1855 = vpop.f32.mrf.mxu0
      %1856 = vmatprep.mubr.bf16.mxu0 0
      %1857 = vmatmul.mubr.bf16.gmra.mxu0 %v1246
      %v1858 = vpop.f32.mrf.mxu0
      %v1859 = vadd.f32 %v461, %v1858
      %v1860 = vpop.f32.mrf.mxu0
      %v1861 = vpop.f32.mrf.mxu0
      %v1862 = vadd.f32 %v461, %v1861
      %v1863 = vpop.f32.mrf.mxu0
      %1864 = vmatprep.mubr.bf16.mxu0 0
      %1865 = vmatmul.mubr.bf16.gmra.mxu0 %v1249
      %v1866 = vpop.f32.mrf.mxu0
      %v1867 = vadd.f32 %v461, %v1866
      %v1868 = vpop.f32.mrf.mxu0
      %v1869 = vpop.f32.mrf.mxu0
      %v1870 = vadd.f32 %v461, %v1869
      %v1871 = vpop.f32.mrf.mxu0
      %1872 = vmatprep.mubr.bf16.mxu0 0
      %1873 = vmatmul.mubr.bf16.gmra.mxu0 %v1252
      %v1874 = vpop.f32.mrf.mxu0
      %v1875 = vadd.f32 %v461, %v1874
      %v1876 = vpop.f32.mrf.mxu0
      %v1877 = vpop.f32.mrf.mxu0
      %v1878 = vadd.f32 %v461, %v1877
      %v1879 = vpop.f32.mrf.mxu0
      %1880 = vmatprep.mubr.bf16.mxu0 0
      %1881 = vmatmul.mubr.bf16.gmra.mxu0 %v1255
      %v1882 = vpop.f32.mrf.mxu0
      %v1883 = vadd.f32 %v461, %v1882
      %v1884 = vpop.f32.mrf.mxu0
      %v1885 = vpop.f32.mrf.mxu0
      %v1886 = vadd.f32 %v461, %v1885
      %v1887 = vpop.f32.mrf.mxu0
      %1888 = vmatprep.mubr.bf16.mxu0 0
      %1889 = vmatmul.mubr.bf16.gmra.mxu0 %v1258
      %v1890 = vpop.f32.mrf.mxu0
      %v1891 = vadd.f32 %v461, %v1890
      %v1892 = vpop.f32.mrf.mxu0
      %v1893 = vpop.f32.mrf.mxu0
      %v1894 = vadd.f32 %v461, %v1893
      %v1895 = vpop.f32.mrf.mxu0
      %1896 = vmatprep.mubr.bf16.mxu0 0
      %1897 = vmatmul.mubr.bf16.gmra.mxu0 %v1261
      %v1898 = vpop.f32.mrf.mxu0
      %v1899 = vadd.f32 %v461, %v1898
      %v1900 = vpop.f32.mrf.mxu0
      %v1901 = vpop.f32.mrf.mxu0
      %v1902 = vadd.f32 %v461, %v1901
      %v1903 = vpop.f32.mrf.mxu0
      %1904 = vmatprep.mubr.bf16.mxu0 0
      %1905 = vmatmul.mubr.bf16.gmra.mxu0 %v1264
      %v1906 = vpop.f32.mrf.mxu0
      %v1907 = vadd.f32 %v461, %v1906
      %v1908 = vpop.f32.mrf.mxu0
      %v1909 = vpop.f32.mrf.mxu0
      %v1910 = vadd.f32 %v461, %v1909
      %v1911 = vpop.f32.mrf.mxu0
      %1912 = vmatprep.mubr.bf16.mxu0 0
      %1913 = vmatmul.mubr.bf16.gmra.mxu0 %v1267
      %v1914 = vpop.f32.mrf.mxu0
      %v1915 = vadd.f32 %v461, %v1914
      %v1916 = vpop.f32.mrf.mxu0
      %v1917 = vpop.f32.mrf.mxu0
      %v1918 = vadd.f32 %v461, %v1917
      %v1919 = vpop.f32.mrf.mxu0
      %1920 = vmatprep.mubr.bf16.mxu0 0
      %1921 = vmatmul.mubr.bf16.gmra.mxu0 %v1270
      %v1922 = vpop.f32.mrf.mxu0
      %v1923 = vadd.f32 %v461, %v1922
      %v1924 = vpop.f32.mrf.mxu0
      %v1925 = vpop.f32.mrf.mxu0
      %v1926 = vadd.f32 %v461, %v1925
      %v1927 = vpop.f32.mrf.mxu0
      %1928 = vmatprep.mubr.bf16.mxu0 0
      %1929 = vmatmul.mubr.bf16.gmra.mxu0 %v1273
      %v1930 = vpop.f32.mrf.mxu0
      %v1931 = vadd.f32 %v461, %v1930
      %v1932 = vpop.f32.mrf.mxu0
      %v1933 = vpop.f32.mrf.mxu0
      %v1934 = vadd.f32 %v461, %v1933
      %v1935 = vpop.f32.mrf.mxu0
      %1936 = vmatprep.mubr.bf16.mxu0 0
      %1937 = vmatmul.mubr.bf16.gmra.mxu0 %v1276
      %v1938 = vpop.f32.mrf.mxu0
      %v1939 = vadd.f32 %v461, %v1938
      %v1940 = vpop.f32.mrf.mxu0
      %v1941 = vpop.f32.mrf.mxu0
      %v1942 = vadd.f32 %v461, %v1941
      %v1943 = vpop.f32.mrf.mxu0
      %1944 = vmatprep.mubr.bf16.mxu0 0
      %1945 = vmatmul.mubr.bf16.gmra.mxu0 %v1279
      %v1946 = vpop.f32.mrf.mxu0
      %v1947 = vadd.f32 %v461, %v1946
      %v1948 = vpop.f32.mrf.mxu0
      %v1949 = vpop.f32.mrf.mxu0
      %v1950 = vadd.f32 %v461, %v1949
      %v1951 = vpop.f32.mrf.mxu0
      %1952 = vmatprep.mubr.bf16.mxu0 0
      %1953 = vmatmul.mubr.bf16.gmra.mxu0 %v1282
      %v1954 = vpop.f32.mrf.mxu0
      %v1955 = vadd.f32 %v461, %v1954
      %v1956 = vpop.f32.mrf.mxu0
      %v1957 = vpop.f32.mrf.mxu0
      %v1958 = vadd.f32 %v461, %v1957
      %v1959 = vpop.f32.mrf.mxu0
      %1960 = vmatprep.mubr.bf16.mxu0 0
      %1961 = vmatmul.mubr.bf16.gmra.mxu0 %v1285
      %v1962 = vpop.f32.mrf.mxu0
      %v1963 = vadd.f32 %v461, %v1962
      %v1964 = vpop.f32.mrf.mxu0
      %v1965 = vpop.f32.mrf.mxu0
      %v1966 = vadd.f32 %v461, %v1965
      %v1967 = vpop.f32.mrf.mxu0
      %1968 = vmatprep.mubr.bf16.mxu0 0
      %1969 = vmatmul.mubr.bf16.gmra.mxu0 %v1288
      %v1970 = vpop.f32.mrf.mxu0
      %v1971 = vadd.f32 %v461, %v1970
      %v1972 = vpop.f32.mrf.mxu0
      %v1973 = vpop.f32.mrf.mxu0
      %v1974 = vadd.f32 %v461, %v1973
      %v1975 = vpop.f32.mrf.mxu0
      %1976 = vmatprep.mubr.bf16.mxu0 0
      %1977 = vmatmul.mubr.bf16.gmra.mxu0 %v1291
      %v1978 = vpop.f32.mrf.mxu0
      %v1979 = vadd.f32 %v461, %v1978
      %v1980 = vpop.f32.mrf.mxu0
      %v1981 = vpop.f32.mrf.mxu0
      %v1982 = vadd.f32 %v461, %v1981
      %v1983 = vpop.f32.mrf.mxu0
      %1984 = vmatprep.mubr.bf16.mxu0 0
      %1985 = vmatmul.mubr.bf16.gmra.mxu0 %v1294
      %v1986 = vpop.f32.mrf.mxu0
      %v1987 = vadd.f32 %v461, %v1986
      %v1988 = vpop.f32.mrf.mxu0
      %v1989 = vpop.f32.mrf.mxu0
      %v1990 = vadd.f32 %v461, %v1989
      %v1991 = vpop.f32.mrf.mxu0
      %1992 = vmatprep.mubr.bf16.mxu0 0
      %1993 = vmatmul.mubr.bf16.gmra.mxu0 %v1297
      %v1994 = vpop.f32.mrf.mxu0
      %v1995 = vadd.f32 %v461, %v1994
      %v1996 = vpop.f32.mrf.mxu0
      %v1997 = vpop.f32.mrf.mxu0
      %v1998 = vadd.f32 %v461, %v1997
      %v1999 = vpop.f32.mrf.mxu0
      %2000 = vmatprep.mubr.bf16.mxu0 0
      %2001 = vmatmul.mubr.bf16.gmra.mxu0 %v1300
      %v2002 = vpop.f32.mrf.mxu0
      %v2003 = vadd.f32 %v461, %v2002
      %v2004 = vpop.f32.mrf.mxu0
      %v2005 = vpop.f32.mrf.mxu0
      %v2006 = vadd.f32 %v461, %v2005
      %v2007 = vpop.f32.mrf.mxu0
      %2008 = vmatprep.mubr.bf16.mxu0 0
      %2009 = vmatmul.mubr.bf16.gmra.mxu0 %v1303
      %v2010 = vpop.f32.mrf.mxu0
      %v2011 = vadd.f32 %v461, %v2010
      %v2012 = vpop.f32.mrf.mxu0
      %v2013 = vpop.f32.mrf.mxu0
      %v2014 = vadd.f32 %v461, %v2013
      %v2015 = vpop.f32.mrf.mxu0
      %2016 = vmatprep.mubr.bf16.mxu0 0
      %2017 = vmatmul.mubr.bf16.gmra.mxu0 %v1306
      %v2018 = vpop.f32.mrf.mxu0
      %v2019 = vadd.f32 %v461, %v2018
      %v2020 = vpop.f32.mrf.mxu0
      %v2021 = vpop.f32.mrf.mxu0
      %v2022 = vadd.f32 %v461, %v2021
      %v2023 = vpop.f32.mrf.mxu0
      %2024 = vmatprep.mubr.bf16.mxu0 0
      %2025 = vmatmul.mubr.bf16.gmra.mxu0 %v1309
      %v2026 = vpop.f32.mrf.mxu0
      %v2027 = vadd.f32 %v461, %v2026
      %v2028 = vpop.f32.mrf.mxu0
      %v2029 = vpop.f32.mrf.mxu0
      %v2030 = vadd.f32 %v461, %v2029
      %v2031 = vpop.f32.mrf.mxu0
      %2032 = vmatprep.mubr.bf16.mxu0 0
      %2033 = vmatmul.mubr.bf16.gmra.mxu0 %v1312
      %v2034 = vpop.f32.mrf.mxu0
      %v2035 = vadd.f32 %v461, %v2034
      %v2036 = vpop.f32.mrf.mxu0
      %v2037 = vpop.f32.mrf.mxu0
      %v2038 = vadd.f32 %v461, %v2037
      %v2039 = vpop.f32.mrf.mxu0
      %2040 = vmatprep.mubr.bf16.mxu0 0
      %2041 = vmatmul.mubr.bf16.gmra.mxu0 %v1315
      %v2042 = vpop.f32.mrf.mxu0
      %v2043 = vadd.f32 %v461, %v2042
      %v2044 = vpop.f32.mrf.mxu0
      %v2045 = vpop.f32.mrf.mxu0
      %v2046 = vadd.f32 %v461, %v2045
      %v2047 = vpop.f32.mrf.mxu0
      %2048 = vmatprep.mubr.bf16.mxu0 0
      %2049 = vmatmul.mubr.bf16.gmra.mxu0 %v1318
      %v2050 = vpop.f32.mrf.mxu0
      %v2051 = vadd.f32 %v461, %v2050
      %v2052 = vpop.f32.mrf.mxu0
      %v2053 = vpop.f32.mrf.mxu0
      %v2054 = vadd.f32 %v461, %v2053
      %v2055 = vpop.f32.mrf.mxu0
      %2056 = vmatprep.mubr.bf16.mxu0 0
      %2057 = vmatmul.mubr.bf16.gmra.mxu0 %v1321
      %v2058 = vpop.f32.mrf.mxu0
      %v2059 = vadd.f32 %v461, %v2058
      %v2060 = vpop.f32.mrf.mxu0
      %v2061 = vpop.f32.mrf.mxu0
      %v2062 = vadd.f32 %v461, %v2061
      %v2063 = vpop.f32.mrf.mxu0
      %2064 = vmatprep.mubr.bf16.mxu0 0
      %2065 = vmatmul.mubr.bf16.gmra.mxu0 %v1324
      %v2066 = vpop.f32.mrf.mxu0
      %v2067 = vadd.f32 %v461, %v2066
      %v2068 = vpop.f32.mrf.mxu0
      %v2069 = vpop.f32.mrf.mxu0
      %v2070 = vadd.f32 %v461, %v2069
      %v2071 = vpop.f32.mrf.mxu0
      %2072 = vmatprep.mubr.bf16.mxu0 0
      %2073 = vmatmul.mubr.bf16.gmra.mxu0 %v1327
      %v2074 = vpop.f32.mrf.mxu0
      %v2075 = vadd.f32 %v461, %v2074
      %v2076 = vpop.f32.mrf.mxu0
      %v2077 = vpop.f32.mrf.mxu0
      %v2078 = vadd.f32 %v461, %v2077
      %v2079 = vpop.f32.mrf.mxu0
      %2080 = vmatprep.mubr.bf16.mxu0 0
      %2081 = vmatmul.mubr.bf16.gmra.mxu0 %v1330
      %v2082 = vpop.f32.mrf.mxu0
      %v2083 = vadd.f32 %v461, %v2082
      %v2084 = vpop.f32.mrf.mxu0
      %v2085 = vpop.f32.mrf.mxu0
      %v2086 = vadd.f32 %v461, %v2085
      %v2087 = vpop.f32.mrf.mxu0
      %2088 = vmatprep.mubr.bf16.mxu0 0
      %2089 = vmatmul.mubr.bf16.gmra.mxu0 %v1333
      %v2090 = vpop.f32.mrf.mxu0
      %v2091 = vadd.f32 %v461, %v2090
      %v2092 = vpop.f32.mrf.mxu0
      %v2093 = vpop.f32.mrf.mxu0
      %v2094 = vadd.f32 %v461, %v2093
      %v2095 = vpop.f32.mrf.mxu0
      %2096 = vmatprep.mubr.bf16.mxu0 0
      %2097 = vmatmul.mubr.bf16.gmra.mxu0 %v1336
      %v2098 = vpop.f32.mrf.mxu0
      %v2099 = vadd.f32 %v461, %v2098
      %v2100 = vpop.f32.mrf.mxu0
      %v2101 = vpop.f32.mrf.mxu0
      %v2102 = vadd.f32 %v461, %v2101
      %v2103 = vpop.f32.mrf.mxu0
      %2104 = vmatprep.mubr.bf16.mxu0 0
      %2105 = vmatmul.mubr.bf16.gmra.mxu0 %v1339
      %v2106 = vpop.f32.mrf.mxu0
      %v2107 = vadd.f32 %v461, %v2106
      %v2108 = vpop.f32.mrf.mxu0
      %v2109 = vpop.f32.mrf.mxu0
      %v2110 = vadd.f32 %v461, %v2109
      %v2111 = vpop.f32.mrf.mxu0
      %2112 = vmatprep.mubr.bf16.mxu0 0
      %2113 = vmatmul.mubr.bf16.gmra.mxu0 %v1342
      %v2114 = vpop.f32.mrf.mxu0
      %v2115 = vadd.f32 %v461, %v2114
      %v2116 = vpop.f32.mrf.mxu0
      %v2117 = vpop.f32.mrf.mxu0
      %v2118 = vadd.f32 %v461, %v2117
      %v2119 = vpop.f32.mrf.mxu0
      %2120 = vmatprep.mubr.bf16.mxu0 0
      %2121 = vmatmul.mubr.bf16.gmra.mxu0 %v1345
      %v2122 = vpop.f32.mrf.mxu0
      %v2123 = vadd.f32 %v461, %v2122
      %v2124 = vpop.f32.mrf.mxu0
      %v2125 = vpop.f32.mrf.mxu0
      %v2126 = vadd.f32 %v461, %v2125
      %v2127 = vpop.f32.mrf.mxu0
      %2128 = vmatprep.mubr.bf16.mxu0 0
      %2129 = vmatmul.mubr.bf16.gmra.mxu0 %v1348
      %v2130 = vpop.f32.mrf.mxu0
      %v2131 = vadd.f32 %v461, %v2130
      %v2132 = vpop.f32.mrf.mxu0
      %v2133 = vpop.f32.mrf.mxu0
      %v2134 = vadd.f32 %v461, %v2133
      %v2135 = vpop.f32.mrf.mxu0
      %2136 = vmatprep.mubr.bf16.mxu0 0
      %2137 = vmatmul.mubr.bf16.gmra.mxu0 %v1351
      %v2138 = vpop.f32.mrf.mxu0
      %v2139 = vadd.f32 %v461, %v2138
      %v2140 = vpop.f32.mrf.mxu0
      %v2141 = vpop.f32.mrf.mxu0
      %v2142 = vadd.f32 %v461, %v2141
      %v2143 = vpop.f32.mrf.mxu0
      %2144 = vmatprep.mubr.bf16.mxu0 0
      %2145 = vmatmul.mubr.bf16.gmra.mxu0 %v1354
      %v2146 = vpop.f32.mrf.mxu0
      %v2147 = vadd.f32 %v461, %v2146
      %v2148 = vpop.f32.mrf.mxu0
      %v2149 = vpop.f32.mrf.mxu0
      %v2150 = vadd.f32 %v461, %v2149
      %v2151 = vpop.f32.mrf.mxu0
      %2152 = vmatprep.mubr.bf16.mxu0 0
      %2153 = vmatmul.mubr.bf16.gmra.mxu0 %v1357
      %v2154 = vpop.f32.mrf.mxu0
      %v2155 = vadd.f32 %v461, %v2154
      %v2156 = vpop.f32.mrf.mxu0
      %v2157 = vpop.f32.mrf.mxu0
      %v2158 = vadd.f32 %v461, %v2157
      %v2159 = vpop.f32.mrf.mxu0
      %2160 = vmatprep.mubr.bf16.mxu0 0
      %2161 = vmatmul.mubr.bf16.gmra.mxu0 %v1360
      %v2162 = vpop.f32.mrf.mxu0
      %v2163 = vadd.f32 %v461, %v2162
      %v2164 = vpop.f32.mrf.mxu0
      %v2165 = vpop.f32.mrf.mxu0
      %v2166 = vadd.f32 %v461, %v2165
      %v2167 = vpop.f32.mrf.mxu0
      %2168 = vmatprep.mubr.bf16.mxu0 0
      %2169 = vmatmul.mubr.bf16.gmra.mxu0 %v1363
      %v2170 = vpop.f32.mrf.mxu0
      %v2171 = vadd.f32 %v461, %v2170
      %v2172 = vpop.f32.mrf.mxu0
      %v2173 = vpop.f32.mrf.mxu0
      %v2174 = vadd.f32 %v461, %v2173
      %v2175 = vpop.f32.mrf.mxu0
      %2176 = vmatprep.mubr.bf16.mxu0 0
      %2177 = vmatmul.mubr.bf16.gmra.mxu0 %v1366
      %v2178 = vpop.f32.mrf.mxu0
      %v2179 = vadd.f32 %v461, %v2178
      %v2180 = vpop.f32.mrf.mxu0
      %v2181 = vpop.f32.mrf.mxu0
      %v2182 = vadd.f32 %v461, %v2181
      %v2183 = vpop.f32.mrf.mxu0
      %2184 = vmatprep.mubr.bf16.mxu0 0
      %2185 = vmatmul.mubr.bf16.gmra.mxu0 %v1369
      %v2186 = vpop.f32.mrf.mxu0
      %v2187 = vadd.f32 %v461, %v2186
      %v2188 = vpop.f32.mrf.mxu0
      %v2189 = vpop.f32.mrf.mxu0
      %v2190 = vadd.f32 %v461, %v2189
      %v2191 = vpop.f32.mrf.mxu0
      %2192 = vmatprep.mubr.bf16.mxu0 0
      %2193 = vmatmul.mubr.bf16.gmra.mxu0 %v1372
      %v2194 = vpop.f32.mrf.mxu0
      %v2195 = vadd.f32 %v461, %v2194
      %v2196 = vpop.f32.mrf.mxu0
      %v2197 = vpop.f32.mrf.mxu0
      %v2198 = vadd.f32 %v461, %v2197
      %v2199 = vpop.f32.mrf.mxu0
      %2200 = vmatprep.mubr.bf16.mxu0 0
      %2201 = vmatmul.mubr.bf16.gmra.mxu0 %v1375
      %v2202 = vpop.f32.mrf.mxu0
      %v2203 = vadd.f32 %v461, %v2202
      %v2204 = vpop.f32.mrf.mxu0
      %v2205 = vpop.f32.mrf.mxu0
      %v2206 = vadd.f32 %v461, %v2205
      %v2207 = vpop.f32.mrf.mxu0
      %2208 = vmatprep.mubr.bf16.mxu0 0
      %2209 = vmatmul.mubr.bf16.gmra.mxu0 %v1378
      %v2210 = vpop.f32.mrf.mxu0
      %v2211 = vadd.f32 %v461, %v2210
      %v2212 = vpop.f32.mrf.mxu0
      %v2213 = vpop.f32.mrf.mxu0
      %v2214 = vadd.f32 %v461, %v2213
      %v2215 = vpop.f32.mrf.mxu0
      %2216 = vmatprep.mubr.bf16.mxu0 0
      %2217 = vmatmul.mubr.bf16.gmra.mxu0 %v1381
      %v2218 = vpop.f32.mrf.mxu0
      %v2219 = vadd.f32 %v461, %v2218
      %v2220 = vpop.f32.mrf.mxu0
      %v2221 = vpop.f32.mrf.mxu0
      %v2222 = vadd.f32 %v461, %v2221
      %v2223 = vpop.f32.mrf.mxu0
      %2224 = vmatprep.mubr.bf16.mxu0 0
      %2225 = vmatmul.mubr.bf16.gmra.mxu0 %v1384
      %v2226 = vpop.f32.mrf.mxu0
      %v2227 = vadd.f32 %v461, %v2226
      %v2228 = vpop.f32.mrf.mxu0
      %v2229 = vpop.f32.mrf.mxu0
      %v2230 = vadd.f32 %v461, %v2229
      %v2231 = vpop.f32.mrf.mxu0
      %2232 = vmatprep.mubr.bf16.mxu0 0
      %2233 = vmatmul.mubr.bf16.gmra.mxu0 %v1387
      %v2234 = vpop.f32.mrf.mxu0
      %v2235 = vadd.f32 %v461, %v2234
      %v2236 = vpop.f32.mrf.mxu0
      %v2237 = vpop.f32.mrf.mxu0
      %v2238 = vadd.f32 %v461, %v2237
      %v2239 = vpop.f32.mrf.mxu0
      %2240 = vmatprep.mubr.bf16.mxu0 0
      %2241 = vmatmul.mubr.bf16.gmra.mxu0 %v1390
      %v2242 = vpop.f32.mrf.mxu0
      %v2243 = vadd.f32 %v461, %v2242
      %v2244 = vpop.f32.mrf.mxu0
      %v2245 = vpop.f32.mrf.mxu0
      %v2246 = vadd.f32 %v461, %v2245
      %v2247 = vpop.f32.mrf.mxu0
      %2248 = vmatprep.mubr.bf16.mxu0 0
      %2249 = vmatmul.mubr.bf16.gmra.mxu0 %v1393
      %v2250 = vpop.f32.mrf.mxu0
      %v2251 = vadd.f32 %v461, %v2250
      %v2252 = vpop.f32.mrf.mxu0
      %v2253 = vpop.f32.mrf.mxu0
      %v2254 = vadd.f32 %v461, %v2253
      %v2255 = vpop.f32.mrf.mxu0
      %2256 = vmatprep.mubr.bf16.mxu0 0
      %2257 = vmatmul.mubr.bf16.gmra.mxu0 %v1396
      %v2258 = vpop.f32.mrf.mxu0
      %v2259 = vadd.f32 %v461, %v2258
      %v2260 = vpop.f32.mrf.mxu0
      %v2261 = vpop.f32.mrf.mxu0
      %v2262 = vadd.f32 %v461, %v2261
      %v2263 = vpop.f32.mrf.mxu0
      %2264 = vmatprep.mubr.bf16.mxu0 0
      %2265 = vmatmul.mubr.bf16.gmra.mxu0 %v1399
      %v2266 = vpop.f32.mrf.mxu0
      %v2267 = vadd.f32 %v461, %v2266
      %v2268 = vpop.f32.mrf.mxu0
      %v2269 = vpop.f32.mrf.mxu0
      %v2270 = vadd.f32 %v461, %v2269
      %v2271 = vpop.f32.mrf.mxu0
      %2272 = vmatprep.mubr.bf16.mxu0 0
      %2273 = vmatmul.mubr.bf16.gmra.mxu0 %v1402
      %v2274 = vpop.f32.mrf.mxu0
      %v2275 = vadd.f32 %v461, %v2274
      %v2276 = vpop.f32.mrf.mxu0
      %v2277 = vpop.f32.mrf.mxu0
      %v2278 = vadd.f32 %v461, %v2277
      %v2279 = vpop.f32.mrf.mxu0
      %2280 = vmatprep.mubr.bf16.mxu0 0
      %2281 = vmatmul.mubr.bf16.gmra.mxu0 %v1405
      %v2282 = vpop.f32.mrf.mxu0
      %v2283 = vadd.f32 %v461, %v2282
      %v2284 = vpop.f32.mrf.mxu0
      %v2285 = vpop.f32.mrf.mxu0
      %v2286 = vadd.f32 %v461, %v2285
      %v2287 = vpop.f32.mrf.mxu0
      %2288 = vmatprep.mubr.bf16.mxu0 0
      %2289 = vmatmul.mubr.bf16.gmra.mxu0 %v1408
      %v2290 = vpop.f32.mrf.mxu0
      %v2291 = vadd.f32 %v461, %v2290
      %v2292 = vpop.f32.mrf.mxu0
      %v2293 = vpop.f32.mrf.mxu0
      %v2294 = vadd.f32 %v461, %v2293
      %v2295 = vpop.f32.mrf.mxu0
      %2296 = vmatprep.mubr.bf16.mxu0 0
      %2297 = vmatmul.mubr.bf16.gmra.mxu0 %v1411
      %v2298 = vpop.f32.mrf.mxu0
      %v2299 = vadd.f32 %v461, %v2298
      %v2300 = vpop.f32.mrf.mxu0
      %v2301 = vpop.f32.mrf.mxu0
      %v2302 = vadd.f32 %v461, %v2301
      %v2303 = vpop.f32.mrf.mxu0
      %2304 = vmatprep.mubr.bf16.mxu0 0
      %2305 = vmatmul.mubr.bf16.gmra.mxu0 %v1414
      %v2306 = vpop.f32.mrf.mxu0
      %v2307 = vadd.f32 %v461, %v2306
      %v2308 = vpop.f32.mrf.mxu0
      %v2309 = vpop.f32.mrf.mxu0
      %v2310 = vadd.f32 %v461, %v2309
      %v2311 = vpop.f32.mrf.mxu0
      %2312 = vmatprep.mubr.bf16.mxu0 0
      %2313 = vmatmul.mubr.bf16.gmra.mxu0 %v1417
      %v2314 = vpop.f32.mrf.mxu0
      %v2315 = vadd.f32 %v461, %v2314
      %v2316 = vpop.f32.mrf.mxu0
      %v2317 = vpop.f32.mrf.mxu0
      %v2318 = vadd.f32 %v461, %v2317
      %v2319 = vpop.f32.mrf.mxu0
      %2320 = vmatprep.mubr.bf16.mxu0 0
      %2321 = vmatmul.mubr.bf16.gmra.mxu0 %v1420
      %v2322 = vpop.f32.mrf.mxu0
      %v2323 = vadd.f32 %v461, %v2322
      %v2324 = vpop.f32.mrf.mxu0
      %v2325 = vpop.f32.mrf.mxu0
      %v2326 = vadd.f32 %v461, %v2325
      %v2327 = vpop.f32.mrf.mxu0
      %2328 = vmatprep.mubr.bf16.mxu0 0
      %2329 = vmatmul.mubr.bf16.gmra.mxu0 %v1423
      %v2330 = vpop.f32.mrf.mxu0
      %v2331 = vadd.f32 %v461, %v2330
      %v2332 = vpop.f32.mrf.mxu0
      %v2333 = vpop.f32.mrf.mxu0
      %v2334 = vadd.f32 %v461, %v2333
      %v2335 = vpop.f32.mrf.mxu0
      %2336 = vmatprep.mubr.bf16.mxu0 0
      %2337 = vmatmul.mubr.bf16.gmra.mxu0 %v1426
      %v2338 = vpop.f32.mrf.mxu0
      %v2339 = vadd.f32 %v461, %v2338
      %v2340 = vpop.f32.mrf.mxu0
      %v2341 = vpop.f32.mrf.mxu0
      %v2342 = vadd.f32 %v461, %v2341
      %v2343 = vpop.f32.mrf.mxu0
      %2344 = vmatprep.mubr.bf16.mxu0 0
      %2345 = vmatmul.mubr.bf16.gmra.mxu0 %v1429
      %v2346 = vpop.f32.mrf.mxu0
      %v2347 = vadd.f32 %v461, %v2346
      %v2348 = vpop.f32.mrf.mxu0
      %v2349 = vpop.f32.mrf.mxu0
      %v2350 = vadd.f32 %v461, %v2349
      %v2351 = vpop.f32.mrf.mxu0
      %2352 = vmatprep.mubr.bf16.mxu0 0
      %2353 = vmatmul.mubr.bf16.gmra.mxu0 %v1432
      %v2354 = vpop.f32.mrf.mxu0
      %v2355 = vadd.f32 %v461, %v2354
      %v2356 = vpop.f32.mrf.mxu0
      %v2357 = vpop.f32.mrf.mxu0
      %v2358 = vadd.f32 %v461, %v2357
      %v2359 = vpop.f32.mrf.mxu0
      %2360 = vmatprep.mubr.bf16.mxu0 0
      %2361 = vmatmul.mubr.bf16.gmra.mxu0 %v1435
      %v2362 = vpop.f32.mrf.mxu0
      %v2363 = vadd.f32 %v461, %v2362
      %v2364 = vpop.f32.mrf.mxu0
      %v2365 = vpop.f32.mrf.mxu0
      %v2366 = vadd.f32 %v461, %v2365
      %v2367 = vpop.f32.mrf.mxu0
      %2368 = vmatprep.mubr.bf16.mxu0 0
      %2369 = vmatmul.mubr.bf16.gmra.mxu0 %v1438
      %v2370 = vpop.f32.mrf.mxu0
      %v2371 = vadd.f32 %v461, %v2370
      %v2372 = vpop.f32.mrf.mxu0
      %v2373 = vpop.f32.mrf.mxu0
      %v2374 = vadd.f32 %v461, %v2373
      %v2375 = vpop.f32.mrf.mxu0
      %2376 = vmatprep.mubr.bf16.mxu0 0
      %2377 = vmatmul.mubr.bf16.gmra.mxu0 %v1441
      %v2378 = vpop.f32.mrf.mxu0
      %v2379 = vadd.f32 %v461, %v2378
      %v2380 = vpop.f32.mrf.mxu0
      %v2381 = vpop.f32.mrf.mxu0
      %v2382 = vadd.f32 %v461, %v2381
      %v2383 = vpop.f32.mrf.mxu0
      %2384 = vmatprep.mubr.bf16.mxu0 0
      %2385 = vmatmul.mubr.bf16.gmra.mxu0 %v1444
      %v2386 = vpop.f32.mrf.mxu0
      %v2387 = vadd.f32 %v461, %v2386
      %v2388 = vpop.f32.mrf.mxu0
      %v2389 = vpop.f32.mrf.mxu0
      %v2390 = vadd.f32 %v461, %v2389
      %v2391 = vpop.f32.mrf.mxu0
      %2392 = vmatprep.mubr.bf16.mxu0 0
      %2393 = vmatmul.mubr.bf16.gmra.mxu0 %v1447
      %v2394 = vpop.f32.mrf.mxu0
      %v2395 = vadd.f32 %v461, %v2394
      %v2396 = vpop.f32.mrf.mxu0
      %v2397 = vpop.f32.mrf.mxu0
      %v2398 = vadd.f32 %v461, %v2397
      %v2399 = vpop.f32.mrf.mxu0
      %2400 = vmatprep.mubr.bf16.mxu0 0
      %2401 = vmatmul.mubr.bf16.gmra.mxu0 %v1450
      %v2402 = vpop.f32.mrf.mxu0
      %v2403 = vadd.f32 %v461, %v2402
      %v2404 = vpop.f32.mrf.mxu0
      %v2405 = vpop.f32.mrf.mxu0
      %v2406 = vadd.f32 %v461, %v2405
      %v2407 = vpop.f32.mrf.mxu0
      %2408 = vmatprep.mubr.bf16.mxu0 0
      %2409 = vmatmul.mubr.bf16.gmra.mxu0 %v1453
      %v2410 = vpop.f32.mrf.mxu0
      %v2411 = vadd.f32 %v461, %v2410
      %v2412 = vpop.f32.mrf.mxu0
      %v2413 = vpop.f32.mrf.mxu0
      %v2414 = vadd.f32 %v461, %v2413
      %v2415 = vpop.f32.mrf.mxu0
      %2416 = vmatprep.mubr.bf16.mxu0 0
      %2417 = vmatmul.mubr.bf16.gmra.mxu0 %v1456
      %v2418 = vpop.f32.mrf.mxu0
      %v2419 = vadd.f32 %v461, %v2418
      %v2420 = vpop.f32.mrf.mxu0
      %v2421 = vpop.f32.mrf.mxu0
      %v2422 = vadd.f32 %v461, %v2421
      %v2423 = vpop.f32.mrf.mxu0
      %2424 = vmatprep.mubr.bf16.mxu0 0
      %2425 = vmatmul.mubr.bf16.gmra.mxu0 %v1459
      %v2426 = vpop.f32.mrf.mxu0
      %v2427 = vadd.f32 %v461, %v2426
      %v2428 = vpop.f32.mrf.mxu0
      %v2429 = vpop.f32.mrf.mxu0
      %v2430 = vadd.f32 %v461, %v2429
      %v2431 = vpop.f32.mrf.mxu0
      %2432 = vmatprep.mubr.bf16.mxu0 0
      %2433 = vmatmul.mubr.bf16.gmra.mxu0 %v1462
      %v2434 = vpop.f32.mrf.mxu0
      %v2435 = vadd.f32 %v461, %v2434
      %v2436 = vpop.f32.mrf.mxu0
      %v2437 = vpop.f32.mrf.mxu0
      %v2438 = vadd.f32 %v461, %v2437
      %v2439 = vpop.f32.mrf.mxu0
      %2440 = vmatprep.mubr.bf16.mxu0 0
      %2441 = vmatmul.mubr.bf16.gmra.mxu0 %v1465
      %v2442 = vpop.f32.mrf.mxu0
      %v2443 = vadd.f32 %v461, %v2442
      %v2444 = vpop.f32.mrf.mxu0
      %v2445 = vpop.f32.mrf.mxu0
      %v2446 = vadd.f32 %v461, %v2445
      %v2447 = vpop.f32.mrf.mxu0
      %2448 = vmatprep.mubr.bf16.mxu0 0
      %2449 = vmatmul.mubr.bf16.gmra.mxu0 %v1468
      %v2450 = vpop.f32.mrf.mxu0
      %v2451 = vadd.f32 %v461, %v2450
      %v2452 = vpop.f32.mrf.mxu0
      %v2453 = vpop.f32.mrf.mxu0
      %v2454 = vadd.f32 %v461, %v2453
      %v2455 = vpop.f32.mrf.mxu0
      %2456 = vmatprep.mubr.bf16.mxu0 0
      %2457 = vmatmul.mubr.bf16.gmra.mxu0 %v1471
      %v2458 = vpop.f32.mrf.mxu0
      %v2459 = vadd.f32 %v461, %v2458
      %v2460 = vpop.f32.mrf.mxu0
      %v2461 = vpop.f32.mrf.mxu0
      %v2462 = vadd.f32 %v461, %v2461
      %v2463 = vpop.f32.mrf.mxu0
      %2464 = vmatprep.mubr.bf16.mxu0 0
      %2465 = vmatmul.mubr.bf16.gmra.mxu0 %v1474
      %v2466 = vpop.f32.mrf.mxu0
      %v2467 = vadd.f32 %v461, %v2466
      %v2468 = vpop.f32.mrf.mxu0
      %v2469 = vpop.f32.mrf.mxu0
      %v2470 = vadd.f32 %v461, %v2469
      %v2471 = vpop.f32.mrf.mxu0
      %2472 = vmatprep.mubr.bf16.mxu0 0
      %2473 = vmatmul.mubr.bf16.gmra.mxu0 %v1477
      %v2474 = vpop.f32.mrf.mxu0
      %v2475 = vadd.f32 %v461, %v2474
      %v2476 = vpop.f32.mrf.mxu0
      %v2477 = vpop.f32.mrf.mxu0
      %v2478 = vadd.f32 %v461, %v2477
      %v2479 = vpop.f32.mrf.mxu0
      %2480 = vmatprep.mubr.bf16.mxu0 0
      %2481 = vmatmul.mubr.bf16.gmra.mxu0 %v1480
      %v2482 = vpop.f32.mrf.mxu0
      %v2483 = vadd.f32 %v461, %v2482
      %v2484 = vpop.f32.mrf.mxu0
      %v2485 = vpop.f32.mrf.mxu0
      %v2486 = vadd.f32 %v461, %v2485
      %v2487 = vpop.f32.mrf.mxu0
      %2488 = vmatprep.mubr.bf16.mxu0 0
      %2489 = vmatmul.mubr.bf16.gmra.mxu0 %v1483
      %v2490 = vpop.f32.mrf.mxu0
      %v2491 = vadd.f32 %v461, %v2490
      %v2492 = vpop.f32.mrf.mxu0
      %v2493 = vpop.f32.mrf.mxu0
      %v2494 = vadd.f32 %v461, %v2493
      %v2495 = vpop.f32.mrf.mxu0
      %2496 = vmatprep.mubr.bf16.mxu0 0
      %2497 = vmatmul.mubr.bf16.gmra.mxu0 %v1486
      %v2498 = vpop.f32.mrf.mxu0
      %v2499 = vadd.f32 %v461, %v2498
      %v2500 = vpop.f32.mrf.mxu0
      %v2501 = vpop.f32.mrf.mxu0
      %v2502 = vadd.f32 %v461, %v2501
      %v2503 = vpop.f32.mrf.mxu0
      %2504 = vmatprep.mubr.bf16.mxu0 0
      %2505 = vmatmul.mubr.bf16.gmra.mxu0 %v1489
      %v2506 = vpop.f32.mrf.mxu0
      %v2507 = vadd.f32 %v461, %v2506
      %v2508 = vpop.f32.mrf.mxu0
      %v2509 = vpop.f32.mrf.mxu0
      %v2510 = vadd.f32 %v461, %v2509
      %v2511 = vpop.f32.mrf.mxu0
      %2512 = vmatprep.mubr.bf16.mxu0 0
      %2513 = vmatmul.mubr.bf16.gmra.mxu0 %v1492
      %v2514 = vpop.f32.mrf.mxu0
      %v2515 = vadd.f32 %v461, %v2514
      %v2516 = vpop.f32.mrf.mxu0
      %v2517 = vpop.f32.mrf.mxu0
      %v2518 = vadd.f32 %v461, %v2517
      %v2519 = vpop.f32.mrf.mxu0
      %2520 = vmatprep.mubr.bf16.mxu0 0
      %2521 = vmatmul.mubr.bf16.gmra.mxu0 %v1495
      %v2522 = vpop.f32.mrf.mxu0
      %v2523 = vadd.f32 %v461, %v2522
      %v2524 = vpop.f32.mrf.mxu0
      %v2525 = vpop.f32.mrf.mxu0
      %v2526 = vadd.f32 %v461, %v2525
      %v2527 = vpop.f32.mrf.mxu0
      %2528 = vmatprep.mubr.bf16.mxu0 0
      %2529 = vmatmul.mubr.bf16.gmra.mxu0 %v1498
      %v2530 = vpop.f32.mrf.mxu0
      %v2531 = vadd.f32 %v461, %v2530
      %v2532 = vpop.f32.mrf.mxu0
      %v2533 = vpop.f32.mrf.mxu0
      %v2534 = vadd.f32 %v461, %v2533
      %v2535 = vpop.f32.mrf.mxu0
      %2536 = vmatprep.mubr.bf16.mxu0 0
      %2537 = vmatmul.mubr.bf16.gmra.mxu0 %v1501
      %v2538 = vpop.f32.mrf.mxu0
      %v2539 = vadd.f32 %v461, %v2538
      %v2540 = vpop.f32.mrf.mxu0
      %v2541 = vpop.f32.mrf.mxu0
      %v2542 = vadd.f32 %v461, %v2541
      %v2543 = vpop.f32.mrf.mxu0
      %2544 = vmatprep.mubr.bf16.mxu0 0
      %2545 = vmatmul.mubr.bf16.gmra.mxu0 %v1504
      %v2546 = vpop.f32.mrf.mxu0
      %v2547 = vadd.f32 %v461, %v2546
      %v2548 = vpop.f32.mrf.mxu0
      %v2549 = vpop.f32.mrf.mxu0
      %v2550 = vadd.f32 %v461, %v2549
      %v2551 = vpop.f32.mrf.mxu0
      %2552 = vmatprep.mubr.bf16.mxu0 0
      %2553 = vmatmul.mubr.bf16.gmra.mxu0 %v1507
      %v2554 = vpop.f32.mrf.mxu0
      %v2555 = vadd.f32 %v461, %v2554
      %v2556 = vpop.f32.mrf.mxu0
      %v2557 = vpop.f32.mrf.mxu0
      %v2558 = vadd.f32 %v461, %v2557
      %v2559 = vpop.f32.mrf.mxu0
      %2560 = vmatprep.mubr.bf16.mxu0 0
      %2561 = vmatmul.mubr.bf16.gmra.mxu0 %v1510
      %v2562 = vpop.f32.mrf.mxu0
      %v2563 = vadd.f32 %v461, %v2562
      %v2564 = vpop.f32.mrf.mxu0
      %v2565 = vpop.f32.mrf.mxu0
      %v2566 = vadd.f32 %v461, %v2565
      %v2567 = vpop.f32.mrf.mxu0
      %2568 = vdwg.mxu0
      %v2569 = vtanh.pop %v1547
      %v2570 = vtanh.pop %v1550
      %v2571 = vtanh.pop %v1555
      %v2572 = vtanh.pop %v1558
      %v2573 = vtanh.pop %v1563
      %v2574 = vtanh.pop %v1566
      %v2575 = vtanh.pop %v1571
      %v2576 = vtanh.pop %v1574
      %v2577 = vtanh.pop %v1579
      %v2578 = vtanh.pop %v1582
      %v2579 = vtanh.pop %v1587
      %v2580 = vtanh.pop %v1590
      %v2581 = vtanh.pop %v1595
      %v2582 = vtanh.pop %v1598
      %v2583 = vtanh.pop %v1603
      %v2584 = vtanh.pop %v1606
      %v2585 = vtanh.pop %v1611
      %v2586 = vtanh.pop %v1614
      %v2587 = vtanh.pop %v1619
      %v2588 = vtanh.pop %v1622
      %v2589 = vtanh.pop %v1627
      %v2590 = vtanh.pop %v1630
      %v2591 = vtanh.pop %v1635
      %v2592 = vtanh.pop %v1638
      %v2593 = vtanh.pop %v1643
      %v2594 = vtanh.pop %v1646
      %v2595 = vtanh.pop %v1651
      %v2596 = vtanh.pop %v1654
      %v2597 = vtanh.pop %v1659
      %v2598 = vtanh.pop %v1662
      %v2599 = vtanh.pop %v1667
      %v2600 = vtanh.pop %v1670
      %v2601 = vtanh.pop %v1675
      %v2602 = vtanh.pop %v1678
      %v2603 = vtanh.pop %v1683
      %v2604 = vtanh.pop %v1686
      %v2605 = vtanh.pop %v1691
      %v2606 = vtanh.pop %v1694
      %v2607 = vtanh.pop %v1699
      %v2608 = vtanh.pop %v1702
      %v2609 = vtanh.pop %v1707
      %v2610 = vtanh.pop %v1710
      %v2611 = vtanh.pop %v1715
      %v2612 = vtanh.pop %v1718
      %v2613 = vtanh.pop %v1723
      %v2614 = vtanh.pop %v1726
      %v2615 = vtanh.pop %v1731
      %v2616 = vtanh.pop %v1734
      %v2617 = vtanh.pop %v1739
      %v2618 = vtanh.pop %v1742
      %v2619 = vtanh.pop %v1747
      %v2620 = vtanh.pop %v1750
      %v2621 = vtanh.pop %v1755
      %v2622 = vtanh.pop %v1758
      %v2623 = vtanh.pop %v1763
      %v2624 = vtanh.pop %v1766
      %v2625 = vtanh.pop %v1771
      %v2626 = vtanh.pop %v1774
      %v2627 = vtanh.pop %v1779
      %v2628 = vtanh.pop %v1782
      %v2629 = vtanh.pop %v1787
      %v2630 = vtanh.pop %v1790
      %v2631 = vtanh.pop %v1795
      %v2632 = vtanh.pop %v1798
      %v2633 = vtanh.pop %v1803
      %v2634 = vtanh.pop %v1806
      %v2635 = vtanh.pop %v1811
      %v2636 = vtanh.pop %v1814
      %v2637 = vtanh.pop %v1819
      %v2638 = vtanh.pop %v1822
      %v2639 = vtanh.pop %v1827
      %v2640 = vtanh.pop %v1830
      %v2641 = vtanh.pop %v1835
      %v2642 = vtanh.pop %v1838
      %v2643 = vtanh.pop %v1843
      %v2644 = vtanh.pop %v1846
      %v2645 = vtanh.pop %v1851
      %v2646 = vtanh.pop %v1854
      %v2647 = vtanh.pop %v1859
      %v2648 = vtanh.pop %v1862
      %v2649 = vtanh.pop %v1867
      %v2650 = vtanh.pop %v1870
      %v2651 = vtanh.pop %v1875
      %v2652 = vtanh.pop %v1878
      %v2653 = vtanh.pop %v1883
      %v2654 = vtanh.pop %v1886
      %v2655 = vtanh.pop %v1891
      %v2656 = vtanh.pop %v1894
      %v2657 = vtanh.pop %v1899
      %v2658 = vtanh.pop %v1902
      %v2659 = vtanh.pop %v1907
      %v2660 = vtanh.pop %v1910
      %v2661 = vtanh.pop %v1915
      %v2662 = vtanh.pop %v1918
      %v2663 = vtanh.pop %v1923
      %v2664 = vtanh.pop %v1926
      %v2665 = vtanh.pop %v1931
      %v2666 = vtanh.pop %v1934
      %v2667 = vtanh.pop %v1939
      %v2668 = vtanh.pop %v1942
      %v2669 = vtanh.pop %v1947
      %v2670 = vtanh.pop %v1950
      %v2671 = vtanh.pop %v1955
      %v2672 = vtanh.pop %v1958
      %v2673 = vtanh.pop %v1963
      %v2674 = vtanh.pop %v1966
      %v2675 = vtanh.pop %v1971
      %v2676 = vtanh.pop %v1974
      %v2677 = vtanh.pop %v1979
      %v2678 = vtanh.pop %v1982
      %v2679 = vtanh.pop %v1987
      %v2680 = vtanh.pop %v1990
      %v2681 = vtanh.pop %v1995
      %v2682 = vtanh.pop %v1998
      %v2683 = vtanh.pop %v2003
      %v2684 = vtanh.pop %v2006
      %v2685 = vtanh.pop %v2011
      %v2686 = vtanh.pop %v2014
      %v2687 = vtanh.pop %v2019
      %v2688 = vtanh.pop %v2022
      %v2689 = vtanh.pop %v2027
      %v2690 = vtanh.pop %v2030
      %v2691 = vtanh.pop %v2035
      %v2692 = vtanh.pop %v2038
      %v2693 = vtanh.pop %v2043
      %v2694 = vtanh.pop %v2046
      %v2695 = vtanh.pop %v2051
      %v2696 = vtanh.pop %v2054
      %v2697 = vtanh.pop %v2059
      %v2698 = vtanh.pop %v2062
      %v2699 = vtanh.pop %v2067
      %v2700 = vtanh.pop %v2070
      %v2701 = vtanh.pop %v2075
      %v2702 = vtanh.pop %v2078
      %v2703 = vtanh.pop %v2083
      %v2704 = vtanh.pop %v2086
      %v2705 = vtanh.pop %v2091
      %v2706 = vtanh.pop %v2094
      %v2707 = vtanh.pop %v2099
      %v2708 = vtanh.pop %v2102
      %v2709 = vtanh.pop %v2107
      %v2710 = vtanh.pop %v2110
      %v2711 = vtanh.pop %v2115
      %v2712 = vtanh.pop %v2118
      %v2713 = vtanh.pop %v2123
      %v2714 = vtanh.pop %v2126
      %v2715 = vtanh.pop %v2131
      %v2716 = vtanh.pop %v2134
      %v2717 = vtanh.pop %v2139
      %v2718 = vtanh.pop %v2142
      %v2719 = vtanh.pop %v2147
      %v2720 = vtanh.pop %v2150
      %v2721 = vtanh.pop %v2155
      %v2722 = vtanh.pop %v2158
      %v2723 = vtanh.pop %v2163
      %v2724 = vtanh.pop %v2166
      %v2725 = vtanh.pop %v2171
      %v2726 = vtanh.pop %v2174
      %v2727 = vtanh.pop %v2179
      %v2728 = vtanh.pop %v2182
      %v2729 = vtanh.pop %v2187
      %v2730 = vtanh.pop %v2190
      %v2731 = vtanh.pop %v2195
      %v2732 = vtanh.pop %v2198
      %v2733 = vtanh.pop %v2203
      %v2734 = vtanh.pop %v2206
      %v2735 = vtanh.pop %v2211
      %v2736 = vtanh.pop %v2214
      %v2737 = vtanh.pop %v2219
      %v2738 = vtanh.pop %v2222
      %v2739 = vtanh.pop %v2227
      %v2740 = vtanh.pop %v2230
      %v2741 = vtanh.pop %v2235
      %v2742 = vtanh.pop %v2238
      %v2743 = vtanh.pop %v2243
      %v2744 = vtanh.pop %v2246
      %v2745 = vtanh.pop %v2251
      %v2746 = vtanh.pop %v2254
      %v2747 = vtanh.pop %v2259
      %v2748 = vtanh.pop %v2262
      %v2749 = vtanh.pop %v2267
      %v2750 = vtanh.pop %v2270
      %v2751 = vtanh.pop %v2275
      %v2752 = vtanh.pop %v2278
      %v2753 = vtanh.pop %v2283
      %v2754 = vtanh.pop %v2286
      %v2755 = vtanh.pop %v2291
      %v2756 = vtanh.pop %v2294
      %v2757 = vtanh.pop %v2299
      %v2758 = vtanh.pop %v2302
      %v2759 = vtanh.pop %v2307
      %v2760 = vtanh.pop %v2310
      %v2761 = vtanh.pop %v2315
      %v2762 = vtanh.pop %v2318
      %v2763 = vtanh.pop %v2323
      %v2764 = vtanh.pop %v2326
      %v2765 = vtanh.pop %v2331
      %v2766 = vtanh.pop %v2334
      %v2767 = vtanh.pop %v2339
      %v2768 = vtanh.pop %v2342
      %v2769 = vtanh.pop %v2347
      %v2770 = vtanh.pop %v2350
      %v2771 = vtanh.pop %v2355
      %v2772 = vtanh.pop %v2358
      %v2773 = vtanh.pop %v2363
      %v2774 = vtanh.pop %v2366
      %v2775 = vtanh.pop %v2371
      %v2776 = vtanh.pop %v2374
      %v2777 = vtanh.pop %v2379
      %v2778 = vtanh.pop %v2382
      %v2779 = vtanh.pop %v2387
      %v2780 = vtanh.pop %v2390
      %v2781 = vtanh.pop %v2395
      %v2782 = vtanh.pop %v2398
      %v2783 = vtanh.pop %v2403
      %v2784 = vtanh.pop %v2406
      %v2785 = vtanh.pop %v2411
      %v2786 = vtanh.pop %v2414
      %v2787 = vtanh.pop %v2419
      %v2788 = vtanh.pop %v2422
      %v2789 = vtanh.pop %v2427
      %v2790 = vtanh.pop %v2430
      %v2791 = vtanh.pop %v2435
      %v2792 = vtanh.pop %v2438
      %v2793 = vtanh.pop %v2443
      %v2794 = vtanh.pop %v2446
      %v2795 = vtanh.pop %v2451
      %v2796 = vtanh.pop %v2454
      %v2797 = vtanh.pop %v2459
      %v2798 = vtanh.pop %v2462
      %v2799 = vtanh.pop %v2467
      %v2800 = vtanh.pop %v2470
      %v2801 = vtanh.pop %v2475
      %v2802 = vtanh.pop %v2478
      %v2803 = vtanh.pop %v2483
      %v2804 = vtanh.pop %v2486
      %v2805 = vtanh.pop %v2491
      %v2806 = vtanh.pop %v2494
      %v2807 = vtanh.pop %v2499
      %v2808 = vtanh.pop %v2502
      %v2809 = vtanh.pop %v2507
      %v2810 = vtanh.pop %v2510
      %v2811 = vtanh.pop %v2515
      %v2812 = vtanh.pop %v2518
      %v2813 = vtanh.pop %v2523
      %v2814 = vtanh.pop %v2526
      %v2815 = vtanh.pop %v2531
      %v2816 = vtanh.pop %v2534
      %v2817 = vtanh.pop %v2539
      %v2818 = vtanh.pop %v2542
      %v2819 = vtanh.pop %v2547
      %v2820 = vtanh.pop %v2550
      %v2821 = vtanh.pop %v2555
      %v2822 = vtanh.pop %v2558
      %v2823 = vtanh.pop %v2563
      %v2824 = vtanh.pop %v2566
      %2825 = vst [vmem:[%s190] sm:$0xff] %v2569
      %2826 = vst [vmem:[%s190 + $0x8] sm:$0xff] %v2570
      %2827 = vst [vmem:[%s190 + $0x10] sm:$0xff] %v2571
      %2828 = vst [vmem:[%s190 + $0x18] sm:$0xff] %v2572
      %2829 = vst [vmem:[%s190 + $0x20] sm:$0xff] %v2573
      %2830 = vst [vmem:[%s190 + $0x28] sm:$0xff] %v2574
      %2831 = vst [vmem:[%s190 + $0x30] sm:$0xff] %v2575
      %2832 = vst [vmem:[%s190 + $0x38] sm:$0xff] %v2576
      %2833 = vst [vmem:[%s190 + $0x40] sm:$0xff] %v2577
      %2834 = vst [vmem:[%s190 + $0x48] sm:$0xff] %v2578
      %2835 = vst [vmem:[%s190 + $0x50] sm:$0xff] %v2579
      %2836 = vst [vmem:[%s190 + $0x58] sm:$0xff] %v2580
      %2837 = vst [vmem:[%s190 + $0x60] sm:$0xff] %v2581
      %2838 = vst [vmem:[%s190 + $0x68] sm:$0xff] %v2582
      %2839 = vst [vmem:[%s190 + $0x70] sm:$0xff] %v2583
      %2840 = vst [vmem:[%s190 + $0x78] sm:$0xff] %v2584
      %2841 = vst [vmem:[%s190 + $0x80] sm:$0xff] %v2585
      %2842 = vst [vmem:[%s190 + $0x88] sm:$0xff] %v2586
      %2843 = vst [vmem:[%s190 + $0x90] sm:$0xff] %v2587
      %2844 = vst [vmem:[%s190 + $0x98] sm:$0xff] %v2588
      %2845 = vst [vmem:[%s190 + $0xa0] sm:$0xff] %v2589
      %2846 = vst [vmem:[%s190 + $0xa8] sm:$0xff] %v2590
      %2847 = vst [vmem:[%s190 + $0xb0] sm:$0xff] %v2591
      %2848 = vst [vmem:[%s190 + $0xb8] sm:$0xff] %v2592
      %2849 = vst [vmem:[%s190 + $0xc0] sm:$0xff] %v2593
      %2850 = vst [vmem:[%s190 + $0xc8] sm:$0xff] %v2594
      %2851 = vst [vmem:[%s190 + $0xd0] sm:$0xff] %v2595
      %2852 = vst [vmem:[%s190 + $0xd8] sm:$0xff] %v2596
      %2853 = vst [vmem:[%s190 + $0xe0] sm:$0xff] %v2597
      %2854 = vst [vmem:[%s190 + $0xe8] sm:$0xff] %v2598
      %2855 = vst [vmem:[%s190 + $0xf0] sm:$0xff] %v2599
      %2856 = vst [vmem:[%s190 + $0xf8] sm:$0xff] %v2600
      %2857 = vst [vmem:[%s190 + $0x100] sm:$0xff] %v2601
      %2858 = vst [vmem:[%s190 + $0x108] sm:$0xff] %v2602
      %2859 = vst [vmem:[%s190 + $0x110] sm:$0xff] %v2603
      %2860 = vst [vmem:[%s190 + $0x118] sm:$0xff] %v2604
      %2861 = vst [vmem:[%s190 + $0x120] sm:$0xff] %v2605
      %2862 = vst [vmem:[%s190 + $0x128] sm:$0xff] %v2606
      %2863 = vst [vmem:[%s190 + $0x130] sm:$0xff] %v2607
      %2864 = vst [vmem:[%s190 + $0x138] sm:$0xff] %v2608
      %2865 = vst [vmem:[%s190 + $0x140] sm:$0xff] %v2609
      %2866 = vst [vmem:[%s190 + $0x148] sm:$0xff] %v2610
      %2867 = vst [vmem:[%s190 + $0x150] sm:$0xff] %v2611
      %2868 = vst [vmem:[%s190 + $0x158] sm:$0xff] %v2612
      %2869 = vst [vmem:[%s190 + $0x160] sm:$0xff] %v2613
      %2870 = vst [vmem:[%s190 + $0x168] sm:$0xff] %v2614
      %2871 = vst [vmem:[%s190 + $0x170] sm:$0xff] %v2615
      %2872 = vst [vmem:[%s190 + $0x178] sm:$0xff] %v2616
      %2873 = vst [vmem:[%s190 + $0x180] sm:$0xff] %v2617
      %2874 = vst [vmem:[%s190 + $0x188] sm:$0xff] %v2618
      %2875 = vst [vmem:[%s190 + $0x190] sm:$0xff] %v2619
      %2876 = vst [vmem:[%s190 + $0x198] sm:$0xff] %v2620
      %2877 = vst [vmem:[%s190 + $0x1a0] sm:$0xff] %v2621
      %2878 = vst [vmem:[%s190 + $0x1a8] sm:$0xff] %v2622
      %2879 = vst [vmem:[%s190 + $0x1b0] sm:$0xff] %v2623
      %2880 = vst [vmem:[%s190 + $0x1b8] sm:$0xff] %v2624
      %2881 = vst [vmem:[%s190 + $0x1c0] sm:$0xff] %v2625
      %2882 = vst [vmem:[%s190 + $0x1c8] sm:$0xff] %v2626
      %2883 = vst [vmem:[%s190 + $0x1d0] sm:$0xff] %v2627
      %2884 = vst [vmem:[%s190 + $0x1d8] sm:$0xff] %v2628
      %2885 = vst [vmem:[%s190 + $0x1e0] sm:$0xff] %v2629
      %2886 = vst [vmem:[%s190 + $0x1e8] sm:$0xff] %v2630
      %2887 = vst [vmem:[%s190 + $0x1f0] sm:$0xff] %v2631
      %2888 = vst [vmem:[%s190 + $0x1f8] sm:$0xff] %v2632
      %2889 = vst [vmem:[%s190 + $0x200] sm:$0xff] %v2633
      %2890 = vst [vmem:[%s190 + $0x208] sm:$0xff] %v2634
      %2891 = vst [vmem:[%s190 + $0x210] sm:$0xff] %v2635
      %2892 = vst [vmem:[%s190 + $0x218] sm:$0xff] %v2636
      %2893 = vst [vmem:[%s190 + $0x220] sm:$0xff] %v2637
      %2894 = vst [vmem:[%s190 + $0x228] sm:$0xff] %v2638
      %2895 = vst [vmem:[%s190 + $0x230] sm:$0xff] %v2639
      %2896 = vst [vmem:[%s190 + $0x238] sm:$0xff] %v2640
      %2897 = vst [vmem:[%s190 + $0x240] sm:$0xff] %v2641
      %2898 = vst [vmem:[%s190 + $0x248] sm:$0xff] %v2642
      %2899 = vst [vmem:[%s190 + $0x250] sm:$0xff] %v2643
      %2900 = vst [vmem:[%s190 + $0x258] sm:$0xff] %v2644
      %2901 = vst [vmem:[%s190 + $0x260] sm:$0xff] %v2645
      %2902 = vst [vmem:[%s190 + $0x268] sm:$0xff] %v2646
      %2903 = vst [vmem:[%s190 + $0x270] sm:$0xff] %v2647
      %2904 = vst [vmem:[%s190 + $0x278] sm:$0xff] %v2648
      %2905 = vst [vmem:[%s190 + $0x280] sm:$0xff] %v2649
      %2906 = vst [vmem:[%s190 + $0x288] sm:$0xff] %v2650
      %2907 = vst [vmem:[%s190 + $0x290] sm:$0xff] %v2651
      %2908 = vst [vmem:[%s190 + $0x298] sm:$0xff] %v2652
      %2909 = vst [vmem:[%s190 + $0x2a0] sm:$0xff] %v2653
      %2910 = vst [vmem:[%s190 + $0x2a8] sm:$0xff] %v2654
      %2911 = vst [vmem:[%s190 + $0x2b0] sm:$0xff] %v2655
      %2912 = vst [vmem:[%s190 + $0x2b8] sm:$0xff] %v2656
      %2913 = vst [vmem:[%s190 + $0x2c0] sm:$0xff] %v2657
      %2914 = vst [vmem:[%s190 + $0x2c8] sm:$0xff] %v2658
      %2915 = vst [vmem:[%s190 + $0x2d0] sm:$0xff] %v2659
      %2916 = vst [vmem:[%s190 + $0x2d8] sm:$0xff] %v2660
      %2917 = vst [vmem:[%s190 + $0x2e0] sm:$0xff] %v2661
      %2918 = vst [vmem:[%s190 + $0x2e8] sm:$0xff] %v2662
      %2919 = vst [vmem:[%s190 + $0x2f0] sm:$0xff] %v2663
      %2920 = vst [vmem:[%s190 + $0x2f8] sm:$0xff] %v2664
      %2921 = vst [vmem:[%s190 + $0x300] sm:$0xff] %v2665
      %2922 = vst [vmem:[%s190 + $0x308] sm:$0xff] %v2666
      %2923 = vst [vmem:[%s190 + $0x310] sm:$0xff] %v2667
      %2924 = vst [vmem:[%s190 + $0x318] sm:$0xff] %v2668
      %2925 = vst [vmem:[%s190 + $0x320] sm:$0xff] %v2669
      %2926 = vst [vmem:[%s190 + $0x328] sm:$0xff] %v2670
      %2927 = vst [vmem:[%s190 + $0x330] sm:$0xff] %v2671
      %2928 = vst [vmem:[%s190 + $0x338] sm:$0xff] %v2672
      %2929 = vst [vmem:[%s190 + $0x340] sm:$0xff] %v2673
      %2930 = vst [vmem:[%s190 + $0x348] sm:$0xff] %v2674
      %2931 = vst [vmem:[%s190 + $0x350] sm:$0xff] %v2675
      %2932 = vst [vmem:[%s190 + $0x358] sm:$0xff] %v2676
      %2933 = vst [vmem:[%s190 + $0x360] sm:$0xff] %v2677
      %2934 = vst [vmem:[%s190 + $0x368] sm:$0xff] %v2678
      %2935 = vst [vmem:[%s190 + $0x370] sm:$0xff] %v2679
      %2936 = vst [vmem:[%s190 + $0x378] sm:$0xff] %v2680
      %2937 = vst [vmem:[%s190 + $0x380] sm:$0xff] %v2681
      %2938 = vst [vmem:[%s190 + $0x388] sm:$0xff] %v2682
      %2939 = vst [vmem:[%s190 + $0x390] sm:$0xff] %v2683
      %2940 = vst [vmem:[%s190 + $0x398] sm:$0xff] %v2684
      %2941 = vst [vmem:[%s190 + $0x3a0] sm:$0xff] %v2685
      %2942 = vst [vmem:[%s190 + $0x3a8] sm:$0xff] %v2686
      %2943 = vst [vmem:[%s190 + $0x3b0] sm:$0xff] %v2687
      %2944 = vst [vmem:[%s190 + $0x3b8] sm:$0xff] %v2688
      %2945 = vst [vmem:[%s190 + $0x3c0] sm:$0xff] %v2689
      %2946 = vst [vmem:[%s190 + $0x3c8] sm:$0xff] %v2690
      %2947 = vst [vmem:[%s190 + $0x3d0] sm:$0xff] %v2691
      %2948 = vst [vmem:[%s190 + $0x3d8] sm:$0xff] %v2692
      %2949 = vst [vmem:[%s190 + $0x3e0] sm:$0xff] %v2693
      %2950 = vst [vmem:[%s190 + $0x3e8] sm:$0xff] %v2694
      %2951 = vst [vmem:[%s190 + $0x3f0] sm:$0xff] %v2695
      %2952 = vst [vmem:[%s190 + $0x3f8] sm:$0xff] %v2696
      %2953 = vst [vmem:[%s190 + $0x400] sm:$0xff] %v2697
      %2954 = vst [vmem:[%s190 + $0x408] sm:$0xff] %v2698
      %2955 = vst [vmem:[%s190 + $0x410] sm:$0xff] %v2699
      %2956 = vst [vmem:[%s190 + $0x418] sm:$0xff] %v2700
      %2957 = vst [vmem:[%s190 + $0x420] sm:$0xff] %v2701
      %2958 = vst [vmem:[%s190 + $0x428] sm:$0xff] %v2702
      %2959 = vst [vmem:[%s190 + $0x430] sm:$0xff] %v2703
      %2960 = vst [vmem:[%s190 + $0x438] sm:$0xff] %v2704
      %2961 = vst [vmem:[%s190 + $0x440] sm:$0xff] %v2705
      %2962 = vst [vmem:[%s190 + $0x448] sm:$0xff] %v2706
      %2963 = vst [vmem:[%s190 + $0x450] sm:$0xff] %v2707
      %2964 = vst [vmem:[%s190 + $0x458] sm:$0xff] %v2708
      %2965 = vst [vmem:[%s190 + $0x460] sm:$0xff] %v2709
      %2966 = vst [vmem:[%s190 + $0x468] sm:$0xff] %v2710
      %2967 = vst [vmem:[%s190 + $0x470] sm:$0xff] %v2711
      %2968 = vst [vmem:[%s190 + $0x478] sm:$0xff] %v2712
      %2969 = vst [vmem:[%s190 + $0x480] sm:$0xff] %v2713
      %2970 = vst [vmem:[%s190 + $0x488] sm:$0xff] %v2714
      %2971 = vst [vmem:[%s190 + $0x490] sm:$0xff] %v2715
      %2972 = vst [vmem:[%s190 + $0x498] sm:$0xff] %v2716
      %2973 = vst [vmem:[%s190 + $0x4a0] sm:$0xff] %v2717
      %2974 = vst [vmem:[%s190 + $0x4a8] sm:$0xff] %v2718
      %2975 = vst [vmem:[%s190 + $0x4b0] sm:$0xff] %v2719
      %2976 = vst [vmem:[%s190 + $0x4b8] sm:$0xff] %v2720
      %2977 = vst [vmem:[%s190 + $0x4c0] sm:$0xff] %v2721
      %2978 = vst [vmem:[%s190 + $0x4c8] sm:$0xff] %v2722
      %2979 = vst [vmem:[%s190 + $0x4d0] sm:$0xff] %v2723
      %2980 = vst [vmem:[%s190 + $0x4d8] sm:$0xff] %v2724
      %2981 = vst [vmem:[%s190 + $0x4e0] sm:$0xff] %v2725
      %2982 = vst [vmem:[%s190 + $0x4e8] sm:$0xff] %v2726
      %2983 = vst [vmem:[%s190 + $0x4f0] sm:$0xff] %v2727
      %2984 = vst [vmem:[%s190 + $0x4f8] sm:$0xff] %v2728
      %2985 = vst [vmem:[%s190 + $0x500] sm:$0xff] %v2729
      %2986 = vst [vmem:[%s190 + $0x508] sm:$0xff] %v2730
      %2987 = vst [vmem:[%s190 + $0x510] sm:$0xff] %v2731
      %2988 = vst [vmem:[%s190 + $0x518] sm:$0xff] %v2732
      %2989 = vst [vmem:[%s190 + $0x520] sm:$0xff] %v2733
      %2990 = vst [vmem:[%s190 + $0x528] sm:$0xff] %v2734
      %2991 = vst [vmem:[%s190 + $0x530] sm:$0xff] %v2735
      %2992 = vst [vmem:[%s190 + $0x538] sm:$0xff] %v2736
      %2993 = vst [vmem:[%s190 + $0x540] sm:$0xff] %v2737
      %2994 = vst [vmem:[%s190 + $0x548] sm:$0xff] %v2738
      %2995 = vst [vmem:[%s190 + $0x550] sm:$0xff] %v2739
      %2996 = vst [vmem:[%s190 + $0x558] sm:$0xff] %v2740
      %2997 = vst [vmem:[%s190 + $0x560] sm:$0xff] %v2741
      %2998 = vst [vmem:[%s190 + $0x568] sm:$0xff] %v2742
      %2999 = vst [vmem:[%s190 + $0x570] sm:$0xff] %v2743
      %3000 = vst [vmem:[%s190 + $0x578] sm:$0xff] %v2744
      %3001 = vst [vmem:[%s190 + $0x580] sm:$0xff] %v2745
      %3002 = vst [vmem:[%s190 + $0x588] sm:$0xff] %v2746
      %3003 = vst [vmem:[%s190 + $0x590] sm:$0xff] %v2747
      %3004 = vst [vmem:[%s190 + $0x598] sm:$0xff] %v2748
      %3005 = vst [vmem:[%s190 + $0x5a0] sm:$0xff] %v2749
      %3006 = vst [vmem:[%s190 + $0x5a8] sm:$0xff] %v2750
      %3007 = vst [vmem:[%s190 + $0x5b0] sm:$0xff] %v2751
      %3008 = vst [vmem:[%s190 + $0x5b8] sm:$0xff] %v2752
      %3009 = vst [vmem:[%s190 + $0x5c0] sm:$0xff] %v2753
      %3010 = vst [vmem:[%s190 + $0x5c8] sm:$0xff] %v2754
      %3011 = vst [vmem:[%s190 + $0x5d0] sm:$0xff] %v2755
      %3012 = vst [vmem:[%s190 + $0x5d8] sm:$0xff] %v2756
      %3013 = vst [vmem:[%s190 + $0x5e0] sm:$0xff] %v2757
      %3014 = vst [vmem:[%s190 + $0x5e8] sm:$0xff] %v2758
      %3015 = vst [vmem:[%s190 + $0x5f0] sm:$0xff] %v2759
      %3016 = vst [vmem:[%s190 + $0x5f8] sm:$0xff] %v2760
      %3017 = vst [vmem:[%s190 + $0x600] sm:$0xff] %v2761
      %3018 = vst [vmem:[%s190 + $0x608] sm:$0xff] %v2762
      %3019 = vst [vmem:[%s190 + $0x610] sm:$0xff] %v2763
      %3020 = vst [vmem:[%s190 + $0x618] sm:$0xff] %v2764
      %3021 = vst [vmem:[%s190 + $0x620] sm:$0xff] %v2765
      %3022 = vst [vmem:[%s190 + $0x628] sm:$0xff] %v2766
      %3023 = vst [vmem:[%s190 + $0x630] sm:$0xff] %v2767
      %3024 = vst [vmem:[%s190 + $0x638] sm:$0xff] %v2768
      %3025 = vst [vmem:[%s190 + $0x640] sm:$0xff] %v2769
      %3026 = vst [vmem:[%s190 + $0x648] sm:$0xff] %v2770
      %3027 = vst [vmem:[%s190 + $0x650] sm:$0xff] %v2771
      %3028 = vst [vmem:[%s190 + $0x658] sm:$0xff] %v2772
      %3029 = vst [vmem:[%s190 + $0x660] sm:$0xff] %v2773
      %3030 = vst [vmem:[%s190 + $0x668] sm:$0xff] %v2774
      %3031 = vst [vmem:[%s190 + $0x670] sm:$0xff] %v2775
      %3032 = vst [vmem:[%s190 + $0x678] sm:$0xff] %v2776
      %3033 = vst [vmem:[%s190 + $0x680] sm:$0xff] %v2777
      %3034 = vst [vmem:[%s190 + $0x688] sm:$0xff] %v2778
      %3035 = vst [vmem:[%s190 + $0x690] sm:$0xff] %v2779
      %3036 = vst [vmem:[%s190 + $0x698] sm:$0xff] %v2780
      %3037 = vst [vmem:[%s190 + $0x6a0] sm:$0xff] %v2781
      %3038 = vst [vmem:[%s190 + $0x6a8] sm:$0xff] %v2782
      %3039 = vst [vmem:[%s190 + $0x6b0] sm:$0xff] %v2783
      %3040 = vst [vmem:[%s190 + $0x6b8] sm:$0xff] %v2784
      %3041 = vst [vmem:[%s190 + $0x6c0] sm:$0xff] %v2785
      %3042 = vst [vmem:[%s190 + $0x6c8] sm:$0xff] %v2786
      %3043 = vst [vmem:[%s190 + $0x6d0] sm:$0xff] %v2787
      %3044 = vst [vmem:[%s190 + $0x6d8] sm:$0xff] %v2788
      %3045 = vst [vmem:[%s190 + $0x6e0] sm:$0xff] %v2789
      %3046 = vst [vmem:[%s190 + $0x6e8] sm:$0xff] %v2790
      %3047 = vst [vmem:[%s190 + $0x6f0] sm:$0xff] %v2791
      %3048 = vst [vmem:[%s190 + $0x6f8] sm:$0xff] %v2792
      %3049 = vst [vmem:[%s190 + $0x700] sm:$0xff] %v2793
      %3050 = vst [vmem:[%s190 + $0x708] sm:$0xff] %v2794
      %3051 = vst [vmem:[%s190 + $0x710] sm:$0xff] %v2795
      %3052 = vst [vmem:[%s190 + $0x718] sm:$0xff] %v2796
      %3053 = vst [vmem:[%s190 + $0x720] sm:$0xff] %v2797
      %3054 = vst [vmem:[%s190 + $0x728] sm:$0xff] %v2798
      %3055 = vst [vmem:[%s190 + $0x730] sm:$0xff] %v2799
      %3056 = vst [vmem:[%s190 + $0x738] sm:$0xff] %v2800
      %3057 = vst [vmem:[%s190 + $0x740] sm:$0xff] %v2801
      %3058 = vst [vmem:[%s190 + $0x748] sm:$0xff] %v2802
      %3059 = vst [vmem:[%s190 + $0x750] sm:$0xff] %v2803
      %3060 = vst [vmem:[%s190 + $0x758] sm:$0xff] %v2804
      %3061 = vst [vmem:[%s190 + $0x760] sm:$0xff] %v2805
      %3062 = vst [vmem:[%s190 + $0x768] sm:$0xff] %v2806
      %3063 = vst [vmem:[%s190 + $0x770] sm:$0xff] %v2807
      %3064 = vst [vmem:[%s190 + $0x778] sm:$0xff] %v2808
      %3065 = vst [vmem:[%s190 + $0x780] sm:$0xff] %v2809
      %3066 = vst [vmem:[%s190 + $0x788] sm:$0xff] %v2810
      %3067 = vst [vmem:[%s190 + $0x790] sm:$0xff] %v2811
      %3068 = vst [vmem:[%s190 + $0x798] sm:$0xff] %v2812
      %3069 = vst [vmem:[%s190 + $0x7a0] sm:$0xff] %v2813
      %3070 = vst [vmem:[%s190 + $0x7a8] sm:$0xff] %v2814
      %3071 = vst [vmem:[%s190 + $0x7b0] sm:$0xff] %v2815
      %3072 = vst [vmem:[%s190 + $0x7b8] sm:$0xff] %v2816
      %3073 = vst [vmem:[%s190 + $0x7c0] sm:$0xff] %v2817
      %3074 = vst [vmem:[%s190 + $0x7c8] sm:$0xff] %v2818
      %3075 = vst [vmem:[%s190 + $0x7d0] sm:$0xff] %v2819
      %3076 = vst [vmem:[%s190 + $0x7d8] sm:$0xff] %v2820
      %3077 = vst [vmem:[%s190 + $0x7e0] sm:$0xff] %v2821
      %3078 = vst [vmem:[%s190 + $0x7e8] sm:$0xff] %v2822
      %3079 = vst [vmem:[%s190 + $0x7f0] sm:$0xff] %v2823
      %3080 = vst [vmem:[%s190 + $0x7f8] sm:$0xff] %v2824
      %p3081 = scmp.lt.s32.totalorder %s14, 3
      %s3082 = scalar_select %p3081, %s14, 3
      %s3083 = smul.addr %s3082, 256
      %s3084 = smul.addr %s3083, 8
      %s3085 = scalar_lea.vmem %s3, %s3084
      // Predicated region
      $region33: #{dc_generator_forward.9} parent=31 // pred_check
        %p3086 = pneg %p105
      $region34: #{dc_generator_forward.9} parent=31 // pred_check_branch
        %3088 = sbr.rel (%p3086) target = $region36
      $region35: #{dc_generator_forward.9} parent=31 // pred_region
        _
      $region36: #{dc_generator_forward.9} parent=31 // pred_fallthru
        _
    $region32: #{dc_generator_forward.9} parent=5 // pred_fallthru
      _
    %p3089 = scmp.le.s32.totalorder 2, %s9
    // Predicated region
    $region37: #{dc_generator_forward.9} parent=5 // pred_check
      %p3090 = pneg %p3089
    $region38: #{dc_generator_forward.9} parent=5 // pred_check_branch
      %3092 = sbr.rel (%p3090) target = $region40
    $region39: #{dc_generator_forward.9} parent=5 // pred_region
      %s3093 = ssub.s32 %s9, 2
      // Predicated region
      $region41: #{dc_generator_forward.9} parent=39 // pred_check
        %p3094 = pneg %p111
      $region42: #{dc_generator_forward.9} parent=39 // pred_check_branch
        %3096 = sbr.rel (%p3094) target = $region44
      $region43: #{dc_generator_forward.9} parent=39 // pred_region
        %p3097 = scmp.lt.s32.totalorder %s15, 3
        %s3098 = scalar_select %p3097, %s15, 3
        %s3099 = smul.addr %s3098, 256
        %s3100 = smul.addr %s3099, 8
        %s3101 = scalar_lea.vmem %s3, %s3100
      $region44: #{dc_generator_forward.9} parent=39 // pred_fallthru
        _
    $region40: #{dc_generator_forward.9} parent=5 // pred_fallthru
      _
  $region6: #{dc_generator_forward.9} parent=0 // loop_footer
    %s13 = sadd.s32 1, %s9
  $region7: #{dc_generator_forward.9} parent=0 // loop_footer_branch
    %8 = sbr.rel target = $region3
  $region8: #{dc_generator_forward.9} parent=0 // loop_exit
    _

</llo_original>
